<compile_context>
chip_gen: v5e
topology: v5e:2x2
jax: 0.10.0
libtpu: 0.0.40
codegen_flags: <defaults>
</compile_context>

<pallas_src>
import jax
import jax.numpy as jnp
from jax.experimental import pallas as pl
from jax.experimental.pallas import tpu as pltpu


def _round_up(x, m):
    return ((x + m - 1) // m) * m


def _classifier_kernel(tf_ref, if_ref, wei_ref, wet_ref, w1_ref, b1_ref, w2_ref,
                       b2_ref, out_ref):
    tf = tf_ref[...]           # (tb, D) f32 text-feature tile
    imf = if_ref[...]          # (tb, D) f32 image-feature tile

    # Gate logits ET, EI: bf16 MXU inputs, fp32 accumulation (resident weights).
    et = jnp.dot(tf.astype(jnp.bfloat16), wei_ref[...],
                 preferred_element_type=jnp.float32)
    ei = jnp.dot(imf.astype(jnp.bfloat16), wet_ref[...],
                 preferred_element_type=jnp.float32)

    # k = exp(ET)/(exp(EI)+exp(ET)) == sigmoid(ET-EI): one EUP exp, overflow-safe,
    # and an approximate reciprocal (EUP) instead of a full fp32 divide.
    k = pl.reciprocal(1.0 + jnp.exp(ei - et), approx=True)
    # Gate + GELU elementwise math kept in fp32 (v5e VPU/EUP have no bf16).
    c = k * tf + (1.0 - k) * imf

    # MLP: Linear(D, 3072) -> exact-erf GELU (matches nn.GELU()) -> Linear(3072, O).
    h = jnp.dot(c.astype(jnp.bfloat16), w1_ref[...],
                preferred_element_type=jnp.float32) + b1_ref[...]
    # NOTE: if the accuracy budget allows, jax.nn.gelu(h, approximate=True) moves
    # the transcendental onto the EUP slot (relevant on v6e/v7x where the VALU
    # polynomial for erf can rival MXU time). Exact erf kept for parity with
    # torch.nn.GELU().
    h = 0.5 * h * (1.0 + jax.lax.erf(h * jnp.float32(0.7071067811865476)))
    out = jnp.dot(h.astype(jnp.bfloat16), w2_ref[...],
                  preferred_element_type=jnp.float32) + b2_ref[...]
    out_ref[...] = out.astype(out_ref.dtype)


def prepare_params(params):
    """One-time weight packing: bf16 casts, lane-dense O padding, 2-D biases.

    Do this once (outside the hot path) so classifier_forward never re-reads the
    fp32 weights / re-writes bf16 copies through HBM per call.
    """
    w_ei, w_et, w1, b1, w2, b2 = params
    D = w_ei.shape[0]
    H = w1.shape[1]
    O = w2.shape[1]
    O_pad = _round_up(O, 128)
    return {
        "w_ei": w_ei.astype(jnp.bfloat16),                                   # (D, D)
        "w_et": w_et.astype(jnp.bfloat16),                                   # (D, D)
        "w1": w1.astype(jnp.bfloat16),                                       # (D, H)
        "b1": b1.reshape(1, H).astype(jnp.float32),                          # (1, H)
        "w2": jnp.zeros((H, O_pad), jnp.bfloat16).at[:, :O].set(
            w2.astype(jnp.bfloat16)),                                        # (H, O_pad)
        "b2": jnp.zeros((1, O_pad), jnp.float32).at[:, :O].set(
            b2.reshape(1, O).astype(jnp.float32)),                           # (1, O_pad)
        "input_dim": D,
        "hidden_dim": H,
        "output_dim": O,
        "output_dim_padded": O_pad,
    }


def classifier_forward(text_feature, image_feature, packed, *, tile_b=256):
    """text_feature/image_feature: (B, D) float32. Returns (B, output_dim) float32."""
    B, D = text_feature.shape
    H = packed["hidden_dim"]
    O = packed["output_dim"]
    O_pad = packed["output_dim_padded"]

    # ---------- batch tiling ----------
    Bp = _round_up(max(B, 8), 8)
    tb = min(tile_b, Bp)
    # v7x megacore: give dimension_semantics=("parallel",) >= 2 grid blocks to
    # shard across its two TensorCores whenever the batch allows it.
    if Bp // tb < 2 and Bp >= 16:
        tb = _round_up(pl.cdiv(Bp, 2), 8)

    # ---------- generation-aware VMEM budget ----------
    try:
        vmem_cap = int(pltpu.get_tpu_info().vmem_capacity_bytes)
    except Exception:  # noqa: BLE001 - conservative default if query unavailable
        vmem_cap = 64 << 20
    scoped_cap = int(vmem_cap * 0.85)        # ~54 MiB on v7x, ~108 MiB on v5e/v6e

    # Resident (single-buffered) weight footprint.
    weight_bytes = (2 * D * D + D * H + H * O_pad) * 2 + (H + O_pad) * 4

    def act_bytes(t):
        return (2 * (2 * t * D * 4)        # double-buffered input tiles
                + 2 * (t * O_pad * 4)      # double-buffered output tile
                + t * H * 6                # fp32 + bf16 hidden activation
                + 8 * t * D * 4            # gate temporaries (et/ei/k/c/...)
                + 2 * t * O_pad * 4)       # out temp + headroom

    # Clamp tb so the footprint always fits the scoped budget (never hard-fail).
    while tb > 8 and weight_bytes + act_bytes(tb) + (2 << 20) > scoped_cap:
        tb = max(8, _round_up(tb // 2, 8))

    Bp = _round_up(Bp, tb)
    if Bp != B:
        pad = Bp - B
        text_feature = jnp.pad(text_feature, ((0, pad), (0, 0)))
        image_feature = jnp.pad(image_feature, ((0, pad), (0, 0)))
    n_blocks = Bp // tb

    cost = pl.CostEstimate(
        flops=2 * Bp * (2 * D * D + D * H + H * O_pad),
        transcendentals=Bp * (D + H),
        bytes_accessed=(2 * Bp * D * 4 + Bp * O_pad * 4 + weight_bytes),
    )

    def _run(single_buffer_weights):
        weight_mul = 1 if single_buffer_weights else 2
        vmem_limit = int(min(
            max(weight_mul * weight_bytes + act_bytes(tb) + (4 << 20), 16 << 20),
            scoped_cap))

        def resident_spec(shape):
            idx = lambda i: (0,) * len(shape)  # noqa: E731
            if single_buffer_weights:
                return pl.BlockSpec(shape, idx, pipeline_mode=pl.Buffered(1))
            return pl.BlockSpec(shape, idx)

        in_specs = [
            pl.BlockSpec((tb, D), lambda i: (i, 0)),    # text feature tile
            pl.BlockSpec((tb, D), lambda i: (i, 0)),    # image feature tile
            resident_spec((D, D)),                      # W_ei (resident)
            resident_spec((D, D)),                      # W_et (resident)
            resident_spec((D, H)),                      # MLP W1 (resident)
            resident_spec((1, H)),                      # MLP b1
            resident_spec((H, O_pad)),                  # MLP W2 (resident, O padded)
            resident_spec((1, O_pad)),                  # MLP b2
        ]
        call = pl.pallas_call(
            _classifier_kernel,
            out_shape=jax.ShapeDtypeStruct((Bp, O_pad), jnp.float32),
            grid=(n_blocks,),
            in_specs=in_specs,
            out_specs=pl.BlockSpec((tb, O_pad), lambda i: (i, 0)),
            compiler_params=pltpu.CompilerParams(
                dimension_semantics=("parallel",),
                vmem_limit_bytes=vmem_limit,
            ),
            cost_estimate=cost,
        )
        return call(text_feature, image_feature,
                    packed["w_ei"], packed["w_et"],
                    packed["w1"], packed["b1"], packed["w2"], packed["b2"])

    try:
        out_p = _run(single_buffer_weights=True)
    except Exception:  # noqa: BLE001
        # Fallback for JAX versions without per-BlockSpec Buffered(1) support.
        out_p = _run(single_buffer_weights=False)

    return out_p[:B, :O]


def init_params(key, input_dim, output_dim, hidden=3072):
    k0, k1, k2, k3, k4, k5 = jax.random.split(key, 6)
    scale = 0.02
    w_ei = scale * jax.random.normal(k0, (input_dim, input_dim), jnp.float32)
    w_et = scale * jax.random.normal(k1, (input_dim, input_dim), jnp.float32)
    w1 = scale * jax.random.normal(k2, (input_dim, hidden), jnp.float32)
    b1 = scale * jax.random.normal(k3, (hidden,), jnp.float32)
    w2 = scale * jax.random.normal(k4, (hidden, output_dim), jnp.float32)
    b2 = scale * jax.random.normal(k5, (output_dim,), jnp.float32)
    return (w_ei, w_et, w1, b1, w2, b2)


def _reference(text_feature, image_feature, params):
    """Matches the module's math with the same bf16 weight/MXU-input rounding."""
    w_ei, w_et, w1, b1, w2, b2 = params
    bf = lambda x: x.astype(jnp.bfloat16).astype(jnp.float32)  # noqa: E731
    # Module pairing: ET = ei(text_feature), EI = et(image_feature).
    ET = bf(text_feature) @ bf(w_ei)
    EI = bf(image_feature) @ bf(w_et)
    k = jnp.exp(ET) / (jnp.exp(EI) + jnp.exp(ET))
    c = k * text_feature + (1.0 - k) * image_feature
    h = bf(c) @ bf(w1) + b1
    h = jax.nn.gelu(h, approximate=False)
    return bf(h) @ bf(w2) + b2


if __name__ == "__main__":
    B = 8            # batch
    D = 128          # input_dim (stand-in CLIP feature dim, small for test)
    O = 32           # output_dim (num classes)
    HIDDEN = 3072    # fixed by the module

    key = jax.random.PRNGKey(0)
    k_text, k_img, k_par = jax.random.split(key, 3)
    # Stand-ins for CLIP encoder outputs (float32 features).
    text_feature = jax.random.normal(k_text, (B, D), jnp.float32)
    image_feature = jax.random.normal(k_img, (B, D), jnp.float32)
    params = init_params(k_par, D, O, HIDDEN)

    packed = prepare_params(params)           # one-time weight packing
    out = classifier_forward(text_feature, image_feature, packed)
    out = jax.block_until_ready(out)

    ref = _reference(text_feature, image_feature, params)
    assert out.shape == (B, O)
    assert jnp.allclose(out, ref, atol=1e-3, rtol=1e-3), "mismatch vs reference"

    print("KERNEL_OK")
</pallas_src>

<mosaic_0001>
module attributes {stable_mosaic.version = 11 : i64} {
  func.func @_classifier_kernel(%arg0: i32, %arg1: memref<8x128xf32, #tpu.memory_space<vmem>>, %arg2: memref<8x128xf32, #tpu.memory_space<vmem>>, %arg3: memref<128x128xbf16, #tpu.memory_space<vmem>>, %arg4: memref<128x128xbf16, #tpu.memory_space<vmem>>, %arg5: memref<128x3072xbf16, #tpu.memory_space<vmem>>, %arg6: memref<1x3072xf32, #tpu.memory_space<vmem>>, %arg7: memref<3072x128xbf16, #tpu.memory_space<vmem>>, %arg8: memref<1x128xf32, #tpu.memory_space<vmem>>, %arg9: memref<8x128xf32, #tpu.memory_space<vmem>>) attributes {dimension_semantics = [#tpu.dimension_semantics<parallel>], iteration_bounds = array<i64: 1>, scalar_prefetch = 0 : i64, scratch_operands = 0 : i64, tpu.core_type = #tpu.core_type<tc>, window_params = [{transform_indices = @transform_0, window_bounds = array<i64: 8, 128>}, {transform_indices = @transform_1, window_bounds = array<i64: 8, 128>}, {pipeline_mode = #tpu.pipeline_mode<synchronous>, transform_indices = @transform_2, window_bounds = array<i64: 128, 128>}, {pipeline_mode = #tpu.pipeline_mode<synchronous>, transform_indices = @transform_3, window_bounds = array<i64: 128, 128>}, {pipeline_mode = #tpu.pipeline_mode<synchronous>, transform_indices = @transform_4, window_bounds = array<i64: 128, 3072>}, {pipeline_mode = #tpu.pipeline_mode<synchronous>, transform_indices = @transform_5, window_bounds = array<i64: 1, 3072>}, {pipeline_mode = #tpu.pipeline_mode<synchronous>, transform_indices = @transform_6, window_bounds = array<i64: 3072, 128>}, {pipeline_mode = #tpu.pipeline_mode<synchronous>, transform_indices = @transform_7, window_bounds = array<i64: 1, 128>}, {transform_indices = @transform_8, window_bounds = array<i64: 8, 128>}]} {
    %c0 = arith.constant 0 : index
    %c0_0 = arith.constant 0 : index
    %0 = vector.load %arg1[%c0, %c0_0] : memref<8x128xf32, #tpu.memory_space<vmem>>, vector<8x128xf32>
    %c0_1 = arith.constant 0 : index
    %c0_2 = arith.constant 0 : index
    %1 = vector.load %arg2[%c0_1, %c0_2] : memref<8x128xf32, #tpu.memory_space<vmem>>, vector<8x128xf32>
    %2 = arith.truncf %0 : vector<8x128xf32> to vector<8x128xbf16>
    %c0_3 = arith.constant 0 : index
    %c0_4 = arith.constant 0 : index
    %3 = vector.load %arg3[%c0_3, %c0_4] : memref<128x128xbf16, #tpu.memory_space<vmem>>, vector<128x128xbf16>
    %cst = arith.constant dense<0.000000e+00> : vector<8x128xf32>
    %4 = tpu.matmul %2, %3, %cst {dimension_numbers = #tpu.dot_dimension_numbers<[1], [0], [0], [1], [0, 0, 1, 1], [], []>} : vector<8x128xbf16>, vector<128x128xbf16>, vector<8x128xf32> -> vector<8x128xf32>
    %5 = arith.truncf %1 : vector<8x128xf32> to vector<8x128xbf16>
    %c0_5 = arith.constant 0 : index
    %c0_6 = arith.constant 0 : index
    %6 = vector.load %arg4[%c0_5, %c0_6] : memref<128x128xbf16, #tpu.memory_space<vmem>>, vector<128x128xbf16>
    %cst_7 = arith.constant dense<0.000000e+00> : vector<8x128xf32>
    %7 = tpu.matmul %5, %6, %cst_7 {dimension_numbers = #tpu.dot_dimension_numbers<[1], [0], [0], [1], [0, 0, 1, 1], [], []>} : vector<8x128xbf16>, vector<128x128xbf16>, vector<8x128xf32> -> vector<8x128xf32>
    %8 = arith.subf %7, %4 : vector<8x128xf32>
    %9 = math.exp %8 : vector<8x128xf32>
    %cst_8 = arith.constant 1.000000e+00 : f32
    %10 = vector.broadcast %cst_8 : f32 to vector<8x128xf32>
    %11 = arith.addf %10, %9 : vector<8x128xf32>
    %12 = tpu.reciprocal %11 {approx = true} : vector<8x128xf32> -> vector<8x128xf32>
    %13 = arith.mulf %12, %0 : vector<8x128xf32>
    %cst_9 = arith.constant 1.000000e+00 : f32
    %14 = vector.broadcast %cst_9 : f32 to vector<8x128xf32>
    %15 = arith.subf %14, %12 : vector<8x128xf32>
    %16 = arith.mulf %15, %1 : vector<8x128xf32>
    %17 = arith.addf %13, %16 : vector<8x128xf32>
    %18 = arith.truncf %17 : vector<8x128xf32> to vector<8x128xbf16>
    %c0_10 = arith.constant 0 : index
    %c0_11 = arith.constant 0 : index
    %19 = vector.load %arg5[%c0_10, %c0_11] : memref<128x3072xbf16, #tpu.memory_space<vmem>>, vector<128x3072xbf16>
    %cst_12 = arith.constant dense<0.000000e+00> : vector<8x3072xf32>
    %20 = tpu.matmul %18, %19, %cst_12 {dimension_numbers = #tpu.dot_dimension_numbers<[1], [0], [0], [1], [0, 0, 1, 1], [], []>} : vector<8x128xbf16>, vector<128x3072xbf16>, vector<8x3072xf32> -> vector<8x3072xf32>
    %c0_13 = arith.constant 0 : index
    %c0_14 = arith.constant 0 : index
    %21 = vector.load %arg6[%c0_13, %c0_14] : memref<1x3072xf32, #tpu.memory_space<vmem>>, vector<1x3072xf32>
    %22 = vector.broadcast %21 : vector<1x3072xf32> to vector<8x3072xf32>
    %23 = arith.addf %20, %22 : vector<8x3072xf32>
    %cst_15 = arith.constant 5.000000e-01 : f32
    %24 = vector.broadcast %cst_15 : f32 to vector<8x3072xf32>
    %25 = arith.mulf %24, %23 : vector<8x3072xf32>
    %cst_16 = arith.constant 0.707106769 : f32
    %26 = vector.broadcast %cst_16 : f32 to vector<8x3072xf32>
    %27 = arith.mulf %23, %26 : vector<8x3072xf32>
    %28 = math.erf %27 : vector<8x3072xf32>
    %cst_17 = arith.constant 1.000000e+00 : f32
    %29 = vector.broadcast %cst_17 : f32 to vector<8x3072xf32>
    %30 = arith.addf %29, %28 : vector<8x3072xf32>
    %31 = arith.mulf %25, %30 : vector<8x3072xf32>
    %32 = arith.truncf %31 : vector<8x3072xf32> to vector<8x3072xbf16>
    %c0_18 = arith.constant 0 : index
    %c0_19 = arith.constant 0 : index
    %33 = vector.load %arg7[%c0_18, %c0_19] : memref<3072x128xbf16, #tpu.memory_space<vmem>>, vector<3072x128xbf16>
    %cst_20 = arith.constant dense<0.000000e+00> : vector<8x128xf32>
    %34 = tpu.matmul %32, %33, %cst_20 {dimension_numbers = #tpu.dot_dimension_numbers<[1], [0], [0], [1], [0, 0, 1, 1], [], []>} : vector<8x3072xbf16>, vector<3072x128xbf16>, vector<8x128xf32> -> vector<8x128xf32>
    %c0_21 = arith.constant 0 : index
    %c0_22 = arith.constant 0 : index
    %35 = vector.load %arg8[%c0_21, %c0_22] : memref<1x128xf32, #tpu.memory_space<vmem>>, vector<1x128xf32>
    %36 = vector.broadcast %35 : vector<1x128xf32> to vector<8x128xf32>
    %37 = arith.addf %34, %36 : vector<8x128xf32>
    %c0_23 = arith.constant 0 : index
    %c0_24 = arith.constant 0 : index
    %38 = vector.load %arg9[%c0_23, %c0_24] : memref<8x128xf32, #tpu.memory_space<vmem>>, vector<8x128xf32>
    tpu.vector_store %arg9[%c0_23, %c0_24], %37 {strides = array<i32>} : memref<8x128xf32, #tpu.memory_space<vmem>>, vector<8x128xf32>,
    return
  }
  func.func @transform_0(%arg0: i32) -> (i32, i32) {
    %c0_i32 = arith.constant 0 : i32
    %c0_i32_0 = arith.constant 0 : i32
    return %arg0, %c0_i32 : i32, i32
  }
  func.func @transform_1(%arg0: i32) -> (i32, i32) {
    %c0_i32 = arith.constant 0 : i32
    %c0_i32_0 = arith.constant 0 : i32
    return %arg0, %c0_i32 : i32, i32
  }
  func.func @transform_2(%arg0: i32) -> (i32, i32) {
    %c0_i32 = arith.constant 0 : i32
    %c0_i32_0 = arith.constant 0 : i32
    %c0_i32_1 = arith.constant 0 : i32
    return %c0_i32, %c0_i32_0 : i32, i32
  }
  func.func @transform_3(%arg0: i32) -> (i32, i32) {
    %c0_i32 = arith.constant 0 : i32
    %c0_i32_0 = arith.constant 0 : i32
    %c0_i32_1 = arith.constant 0 : i32
    return %c0_i32, %c0_i32_0 : i32, i32
  }
  func.func @transform_4(%arg0: i32) -> (i32, i32) {
    %c0_i32 = arith.constant 0 : i32
    %c0_i32_0 = arith.constant 0 : i32
    %c0_i32_1 = arith.constant 0 : i32
    return %c0_i32, %c0_i32_0 : i32, i32
  }
  func.func @transform_5(%arg0: i32) -> (i32, i32) {
    %c0_i32 = arith.constant 0 : i32
    %c0_i32_0 = arith.constant 0 : i32
    %c0_i32_1 = arith.constant 0 : i32
    return %c0_i32, %c0_i32_0 : i32, i32
  }
  func.func @transform_6(%arg0: i32) -> (i32, i32) {
    %c0_i32 = arith.constant 0 : i32
    %c0_i32_0 = arith.constant 0 : i32
    %c0_i32_1 = arith.constant 0 : i32
    return %c0_i32, %c0_i32_0 : i32, i32
  }
  func.func @transform_7(%arg0: i32) -> (i32, i32) {
    %c0_i32 = arith.constant 0 : i32
    %c0_i32_0 = arith.constant 0 : i32
    %c0_i32_1 = arith.constant 0 : i32
    return %c0_i32, %c0_i32_0 : i32, i32
  }
  func.func @transform_8(%arg0: i32) -> (i32, i32) {
    %c0_i32 = arith.constant 0 : i32
    %c0_i32_0 = arith.constant 0 : i32
    return %arg0, %c0_i32 : i32, i32
  }
}

module attributes {stable_mosaic.version = 11 : i64} {
  func.func @_classifier_kernel(%arg0: i32, %arg1: memref<8x128xf32, #tpu.memory_space<vmem>>, %arg2: memref<8x128xf32, #tpu.memory_space<vmem>>, %arg3: memref<128x128xbf16, #tpu.memory_space<vmem>>, %arg4: memref<128x128xbf16, #tpu.memory_space<vmem>>, %arg5: memref<128x3072xbf16, #tpu.memory_space<vmem>>, %arg6: memref<1x3072xf32, #tpu.memory_space<vmem>>, %arg7: memref<3072x128xbf16, #tpu.memory_space<vmem>>, %arg8: memref<1x128xf32, #tpu.memory_space<vmem>>, %arg9: memref<8x128xf32, #tpu.memory_space<vmem>>) attributes {dimension_semantics = [#tpu.dimension_semantics<parallel>], iteration_bounds = array<i64: 1>, scalar_prefetch = 0 : i64, scratch_operands = 0 : i64, tpu.core_type = #tpu.core_type<tc>, window_params = [{transform_indices = @transform_0, window_bounds = array<i64: 8, 128>}, {transform_indices = @transform_1, window_bounds = array<i64: 8, 128>}, {pipeline_mode = #tpu.pipeline_mode<synchronous>, transform_indices = @transform_2, window_bounds = array<i64: 128, 128>}, {pipeline_mode = #tpu.pipeline_mode<synchronous>, transform_indices = @transform_3, window_bounds = array<i64: 128, 128>}, {pipeline_mode = #tpu.pipeline_mode<synchronous>, transform_indices = @transform_4, window_bounds = array<i64: 128, 3072>}, {pipeline_mode = #tpu.pipeline_mode<synchronous>, transform_indices = @transform_5, window_bounds = array<i64: 1, 3072>}, {pipeline_mode = #tpu.pipeline_mode<synchronous>, transform_indices = @transform_6, window_bounds = array<i64: 3072, 128>}, {pipeline_mode = #tpu.pipeline_mode<synchronous>, transform_indices = @transform_7, window_bounds = array<i64: 1, 128>}, {transform_indices = @transform_8, window_bounds = array<i64: 8, 128>}]} {
    %c0 = arith.constant 0 : index
    %c0_0 = arith.constant 0 : index
    %0 = vector.load %arg1[%c0, %c0_0] : memref<8x128xf32, #tpu.memory_space<vmem>>, vector<8x128xf32>
    %c0_1 = arith.constant 0 : index
    %c0_2 = arith.constant 0 : index
    %1 = vector.load %arg2[%c0_1, %c0_2] : memref<8x128xf32, #tpu.memory_space<vmem>>, vector<8x128xf32>
    %2 = arith.truncf %0 : vector<8x128xf32> to vector<8x128xbf16>
    %c0_3 = arith.constant 0 : index
    %c0_4 = arith.constant 0 : index
    %3 = vector.load %arg3[%c0_3, %c0_4] : memref<128x128xbf16, #tpu.memory_space<vmem>>, vector<128x128xbf16>
    %cst = arith.constant dense<0.000000e+00> : vector<8x128xf32>
    %4 = tpu.matmul %2, %3, %cst {dimension_numbers = #tpu.dot_dimension_numbers<[1], [0], [0], [1], [0, 0, 1, 1], [], []>} : vector<8x128xbf16>, vector<128x128xbf16>, vector<8x128xf32> -> vector<8x128xf32>
    %5 = arith.truncf %1 : vector<8x128xf32> to vector<8x128xbf16>
    %c0_5 = arith.constant 0 : index
    %c0_6 = arith.constant 0 : index
    %6 = vector.load %arg4[%c0_5, %c0_6] : memref<128x128xbf16, #tpu.memory_space<vmem>>, vector<128x128xbf16>
    %cst_7 = arith.constant dense<0.000000e+00> : vector<8x128xf32>
    %7 = tpu.matmul %5, %6, %cst_7 {dimension_numbers = #tpu.dot_dimension_numbers<[1], [0], [0], [1], [0, 0, 1, 1], [], []>} : vector<8x128xbf16>, vector<128x128xbf16>, vector<8x128xf32> -> vector<8x128xf32>
    %8 = arith.subf %7, %4 : vector<8x128xf32>
    %9 = math.exp %8 : vector<8x128xf32>
    %cst_8 = arith.constant 1.000000e+00 : f32
    %10 = vector.broadcast %cst_8 : f32 to vector<8x128xf32>
    %11 = arith.addf %10, %9 : vector<8x128xf32>
    %12 = tpu.reciprocal %11 {approx = true} : vector<8x128xf32> -> vector<8x128xf32>
    %13 = arith.mulf %12, %0 : vector<8x128xf32>
    %cst_9 = arith.constant 1.000000e+00 : f32
    %14 = vector.broadcast %cst_9 : f32 to vector<8x128xf32>
    %15 = arith.subf %14, %12 : vector<8x128xf32>
    %16 = arith.mulf %15, %1 : vector<8x128xf32>
    %17 = arith.addf %13, %16 : vector<8x128xf32>
    %18 = arith.truncf %17 : vector<8x128xf32> to vector<8x128xbf16>
    %c0_10 = arith.constant 0 : index
    %c0_11 = arith.constant 0 : index
    %19 = vector.load %arg5[%c0_10, %c0_11] : memref<128x3072xbf16, #tpu.memory_space<vmem>>, vector<128x3072xbf16>
    %cst_12 = arith.constant dense<0.000000e+00> : vector<8x3072xf32>
    %20 = tpu.matmul %18, %19, %cst_12 {dimension_numbers = #tpu.dot_dimension_numbers<[1], [0], [0], [1], [0, 0, 1, 1], [], []>} : vector<8x128xbf16>, vector<128x3072xbf16>, vector<8x3072xf32> -> vector<8x3072xf32>
    %c0_13 = arith.constant 0 : index
    %c0_14 = arith.constant 0 : index
    %21 = vector.load %arg6[%c0_13, %c0_14] : memref<1x3072xf32, #tpu.memory_space<vmem>>, vector<1x3072xf32>
    %22 = vector.broadcast %21 : vector<1x3072xf32> to vector<8x3072xf32>
    %23 = arith.addf %20, %22 : vector<8x3072xf32>
    %cst_15 = arith.constant 5.000000e-01 : f32
    %24 = vector.broadcast %cst_15 : f32 to vector<8x3072xf32>
    %25 = arith.mulf %24, %23 : vector<8x3072xf32>
    %cst_16 = arith.constant 0.707106769 : f32
    %26 = vector.broadcast %cst_16 : f32 to vector<8x3072xf32>
    %27 = arith.mulf %23, %26 : vector<8x3072xf32>
    %28 = math.erf %27 : vector<8x3072xf32>
    %cst_17 = arith.constant 1.000000e+00 : f32
    %29 = vector.broadcast %cst_17 : f32 to vector<8x3072xf32>
    %30 = arith.addf %29, %28 : vector<8x3072xf32>
    %31 = arith.mulf %25, %30 : vector<8x3072xf32>
    %32 = arith.truncf %31 : vector<8x3072xf32> to vector<8x3072xbf16>
    %c0_18 = arith.constant 0 : index
    %c0_19 = arith.constant 0 : index
    %33 = vector.load %arg7[%c0_18, %c0_19] : memref<3072x128xbf16, #tpu.memory_space<vmem>>, vector<3072x128xbf16>
    %cst_20 = arith.constant dense<0.000000e+00> : vector<8x128xf32>
    %34 = tpu.matmul %32, %33, %cst_20 {dimension_numbers = #tpu.dot_dimension_numbers<[1], [0], [0], [1], [0, 0, 1, 1], [], []>} : vector<8x3072xbf16>, vector<3072x128xbf16>, vector<8x128xf32> -> vector<8x128xf32>
    %c0_21 = arith.constant 0 : index
    %c0_22 = arith.constant 0 : index
    %35 = vector.load %arg8[%c0_21, %c0_22] : memref<1x128xf32, #tpu.memory_space<vmem>>, vector<1x128xf32>
    %36 = vector.broadcast %35 : vector<1x128xf32> to vector<8x128xf32>
    %37 = arith.addf %34, %36 : vector<8x128xf32>
    %c0_23 = arith.constant 0 : index
    %c0_24 = arith.constant 0 : index
    %38 = vector.load %arg9[%c0_23, %c0_24] : memref<8x128xf32, #tpu.memory_space<vmem>>, vector<8x128xf32>
    tpu.vector_store %arg9[%c0_23, %c0_24], %37 {strides = array<i32>} : memref<8x128xf32, #tpu.memory_space<vmem>>, vector<8x128xf32>,
    return
  }
  func.func @transform_0(%arg0: i32) -> (i32, i32) {
    %c0_i32 = arith.constant 0 : i32
    %c0_i32_0 = arith.constant 0 : i32
    return %arg0, %c0_i32 : i32, i32
  }
  func.func @transform_1(%arg0: i32) -> (i32, i32) {
    %c0_i32 = arith.constant 0 : i32
    %c0_i32_0 = arith.constant 0 : i32
    return %arg0, %c0_i32 : i32, i32
  }
  func.func @transform_2(%arg0: i32) -> (i32, i32) {
    %c0_i32 = arith.constant 0 : i32
    %c0_i32_0 = arith.constant 0 : i32
    %c0_i32_1 = arith.constant 0 : i32
    return %c0_i32, %c0_i32_0 : i32, i32
  }
  func.func @transform_3(%arg0: i32) -> (i32, i32) {
    %c0_i32 = arith.constant 0 : i32
    %c0_i32_0 = arith.constant 0 : i32
    %c0_i32_1 = arith.constant 0 : i32
    return %c0_i32, %c0_i32_0 : i32, i32
  }
  func.func @transform_4(%arg0: i32) -> (i32, i32) {
    %c0_i32 = arith.constant 0 : i32
    %c0_i32_0 = arith.constant 0 : i32
    %c0_i32_1 = arith.constant 0 : i32
    return %c0_i32, %c0_i32_0 : i32, i32
  }
  func.func @transform_5(%arg0: i32) -> (i32, i32) {
    %c0_i32 = arith.constant 0 : i32
    %c0_i32_0 = arith.constant 0 : i32
    %c0_i32_1 = arith.constant 0 : i32
    return %c0_i32, %c0_i32_0 : i32, i32
  }
  func.func @transform_6(%arg0: i32) -> (i32, i32) {
    %c0_i32 = arith.constant 0 : i32
    %c0_i32_0 = arith.constant 0 : i32
    %c0_i32_1 = arith.constant 0 : i32
    return %c0_i32, %c0_i32_0 : i32, i32
  }
  func.func @transform_7(%arg0: i32) -> (i32, i32) {
    %c0_i32 = arith.constant 0 : i32
    %c0_i32_0 = arith.constant 0 : i32
    %c0_i32_1 = arith.constant 0 : i32
    return %c0_i32, %c0_i32_0 : i32, i32
  }
  func.func @transform_8(%arg0: i32) -> (i32, i32) {
    %c0_i32 = arith.constant 0 : i32
    %c0_i32_0 = arith.constant 0 : i32
    return %arg0, %c0_i32 : i32, i32
  }
}

</mosaic_0001>

<llo_original>
// kernel: tpu_custom_call.1
$region0: #{tpu_custom_call.1}
  #allocation0 [shape = 'u32[]', space=smem, size = 0x4, offset = 0x4, fixed_abs, tag = 'smem constant byte address 0x4 - core index']
  #allocation1 [shape = 'u32[72,128]{1,0:T(1,128)}', space=vmem, size = 0x9000, scoped, tag = 'internal scratch']
  %s0 = inlined_call_operand.hbm [shape: f32[8,128], index: 0, kind: input, shape index: {}]
  %s1 = inlined_call_operand.hbm [shape: f32[8,128], index: 1, kind: input, shape index: {}]
  %s2 = inlined_call_operand.hbm [shape: bf16[128,128], index: 2, kind: input, shape index: {}]
  %s3 = inlined_call_operand.hbm [shape: bf16[128,128], index: 3, kind: input, shape index: {}]
  %s4 = inlined_call_operand.hbm [shape: bf16[128,3072], index: 4, kind: input, shape index: {}]
  %s5 = inlined_call_operand.hbm [shape: f32[1,3072], index: 5, kind: input, shape index: {}]
  %s6 = inlined_call_operand.hbm [shape: bf16[3072,128], index: 6, kind: input, shape index: {}]
  %s7 = inlined_call_operand.vmem [shape: f32[1,128], index: 7, kind: input, shape index: {}]
  %s8 = inlined_call_operand.hbm [shape: f32[8,128], index: 8, kind: output, shape index: {}]
  %s9 = sld [smem:[#allocation0]]
  $region70: #{tpu_custom_call.1} parent=0
    _
  %s11 = ssub.s32 1, %s9
  %s12 = scalar_select 0, %s11, %s9
  $region1: #{tpu_custom_call.1} parent=0
    #allocation2 [shape = 'u8[4096]{0}', space=vmem, size = 0x1000, scoped, tag = 'input window, operand 0, single buffered']
    #allocation3 [shape = 's32[1]{0}', space=sflag, size = 0x4, scoped, tag = 'scoped memory for tpu_custom_call.1']
    #allocation4 [shape = 's32[1]{0}', space=sflag, size = 0x4, scoped, tag = 'scoped memory for tpu_custom_call.1']
    #allocation5 [shape = 'u8[4096]{0}', space=vmem, size = 0x1000, scoped, tag = 'input window, operand 1, single buffered']
    #allocation6 [shape = 's32[1]{0}', space=sflag, size = 0x4, scoped, tag = 'scoped memory for tpu_custom_call.1']
    #allocation7 [shape = 'u8[32768]{0}', space=vmem, size = 0x8000, scoped, tag = 'input window, operand 2, single buffered']
    #allocation8 [shape = 'u8[32768]{0}', space=vmem, size = 0x8000, scoped, tag = 'input window, operand 3, single buffered']
    #allocation9 [shape = 's32[1]{0}', space=sflag, size = 0x4, scoped, tag = 'scoped memory for tpu_custom_call.1']
    #allocation10 [shape = 'u8[786432]{0}', space=vmem, size = 0xc0000, scoped, tag = 'input window, operand 4, single buffered']
    #allocation11 [shape = 'u8[12288]{0}', space=vmem, size = 0x3000, scoped, tag = 'input window, operand 5, single buffered']
    #allocation12 [shape = 's32[1]{0}', space=sflag, size = 0x4, scoped, tag = 'scoped memory for tpu_custom_call.1']
    #allocation13 [shape = 'u8[786432]{0}', space=vmem, size = 0xc0000, scoped, tag = 'input window, operand 6, single buffered']
    #allocation14 [shape = 'u8[4096]{0}', space=vmem, size = 0x1000, scoped, tag = 'output window, operand 0, single buffered']
    %13 = vsyncpa [#allocation3], 0
    %14 = vsyncpa [#allocation6], 0
    %15 = vsyncpa [#allocation9], 0
    %16 = vsyncpa [#allocation12], 0
    %17 = vsyncpa [#allocation4], 0
    // Predicated region
    $region2: #{tpu_custom_call.1} parent=1 // pred_check
      _
    $region3: #{tpu_custom_call.1} parent=1 // pred_check_branch
      %19 = sbr.rel (0) target = $region5
    $region4: #{tpu_custom_call.1} parent=1 // pred_region
      %21 = vsyncadd [#allocation3], 0
      %s23 = sshll.u32 %s0, 4
      %s24 = int_to_ptr.hbm [resolvable:$true] %s23
      %s25 = sshll.u32 [#allocation2], 4
      %s26 = int_to_ptr.vmem [resolvable:$true] %s25
      %28 = dma.hbm_to_vmem [thread:$0]  %s24, 128, %s26, [#allocation3]
    $region5: #{tpu_custom_call.1} parent=1 // pred_fallthru
      _
    // Predicated region
    $region6: #{tpu_custom_call.1} parent=1 // pred_check
      _
    $region7: #{tpu_custom_call.1} parent=1 // pred_check_branch
      %30 = sbr.rel (0) target = $region9
    $region8: #{tpu_custom_call.1} parent=1 // pred_region
      %32 = vsyncadd [#allocation6], 0
      %s34 = sshll.u32 %s1, 4
      %s35 = int_to_ptr.hbm [resolvable:$true] %s34
      %s36 = sshll.u32 [#allocation5], 4
      %s37 = int_to_ptr.vmem [resolvable:$true] %s36
      %39 = dma.hbm_to_vmem [thread:$0]  %s35, 128, %s37, [#allocation6]
    $region9: #{tpu_custom_call.1} parent=1 // pred_fallthru
      _
    // Predicated region
    $region10: #{tpu_custom_call.1} parent=1 // pred_check
      _
    $region11: #{tpu_custom_call.1} parent=1 // pred_check_branch
      %41 = sbr.rel (0) target = $region13
    $region12: #{tpu_custom_call.1} parent=1 // pred_region
      %43 = vsyncadd [#allocation6], 0
      %s44 = sshll.u32 %s2, 4
      %s45 = int_to_ptr.hbm [resolvable:$true] %s44
      %s46 = sshll.u32 [#allocation7], 4
      %s47 = int_to_ptr.vmem [resolvable:$true] %s46
      %52 = dma.hbm_to_vmem [thread:$0]  %s45, 1024, %s47, [#allocation6], 64, 64, 4
    $region13: #{tpu_custom_call.1} parent=1 // pred_fallthru
      _
    // Predicated region
    $region14: #{tpu_custom_call.1} parent=1 // pred_check
      _
    $region15: #{tpu_custom_call.1} parent=1 // pred_check_branch
      %54 = sbr.rel (0) target = $region17
    $region16: #{tpu_custom_call.1} parent=1 // pred_region
      %56 = vsyncadd [#allocation9], 0
      %s57 = sshll.u32 %s3, 4
      %s58 = int_to_ptr.hbm [resolvable:$true] %s57
      %s59 = sshll.u32 [#allocation8], 4
      %s60 = int_to_ptr.vmem [resolvable:$true] %s59
      %65 = dma.hbm_to_vmem [thread:$0]  %s58, 1024, %s60, [#allocation9], 64, 64, 4
    $region17: #{tpu_custom_call.1} parent=1 // pred_fallthru
      _
    // Predicated region
    $region18: #{tpu_custom_call.1} parent=1 // pred_check
      _
    $region19: #{tpu_custom_call.1} parent=1 // pred_check_branch
      %67 = sbr.rel (0) target = $region21
    $region20: #{tpu_custom_call.1} parent=1 // pred_region
      %69 = vsyncadd [#allocation9], 0
      %s70 = sshll.u32 %s4, 4
      %s71 = int_to_ptr.hbm [resolvable:$true] %s70
      %s72 = sshll.u32 [#allocation10], 4
      %s73 = int_to_ptr.vmem [resolvable:$true] %s72
      %78 = dma.hbm_to_vmem [thread:$0]  %s71, 24576, %s73, [#allocation9], 1536, 1536, 96
    $region21: #{tpu_custom_call.1} parent=1 // pred_fallthru
      _
    // Predicated region
    $region22: #{tpu_custom_call.1} parent=1 // pred_check
      _
    $region23: #{tpu_custom_call.1} parent=1 // pred_check_branch
      %80 = sbr.rel (0) target = $region25
    $region24: #{tpu_custom_call.1} parent=1 // pred_region
      %82 = vsyncadd [#allocation12], 0
      %s84 = sshll.u32 %s5, 4
      %s85 = int_to_ptr.hbm [resolvable:$true] %s84
      %s86 = sshll.u32 [#allocation11], 4
      %s87 = int_to_ptr.vmem [resolvable:$true] %s86
      %89 = dma.hbm_to_vmem [thread:$0]  %s85, 384, %s87, [#allocation12]
    $region25: #{tpu_custom_call.1} parent=1 // pred_fallthru
      _
    // Predicated region
    $region26: #{tpu_custom_call.1} parent=1 // pred_check
      _
    $region27: #{tpu_custom_call.1} parent=1 // pred_check_branch
      %91 = sbr.rel (0) target = $region29
    $region28: #{tpu_custom_call.1} parent=1 // pred_region
      %93 = vsyncadd [#allocation12], 0
      %s94 = sshll.u32 %s6, 4
      %s95 = int_to_ptr.hbm [resolvable:$true] %s94
      %s96 = sshll.u32 [#allocation13], 4
      %s97 = int_to_ptr.vmem [resolvable:$true] %s96
      %102 = dma.hbm_to_vmem [thread:$0]  %s95, 24576, %s97, [#allocation12], 64, 64, 4
    $region29: #{tpu_custom_call.1} parent=1 // pred_fallthru
      _
    // Predicated region
    $region30: #{tpu_custom_call.1} parent=1 // pred_check
      _
    $region31: #{tpu_custom_call.1} parent=1 // pred_check_branch
      %104 = sbr.rel (0) target = $region33
    $region32: #{tpu_custom_call.1} parent=1 // pred_region
      _
    $region33: #{tpu_custom_call.1} parent=1 // pred_fallthru
      _
    // Predicated region
    $region34: #{tpu_custom_call.1} parent=1 // pred_check
      _
    $region35: #{tpu_custom_call.1} parent=1 // pred_check_branch
      %106 = sbr.rel (0) target = $region37
    $region36: #{tpu_custom_call.1} parent=1 // pred_region
      %108 = dma.done [#allocation3], 128
    $region37: #{tpu_custom_call.1} parent=1 // pred_fallthru
      _
    // Predicated region
    $region38: #{tpu_custom_call.1} parent=1 // pred_check
      _
    $region39: #{tpu_custom_call.1} parent=1 // pred_check_branch
      %110 = sbr.rel (0) target = $region41
    $region40: #{tpu_custom_call.1} parent=1 // pred_region
      %112 = dma.done [#allocation6], 128
    $region41: #{tpu_custom_call.1} parent=1 // pred_fallthru
      _
    // Predicated region
    $region42: #{tpu_custom_call.1} parent=1 // pred_check
      _
    $region43: #{tpu_custom_call.1} parent=1 // pred_check_branch
      %114 = sbr.rel (0) target = $region45
    $region44: #{tpu_custom_call.1} parent=1 // pred_region
      %116 = dma.done [#allocation6], 1024
    $region45: #{tpu_custom_call.1} parent=1 // pred_fallthru
      _
    // Predicated region
    $region46: #{tpu_custom_call.1} parent=1 // pred_check
      _
    $region47: #{tpu_custom_call.1} parent=1 // pred_check_branch
      %118 = sbr.rel (0) target = $region49
    $region48: #{tpu_custom_call.1} parent=1 // pred_region
      %120 = dma.done [#allocation9], 1024
    $region49: #{tpu_custom_call.1} parent=1 // pred_fallthru
      _
    // Predicated region
    $region50: #{tpu_custom_call.1} parent=1 // pred_check
      _
    $region51: #{tpu_custom_call.1} parent=1 // pred_check_branch
      %122 = sbr.rel (0) target = $region53
    $region52: #{tpu_custom_call.1} parent=1 // pred_region
      %124 = dma.done [#allocation9], 24576
    $region53: #{tpu_custom_call.1} parent=1 // pred_fallthru
      _
    // Predicated region
    $region54: #{tpu_custom_call.1} parent=1 // pred_check
      _
    $region55: #{tpu_custom_call.1} parent=1 // pred_check_branch
      %126 = sbr.rel (0) target = $region57
    $region56: #{tpu_custom_call.1} parent=1 // pred_region
      %128 = dma.done [#allocation12], 384
    $region57: #{tpu_custom_call.1} parent=1 // pred_fallthru
      _
    // Predicated region
    $region58: #{tpu_custom_call.1} parent=1 // pred_check
      _
    $region59: #{tpu_custom_call.1} parent=1 // pred_check_branch
      %130 = sbr.rel (0) target = $region61
    $region60: #{tpu_custom_call.1} parent=1 // pred_region
      %132 = dma.done [#allocation12], 24576
    $region61: #{tpu_custom_call.1} parent=1 // pred_fallthru
      _
    %v133 = vld [vmem:[#allocation2] sm:$0xff]
    %v134 = vld [vmem:[#allocation5] sm:$0xff]
    %v135 = vpack.c.bf16 %v133, %v133
    %v136 = vld [vmem:[#allocation7] sm:$0xf]
    %v137 = vld [vmem:[#allocation7 + $0x4] sm:$0xf]
    %v138 = vld [vmem:[#allocation7 + $0x8] sm:$0xf]
    %v139 = vld [vmem:[#allocation7 + $0xc] sm:$0xf]
    %v140 = vld [vmem:[#allocation7 + $0x10] sm:$0xf]
    %v141 = vld [vmem:[#allocation7 + $0x14] sm:$0xf]
    %v142 = vld [vmem:[#allocation7 + $0x18] sm:$0xf]
    %v143 = vld [vmem:[#allocation7 + $0x1c] sm:$0xf]
    %v144 = vld [vmem:[#allocation7 + $0x20] sm:$0xf]
    %v145 = vld [vmem:[#allocation7 + $0x24] sm:$0xf]
    %v146 = vld [vmem:[#allocation7 + $0x28] sm:$0xf]
    %v147 = vld [vmem:[#allocation7 + $0x2c] sm:$0xf]
    %v148 = vld [vmem:[#allocation7 + $0x30] sm:$0xf]
    %v149 = vld [vmem:[#allocation7 + $0x34] sm:$0xf]
    %v150 = vld [vmem:[#allocation7 + $0x38] sm:$0xf]
    %v151 = vld [vmem:[#allocation7 + $0x3c] sm:$0xf]
    %v168 = vunpack.c.l.b16 %v136
    %v169 = vunpack.c.l.b16 %v137
    %v170 = vunpack.c.l.b16 %v138
    %v171 = vunpack.c.l.b16 %v139
    %v172 = vunpack.c.l.b16 %v140
    %v173 = vunpack.c.l.b16 %v141
    %v174 = vunpack.c.l.b16 %v142
    %v175 = vunpack.c.l.b16 %v143
    %v176 = vunpack.c.l.b16 %v144
    %v177 = vunpack.c.l.b16 %v145
    %v178 = vunpack.c.l.b16 %v146
    %v179 = vunpack.c.l.b16 %v147
    %v180 = vunpack.c.l.b16 %v148
    %v181 = vunpack.c.l.b16 %v149
    %v182 = vunpack.c.l.b16 %v150
    %v183 = vunpack.c.l.b16 %v151
    %v184 = vpack.c.b16 %v169, %v168
    %v185 = vpack.c.b16 %v171, %v170
    %v186 = vpack.c.b16 %v173, %v172
    %v187 = vpack.c.b16 %v175, %v174
    %v188 = vpack.c.b16 %v177, %v176
    %v189 = vpack.c.b16 %v179, %v178
    %v190 = vpack.c.b16 %v181, %v180
    %v191 = vpack.c.b16 %v183, %v182
    %200 = vmatpush.bf16.msra.mxu0 %v191
    %201 = vmatpush.bf16.msra.mxu0 %v190
    %202 = vmatpush.bf16.msra.mxu0 %v189
    %203 = vmatpush.bf16.msra.mxu0 %v188
    %204 = vmatpush.bf16.msra.mxu0 %v187
    %205 = vmatpush.bf16.msra.mxu0 %v186
    %206 = vmatpush.bf16.msra.mxu0 %v185
    %207 = vmatpush.bf16.msra.mxu0 %v184
    %208 = vmatmul.bf16.gmra.mxu0 %v135
    %v209 = vpop.f32.mrf.mxu0
    %v210 = vadd.f32 0.0, %v209
    %v211 = vpop.f32.mrf.mxu0
    %212 = vdwg.mxu0
    %v213 = vpack.c.bf16 %v134, %v134
    %v214 = vld [vmem:[#allocation8] sm:$0xf]
    %v215 = vld [vmem:[#allocation8 + $0x4] sm:$0xf]
    %v216 = vld [vmem:[#allocation8 + $0x8] sm:$0xf]
    %v217 = vld [vmem:[#allocation8 + $0xc] sm:$0xf]
    %v218 = vld [vmem:[#allocation8 + $0x10] sm:$0xf]
    %v219 = vld [vmem:[#allocation8 + $0x14] sm:$0xf]
    %v220 = vld [vmem:[#allocation8 + $0x18] sm:$0xf]
    %v221 = vld [vmem:[#allocation8 + $0x1c] sm:$0xf]
    %v222 = vld [vmem:[#allocation8 + $0x20] sm:$0xf]
    %v223 = vld [vmem:[#allocation8 + $0x24] sm:$0xf]
    %v224 = vld [vmem:[#allocation8 + $0x28] sm:$0xf]
    %v225 = vld [vmem:[#allocation8 + $0x2c] sm:$0xf]
    %v226 = vld [vmem:[#allocation8 + $0x30] sm:$0xf]
    %v227 = vld [vmem:[#allocation8 + $0x34] sm:$0xf]
    %v228 = vld [vmem:[#allocation8 + $0x38] sm:$0xf]
    %v229 = vld [vmem:[#allocation8 + $0x3c] sm:$0xf]
    %v246 = vunpack.c.l.b16 %v214
    %v247 = vunpack.c.l.b16 %v215
    %v248 = vunpack.c.l.b16 %v216
    %v249 = vunpack.c.l.b16 %v217
    %v250 = vunpack.c.l.b16 %v218
    %v251 = vunpack.c.l.b16 %v219
    %v252 = vunpack.c.l.b16 %v220
    %v253 = vunpack.c.l.b16 %v221
    %v254 = vunpack.c.l.b16 %v222
    %v255 = vunpack.c.l.b16 %v223
    %v256 = vunpack.c.l.b16 %v224
    %v257 = vunpack.c.l.b16 %v225
    %v258 = vunpack.c.l.b16 %v226
    %v259 = vunpack.c.l.b16 %v227
    %v260 = vunpack.c.l.b16 %v228
    %v261 = vunpack.c.l.b16 %v229
    %v262 = vpack.c.b16 %v247, %v246
    %v263 = vpack.c.b16 %v249, %v248
    %v264 = vpack.c.b16 %v251, %v250
    %v265 = vpack.c.b16 %v253, %v252
    %v266 = vpack.c.b16 %v255, %v254
    %v267 = vpack.c.b16 %v257, %v256
    %v268 = vpack.c.b16 %v259, %v258
    %v269 = vpack.c.b16 %v261, %v260
    %278 = vmatpush.bf16.msra.mxu0 %v269
    %279 = vmatpush.bf16.msra.mxu0 %v268
    %280 = vmatpush.bf16.msra.mxu0 %v267
    %281 = vmatpush.bf16.msra.mxu0 %v266
    %282 = vmatpush.bf16.msra.mxu0 %v265
    %283 = vmatpush.bf16.msra.mxu0 %v264
    %284 = vmatpush.bf16.msra.mxu0 %v263
    %285 = vmatpush.bf16.msra.mxu0 %v262
    %286 = vmatmul.bf16.gmra.mxu0 %v213
    %v287 = vpop.f32.mrf.mxu0
    %v288 = vadd.f32 0.0, %v287
    %v289 = vpop.f32.mrf.mxu0
    %290 = vdwg.mxu0
    %v291 = vsub.f32 %v288, %v210
    %v292 = vmul.f32 %v291, 1.442695
    %v293 = vpow.pop %v292
    %v294 = vadd.f32 %v293, 1.0
    %v295 = vrcp.pop %v294
    %v296 = vmul.f32 %v295, %v133
    %v297 = vsub.f32 1.0, %v295
    %v298 = vmul.f32 %v297, %v134
    %v299 = vadd.f32 %v296, %v298
    %v300 = vpack.c.bf16 %v299, %v299
    %v301 = vld [vmem:[#allocation10] sm:$0xff]
    %v302 = vld [vmem:[#allocation10 + $0x8] sm:$0xff]
    %v303 = vld [vmem:[#allocation10 + $0x10] sm:$0xff]
    %v304 = vld [vmem:[#allocation10 + $0x18] sm:$0xff]
    %v305 = vld [vmem:[#allocation10 + $0x20] sm:$0xff]
    %v306 = vld [vmem:[#allocation10 + $0x28] sm:$0xff]
    %v307 = vld [vmem:[#allocation10 + $0x30] sm:$0xff]
    %v308 = vld [vmem:[#allocation10 + $0x38] sm:$0xff]
    %v309 = vld [vmem:[#allocation10 + $0x40] sm:$0xff]
    %v310 = vld [vmem:[#allocation10 + $0x48] sm:$0xff]
    %v311 = vld [vmem:[#allocation10 + $0x50] sm:$0xff]
    %v312 = vld [vmem:[#allocation10 + $0x58] sm:$0xff]
    %v313 = vld [vmem:[#allocation10 + $0x60] sm:$0xff]
    %v314 = vld [vmem:[#allocation10 + $0x68] sm:$0xff]
    %v315 = vld [vmem:[#allocation10 + $0x70] sm:$0xff]
    %v316 = vld [vmem:[#allocation10 + $0x78] sm:$0xff]
    %v317 = vld [vmem:[#allocation10 + $0x80] sm:$0xff]
    %v318 = vld [vmem:[#allocation10 + $0x88] sm:$0xff]
    %v319 = vld [vmem:[#allocation10 + $0x90] sm:$0xff]
    %v320 = vld [vmem:[#allocation10 + $0x98] sm:$0xff]
    %v321 = vld [vmem:[#allocation10 + $0xa0] sm:$0xff]
    %v322 = vld [vmem:[#allocation10 + $0xa8] sm:$0xff]
    %v323 = vld [vmem:[#allocation10 + $0xb0] sm:$0xff]
    %v324 = vld [vmem:[#allocation10 + $0xb8] sm:$0xff]
    %v325 = vld [vmem:[#allocation10 + $0xc0] sm:$0xff]
    %v326 = vld [vmem:[#allocation10 + $0xc8] sm:$0xff]
    %v327 = vld [vmem:[#allocation10 + $0xd0] sm:$0xff]
    %v328 = vld [vmem:[#allocation10 + $0xd8] sm:$0xff]
    %v329 = vld [vmem:[#allocation10 + $0xe0] sm:$0xff]
    %v330 = vld [vmem:[#allocation10 + $0xe8] sm:$0xff]
    %v331 = vld [vmem:[#allocation10 + $0xf0] sm:$0xff]
    %v332 = vld [vmem:[#allocation10 + $0xf8] sm:$0xff]
    %v333 = vld [vmem:[#allocation10 + $0x100] sm:$0xff]
    %v334 = vld [vmem:[#allocation10 + $0x108] sm:$0xff]
    %v335 = vld [vmem:[#allocation10 + $0x110] sm:$0xff]
    %v336 = vld [vmem:[#allocation10 + $0x118] sm:$0xff]
    %v337 = vld [vmem:[#allocation10 + $0x120] sm:$0xff]
    %v338 = vld [vmem:[#allocation10 + $0x128] sm:$0xff]
    %v339 = vld [vmem:[#allocation10 + $0x130] sm:$0xff]
    %v340 = vld [vmem:[#allocation10 + $0x138] sm:$0xff]
    %v341 = vld [vmem:[#allocation10 + $0x140] sm:$0xff]
    %v342 = vld [vmem:[#allocation10 + $0x148] sm:$0xff]
    %v343 = vld [vmem:[#allocation10 + $0x150] sm:$0xff]
    %v344 = vld [vmem:[#allocation10 + $0x158] sm:$0xff]
    %v345 = vld [vmem:[#allocation10 + $0x160] sm:$0xff]
    %v346 = vld [vmem:[#allocation10 + $0x168] sm:$0xff]
    %v347 = vld [vmem:[#allocation10 + $0x170] sm:$0xff]
    %v348 = vld [vmem:[#allocation10 + $0x178] sm:$0xff]
    %v349 = vld [vmem:[#allocation10 + $0x180] sm:$0xff]
    %v350 = vld [vmem:[#allocation10 + $0x188] sm:$0xff]
    %v351 = vld [vmem:[#allocation10 + $0x190] sm:$0xff]
    %v352 = vld [vmem:[#allocation10 + $0x198] sm:$0xff]
    %v353 = vld [vmem:[#allocation10 + $0x1a0] sm:$0xff]
    %v354 = vld [vmem:[#allocation10 + $0x1a8] sm:$0xff]
    %v355 = vld [vmem:[#allocation10 + $0x1b0] sm:$0xff]
    %v356 = vld [vmem:[#allocation10 + $0x1b8] sm:$0xff]
    %v357 = vld [vmem:[#allocation10 + $0x1c0] sm:$0xff]
    %v358 = vld [vmem:[#allocation10 + $0x1c8] sm:$0xff]
    %v359 = vld [vmem:[#allocation10 + $0x1d0] sm:$0xff]
    %v360 = vld [vmem:[#allocation10 + $0x1d8] sm:$0xff]
    %v361 = vld [vmem:[#allocation10 + $0x1e0] sm:$0xff]
    %v362 = vld [vmem:[#allocation10 + $0x1e8] sm:$0xff]
    %v363 = vld [vmem:[#allocation10 + $0x1f0] sm:$0xff]
    %v364 = vld [vmem:[#allocation10 + $0x1f8] sm:$0xff]
    %v365 = vld [vmem:[#allocation10 + $0x200] sm:$0xff]
    %v366 = vld [vmem:[#allocation10 + $0x208] sm:$0xff]
    %v367 = vld [vmem:[#allocation10 + $0x210] sm:$0xff]
    %v368 = vld [vmem:[#allocation10 + $0x218] sm:$0xff]
    %v369 = vld [vmem:[#allocation10 + $0x220] sm:$0xff]
    %v370 = vld [vmem:[#allocation10 + $0x228] sm:$0xff]
    %v371 = vld [vmem:[#allocation10 + $0x230] sm:$0xff]
    %v372 = vld [vmem:[#allocation10 + $0x238] sm:$0xff]
    %v373 = vld [vmem:[#allocation10 + $0x240] sm:$0xff]
    %v374 = vld [vmem:[#allocation10 + $0x248] sm:$0xff]
    %v375 = vld [vmem:[#allocation10 + $0x250] sm:$0xff]
    %v376 = vld [vmem:[#allocation10 + $0x258] sm:$0xff]
    %v377 = vld [vmem:[#allocation10 + $0x260] sm:$0xff]
    %v378 = vld [vmem:[#allocation10 + $0x268] sm:$0xff]
    %v379 = vld [vmem:[#allocation10 + $0x270] sm:$0xff]
    %v380 = vld [vmem:[#allocation10 + $0x278] sm:$0xff]
    %v381 = vld [vmem:[#allocation10 + $0x280] sm:$0xff]
    %v382 = vld [vmem:[#allocation10 + $0x288] sm:$0xff]
    %v383 = vld [vmem:[#allocation10 + $0x290] sm:$0xff]
    %v384 = vld [vmem:[#allocation10 + $0x298] sm:$0xff]
    %v385 = vld [vmem:[#allocation10 + $0x2a0] sm:$0xff]
    %v386 = vld [vmem:[#allocation10 + $0x2a8] sm:$0xff]
    %v387 = vld [vmem:[#allocation10 + $0x2b0] sm:$0xff]
    %v388 = vld [vmem:[#allocation10 + $0x2b8] sm:$0xff]
    %v389 = vld [vmem:[#allocation10 + $0x2c0] sm:$0xff]
    %v390 = vld [vmem:[#allocation10 + $0x2c8] sm:$0xff]
    %v391 = vld [vmem:[#allocation10 + $0x2d0] sm:$0xff]
    %v392 = vld [vmem:[#allocation10 + $0x2d8] sm:$0xff]
    %v393 = vld [vmem:[#allocation10 + $0x2e0] sm:$0xff]
    %v394 = vld [vmem:[#allocation10 + $0x2e8] sm:$0xff]
    %v395 = vld [vmem:[#allocation10 + $0x2f0] sm:$0xff]
    %v396 = vld [vmem:[#allocation10 + $0x2f8] sm:$0xff]
    %v397 = vld [vmem:[#allocation10 + $0x300] sm:$0xff]
    %v398 = vld [vmem:[#allocation10 + $0x308] sm:$0xff]
    %v399 = vld [vmem:[#allocation10 + $0x310] sm:$0xff]
    %v400 = vld [vmem:[#allocation10 + $0x318] sm:$0xff]
    %v401 = vld [vmem:[#allocation10 + $0x320] sm:$0xff]
    %v402 = vld [vmem:[#allocation10 + $0x328] sm:$0xff]
    %v403 = vld [vmem:[#allocation10 + $0x330] sm:$0xff]
    %v404 = vld [vmem:[#allocation10 + $0x338] sm:$0xff]
    %v405 = vld [vmem:[#allocation10 + $0x340] sm:$0xff]
    %v406 = vld [vmem:[#allocation10 + $0x348] sm:$0xff]
    %v407 = vld [vmem:[#allocation10 + $0x350] sm:$0xff]
    %v408 = vld [vmem:[#allocation10 + $0x358] sm:$0xff]
    %v409 = vld [vmem:[#allocation10 + $0x360] sm:$0xff]
    %v410 = vld [vmem:[#allocation10 + $0x368] sm:$0xff]
    %v411 = vld [vmem:[#allocation10 + $0x370] sm:$0xff]
    %v412 = vld [vmem:[#allocation10 + $0x378] sm:$0xff]
    %v413 = vld [vmem:[#allocation10 + $0x380] sm:$0xff]
    %v414 = vld [vmem:[#allocation10 + $0x388] sm:$0xff]
    %v415 = vld [vmem:[#allocation10 + $0x390] sm:$0xff]
    %v416 = vld [vmem:[#allocation10 + $0x398] sm:$0xff]
    %v417 = vld [vmem:[#allocation10 + $0x3a0] sm:$0xff]
    %v418 = vld [vmem:[#allocation10 + $0x3a8] sm:$0xff]
    %v419 = vld [vmem:[#allocation10 + $0x3b0] sm:$0xff]
    %v420 = vld [vmem:[#allocation10 + $0x3b8] sm:$0xff]
    %v421 = vld [vmem:[#allocation10 + $0x3c0] sm:$0xff]
    %v422 = vld [vmem:[#allocation10 + $0x3c8] sm:$0xff]
    %v423 = vld [vmem:[#allocation10 + $0x3d0] sm:$0xff]
    %v424 = vld [vmem:[#allocation10 + $0x3d8] sm:$0xff]
    %v425 = vld [vmem:[#allocation10 + $0x3e0] sm:$0xff]
    %v426 = vld [vmem:[#allocation10 + $0x3e8] sm:$0xff]
    %v427 = vld [vmem:[#allocation10 + $0x3f0] sm:$0xff]
    %v428 = vld [vmem:[#allocation10 + $0x3f8] sm:$0xff]
    %v429 = vld [vmem:[#allocation10 + $0x400] sm:$0xff]
    %v430 = vld [vmem:[#allocation10 + $0x408] sm:$0xff]
    %v431 = vld [vmem:[#allocation10 + $0x410] sm:$0xff]
    %v432 = vld [vmem:[#allocation10 + $0x418] sm:$0xff]
    %v433 = vld [vmem:[#allocation10 + $0x420] sm:$0xff]
    %v434 = vld [vmem:[#allocation10 + $0x428] sm:$0xff]
    %v435 = vld [vmem:[#allocation10 + $0x430] sm:$0xff]
    %v436 = vld [vmem:[#allocation10 + $0x438] sm:$0xff]
    %v437 = vld [vmem:[#allocation10 + $0x440] sm:$0xff]
    %v438 = vld [vmem:[#allocation10 + $0x448] sm:$0xff]
    %v439 = vld [vmem:[#allocation10 + $0x450] sm:$0xff]
    %v440 = vld [vmem:[#allocation10 + $0x458] sm:$0xff]
    %v441 = vld [vmem:[#allocation10 + $0x460] sm:$0xff]
    %v442 = vld [vmem:[#allocation10 + $0x468] sm:$0xff]
    %v443 = vld [vmem:[#allocation10 + $0x470] sm:$0xff]
    %v444 = vld [vmem:[#allocation10 + $0x478] sm:$0xff]
    %v445 = vld [vmem:[#allocation10 + $0x480] sm:$0xff]
    %v446 = vld [vmem:[#allocation10 + $0x488] sm:$0xff]
    %v447 = vld [vmem:[#allocation10 + $0x490] sm:$0xff]
    %v448 = vld [vmem:[#allocation10 + $0x498] sm:$0xff]
    %v449 = vld [vmem:[#allocation10 + $0x4a0] sm:$0xff]
    %v450 = vld [vmem:[#allocation10 + $0x4a8] sm:$0xff]
    %v451 = vld [vmem:[#allocation10 + $0x4b0] sm:$0xff]
    %v452 = vld [vmem:[#allocation10 + $0x4b8] sm:$0xff]
    %v453 = vld [vmem:[#allocation10 + $0x4c0] sm:$0xff]
    %v454 = vld [vmem:[#allocation10 + $0x4c8] sm:$0xff]
    %v455 = vld [vmem:[#allocation10 + $0x4d0] sm:$0xff]
    %v456 = vld [vmem:[#allocation10 + $0x4d8] sm:$0xff]
    %v457 = vld [vmem:[#allocation10 + $0x4e0] sm:$0xff]
    %v458 = vld [vmem:[#allocation10 + $0x4e8] sm:$0xff]
    %v459 = vld [vmem:[#allocation10 + $0x4f0] sm:$0xff]
    %v460 = vld [vmem:[#allocation10 + $0x4f8] sm:$0xff]
    %v461 = vld [vmem:[#allocation10 + $0x500] sm:$0xff]
    %v462 = vld [vmem:[#allocation10 + $0x508] sm:$0xff]
    %v463 = vld [vmem:[#allocation10 + $0x510] sm:$0xff]
    %v464 = vld [vmem:[#allocation10 + $0x518] sm:$0xff]
    %v465 = vld [vmem:[#allocation10 + $0x520] sm:$0xff]
    %v466 = vld [vmem:[#allocation10 + $0x528] sm:$0xff]
    %v467 = vld [vmem:[#allocation10 + $0x530] sm:$0xff]
    %v468 = vld [vmem:[#allocation10 + $0x538] sm:$0xff]
    %v469 = vld [vmem:[#allocation10 + $0x540] sm:$0xff]
    %v470 = vld [vmem:[#allocation10 + $0x548] sm:$0xff]
    %v471 = vld [vmem:[#allocation10 + $0x550] sm:$0xff]
    %v472 = vld [vmem:[#allocation10 + $0x558] sm:$0xff]
    %v473 = vld [vmem:[#allocation10 + $0x560] sm:$0xff]
    %v474 = vld [vmem:[#allocation10 + $0x568] sm:$0xff]
    %v475 = vld [vmem:[#allocation10 + $0x570] sm:$0xff]
    %v476 = vld [vmem:[#allocation10 + $0x578] sm:$0xff]
    %v477 = vld [vmem:[#allocation10 + $0x580] sm:$0xff]
    %v478 = vld [vmem:[#allocation10 + $0x588] sm:$0xff]
    %v479 = vld [vmem:[#allocation10 + $0x590] sm:$0xff]
    %v480 = vld [vmem:[#allocation10 + $0x598] sm:$0xff]
    %v481 = vld [vmem:[#allocation10 + $0x5a0] sm:$0xff]
    %v482 = vld [vmem:[#allocation10 + $0x5a8] sm:$0xff]
    %v483 = vld [vmem:[#allocation10 + $0x5b0] sm:$0xff]
    %v484 = vld [vmem:[#allocation10 + $0x5b8] sm:$0xff]
    %v485 = vld [vmem:[#allocation10 + $0x5c0] sm:$0xff]
    %v486 = vld [vmem:[#allocation10 + $0x5c8] sm:$0xff]
    %v487 = vld [vmem:[#allocation10 + $0x5d0] sm:$0xff]
    %v488 = vld [vmem:[#allocation10 + $0x5d8] sm:$0xff]
    %v489 = vld [vmem:[#allocation10 + $0x5e0] sm:$0xff]
    %v490 = vld [vmem:[#allocation10 + $0x5e8] sm:$0xff]
    %v491 = vld [vmem:[#allocation10 + $0x5f0] sm:$0xff]
    %v492 = vld [vmem:[#allocation10 + $0x5f8] sm:$0xff]
    %v493 = vld [vmem:[#allocation11] sm:$0xff]
    %v494 = vld [vmem:[#allocation11 + $0x8] sm:$0xff]
    %v495 = vld [vmem:[#allocation11 + $0x10] sm:$0xff]
    %v499 = vperm.slane %v493, 0
    %v500 = vperm.slane %v493, 1
    %v501 = vperm.slane %v493, 2
    %v502 = vperm.slane %v493, 3
    %v503 = vperm.slane %v493, 4
    %v504 = vperm.slane %v493, 5
    %v505 = vperm.slane %v493, 6
    %v506 = vperm.slane %v493, 7
    %v507 = vperm.slane %v494, 0
    %v508 = vperm.slane %v494, 1
    %v509 = vperm.slane %v494, 2
    %v510 = vperm.slane %v494, 3
    %v511 = vperm.slane %v494, 4
    %v512 = vperm.slane %v494, 5
    %v513 = vperm.slane %v494, 6
    %v514 = vperm.slane %v494, 7
    %v515 = vperm.slane %v495, 0
    %v516 = vperm.slane %v495, 1
    %v517 = vperm.slane %v495, 2
    %v518 = vperm.slane %v495, 3
    %v519 = vperm.slane %v495, 4
    %v520 = vperm.slane %v495, 5
    %v521 = vperm.slane %v495, 6
    %v522 = vperm.slane %v495, 7
    %v739 = vunpack.c.l.b16 %v301
    %v740 = vunpack.c.h.b16 %v301
    %v741 = vunpack.c.l.b16 %v302
    %v742 = vunpack.c.h.b16 %v302
    %v743 = vunpack.c.l.b16 %v303
    %v744 = vunpack.c.h.b16 %v303
    %v745 = vunpack.c.l.b16 %v304
    %v746 = vunpack.c.h.b16 %v304
    %v747 = vunpack.c.l.b16 %v305
    %v748 = vunpack.c.h.b16 %v305
    %v749 = vunpack.c.l.b16 %v306
    %v750 = vunpack.c.h.b16 %v306
    %v751 = vunpack.c.l.b16 %v307
    %v752 = vunpack.c.h.b16 %v307
    %v753 = vunpack.c.l.b16 %v308
    %v754 = vunpack.c.h.b16 %v308
    %v755 = vunpack.c.l.b16 %v309
    %v756 = vunpack.c.h.b16 %v309
    %v757 = vunpack.c.l.b16 %v310
    %v758 = vunpack.c.h.b16 %v310
    %v759 = vunpack.c.l.b16 %v311
    %v760 = vunpack.c.h.b16 %v311
    %v761 = vunpack.c.l.b16 %v312
    %v762 = vunpack.c.h.b16 %v312
    %v763 = vunpack.c.l.b16 %v313
    %v764 = vunpack.c.h.b16 %v313
    %v765 = vunpack.c.l.b16 %v314
    %v766 = vunpack.c.h.b16 %v314
    %v767 = vunpack.c.l.b16 %v315
    %v768 = vunpack.c.h.b16 %v315
    %v769 = vunpack.c.l.b16 %v316
    %v770 = vunpack.c.h.b16 %v316
    %v771 = vunpack.c.l.b16 %v317
    %v772 = vunpack.c.h.b16 %v317
    %v773 = vunpack.c.l.b16 %v318
    %v774 = vunpack.c.h.b16 %v318
    %v775 = vunpack.c.l.b16 %v319
    %v776 = vunpack.c.h.b16 %v319
    %v777 = vunpack.c.l.b16 %v320
    %v778 = vunpack.c.h.b16 %v320
    %v779 = vunpack.c.l.b16 %v321
    %v780 = vunpack.c.h.b16 %v321
    %v781 = vunpack.c.l.b16 %v322
    %v782 = vunpack.c.h.b16 %v322
    %v783 = vunpack.c.l.b16 %v323
    %v784 = vunpack.c.h.b16 %v323
    %v785 = vunpack.c.l.b16 %v324
    %v786 = vunpack.c.h.b16 %v324
    %v787 = vunpack.c.l.b16 %v325
    %v788 = vunpack.c.h.b16 %v325
    %v789 = vunpack.c.l.b16 %v326
    %v790 = vunpack.c.h.b16 %v326
    %v791 = vunpack.c.l.b16 %v327
    %v792 = vunpack.c.h.b16 %v327
    %v793 = vunpack.c.l.b16 %v328
    %v794 = vunpack.c.h.b16 %v328
    %v795 = vunpack.c.l.b16 %v329
    %v796 = vunpack.c.h.b16 %v329
    %v797 = vunpack.c.l.b16 %v330
    %v798 = vunpack.c.h.b16 %v330
    %v799 = vunpack.c.l.b16 %v331
    %v800 = vunpack.c.h.b16 %v331
    %v801 = vunpack.c.l.b16 %v332
    %v802 = vunpack.c.h.b16 %v332
    %v803 = vunpack.c.l.b16 %v333
    %v804 = vunpack.c.h.b16 %v333
    %v805 = vunpack.c.l.b16 %v334
    %v806 = vunpack.c.h.b16 %v334
    %v807 = vunpack.c.l.b16 %v335
    %v808 = vunpack.c.h.b16 %v335
    %v809 = vunpack.c.l.b16 %v336
    %v810 = vunpack.c.h.b16 %v336
    %v811 = vunpack.c.l.b16 %v337
    %v812 = vunpack.c.h.b16 %v337
    %v813 = vunpack.c.l.b16 %v338
    %v814 = vunpack.c.h.b16 %v338
    %v815 = vunpack.c.l.b16 %v339
    %v816 = vunpack.c.h.b16 %v339
    %v817 = vunpack.c.l.b16 %v340
    %v818 = vunpack.c.h.b16 %v340
    %v819 = vunpack.c.l.b16 %v341
    %v820 = vunpack.c.h.b16 %v341
    %v821 = vunpack.c.l.b16 %v342
    %v822 = vunpack.c.h.b16 %v342
    %v823 = vunpack.c.l.b16 %v343
    %v824 = vunpack.c.h.b16 %v343
    %v825 = vunpack.c.l.b16 %v344
    %v826 = vunpack.c.h.b16 %v344
    %v827 = vunpack.c.l.b16 %v345
    %v828 = vunpack.c.h.b16 %v345
    %v829 = vunpack.c.l.b16 %v346
    %v830 = vunpack.c.h.b16 %v346
    %v831 = vunpack.c.l.b16 %v347
    %v832 = vunpack.c.h.b16 %v347
    %v833 = vunpack.c.l.b16 %v348
    %v834 = vunpack.c.h.b16 %v348
    %v835 = vunpack.c.l.b16 %v349
    %v836 = vunpack.c.h.b16 %v349
    %v837 = vunpack.c.l.b16 %v350
    %v838 = vunpack.c.h.b16 %v350
    %v839 = vunpack.c.l.b16 %v351
    %v840 = vunpack.c.h.b16 %v351
    %v841 = vunpack.c.l.b16 %v352
    %v842 = vunpack.c.h.b16 %v352
    %v843 = vunpack.c.l.b16 %v353
    %v844 = vunpack.c.h.b16 %v353
    %v845 = vunpack.c.l.b16 %v354
    %v846 = vunpack.c.h.b16 %v354
    %v847 = vunpack.c.l.b16 %v355
    %v848 = vunpack.c.h.b16 %v355
    %v849 = vunpack.c.l.b16 %v356
    %v850 = vunpack.c.h.b16 %v356
    %v851 = vunpack.c.l.b16 %v357
    %v852 = vunpack.c.h.b16 %v357
    %v853 = vunpack.c.l.b16 %v358
    %v854 = vunpack.c.h.b16 %v358
    %v855 = vunpack.c.l.b16 %v359
    %v856 = vunpack.c.h.b16 %v359
    %v857 = vunpack.c.l.b16 %v360
    %v858 = vunpack.c.h.b16 %v360
    %v859 = vunpack.c.l.b16 %v361
    %v860 = vunpack.c.h.b16 %v361
    %v861 = vunpack.c.l.b16 %v362
    %v862 = vunpack.c.h.b16 %v362
    %v863 = vunpack.c.l.b16 %v363
    %v864 = vunpack.c.h.b16 %v363
    %v865 = vunpack.c.l.b16 %v364
    %v866 = vunpack.c.h.b16 %v364
    %v867 = vunpack.c.l.b16 %v365
    %v868 = vunpack.c.h.b16 %v365
    %v869 = vunpack.c.l.b16 %v366
    %v870 = vunpack.c.h.b16 %v366
    %v871 = vunpack.c.l.b16 %v367
    %v872 = vunpack.c.h.b16 %v367
    %v873 = vunpack.c.l.b16 %v368
    %v874 = vunpack.c.h.b16 %v368
    %v875 = vunpack.c.l.b16 %v369
    %v876 = vunpack.c.h.b16 %v369
    %v877 = vunpack.c.l.b16 %v370
    %v878 = vunpack.c.h.b16 %v370
    %v879 = vunpack.c.l.b16 %v371
    %v880 = vunpack.c.h.b16 %v371
    %v881 = vunpack.c.l.b16 %v372
    %v882 = vunpack.c.h.b16 %v372
    %v883 = vunpack.c.l.b16 %v373
    %v884 = vunpack.c.h.b16 %v373
    %v885 = vunpack.c.l.b16 %v374
    %v886 = vunpack.c.h.b16 %v374
    %v887 = vunpack.c.l.b16 %v375
    %v888 = vunpack.c.h.b16 %v375
    %v889 = vunpack.c.l.b16 %v376
    %v890 = vunpack.c.h.b16 %v376
    %v891 = vunpack.c.l.b16 %v377
    %v892 = vunpack.c.h.b16 %v377
    %v893 = vunpack.c.l.b16 %v378
    %v894 = vunpack.c.h.b16 %v378
    %v895 = vunpack.c.l.b16 %v379
    %v896 = vunpack.c.h.b16 %v379
    %v897 = vunpack.c.l.b16 %v380
    %v898 = vunpack.c.h.b16 %v380
    %v899 = vunpack.c.l.b16 %v381
    %v900 = vunpack.c.h.b16 %v381
    %v901 = vunpack.c.l.b16 %v382
    %v902 = vunpack.c.h.b16 %v382
    %v903 = vunpack.c.l.b16 %v383
    %v904 = vunpack.c.h.b16 %v383
    %v905 = vunpack.c.l.b16 %v384
    %v906 = vunpack.c.h.b16 %v384
    %v907 = vunpack.c.l.b16 %v385
    %v908 = vunpack.c.h.b16 %v385
    %v909 = vunpack.c.l.b16 %v386
    %v910 = vunpack.c.h.b16 %v386
    %v911 = vunpack.c.l.b16 %v387
    %v912 = vunpack.c.h.b16 %v387
    %v913 = vunpack.c.l.b16 %v388
    %v914 = vunpack.c.h.b16 %v388
    %v915 = vunpack.c.l.b16 %v389
    %v916 = vunpack.c.h.b16 %v389
    %v917 = vunpack.c.l.b16 %v390
    %v918 = vunpack.c.h.b16 %v390
    %v919 = vunpack.c.l.b16 %v391
    %v920 = vunpack.c.h.b16 %v391
    %v921 = vunpack.c.l.b16 %v392
    %v922 = vunpack.c.h.b16 %v392
    %v923 = vunpack.c.l.b16 %v393
    %v924 = vunpack.c.h.b16 %v393
    %v925 = vunpack.c.l.b16 %v394
    %v926 = vunpack.c.h.b16 %v394
    %v927 = vunpack.c.l.b16 %v395
    %v928 = vunpack.c.h.b16 %v395
    %v929 = vunpack.c.l.b16 %v396
    %v930 = vunpack.c.h.b16 %v396
    %v931 = vunpack.c.l.b16 %v397
    %v932 = vunpack.c.h.b16 %v397
    %v933 = vunpack.c.l.b16 %v398
    %v934 = vunpack.c.h.b16 %v398
    %v935 = vunpack.c.l.b16 %v399
    %v936 = vunpack.c.h.b16 %v399
    %v937 = vunpack.c.l.b16 %v400
    %v938 = vunpack.c.h.b16 %v400
    %v939 = vunpack.c.l.b16 %v401
    %v940 = vunpack.c.h.b16 %v401
    %v941 = vunpack.c.l.b16 %v402
    %v942 = vunpack.c.h.b16 %v402
    %v943 = vunpack.c.l.b16 %v403
    %v944 = vunpack.c.h.b16 %v403
    %v945 = vunpack.c.l.b16 %v404
    %v946 = vunpack.c.h.b16 %v404
    %v947 = vunpack.c.l.b16 %v405
    %v948 = vunpack.c.h.b16 %v405
    %v949 = vunpack.c.l.b16 %v406
    %v950 = vunpack.c.h.b16 %v406
    %v951 = vunpack.c.l.b16 %v407
    %v952 = vunpack.c.h.b16 %v407
    %v953 = vunpack.c.l.b16 %v408
    %v954 = vunpack.c.h.b16 %v408
    %v955 = vunpack.c.l.b16 %v409
    %v956 = vunpack.c.h.b16 %v409
    %v957 = vunpack.c.l.b16 %v410
    %v958 = vunpack.c.h.b16 %v410
    %v959 = vunpack.c.l.b16 %v411
    %v960 = vunpack.c.h.b16 %v411
    %v961 = vunpack.c.l.b16 %v412
    %v962 = vunpack.c.h.b16 %v412
    %v963 = vunpack.c.l.b16 %v413
    %v964 = vunpack.c.h.b16 %v413
    %v965 = vunpack.c.l.b16 %v414
    %v966 = vunpack.c.h.b16 %v414
    %v967 = vunpack.c.l.b16 %v415
    %v968 = vunpack.c.h.b16 %v415
    %v969 = vunpack.c.l.b16 %v416
    %v970 = vunpack.c.h.b16 %v416
    %v971 = vunpack.c.l.b16 %v417
    %v972 = vunpack.c.h.b16 %v417
    %v973 = vunpack.c.l.b16 %v418
    %v974 = vunpack.c.h.b16 %v418
    %v975 = vunpack.c.l.b16 %v419
    %v976 = vunpack.c.h.b16 %v419
    %v977 = vunpack.c.l.b16 %v420
    %v978 = vunpack.c.h.b16 %v420
    %v979 = vunpack.c.l.b16 %v421
    %v980 = vunpack.c.h.b16 %v421
    %v981 = vunpack.c.l.b16 %v422
    %v982 = vunpack.c.h.b16 %v422
    %v983 = vunpack.c.l.b16 %v423
    %v984 = vunpack.c.h.b16 %v423
    %v985 = vunpack.c.l.b16 %v424
    %v986 = vunpack.c.h.b16 %v424
    %v987 = vunpack.c.l.b16 %v425
    %v988 = vunpack.c.h.b16 %v425
    %v989 = vunpack.c.l.b16 %v426
    %v990 = vunpack.c.h.b16 %v426
    %v991 = vunpack.c.l.b16 %v427
    %v992 = vunpack.c.h.b16 %v427
    %v993 = vunpack.c.l.b16 %v428
    %v994 = vunpack.c.h.b16 %v428
    %v995 = vunpack.c.l.b16 %v429
    %v996 = vunpack.c.h.b16 %v429
    %v997 = vunpack.c.l.b16 %v430
    %v998 = vunpack.c.h.b16 %v430
    %v999 = vunpack.c.l.b16 %v431
    %v1000 = vunpack.c.h.b16 %v431
    %v1001 = vunpack.c.l.b16 %v432
    %v1002 = vunpack.c.h.b16 %v432
    %v1003 = vunpack.c.l.b16 %v433
    %v1004 = vunpack.c.h.b16 %v433
    %v1005 = vunpack.c.l.b16 %v434
    %v1006 = vunpack.c.h.b16 %v434
    %v1007 = vunpack.c.l.b16 %v435
    %v1008 = vunpack.c.h.b16 %v435
    %v1009 = vunpack.c.l.b16 %v436
    %v1010 = vunpack.c.h.b16 %v436
    %v1011 = vunpack.c.l.b16 %v437
    %v1012 = vunpack.c.h.b16 %v437
    %v1013 = vunpack.c.l.b16 %v438
    %v1014 = vunpack.c.h.b16 %v438
    %v1015 = vunpack.c.l.b16 %v439
    %v1016 = vunpack.c.h.b16 %v439
    %v1017 = vunpack.c.l.b16 %v440
    %v1018 = vunpack.c.h.b16 %v440
    %v1019 = vunpack.c.l.b16 %v441
    %v1020 = vunpack.c.h.b16 %v441
    %v1021 = vunpack.c.l.b16 %v442
    %v1022 = vunpack.c.h.b16 %v442
    %v1023 = vunpack.c.l.b16 %v443
    %v1024 = vunpack.c.h.b16 %v443
    %v1025 = vunpack.c.l.b16 %v444
    %v1026 = vunpack.c.h.b16 %v444
    %v1027 = vunpack.c.l.b16 %v445
    %v1028 = vunpack.c.h.b16 %v445
    %v1029 = vunpack.c.l.b16 %v446
    %v1030 = vunpack.c.h.b16 %v446
    %v1031 = vunpack.c.l.b16 %v447
    %v1032 = vunpack.c.h.b16 %v447
    %v1033 = vunpack.c.l.b16 %v448
    %v1034 = vunpack.c.h.b16 %v448
    %v1035 = vunpack.c.l.b16 %v449
    %v1036 = vunpack.c.h.b16 %v449
    %v1037 = vunpack.c.l.b16 %v450
    %v1038 = vunpack.c.h.b16 %v450
    %v1039 = vunpack.c.l.b16 %v451
    %v1040 = vunpack.c.h.b16 %v451
    %v1041 = vunpack.c.l.b16 %v452
    %v1042 = vunpack.c.h.b16 %v452
    %v1043 = vunpack.c.l.b16 %v453
    %v1044 = vunpack.c.h.b16 %v453
    %v1045 = vunpack.c.l.b16 %v454
    %v1046 = vunpack.c.h.b16 %v454
    %v1047 = vunpack.c.l.b16 %v455
    %v1048 = vunpack.c.h.b16 %v455
    %v1049 = vunpack.c.l.b16 %v456
    %v1050 = vunpack.c.h.b16 %v456
    %v1051 = vunpack.c.l.b16 %v457
    %v1052 = vunpack.c.h.b16 %v457
    %v1053 = vunpack.c.l.b16 %v458
    %v1054 = vunpack.c.h.b16 %v458
    %v1055 = vunpack.c.l.b16 %v459
    %v1056 = vunpack.c.h.b16 %v459
    %v1057 = vunpack.c.l.b16 %v460
    %v1058 = vunpack.c.h.b16 %v460
    %v1059 = vunpack.c.l.b16 %v461
    %v1060 = vunpack.c.h.b16 %v461
    %v1061 = vunpack.c.l.b16 %v462
    %v1062 = vunpack.c.h.b16 %v462
    %v1063 = vunpack.c.l.b16 %v463
    %v1064 = vunpack.c.h.b16 %v463
    %v1065 = vunpack.c.l.b16 %v464
    %v1066 = vunpack.c.h.b16 %v464
    %v1067 = vunpack.c.l.b16 %v465
    %v1068 = vunpack.c.h.b16 %v465
    %v1069 = vunpack.c.l.b16 %v466
    %v1070 = vunpack.c.h.b16 %v466
    %v1071 = vunpack.c.l.b16 %v467
    %v1072 = vunpack.c.h.b16 %v467
    %v1073 = vunpack.c.l.b16 %v468
    %v1074 = vunpack.c.h.b16 %v468
    %v1075 = vunpack.c.l.b16 %v469
    %v1076 = vunpack.c.h.b16 %v469
    %v1077 = vunpack.c.l.b16 %v470
    %v1078 = vunpack.c.h.b16 %v470
    %v1079 = vunpack.c.l.b16 %v471
    %v1080 = vunpack.c.h.b16 %v471
    %v1081 = vunpack.c.l.b16 %v472
    %v1082 = vunpack.c.h.b16 %v472
    %v1083 = vunpack.c.l.b16 %v473
    %v1084 = vunpack.c.h.b16 %v473
    %v1085 = vunpack.c.l.b16 %v474
    %v1086 = vunpack.c.h.b16 %v474
    %v1087 = vunpack.c.l.b16 %v475
    %v1088 = vunpack.c.h.b16 %v475
    %v1089 = vunpack.c.l.b16 %v476
    %v1090 = vunpack.c.h.b16 %v476
    %v1091 = vunpack.c.l.b16 %v477
    %v1092 = vunpack.c.h.b16 %v477
    %v1093 = vunpack.c.l.b16 %v478
    %v1094 = vunpack.c.h.b16 %v478
    %v1095 = vunpack.c.l.b16 %v479
    %v1096 = vunpack.c.h.b16 %v479
    %v1097 = vunpack.c.l.b16 %v480
    %v1098 = vunpack.c.h.b16 %v480
    %v1099 = vunpack.c.l.b16 %v481
    %v1100 = vunpack.c.h.b16 %v481
    %v1101 = vunpack.c.l.b16 %v482
    %v1102 = vunpack.c.h.b16 %v482
    %v1103 = vunpack.c.l.b16 %v483
    %v1104 = vunpack.c.h.b16 %v483
    %v1105 = vunpack.c.l.b16 %v484
    %v1106 = vunpack.c.h.b16 %v484
    %v1107 = vunpack.c.l.b16 %v485
    %v1108 = vunpack.c.h.b16 %v485
    %v1109 = vunpack.c.l.b16 %v486
    %v1110 = vunpack.c.h.b16 %v486
    %v1111 = vunpack.c.l.b16 %v487
    %v1112 = vunpack.c.h.b16 %v487
    %v1113 = vunpack.c.l.b16 %v488
    %v1114 = vunpack.c.h.b16 %v488
    %v1115 = vunpack.c.l.b16 %v489
    %v1116 = vunpack.c.h.b16 %v489
    %v1117 = vunpack.c.l.b16 %v490
    %v1118 = vunpack.c.h.b16 %v490
    %v1119 = vunpack.c.l.b16 %v491
    %v1120 = vunpack.c.h.b16 %v491
    %v1121 = vunpack.c.l.b16 %v492
    %v1122 = vunpack.c.h.b16 %v492
    %v1123 = vpack.c.b16 %v763, %v739
    %v1124 = vpack.c.b16 %v764, %v740
    %v1125 = vpack.c.b16 %v765, %v741
    %v1126 = vpack.c.b16 %v766, %v742
    %v1127 = vpack.c.b16 %v767, %v743
    %v1128 = vpack.c.b16 %v768, %v744
    %v1129 = vpack.c.b16 %v769, %v745
    %v1130 = vpack.c.b16 %v770, %v746
    %v1131 = vpack.c.b16 %v771, %v747
    %v1132 = vpack.c.b16 %v772, %v748
    %v1133 = vpack.c.b16 %v773, %v749
    %v1134 = vpack.c.b16 %v774, %v750
    %v1135 = vpack.c.b16 %v775, %v751
    %v1136 = vpack.c.b16 %v776, %v752
    %v1137 = vpack.c.b16 %v777, %v753
    %v1138 = vpack.c.b16 %v778, %v754
    %v1139 = vpack.c.b16 %v779, %v755
    %v1140 = vpack.c.b16 %v780, %v756
    %v1141 = vpack.c.b16 %v781, %v757
    %v1142 = vpack.c.b16 %v782, %v758
    %v1143 = vpack.c.b16 %v783, %v759
    %v1144 = vpack.c.b16 %v784, %v760
    %v1145 = vpack.c.b16 %v785, %v761
    %v1146 = vpack.c.b16 %v786, %v762
    %v1147 = vpack.c.b16 %v811, %v787
    %v1148 = vpack.c.b16 %v812, %v788
    %v1149 = vpack.c.b16 %v813, %v789
    %v1150 = vpack.c.b16 %v814, %v790
    %v1151 = vpack.c.b16 %v815, %v791
    %v1152 = vpack.c.b16 %v816, %v792
    %v1153 = vpack.c.b16 %v817, %v793
    %v1154 = vpack.c.b16 %v818, %v794
    %v1155 = vpack.c.b16 %v819, %v795
    %v1156 = vpack.c.b16 %v820, %v796
    %v1157 = vpack.c.b16 %v821, %v797
    %v1158 = vpack.c.b16 %v822, %v798
    %v1159 = vpack.c.b16 %v823, %v799
    %v1160 = vpack.c.b16 %v824, %v800
    %v1161 = vpack.c.b16 %v825, %v801
    %v1162 = vpack.c.b16 %v826, %v802
    %v1163 = vpack.c.b16 %v827, %v803
    %v1164 = vpack.c.b16 %v828, %v804
    %v1165 = vpack.c.b16 %v829, %v805
    %v1166 = vpack.c.b16 %v830, %v806
    %v1167 = vpack.c.b16 %v831, %v807
    %v1168 = vpack.c.b16 %v832, %v808
    %v1169 = vpack.c.b16 %v833, %v809
    %v1170 = vpack.c.b16 %v834, %v810
    %v1171 = vpack.c.b16 %v859, %v835
    %v1172 = vpack.c.b16 %v860, %v836
    %v1173 = vpack.c.b16 %v861, %v837
    %v1174 = vpack.c.b16 %v862, %v838
    %v1175 = vpack.c.b16 %v863, %v839
    %v1176 = vpack.c.b16 %v864, %v840
    %v1177 = vpack.c.b16 %v865, %v841
    %v1178 = vpack.c.b16 %v866, %v842
    %v1179 = vpack.c.b16 %v867, %v843
    %v1180 = vpack.c.b16 %v868, %v844
    %v1181 = vpack.c.b16 %v869, %v845
    %v1182 = vpack.c.b16 %v870, %v846
    %v1183 = vpack.c.b16 %v871, %v847
    %v1184 = vpack.c.b16 %v872, %v848
    %v1185 = vpack.c.b16 %v873, %v849
    %v1186 = vpack.c.b16 %v874, %v850
    %v1187 = vpack.c.b16 %v875, %v851
    %v1188 = vpack.c.b16 %v876, %v852
    %v1189 = vpack.c.b16 %v877, %v853
    %v1190 = vpack.c.b16 %v878, %v854
    %v1191 = vpack.c.b16 %v879, %v855
    %v1192 = vpack.c.b16 %v880, %v856
    %v1193 = vpack.c.b16 %v881, %v857
    %v1194 = vpack.c.b16 %v882, %v858
    %v1195 = vpack.c.b16 %v907, %v883
    %v1196 = vpack.c.b16 %v908, %v884
    %v1197 = vpack.c.b16 %v909, %v885
    %v1198 = vpack.c.b16 %v910, %v886
    %v1199 = vpack.c.b16 %v911, %v887
    %v1200 = vpack.c.b16 %v912, %v888
    %v1201 = vpack.c.b16 %v913, %v889
    %v1202 = vpack.c.b16 %v914, %v890
    %v1203 = vpack.c.b16 %v915, %v891
    %v1204 = vpack.c.b16 %v916, %v892
    %v1205 = vpack.c.b16 %v917, %v893
    %v1206 = vpack.c.b16 %v918, %v894
    %v1207 = vpack.c.b16 %v919, %v895
    %v1208 = vpack.c.b16 %v920, %v896
    %v1209 = vpack.c.b16 %v921, %v897
    %v1210 = vpack.c.b16 %v922, %v898
    %v1211 = vpack.c.b16 %v923, %v899
    %v1212 = vpack.c.b16 %v924, %v900
    %v1213 = vpack.c.b16 %v925, %v901
    %v1214 = vpack.c.b16 %v926, %v902
    %v1215 = vpack.c.b16 %v927, %v903
    %v1216 = vpack.c.b16 %v928, %v904
    %v1217 = vpack.c.b16 %v929, %v905
    %v1218 = vpack.c.b16 %v930, %v906
    %v1219 = vpack.c.b16 %v955, %v931
    %v1220 = vpack.c.b16 %v956, %v932
    %v1221 = vpack.c.b16 %v957, %v933
    %v1222 = vpack.c.b16 %v958, %v934
    %v1223 = vpack.c.b16 %v959, %v935
    %v1224 = vpack.c.b16 %v960, %v936
    %v1225 = vpack.c.b16 %v961, %v937
    %v1226 = vpack.c.b16 %v962, %v938
    %v1227 = vpack.c.b16 %v963, %v939
    %v1228 = vpack.c.b16 %v964, %v940
    %v1229 = vpack.c.b16 %v965, %v941
    %v1230 = vpack.c.b16 %v966, %v942
    %v1231 = vpack.c.b16 %v967, %v943
    %v1232 = vpack.c.b16 %v968, %v944
    %v1233 = vpack.c.b16 %v969, %v945
    %v1234 = vpack.c.b16 %v970, %v946
    %v1235 = vpack.c.b16 %v971, %v947
    %v1236 = vpack.c.b16 %v972, %v948
    %v1237 = vpack.c.b16 %v973, %v949
    %v1238 = vpack.c.b16 %v974, %v950
    %v1239 = vpack.c.b16 %v975, %v951
    %v1240 = vpack.c.b16 %v976, %v952
    %v1241 = vpack.c.b16 %v977, %v953
    %v1242 = vpack.c.b16 %v978, %v954
    %v1243 = vpack.c.b16 %v1003, %v979
    %v1244 = vpack.c.b16 %v1004, %v980
    %v1245 = vpack.c.b16 %v1005, %v981
    %v1246 = vpack.c.b16 %v1006, %v982
    %v1247 = vpack.c.b16 %v1007, %v983
    %v1248 = vpack.c.b16 %v1008, %v984
    %v1249 = vpack.c.b16 %v1009, %v985
    %v1250 = vpack.c.b16 %v1010, %v986
    %v1251 = vpack.c.b16 %v1011, %v987
    %v1252 = vpack.c.b16 %v1012, %v988
    %v1253 = vpack.c.b16 %v1013, %v989
    %v1254 = vpack.c.b16 %v1014, %v990
    %v1255 = vpack.c.b16 %v1015, %v991
    %v1256 = vpack.c.b16 %v1016, %v992
    %v1257 = vpack.c.b16 %v1017, %v993
    %v1258 = vpack.c.b16 %v1018, %v994
    %v1259 = vpack.c.b16 %v1019, %v995
    %v1260 = vpack.c.b16 %v1020, %v996
    %v1261 = vpack.c.b16 %v1021, %v997
    %v1262 = vpack.c.b16 %v1022, %v998
    %v1263 = vpack.c.b16 %v1023, %v999
    %v1264 = vpack.c.b16 %v1024, %v1000
    %v1265 = vpack.c.b16 %v1025, %v1001
    %v1266 = vpack.c.b16 %v1026, %v1002
    %v1267 = vpack.c.b16 %v1051, %v1027
    %v1268 = vpack.c.b16 %v1052, %v1028
    %v1269 = vpack.c.b16 %v1053, %v1029
    %v1270 = vpack.c.b16 %v1054, %v1030
    %v1271 = vpack.c.b16 %v1055, %v1031
    %v1272 = vpack.c.b16 %v1056, %v1032
    %v1273 = vpack.c.b16 %v1057, %v1033
    %v1274 = vpack.c.b16 %v1058, %v1034
    %v1275 = vpack.c.b16 %v1059, %v1035
    %v1276 = vpack.c.b16 %v1060, %v1036
    %v1277 = vpack.c.b16 %v1061, %v1037
    %v1278 = vpack.c.b16 %v1062, %v1038
    %v1279 = vpack.c.b16 %v1063, %v1039
    %v1280 = vpack.c.b16 %v1064, %v1040
    %v1281 = vpack.c.b16 %v1065, %v1041
    %v1282 = vpack.c.b16 %v1066, %v1042
    %v1283 = vpack.c.b16 %v1067, %v1043
    %v1284 = vpack.c.b16 %v1068, %v1044
    %v1285 = vpack.c.b16 %v1069, %v1045
    %v1286 = vpack.c.b16 %v1070, %v1046
    %v1287 = vpack.c.b16 %v1071, %v1047
    %v1288 = vpack.c.b16 %v1072, %v1048
    %v1289 = vpack.c.b16 %v1073, %v1049
    %v1290 = vpack.c.b16 %v1074, %v1050
    %v1291 = vpack.c.b16 %v1099, %v1075
    %v1292 = vpack.c.b16 %v1100, %v1076
    %v1293 = vpack.c.b16 %v1101, %v1077
    %v1294 = vpack.c.b16 %v1102, %v1078
    %v1295 = vpack.c.b16 %v1103, %v1079
    %v1296 = vpack.c.b16 %v1104, %v1080
    %v1297 = vpack.c.b16 %v1105, %v1081
    %v1298 = vpack.c.b16 %v1106, %v1082
    %v1299 = vpack.c.b16 %v1107, %v1083
    %v1300 = vpack.c.b16 %v1108, %v1084
    %v1301 = vpack.c.b16 %v1109, %v1085
    %v1302 = vpack.c.b16 %v1110, %v1086
    %v1303 = vpack.c.b16 %v1111, %v1087
    %v1304 = vpack.c.b16 %v1112, %v1088
    %v1305 = vpack.c.b16 %v1113, %v1089
    %v1306 = vpack.c.b16 %v1114, %v1090
    %v1307 = vpack.c.b16 %v1115, %v1091
    %v1308 = vpack.c.b16 %v1116, %v1092
    %v1309 = vpack.c.b16 %v1117, %v1093
    %v1310 = vpack.c.b16 %v1118, %v1094
    %v1311 = vpack.c.b16 %v1119, %v1095
    %v1312 = vpack.c.b16 %v1120, %v1096
    %v1313 = vpack.c.b16 %v1121, %v1097
    %v1314 = vpack.c.b16 %v1122, %v1098
    %1507 = vmatpush.bf16.msra.mxu0 %v1291
    %1508 = vmatpush.bf16.msra.mxu0 %v1267
    %1509 = vmatpush.bf16.msra.mxu0 %v1243
    %1510 = vmatpush.bf16.msra.mxu0 %v1219
    %1511 = vmatpush.bf16.msra.mxu0 %v1195
    %1512 = vmatpush.bf16.msra.mxu0 %v1171
    %1513 = vmatpush.bf16.msra.mxu0 %v1147
    %1514 = vmatpush.bf16.msra.mxu0 %v1123
    %1515 = vmatmul.bf16.gmra.mxu0 %v300
    %v1516 = vpop.f32.mrf.mxu0
    %v1517 = vadd.f32 %v499, %v1516
    %v1518 = vpop.f32.mrf.mxu0
    %1519 = vdwg.mxu0
    %1520 = vmatpush.bf16.msra.mxu0 %v1292
    %1521 = vmatpush.bf16.msra.mxu0 %v1268
    %1522 = vmatpush.bf16.msra.mxu0 %v1244
    %1523 = vmatpush.bf16.msra.mxu0 %v1220
    %1524 = vmatpush.bf16.msra.mxu0 %v1196
    %1525 = vmatpush.bf16.msra.mxu0 %v1172
    %1526 = vmatpush.bf16.msra.mxu0 %v1148
    %1527 = vmatpush.bf16.msra.mxu0 %v1124
    %1528 = vmatmul.bf16.gmra.mxu0 %v300
    %v1529 = vpop.f32.mrf.mxu0
    %v1530 = vadd.f32 %v500, %v1529
    %v1531 = vpop.f32.mrf.mxu0
    %1532 = vdwg.mxu0
    %1533 = vmatpush.bf16.msra.mxu0 %v1293
    %1534 = vmatpush.bf16.msra.mxu0 %v1269
    %1535 = vmatpush.bf16.msra.mxu0 %v1245
    %1536 = vmatpush.bf16.msra.mxu0 %v1221
    %1537 = vmatpush.bf16.msra.mxu0 %v1197
    %1538 = vmatpush.bf16.msra.mxu0 %v1173
    %1539 = vmatpush.bf16.msra.mxu0 %v1149
    %1540 = vmatpush.bf16.msra.mxu0 %v1125
    %1541 = vmatmul.bf16.gmra.mxu0 %v300
    %v1542 = vpop.f32.mrf.mxu0
    %v1543 = vadd.f32 %v501, %v1542
    %v1544 = vpop.f32.mrf.mxu0
    %1545 = vdwg.mxu0
    %1546 = vmatpush.bf16.msra.mxu0 %v1294
    %1547 = vmatpush.bf16.msra.mxu0 %v1270
    %1548 = vmatpush.bf16.msra.mxu0 %v1246
    %1549 = vmatpush.bf16.msra.mxu0 %v1222
    %1550 = vmatpush.bf16.msra.mxu0 %v1198
    %1551 = vmatpush.bf16.msra.mxu0 %v1174
    %1552 = vmatpush.bf16.msra.mxu0 %v1150
    %1553 = vmatpush.bf16.msra.mxu0 %v1126
    %1554 = vmatmul.bf16.gmra.mxu0 %v300
    %v1555 = vpop.f32.mrf.mxu0
    %v1556 = vadd.f32 %v502, %v1555
    %v1557 = vpop.f32.mrf.mxu0
    %1558 = vdwg.mxu0
    %1559 = vmatpush.bf16.msra.mxu0 %v1295
    %1560 = vmatpush.bf16.msra.mxu0 %v1271
    %1561 = vmatpush.bf16.msra.mxu0 %v1247
    %1562 = vmatpush.bf16.msra.mxu0 %v1223
    %1563 = vmatpush.bf16.msra.mxu0 %v1199
    %1564 = vmatpush.bf16.msra.mxu0 %v1175
    %1565 = vmatpush.bf16.msra.mxu0 %v1151
    %1566 = vmatpush.bf16.msra.mxu0 %v1127
    %1567 = vmatmul.bf16.gmra.mxu0 %v300
    %v1568 = vpop.f32.mrf.mxu0
    %v1569 = vadd.f32 %v503, %v1568
    %v1570 = vpop.f32.mrf.mxu0
    %1571 = vdwg.mxu0
    %1572 = vmatpush.bf16.msra.mxu0 %v1296
    %1573 = vmatpush.bf16.msra.mxu0 %v1272
    %1574 = vmatpush.bf16.msra.mxu0 %v1248
    %1575 = vmatpush.bf16.msra.mxu0 %v1224
    %1576 = vmatpush.bf16.msra.mxu0 %v1200
    %1577 = vmatpush.bf16.msra.mxu0 %v1176
    %1578 = vmatpush.bf16.msra.mxu0 %v1152
    %1579 = vmatpush.bf16.msra.mxu0 %v1128
    %1580 = vmatmul.bf16.gmra.mxu0 %v300
    %v1581 = vpop.f32.mrf.mxu0
    %v1582 = vadd.f32 %v504, %v1581
    %v1583 = vpop.f32.mrf.mxu0
    %1584 = vdwg.mxu0
    %1585 = vmatpush.bf16.msra.mxu0 %v1297
    %1586 = vmatpush.bf16.msra.mxu0 %v1273
    %1587 = vmatpush.bf16.msra.mxu0 %v1249
    %1588 = vmatpush.bf16.msra.mxu0 %v1225
    %1589 = vmatpush.bf16.msra.mxu0 %v1201
    %1590 = vmatpush.bf16.msra.mxu0 %v1177
    %1591 = vmatpush.bf16.msra.mxu0 %v1153
    %1592 = vmatpush.bf16.msra.mxu0 %v1129
    %1593 = vmatmul.bf16.gmra.mxu0 %v300
    %v1594 = vpop.f32.mrf.mxu0
    %v1595 = vadd.f32 %v505, %v1594
    %v1596 = vpop.f32.mrf.mxu0
    %1597 = vdwg.mxu0
    %1598 = vmatpush.bf16.msra.mxu0 %v1298
    %1599 = vmatpush.bf16.msra.mxu0 %v1274
    %1600 = vmatpush.bf16.msra.mxu0 %v1250
    %1601 = vmatpush.bf16.msra.mxu0 %v1226
    %1602 = vmatpush.bf16.msra.mxu0 %v1202
    %1603 = vmatpush.bf16.msra.mxu0 %v1178
    %1604 = vmatpush.bf16.msra.mxu0 %v1154
    %1605 = vmatpush.bf16.msra.mxu0 %v1130
    %1606 = vmatmul.bf16.gmra.mxu0 %v300
    %v1607 = vpop.f32.mrf.mxu0
    %v1608 = vadd.f32 %v506, %v1607
    %v1609 = vpop.f32.mrf.mxu0
    %1610 = vdwg.mxu0
    %1611 = vmatpush.bf16.msra.mxu0 %v1299
    %1612 = vmatpush.bf16.msra.mxu0 %v1275
    %1613 = vmatpush.bf16.msra.mxu0 %v1251
    %1614 = vmatpush.bf16.msra.mxu0 %v1227
    %1615 = vmatpush.bf16.msra.mxu0 %v1203
    %1616 = vmatpush.bf16.msra.mxu0 %v1179
    %1617 = vmatpush.bf16.msra.mxu0 %v1155
    %1618 = vmatpush.bf16.msra.mxu0 %v1131
    %1619 = vmatmul.bf16.gmra.mxu0 %v300
    %v1620 = vpop.f32.mrf.mxu0
    %v1621 = vadd.f32 %v507, %v1620
    %v1622 = vpop.f32.mrf.mxu0
    %1623 = vdwg.mxu0
    %1624 = vmatpush.bf16.msra.mxu0 %v1300
    %1625 = vmatpush.bf16.msra.mxu0 %v1276
    %1626 = vmatpush.bf16.msra.mxu0 %v1252
    %1627 = vmatpush.bf16.msra.mxu0 %v1228
    %1628 = vmatpush.bf16.msra.mxu0 %v1204
    %1629 = vmatpush.bf16.msra.mxu0 %v1180
    %1630 = vmatpush.bf16.msra.mxu0 %v1156
    %1631 = vmatpush.bf16.msra.mxu0 %v1132
    %1632 = vmatmul.bf16.gmra.mxu0 %v300
    %v1633 = vpop.f32.mrf.mxu0
    %v1634 = vadd.f32 %v508, %v1633
    %v1635 = vpop.f32.mrf.mxu0
    %1636 = vdwg.mxu0
    %1637 = vmatpush.bf16.msra.mxu0 %v1301
    %1638 = vmatpush.bf16.msra.mxu0 %v1277
    %1639 = vmatpush.bf16.msra.mxu0 %v1253
    %1640 = vmatpush.bf16.msra.mxu0 %v1229
    %1641 = vmatpush.bf16.msra.mxu0 %v1205
    %1642 = vmatpush.bf16.msra.mxu0 %v1181
    %1643 = vmatpush.bf16.msra.mxu0 %v1157
    %1644 = vmatpush.bf16.msra.mxu0 %v1133
    %1645 = vmatmul.bf16.gmra.mxu0 %v300
    %v1646 = vpop.f32.mrf.mxu0
    %v1647 = vadd.f32 %v509, %v1646
    %v1648 = vpop.f32.mrf.mxu0
    %1649 = vdwg.mxu0
    %1650 = vmatpush.bf16.msra.mxu0 %v1302
    %1651 = vmatpush.bf16.msra.mxu0 %v1278
    %1652 = vmatpush.bf16.msra.mxu0 %v1254
    %1653 = vmatpush.bf16.msra.mxu0 %v1230
    %1654 = vmatpush.bf16.msra.mxu0 %v1206
    %1655 = vmatpush.bf16.msra.mxu0 %v1182
    %1656 = vmatpush.bf16.msra.mxu0 %v1158
    %1657 = vmatpush.bf16.msra.mxu0 %v1134
    %1658 = vmatmul.bf16.gmra.mxu0 %v300
    %v1659 = vpop.f32.mrf.mxu0
    %v1660 = vadd.f32 %v510, %v1659
    %v1661 = vpop.f32.mrf.mxu0
    %1662 = vdwg.mxu0
    %1663 = vmatpush.bf16.msra.mxu0 %v1303
    %1664 = vmatpush.bf16.msra.mxu0 %v1279
    %1665 = vmatpush.bf16.msra.mxu0 %v1255
    %1666 = vmatpush.bf16.msra.mxu0 %v1231
    %1667 = vmatpush.bf16.msra.mxu0 %v1207
    %1668 = vmatpush.bf16.msra.mxu0 %v1183
    %1669 = vmatpush.bf16.msra.mxu0 %v1159
    %1670 = vmatpush.bf16.msra.mxu0 %v1135
    %1671 = vmatmul.bf16.gmra.mxu0 %v300
    %v1672 = vpop.f32.mrf.mxu0
    %v1673 = vadd.f32 %v511, %v1672
    %v1674 = vpop.f32.mrf.mxu0
    %1675 = vdwg.mxu0
    %1676 = vmatpush.bf16.msra.mxu0 %v1304
    %1677 = vmatpush.bf16.msra.mxu0 %v1280
    %1678 = vmatpush.bf16.msra.mxu0 %v1256
    %1679 = vmatpush.bf16.msra.mxu0 %v1232
    %1680 = vmatpush.bf16.msra.mxu0 %v1208
    %1681 = vmatpush.bf16.msra.mxu0 %v1184
    %1682 = vmatpush.bf16.msra.mxu0 %v1160
    %1683 = vmatpush.bf16.msra.mxu0 %v1136
    %1684 = vmatmul.bf16.gmra.mxu0 %v300
    %v1685 = vpop.f32.mrf.mxu0
    %v1686 = vadd.f32 %v512, %v1685
    %v1687 = vpop.f32.mrf.mxu0
    %1688 = vdwg.mxu0
    %1689 = vmatpush.bf16.msra.mxu0 %v1305
    %1690 = vmatpush.bf16.msra.mxu0 %v1281
    %1691 = vmatpush.bf16.msra.mxu0 %v1257
    %1692 = vmatpush.bf16.msra.mxu0 %v1233
    %1693 = vmatpush.bf16.msra.mxu0 %v1209
    %1694 = vmatpush.bf16.msra.mxu0 %v1185
    %1695 = vmatpush.bf16.msra.mxu0 %v1161
    %1696 = vmatpush.bf16.msra.mxu0 %v1137
    %1697 = vmatmul.bf16.gmra.mxu0 %v300
    %v1698 = vpop.f32.mrf.mxu0
    %v1699 = vadd.f32 %v513, %v1698
    %v1700 = vpop.f32.mrf.mxu0
    %1701 = vdwg.mxu0
    %1702 = vmatpush.bf16.msra.mxu0 %v1306
    %1703 = vmatpush.bf16.msra.mxu0 %v1282
    %1704 = vmatpush.bf16.msra.mxu0 %v1258
    %1705 = vmatpush.bf16.msra.mxu0 %v1234
    %1706 = vmatpush.bf16.msra.mxu0 %v1210
    %1707 = vmatpush.bf16.msra.mxu0 %v1186
    %1708 = vmatpush.bf16.msra.mxu0 %v1162
    %1709 = vmatpush.bf16.msra.mxu0 %v1138
    %1710 = vmatmul.bf16.gmra.mxu0 %v300
    %v1711 = vpop.f32.mrf.mxu0
    %v1712 = vadd.f32 %v514, %v1711
    %v1713 = vpop.f32.mrf.mxu0
    %1714 = vdwg.mxu0
    %1715 = vmatpush.bf16.msra.mxu0 %v1307
    %1716 = vmatpush.bf16.msra.mxu0 %v1283
    %1717 = vmatpush.bf16.msra.mxu0 %v1259
    %1718 = vmatpush.bf16.msra.mxu0 %v1235
    %1719 = vmatpush.bf16.msra.mxu0 %v1211
    %1720 = vmatpush.bf16.msra.mxu0 %v1187
    %1721 = vmatpush.bf16.msra.mxu0 %v1163
    %1722 = vmatpush.bf16.msra.mxu0 %v1139
    %1723 = vmatmul.bf16.gmra.mxu0 %v300
    %v1724 = vpop.f32.mrf.mxu0
    %v1725 = vadd.f32 %v515, %v1724
    %v1726 = vpop.f32.mrf.mxu0
    %1727 = vdwg.mxu0
    %1728 = vmatpush.bf16.msra.mxu0 %v1308
    %1729 = vmatpush.bf16.msra.mxu0 %v1284
    %1730 = vmatpush.bf16.msra.mxu0 %v1260
    %1731 = vmatpush.bf16.msra.mxu0 %v1236
    %1732 = vmatpush.bf16.msra.mxu0 %v1212
    %1733 = vmatpush.bf16.msra.mxu0 %v1188
    %1734 = vmatpush.bf16.msra.mxu0 %v1164
    %1735 = vmatpush.bf16.msra.mxu0 %v1140
    %1736 = vmatmul.bf16.gmra.mxu0 %v300
    %v1737 = vpop.f32.mrf.mxu0
    %v1738 = vadd.f32 %v516, %v1737
    %v1739 = vpop.f32.mrf.mxu0
    %1740 = vdwg.mxu0
    %1741 = vmatpush.bf16.msra.mxu0 %v1309
    %1742 = vmatpush.bf16.msra.mxu0 %v1285
    %1743 = vmatpush.bf16.msra.mxu0 %v1261
    %1744 = vmatpush.bf16.msra.mxu0 %v1237
    %1745 = vmatpush.bf16.msra.mxu0 %v1213
    %1746 = vmatpush.bf16.msra.mxu0 %v1189
    %1747 = vmatpush.bf16.msra.mxu0 %v1165
    %1748 = vmatpush.bf16.msra.mxu0 %v1141
    %1749 = vmatmul.bf16.gmra.mxu0 %v300
    %v1750 = vpop.f32.mrf.mxu0
    %v1751 = vadd.f32 %v517, %v1750
    %v1752 = vpop.f32.mrf.mxu0
    %1753 = vdwg.mxu0
    %1754 = vmatpush.bf16.msra.mxu0 %v1310
    %1755 = vmatpush.bf16.msra.mxu0 %v1286
    %1756 = vmatpush.bf16.msra.mxu0 %v1262
    %1757 = vmatpush.bf16.msra.mxu0 %v1238
    %1758 = vmatpush.bf16.msra.mxu0 %v1214
    %1759 = vmatpush.bf16.msra.mxu0 %v1190
    %1760 = vmatpush.bf16.msra.mxu0 %v1166
    %1761 = vmatpush.bf16.msra.mxu0 %v1142
    %1762 = vmatmul.bf16.gmra.mxu0 %v300
    %v1763 = vpop.f32.mrf.mxu0
    %v1764 = vadd.f32 %v518, %v1763
    %v1765 = vpop.f32.mrf.mxu0
    %1766 = vdwg.mxu0
    %1767 = vmatpush.bf16.msra.mxu0 %v1311
    %1768 = vmatpush.bf16.msra.mxu0 %v1287
    %1769 = vmatpush.bf16.msra.mxu0 %v1263
    %1770 = vmatpush.bf16.msra.mxu0 %v1239
    %1771 = vmatpush.bf16.msra.mxu0 %v1215
    %1772 = vmatpush.bf16.msra.mxu0 %v1191
    %1773 = vmatpush.bf16.msra.mxu0 %v1167
    %1774 = vmatpush.bf16.msra.mxu0 %v1143
    %1775 = vmatmul.bf16.gmra.mxu0 %v300
    %v1776 = vpop.f32.mrf.mxu0
    %v1777 = vadd.f32 %v519, %v1776
    %v1778 = vpop.f32.mrf.mxu0
    %1779 = vdwg.mxu0
    %1780 = vmatpush.bf16.msra.mxu0 %v1312
    %1781 = vmatpush.bf16.msra.mxu0 %v1288
    %1782 = vmatpush.bf16.msra.mxu0 %v1264
    %1783 = vmatpush.bf16.msra.mxu0 %v1240
    %1784 = vmatpush.bf16.msra.mxu0 %v1216
    %1785 = vmatpush.bf16.msra.mxu0 %v1192
    %1786 = vmatpush.bf16.msra.mxu0 %v1168
    %1787 = vmatpush.bf16.msra.mxu0 %v1144
    %1788 = vmatmul.bf16.gmra.mxu0 %v300
    %v1789 = vpop.f32.mrf.mxu0
    %v1790 = vadd.f32 %v520, %v1789
    %v1791 = vpop.f32.mrf.mxu0
    %1792 = vdwg.mxu0
    %1793 = vmatpush.bf16.msra.mxu0 %v1313
    %1794 = vmatpush.bf16.msra.mxu0 %v1289
    %1795 = vmatpush.bf16.msra.mxu0 %v1265
    %1796 = vmatpush.bf16.msra.mxu0 %v1241
    %1797 = vmatpush.bf16.msra.mxu0 %v1217
    %1798 = vmatpush.bf16.msra.mxu0 %v1193
    %1799 = vmatpush.bf16.msra.mxu0 %v1169
    %1800 = vmatpush.bf16.msra.mxu0 %v1145
    %1801 = vmatmul.bf16.gmra.mxu0 %v300
    %v1802 = vpop.f32.mrf.mxu0
    %v1803 = vadd.f32 %v521, %v1802
    %v1804 = vpop.f32.mrf.mxu0
    %1805 = vdwg.mxu0
    %1806 = vmatpush.bf16.msra.mxu0 %v1314
    %1807 = vmatpush.bf16.msra.mxu0 %v1290
    %1808 = vmatpush.bf16.msra.mxu0 %v1266
    %1809 = vmatpush.bf16.msra.mxu0 %v1242
    %1810 = vmatpush.bf16.msra.mxu0 %v1218
    %1811 = vmatpush.bf16.msra.mxu0 %v1194
    %1812 = vmatpush.bf16.msra.mxu0 %v1170
    %1813 = vmatpush.bf16.msra.mxu0 %v1146
    %1814 = vmatmul.bf16.gmra.mxu0 %v300
    %v1815 = vpop.f32.mrf.mxu0
    %v1816 = vadd.f32 %v522, %v1815
    %v1817 = vpop.f32.mrf.mxu0
    %1818 = vdwg.mxu0
    %v1819 = vmul.f32 %v1517, 0.5
    %v1820 = vmul.f32 %v1530, 0.5
    %v1821 = vmul.f32 %v1543, 0.5
    %v1822 = vmul.f32 %v1556, 0.5
    %v1823 = vmul.f32 %v1569, 0.5
    %v1824 = vmul.f32 %v1582, 0.5
    %v1825 = vmul.f32 %v1595, 0.5
    %v1826 = vmul.f32 %v1608, 0.5
    %v1827 = vmul.f32 %v1621, 0.5
    %v1828 = vmul.f32 %v1634, 0.5
    %v1829 = vmul.f32 %v1647, 0.5
    %v1830 = vmul.f32 %v1660, 0.5
    %v1831 = vmul.f32 %v1673, 0.5
    %v1832 = vmul.f32 %v1686, 0.5
    %v1833 = vmul.f32 %v1699, 0.5
    %v1834 = vmul.f32 %v1712, 0.5
    %v1835 = vmul.f32 %v1725, 0.5
    %v1836 = vmul.f32 %v1738, 0.5
    %v1837 = vmul.f32 %v1751, 0.5
    %v1838 = vmul.f32 %v1764, 0.5
    %v1839 = vmul.f32 %v1777, 0.5
    %v1840 = vmul.f32 %v1790, 0.5
    %v1841 = vmul.f32 %v1803, 0.5
    %v1842 = vmul.f32 %v1816, 0.5
    %v1843 = vmul.f32 %v1517, 0.70710677
    %v1844 = vmul.f32 %v1530, 0.70710677
    %v1845 = vmul.f32 %v1543, 0.70710677
    %v1846 = vmul.f32 %v1556, 0.70710677
    %v1847 = vmul.f32 %v1569, 0.70710677
    %v1848 = vmul.f32 %v1582, 0.70710677
    %v1849 = vmul.f32 %v1595, 0.70710677
    %v1850 = vmul.f32 %v1608, 0.70710677
    %v1851 = vmul.f32 %v1621, 0.70710677
    %v1852 = vmul.f32 %v1634, 0.70710677
    %v1853 = vmul.f32 %v1647, 0.70710677
    %v1854 = vmul.f32 %v1660, 0.70710677
    %v1855 = vmul.f32 %v1673, 0.70710677
    %v1856 = vmul.f32 %v1686, 0.70710677
    %v1857 = vmul.f32 %v1699, 0.70710677
    %v1858 = vmul.f32 %v1712, 0.70710677
    %v1859 = vmul.f32 %v1725, 0.70710677
    %v1860 = vmul.f32 %v1738, 0.70710677
    %v1861 = vmul.f32 %v1751, 0.70710677
    %v1862 = vmul.f32 %v1764, 0.70710677
    %v1863 = vmul.f32 %v1777, 0.70710677
    %v1864 = vmul.f32 %v1790, 0.70710677
    %v1865 = vmul.f32 %v1803, 0.70710677
    %v1866 = vmul.f32 %v1816, 0.70710677
    %v1867 = vmul.f32 %v1843, %v1843
    %v1868 = vmin.f32 16.0, %v1867
    %v1869 = vmul.f32 %v1868, 2.1237322e-06
    %v1870 = vadd.f32 %v1869, 0.00028619796
    %v1871 = vmul.f32 %v1868, %v1870
    %v1872 = vadd.f32 %v1871, 0.0036580483
    %v1873 = vmul.f32 %v1868, %v1872
    %v1874 = vadd.f32 %v1873, 0.05243302
    %v1875 = vmul.f32 %v1868, %v1874
    %v1876 = vadd.f32 %v1875, 0.18741608
    %v1877 = vmul.f32 %v1868, %v1876
    %v1878 = vadd.f32 %v1877, 1.1283791
    %v1879 = vmul.f32 %v1843, %v1878
    %v1880 = vmul.f32 %v1868, 3.8918573e-05
    %v1881 = vadd.f32 %v1880, 0.001143296
    %v1882 = vmul.f32 %v1868, %v1881
    %v1883 = vadd.f32 %v1882, 0.014752088
    %v1884 = vmul.f32 %v1868, %v1883
    %v1885 = vadd.f32 %v1884, 0.112945676
    %v1886 = vmul.f32 %v1868, %v1885
    %v1887 = vadd.f32 %v1886, 0.4994258
    %v1888 = vmul.f32 %v1868, %v1887
    %v1889 = vadd.f32 %v1888, 1.0
    %v1890 = vrcp.pop %v1889
    %v1891 = vmul.f32 %v1889, %v1890
    %v1892 = vsub.f32 1.0, %v1891
    %v1893 = vmul.f32 %v1890, %v1892
    %v1894 = vadd.f32 %v1890, %v1893
    %vm1895 = vweird.f32 %v1889
    %vm1896 = vweird.f32 %v1890
    %vm1897 = vmor %vm1895, %vm1896
    %v1898 = vsel %vm1897, %v1890, %v1894
    %v1899 = vand.u32 2147483647, %v1889
    %vm1900 = vcmp.eq.f32.partialorder %v1899, 8.507059e+37
    %v1901 = vand.u32 %v1889, 2147483648
    %v1902 = vor.u32 1.1754944e-38, %v1901
    %v1903 = vsel %vm1900, %v1902, %v1898
    %v1904 = vmul.f32 %v1879, %v1903
    %v1905 = vmin.f32 %v1904, 1.0
    %v1906 = vmax.f32 %v1905, -1.0
    %v1907 = vmul.f32 %v1844, %v1844
    %v1908 = vmin.f32 16.0, %v1907
    %v1909 = vmul.f32 %v1908, 2.1237322e-06
    %v1910 = vadd.f32 %v1909, 0.00028619796
    %v1911 = vmul.f32 %v1908, %v1910
    %v1912 = vadd.f32 %v1911, 0.0036580483
    %v1913 = vmul.f32 %v1908, %v1912
    %v1914 = vadd.f32 %v1913, 0.05243302
    %v1915 = vmul.f32 %v1908, %v1914
    %v1916 = vadd.f32 %v1915, 0.18741608
    %v1917 = vmul.f32 %v1908, %v1916
    %v1918 = vadd.f32 %v1917, 1.1283791
    %v1919 = vmul.f32 %v1844, %v1918
    %v1920 = vmul.f32 %v1908, 3.8918573e-05
    %v1921 = vadd.f32 %v1920, 0.001143296
    %v1922 = vmul.f32 %v1908, %v1921
    %v1923 = vadd.f32 %v1922, 0.014752088
    %v1924 = vmul.f32 %v1908, %v1923
    %v1925 = vadd.f32 %v1924, 0.112945676
    %v1926 = vmul.f32 %v1908, %v1925
    %v1927 = vadd.f32 %v1926, 0.4994258
    %v1928 = vmul.f32 %v1908, %v1927
    %v1929 = vadd.f32 %v1928, 1.0
    %v1930 = vrcp.pop %v1929
    %v1931 = vmul.f32 %v1929, %v1930
    %v1932 = vsub.f32 1.0, %v1931
    %v1933 = vmul.f32 %v1930, %v1932
    %v1934 = vadd.f32 %v1930, %v1933
    %vm1935 = vweird.f32 %v1929
    %vm1936 = vweird.f32 %v1930
    %vm1937 = vmor %vm1935, %vm1936
    %v1938 = vsel %vm1937, %v1930, %v1934
    %v1939 = vand.u32 2147483647, %v1929
    %vm1940 = vcmp.eq.f32.partialorder %v1939, 8.507059e+37
    %v1941 = vand.u32 %v1929, 2147483648
    %v1942 = vor.u32 1.1754944e-38, %v1941
    %v1943 = vsel %vm1940, %v1942, %v1938
    %v1944 = vmul.f32 %v1919, %v1943
    %v1945 = vmin.f32 %v1944, 1.0
    %v1946 = vmax.f32 %v1945, -1.0
    %v1947 = vmul.f32 %v1845, %v1845
    %v1948 = vmin.f32 16.0, %v1947
    %v1949 = vmul.f32 %v1948, 2.1237322e-06
    %v1950 = vadd.f32 %v1949, 0.00028619796
    %v1951 = vmul.f32 %v1948, %v1950
    %v1952 = vadd.f32 %v1951, 0.0036580483
    %v1953 = vmul.f32 %v1948, %v1952
    %v1954 = vadd.f32 %v1953, 0.05243302
    %v1955 = vmul.f32 %v1948, %v1954
    %v1956 = vadd.f32 %v1955, 0.18741608
    %v1957 = vmul.f32 %v1948, %v1956
    %v1958 = vadd.f32 %v1957, 1.1283791
    %v1959 = vmul.f32 %v1845, %v1958
    %v1960 = vmul.f32 %v1948, 3.8918573e-05
    %v1961 = vadd.f32 %v1960, 0.001143296
    %v1962 = vmul.f32 %v1948, %v1961
    %v1963 = vadd.f32 %v1962, 0.014752088
    %v1964 = vmul.f32 %v1948, %v1963
    %v1965 = vadd.f32 %v1964, 0.112945676
    %v1966 = vmul.f32 %v1948, %v1965
    %v1967 = vadd.f32 %v1966, 0.4994258
    %v1968 = vmul.f32 %v1948, %v1967
    %v1969 = vadd.f32 %v1968, 1.0
    %v1970 = vrcp.pop %v1969
    %v1971 = vmul.f32 %v1969, %v1970
    %v1972 = vsub.f32 1.0, %v1971
    %v1973 = vmul.f32 %v1970, %v1972
    %v1974 = vadd.f32 %v1970, %v1973
    %vm1975 = vweird.f32 %v1969
    %vm1976 = vweird.f32 %v1970
    %vm1977 = vmor %vm1975, %vm1976
    %v1978 = vsel %vm1977, %v1970, %v1974
    %v1979 = vand.u32 2147483647, %v1969
    %vm1980 = vcmp.eq.f32.partialorder %v1979, 8.507059e+37
    %v1981 = vand.u32 %v1969, 2147483648
    %v1982 = vor.u32 1.1754944e-38, %v1981
    %v1983 = vsel %vm1980, %v1982, %v1978
    %v1984 = vmul.f32 %v1959, %v1983
    %v1985 = vmin.f32 %v1984, 1.0
    %v1986 = vmax.f32 %v1985, -1.0
    %v1987 = vmul.f32 %v1846, %v1846
    %v1988 = vmin.f32 16.0, %v1987
    %v1989 = vmul.f32 %v1988, 2.1237322e-06
    %v1990 = vadd.f32 %v1989, 0.00028619796
    %v1991 = vmul.f32 %v1988, %v1990
    %v1992 = vadd.f32 %v1991, 0.0036580483
    %v1993 = vmul.f32 %v1988, %v1992
    %v1994 = vadd.f32 %v1993, 0.05243302
    %v1995 = vmul.f32 %v1988, %v1994
    %v1996 = vadd.f32 %v1995, 0.18741608
    %v1997 = vmul.f32 %v1988, %v1996
    %v1998 = vadd.f32 %v1997, 1.1283791
    %v1999 = vmul.f32 %v1846, %v1998
    %v2000 = vmul.f32 %v1988, 3.8918573e-05
    %v2001 = vadd.f32 %v2000, 0.001143296
    %v2002 = vmul.f32 %v1988, %v2001
    %v2003 = vadd.f32 %v2002, 0.014752088
    %v2004 = vmul.f32 %v1988, %v2003
    %v2005 = vadd.f32 %v2004, 0.112945676
    %v2006 = vmul.f32 %v1988, %v2005
    %v2007 = vadd.f32 %v2006, 0.4994258
    %v2008 = vmul.f32 %v1988, %v2007
    %v2009 = vadd.f32 %v2008, 1.0
    %v2010 = vrcp.pop %v2009
    %v2011 = vmul.f32 %v2009, %v2010
    %v2012 = vsub.f32 1.0, %v2011
    %v2013 = vmul.f32 %v2010, %v2012
    %v2014 = vadd.f32 %v2010, %v2013
    %vm2015 = vweird.f32 %v2009
    %vm2016 = vweird.f32 %v2010
    %vm2017 = vmor %vm2015, %vm2016
    %v2018 = vsel %vm2017, %v2010, %v2014
    %v2019 = vand.u32 2147483647, %v2009
    %vm2020 = vcmp.eq.f32.partialorder %v2019, 8.507059e+37
    %v2021 = vand.u32 %v2009, 2147483648
    %v2022 = vor.u32 1.1754944e-38, %v2021
    %v2023 = vsel %vm2020, %v2022, %v2018
    %v2024 = vmul.f32 %v1999, %v2023
    %v2025 = vmin.f32 %v2024, 1.0
    %v2026 = vmax.f32 %v2025, -1.0
    %v2027 = vmul.f32 %v1847, %v1847
    %v2028 = vmin.f32 16.0, %v2027
    %v2029 = vmul.f32 %v2028, 2.1237322e-06
    %v2030 = vadd.f32 %v2029, 0.00028619796
    %v2031 = vmul.f32 %v2028, %v2030
    %v2032 = vadd.f32 %v2031, 0.0036580483
    %v2033 = vmul.f32 %v2028, %v2032
    %v2034 = vadd.f32 %v2033, 0.05243302
    %v2035 = vmul.f32 %v2028, %v2034
    %v2036 = vadd.f32 %v2035, 0.18741608
    %v2037 = vmul.f32 %v2028, %v2036
    %v2038 = vadd.f32 %v2037, 1.1283791
    %v2039 = vmul.f32 %v1847, %v2038
    %v2040 = vmul.f32 %v2028, 3.8918573e-05
    %v2041 = vadd.f32 %v2040, 0.001143296
    %v2042 = vmul.f32 %v2028, %v2041
    %v2043 = vadd.f32 %v2042, 0.014752088
    %v2044 = vmul.f32 %v2028, %v2043
    %v2045 = vadd.f32 %v2044, 0.112945676
    %v2046 = vmul.f32 %v2028, %v2045
    %v2047 = vadd.f32 %v2046, 0.4994258
    %v2048 = vmul.f32 %v2028, %v2047
    %v2049 = vadd.f32 %v2048, 1.0
    %v2050 = vrcp.pop %v2049
    %v2051 = vmul.f32 %v2049, %v2050
    %v2052 = vsub.f32 1.0, %v2051
    %v2053 = vmul.f32 %v2050, %v2052
    %v2054 = vadd.f32 %v2050, %v2053
    %vm2055 = vweird.f32 %v2049
    %vm2056 = vweird.f32 %v2050
    %vm2057 = vmor %vm2055, %vm2056
    %v2058 = vsel %vm2057, %v2050, %v2054
    %v2059 = vand.u32 2147483647, %v2049
    %vm2060 = vcmp.eq.f32.partialorder %v2059, 8.507059e+37
    %v2061 = vand.u32 %v2049, 2147483648
    %v2062 = vor.u32 1.1754944e-38, %v2061
    %v2063 = vsel %vm2060, %v2062, %v2058
    %v2064 = vmul.f32 %v2039, %v2063
    %v2065 = vmin.f32 %v2064, 1.0
    %v2066 = vmax.f32 %v2065, -1.0
    %v2067 = vmul.f32 %v1848, %v1848
    %v2068 = vmin.f32 16.0, %v2067
    %v2069 = vmul.f32 %v2068, 2.1237322e-06
    %v2070 = vadd.f32 %v2069, 0.00028619796
    %v2071 = vmul.f32 %v2068, %v2070
    %v2072 = vadd.f32 %v2071, 0.0036580483
    %v2073 = vmul.f32 %v2068, %v2072
    %v2074 = vadd.f32 %v2073, 0.05243302
    %v2075 = vmul.f32 %v2068, %v2074
    %v2076 = vadd.f32 %v2075, 0.18741608
    %v2077 = vmul.f32 %v2068, %v2076
    %v2078 = vadd.f32 %v2077, 1.1283791
    %v2079 = vmul.f32 %v1848, %v2078
    %v2080 = vmul.f32 %v2068, 3.8918573e-05
    %v2081 = vadd.f32 %v2080, 0.001143296
    %v2082 = vmul.f32 %v2068, %v2081
    %v2083 = vadd.f32 %v2082, 0.014752088
    %v2084 = vmul.f32 %v2068, %v2083
    %v2085 = vadd.f32 %v2084, 0.112945676
    %v2086 = vmul.f32 %v2068, %v2085
    %v2087 = vadd.f32 %v2086, 0.4994258
    %v2088 = vmul.f32 %v2068, %v2087
    %v2089 = vadd.f32 %v2088, 1.0
    %v2090 = vrcp.pop %v2089
    %v2091 = vmul.f32 %v2089, %v2090
    %v2092 = vsub.f32 1.0, %v2091
    %v2093 = vmul.f32 %v2090, %v2092
    %v2094 = vadd.f32 %v2090, %v2093
    %vm2095 = vweird.f32 %v2089
    %vm2096 = vweird.f32 %v2090
    %vm2097 = vmor %vm2095, %vm2096
    %v2098 = vsel %vm2097, %v2090, %v2094
    %v2099 = vand.u32 2147483647, %v2089
    %vm2100 = vcmp.eq.f32.partialorder %v2099, 8.507059e+37
    %v2101 = vand.u32 %v2089, 2147483648
    %v2102 = vor.u32 1.1754944e-38, %v2101
    %v2103 = vsel %vm2100, %v2102, %v2098
    %v2104 = vmul.f32 %v2079, %v2103
    %v2105 = vmin.f32 %v2104, 1.0
    %v2106 = vmax.f32 %v2105, -1.0
    %v2107 = vmul.f32 %v1849, %v1849
    %v2108 = vmin.f32 16.0, %v2107
    %v2109 = vmul.f32 %v2108, 2.1237322e-06
    %v2110 = vadd.f32 %v2109, 0.00028619796
    %v2111 = vmul.f32 %v2108, %v2110
    %v2112 = vadd.f32 %v2111, 0.0036580483
    %v2113 = vmul.f32 %v2108, %v2112
    %v2114 = vadd.f32 %v2113, 0.05243302
    %v2115 = vmul.f32 %v2108, %v2114
    %v2116 = vadd.f32 %v2115, 0.18741608
    %v2117 = vmul.f32 %v2108, %v2116
    %v2118 = vadd.f32 %v2117, 1.1283791
    %v2119 = vmul.f32 %v1849, %v2118
    %v2120 = vmul.f32 %v2108, 3.8918573e-05
    %v2121 = vadd.f32 %v2120, 0.001143296
    %v2122 = vmul.f32 %v2108, %v2121
    %v2123 = vadd.f32 %v2122, 0.014752088
    %v2124 = vmul.f32 %v2108, %v2123
    %v2125 = vadd.f32 %v2124, 0.112945676
    %v2126 = vmul.f32 %v2108, %v2125
    %v2127 = vadd.f32 %v2126, 0.4994258
    %v2128 = vmul.f32 %v2108, %v2127
    %v2129 = vadd.f32 %v2128, 1.0
    %v2130 = vrcp.pop %v2129
    %v2131 = vmul.f32 %v2129, %v2130
    %v2132 = vsub.f32 1.0, %v2131
    %v2133 = vmul.f32 %v2130, %v2132
    %v2134 = vadd.f32 %v2130, %v2133
    %vm2135 = vweird.f32 %v2129
    %vm2136 = vweird.f32 %v2130
    %vm2137 = vmor %vm2135, %vm2136
    %v2138 = vsel %vm2137, %v2130, %v2134
    %v2139 = vand.u32 2147483647, %v2129
    %vm2140 = vcmp.eq.f32.partialorder %v2139, 8.507059e+37
    %v2141 = vand.u32 %v2129, 2147483648
    %v2142 = vor.u32 1.1754944e-38, %v2141
    %v2143 = vsel %vm2140, %v2142, %v2138
    %v2144 = vmul.f32 %v2119, %v2143
    %v2145 = vmin.f32 %v2144, 1.0
    %v2146 = vmax.f32 %v2145, -1.0
    %v2147 = vmul.f32 %v1850, %v1850
    %v2148 = vmin.f32 16.0, %v2147
    %v2149 = vmul.f32 %v2148, 2.1237322e-06
    %v2150 = vadd.f32 %v2149, 0.00028619796
    %v2151 = vmul.f32 %v2148, %v2150
    %v2152 = vadd.f32 %v2151, 0.0036580483
    %v2153 = vmul.f32 %v2148, %v2152
    %v2154 = vadd.f32 %v2153, 0.05243302
    %v2155 = vmul.f32 %v2148, %v2154
    %v2156 = vadd.f32 %v2155, 0.18741608
    %v2157 = vmul.f32 %v2148, %v2156
    %v2158 = vadd.f32 %v2157, 1.1283791
    %v2159 = vmul.f32 %v1850, %v2158
    %v2160 = vmul.f32 %v2148, 3.8918573e-05
    %v2161 = vadd.f32 %v2160, 0.001143296
    %v2162 = vmul.f32 %v2148, %v2161
    %v2163 = vadd.f32 %v2162, 0.014752088
    %v2164 = vmul.f32 %v2148, %v2163
    %v2165 = vadd.f32 %v2164, 0.112945676
    %v2166 = vmul.f32 %v2148, %v2165
    %v2167 = vadd.f32 %v2166, 0.4994258
    %v2168 = vmul.f32 %v2148, %v2167
    %v2169 = vadd.f32 %v2168, 1.0
    %v2170 = vrcp.pop %v2169
    %v2171 = vmul.f32 %v2169, %v2170
    %v2172 = vsub.f32 1.0, %v2171
    %v2173 = vmul.f32 %v2170, %v2172
    %v2174 = vadd.f32 %v2170, %v2173
    %vm2175 = vweird.f32 %v2169
    %vm2176 = vweird.f32 %v2170
    %vm2177 = vmor %vm2175, %vm2176
    %v2178 = vsel %vm2177, %v2170, %v2174
    %v2179 = vand.u32 2147483647, %v2169
    %vm2180 = vcmp.eq.f32.partialorder %v2179, 8.507059e+37
    %v2181 = vand.u32 %v2169, 2147483648
    %v2182 = vor.u32 1.1754944e-38, %v2181
    %v2183 = vsel %vm2180, %v2182, %v2178
    %v2184 = vmul.f32 %v2159, %v2183
    %v2185 = vmin.f32 %v2184, 1.0
    %v2186 = vmax.f32 %v2185, -1.0
    %v2187 = vmul.f32 %v1851, %v1851
    %v2188 = vmin.f32 16.0, %v2187
    %v2189 = vmul.f32 %v2188, 2.1237322e-06
    %v2190 = vadd.f32 %v2189, 0.00028619796
    %v2191 = vmul.f32 %v2188, %v2190
    %v2192 = vadd.f32 %v2191, 0.0036580483
    %v2193 = vmul.f32 %v2188, %v2192
    %v2194 = vadd.f32 %v2193, 0.05243302
    %v2195 = vmul.f32 %v2188, %v2194
    %v2196 = vadd.f32 %v2195, 0.18741608
    %v2197 = vmul.f32 %v2188, %v2196
    %v2198 = vadd.f32 %v2197, 1.1283791
    %v2199 = vmul.f32 %v1851, %v2198
    %v2200 = vmul.f32 %v2188, 3.8918573e-05
    %v2201 = vadd.f32 %v2200, 0.001143296
    %v2202 = vmul.f32 %v2188, %v2201
    %v2203 = vadd.f32 %v2202, 0.014752088
    %v2204 = vmul.f32 %v2188, %v2203
    %v2205 = vadd.f32 %v2204, 0.112945676
    %v2206 = vmul.f32 %v2188, %v2205
    %v2207 = vadd.f32 %v2206, 0.4994258
    %v2208 = vmul.f32 %v2188, %v2207
    %v2209 = vadd.f32 %v2208, 1.0
    %v2210 = vrcp.pop %v2209
    %v2211 = vmul.f32 %v2209, %v2210
    %v2212 = vsub.f32 1.0, %v2211
    %v2213 = vmul.f32 %v2210, %v2212
    %v2214 = vadd.f32 %v2210, %v2213
    %vm2215 = vweird.f32 %v2209
    %vm2216 = vweird.f32 %v2210
    %vm2217 = vmor %vm2215, %vm2216
    %v2218 = vsel %vm2217, %v2210, %v2214
    %v2219 = vand.u32 2147483647, %v2209
    %vm2220 = vcmp.eq.f32.partialorder %v2219, 8.507059e+37
    %v2221 = vand.u32 %v2209, 2147483648
    %v2222 = vor.u32 1.1754944e-38, %v2221
    %v2223 = vsel %vm2220, %v2222, %v2218
    %v2224 = vmul.f32 %v2199, %v2223
    %v2225 = vmin.f32 %v2224, 1.0
    %v2226 = vmax.f32 %v2225, -1.0
    %v2227 = vmul.f32 %v1852, %v1852
    %v2228 = vmin.f32 16.0, %v2227
    %v2229 = vmul.f32 %v2228, 2.1237322e-06
    %v2230 = vadd.f32 %v2229, 0.00028619796
    %v2231 = vmul.f32 %v2228, %v2230
    %v2232 = vadd.f32 %v2231, 0.0036580483
    %v2233 = vmul.f32 %v2228, %v2232
    %v2234 = vadd.f32 %v2233, 0.05243302
    %v2235 = vmul.f32 %v2228, %v2234
    %v2236 = vadd.f32 %v2235, 0.18741608
    %v2237 = vmul.f32 %v2228, %v2236
    %v2238 = vadd.f32 %v2237, 1.1283791
    %v2239 = vmul.f32 %v1852, %v2238
    %v2240 = vmul.f32 %v2228, 3.8918573e-05
    %v2241 = vadd.f32 %v2240, 0.001143296
    %v2242 = vmul.f32 %v2228, %v2241
    %v2243 = vadd.f32 %v2242, 0.014752088
    %v2244 = vmul.f32 %v2228, %v2243
    %v2245 = vadd.f32 %v2244, 0.112945676
    %v2246 = vmul.f32 %v2228, %v2245
    %v2247 = vadd.f32 %v2246, 0.4994258
    %v2248 = vmul.f32 %v2228, %v2247
    %v2249 = vadd.f32 %v2248, 1.0
    %v2250 = vrcp.pop %v2249
    %v2251 = vmul.f32 %v2249, %v2250
    %v2252 = vsub.f32 1.0, %v2251
    %v2253 = vmul.f32 %v2250, %v2252
    %v2254 = vadd.f32 %v2250, %v2253
    %vm2255 = vweird.f32 %v2249
    %vm2256 = vweird.f32 %v2250
    %vm2257 = vmor %vm2255, %vm2256
    %v2258 = vsel %vm2257, %v2250, %v2254
    %v2259 = vand.u32 2147483647, %v2249
    %vm2260 = vcmp.eq.f32.partialorder %v2259, 8.507059e+37
    %v2261 = vand.u32 %v2249, 2147483648
    %v2262 = vor.u32 1.1754944e-38, %v2261
    %v2263 = vsel %vm2260, %v2262, %v2258
    %v2264 = vmul.f32 %v2239, %v2263
    %v2265 = vmin.f32 %v2264, 1.0
    %v2266 = vmax.f32 %v2265, -1.0
    %v2267 = vmul.f32 %v1853, %v1853
    %v2268 = vmin.f32 16.0, %v2267
    %v2269 = vmul.f32 %v2268, 2.1237322e-06
    %v2270 = vadd.f32 %v2269, 0.00028619796
    %v2271 = vmul.f32 %v2268, %v2270
    %v2272 = vadd.f32 %v2271, 0.0036580483
    %v2273 = vmul.f32 %v2268, %v2272
    %v2274 = vadd.f32 %v2273, 0.05243302
    %v2275 = vmul.f32 %v2268, %v2274
    %v2276 = vadd.f32 %v2275, 0.18741608
    %v2277 = vmul.f32 %v2268, %v2276
    %v2278 = vadd.f32 %v2277, 1.1283791
    %v2279 = vmul.f32 %v1853, %v2278
    %v2280 = vmul.f32 %v2268, 3.8918573e-05
    %v2281 = vadd.f32 %v2280, 0.001143296
    %v2282 = vmul.f32 %v2268, %v2281
    %v2283 = vadd.f32 %v2282, 0.014752088
    %v2284 = vmul.f32 %v2268, %v2283
    %v2285 = vadd.f32 %v2284, 0.112945676
    %v2286 = vmul.f32 %v2268, %v2285
    %v2287 = vadd.f32 %v2286, 0.4994258
    %v2288 = vmul.f32 %v2268, %v2287
    %v2289 = vadd.f32 %v2288, 1.0
    %v2290 = vrcp.pop %v2289
    %v2291 = vmul.f32 %v2289, %v2290
    %v2292 = vsub.f32 1.0, %v2291
    %v2293 = vmul.f32 %v2290, %v2292
    %v2294 = vadd.f32 %v2290, %v2293
    %vm2295 = vweird.f32 %v2289
    %vm2296 = vweird.f32 %v2290
    %vm2297 = vmor %vm2295, %vm2296
    %v2298 = vsel %vm2297, %v2290, %v2294
    %v2299 = vand.u32 2147483647, %v2289
    %vm2300 = vcmp.eq.f32.partialorder %v2299, 8.507059e+37
    %v2301 = vand.u32 %v2289, 2147483648
    %v2302 = vor.u32 1.1754944e-38, %v2301
    %v2303 = vsel %vm2300, %v2302, %v2298
    %v2304 = vmul.f32 %v2279, %v2303
    %v2305 = vmin.f32 %v2304, 1.0
    %v2306 = vmax.f32 %v2305, -1.0
    %v2307 = vmul.f32 %v1854, %v1854
    %v2308 = vmin.f32 16.0, %v2307
    %v2309 = vmul.f32 %v2308, 2.1237322e-06
    %v2310 = vadd.f32 %v2309, 0.00028619796
    %v2311 = vmul.f32 %v2308, %v2310
    %v2312 = vadd.f32 %v2311, 0.0036580483
    %v2313 = vmul.f32 %v2308, %v2312
    %v2314 = vadd.f32 %v2313, 0.05243302
    %v2315 = vmul.f32 %v2308, %v2314
    %v2316 = vadd.f32 %v2315, 0.18741608
    %v2317 = vmul.f32 %v2308, %v2316
    %v2318 = vadd.f32 %v2317, 1.1283791
    %v2319 = vmul.f32 %v1854, %v2318
    %v2320 = vmul.f32 %v2308, 3.8918573e-05
    %v2321 = vadd.f32 %v2320, 0.001143296
    %v2322 = vmul.f32 %v2308, %v2321
    %v2323 = vadd.f32 %v2322, 0.014752088
    %v2324 = vmul.f32 %v2308, %v2323
    %v2325 = vadd.f32 %v2324, 0.112945676
    %v2326 = vmul.f32 %v2308, %v2325
    %v2327 = vadd.f32 %v2326, 0.4994258
    %v2328 = vmul.f32 %v2308, %v2327
    %v2329 = vadd.f32 %v2328, 1.0
    %v2330 = vrcp.pop %v2329
    %v2331 = vmul.f32 %v2329, %v2330
    %v2332 = vsub.f32 1.0, %v2331
    %v2333 = vmul.f32 %v2330, %v2332
    %v2334 = vadd.f32 %v2330, %v2333
    %vm2335 = vweird.f32 %v2329
    %vm2336 = vweird.f32 %v2330
    %vm2337 = vmor %vm2335, %vm2336
    %v2338 = vsel %vm2337, %v2330, %v2334
    %v2339 = vand.u32 2147483647, %v2329
    %vm2340 = vcmp.eq.f32.partialorder %v2339, 8.507059e+37
    %v2341 = vand.u32 %v2329, 2147483648
    %v2342 = vor.u32 1.1754944e-38, %v2341
    %v2343 = vsel %vm2340, %v2342, %v2338
    %v2344 = vmul.f32 %v2319, %v2343
    %v2345 = vmin.f32 %v2344, 1.0
    %v2346 = vmax.f32 %v2345, -1.0
    %v2347 = vmul.f32 %v1855, %v1855
    %v2348 = vmin.f32 16.0, %v2347
    %v2349 = vmul.f32 %v2348, 2.1237322e-06
    %v2350 = vadd.f32 %v2349, 0.00028619796
    %v2351 = vmul.f32 %v2348, %v2350
    %v2352 = vadd.f32 %v2351, 0.0036580483
    %v2353 = vmul.f32 %v2348, %v2352
    %v2354 = vadd.f32 %v2353, 0.05243302
    %v2355 = vmul.f32 %v2348, %v2354
    %v2356 = vadd.f32 %v2355, 0.18741608
    %v2357 = vmul.f32 %v2348, %v2356
    %v2358 = vadd.f32 %v2357, 1.1283791
    %v2359 = vmul.f32 %v1855, %v2358
    %v2360 = vmul.f32 %v2348, 3.8918573e-05
    %v2361 = vadd.f32 %v2360, 0.001143296
    %v2362 = vmul.f32 %v2348, %v2361
    %v2363 = vadd.f32 %v2362, 0.014752088
    %v2364 = vmul.f32 %v2348, %v2363
    %v2365 = vadd.f32 %v2364, 0.112945676
    %v2366 = vmul.f32 %v2348, %v2365
    %v2367 = vadd.f32 %v2366, 0.4994258
    %v2368 = vmul.f32 %v2348, %v2367
    %v2369 = vadd.f32 %v2368, 1.0
    %v2370 = vrcp.pop %v2369
    %v2371 = vmul.f32 %v2369, %v2370
    %v2372 = vsub.f32 1.0, %v2371
    %v2373 = vmul.f32 %v2370, %v2372
    %v2374 = vadd.f32 %v2370, %v2373
    %vm2375 = vweird.f32 %v2369
    %vm2376 = vweird.f32 %v2370
    %vm2377 = vmor %vm2375, %vm2376
    %v2378 = vsel %vm2377, %v2370, %v2374
    %v2379 = vand.u32 2147483647, %v2369
    %vm2380 = vcmp.eq.f32.partialorder %v2379, 8.507059e+37
    %v2381 = vand.u32 %v2369, 2147483648
    %v2382 = vor.u32 1.1754944e-38, %v2381
    %v2383 = vsel %vm2380, %v2382, %v2378
    %v2384 = vmul.f32 %v2359, %v2383
    %v2385 = vmin.f32 %v2384, 1.0
    %v2386 = vmax.f32 %v2385, -1.0
    %v2387 = vmul.f32 %v1856, %v1856
    %v2388 = vmin.f32 16.0, %v2387
    %v2389 = vmul.f32 %v2388, 2.1237322e-06
    %v2390 = vadd.f32 %v2389, 0.00028619796
    %v2391 = vmul.f32 %v2388, %v2390
    %v2392 = vadd.f32 %v2391, 0.0036580483
    %v2393 = vmul.f32 %v2388, %v2392
    %v2394 = vadd.f32 %v2393, 0.05243302
    %v2395 = vmul.f32 %v2388, %v2394
    %v2396 = vadd.f32 %v2395, 0.18741608
    %v2397 = vmul.f32 %v2388, %v2396
    %v2398 = vadd.f32 %v2397, 1.1283791
    %v2399 = vmul.f32 %v1856, %v2398
    %v2400 = vmul.f32 %v2388, 3.8918573e-05
    %v2401 = vadd.f32 %v2400, 0.001143296
    %v2402 = vmul.f32 %v2388, %v2401
    %v2403 = vadd.f32 %v2402, 0.014752088
    %v2404 = vmul.f32 %v2388, %v2403
    %v2405 = vadd.f32 %v2404, 0.112945676
    %v2406 = vmul.f32 %v2388, %v2405
    %v2407 = vadd.f32 %v2406, 0.4994258
    %v2408 = vmul.f32 %v2388, %v2407
    %v2409 = vadd.f32 %v2408, 1.0
    %v2410 = vrcp.pop %v2409
    %v2411 = vmul.f32 %v2409, %v2410
    %v2412 = vsub.f32 1.0, %v2411
    %v2413 = vmul.f32 %v2410, %v2412
    %v2414 = vadd.f32 %v2410, %v2413
    %vm2415 = vweird.f32 %v2409
    %vm2416 = vweird.f32 %v2410
    %vm2417 = vmor %vm2415, %vm2416
    %v2418 = vsel %vm2417, %v2410, %v2414
    %v2419 = vand.u32 2147483647, %v2409
    %vm2420 = vcmp.eq.f32.partialorder %v2419, 8.507059e+37
    %v2421 = vand.u32 %v2409, 2147483648
    %v2422 = vor.u32 1.1754944e-38, %v2421
    %v2423 = vsel %vm2420, %v2422, %v2418
    %v2424 = vmul.f32 %v2399, %v2423
    %v2425 = vmin.f32 %v2424, 1.0
    %v2426 = vmax.f32 %v2425, -1.0
    %v2427 = vmul.f32 %v1857, %v1857
    %v2428 = vmin.f32 16.0, %v2427
    %v2429 = vmul.f32 %v2428, 2.1237322e-06
    %v2430 = vadd.f32 %v2429, 0.00028619796
    %v2431 = vmul.f32 %v2428, %v2430
    %v2432 = vadd.f32 %v2431, 0.0036580483
    %v2433 = vmul.f32 %v2428, %v2432
    %v2434 = vadd.f32 %v2433, 0.05243302
    %v2435 = vmul.f32 %v2428, %v2434
    %v2436 = vadd.f32 %v2435, 0.18741608
    %v2437 = vmul.f32 %v2428, %v2436
    %v2438 = vadd.f32 %v2437, 1.1283791
    %v2439 = vmul.f32 %v1857, %v2438
    %v2440 = vmul.f32 %v2428, 3.8918573e-05
    %v2441 = vadd.f32 %v2440, 0.001143296
    %v2442 = vmul.f32 %v2428, %v2441
    %v2443 = vadd.f32 %v2442, 0.014752088
    %v2444 = vmul.f32 %v2428, %v2443
    %v2445 = vadd.f32 %v2444, 0.112945676
    %v2446 = vmul.f32 %v2428, %v2445
    %v2447 = vadd.f32 %v2446, 0.4994258
    %v2448 = vmul.f32 %v2428, %v2447
    %v2449 = vadd.f32 %v2448, 1.0
    %v2450 = vrcp.pop %v2449
    %v2451 = vmul.f32 %v2449, %v2450
    %v2452 = vsub.f32 1.0, %v2451
    %v2453 = vmul.f32 %v2450, %v2452
    %v2454 = vadd.f32 %v2450, %v2453
    %vm2455 = vweird.f32 %v2449
    %vm2456 = vweird.f32 %v2450
    %vm2457 = vmor %vm2455, %vm2456
    %v2458 = vsel %vm2457, %v2450, %v2454
    %v2459 = vand.u32 2147483647, %v2449
    %vm2460 = vcmp.eq.f32.partialorder %v2459, 8.507059e+37
    %v2461 = vand.u32 %v2449, 2147483648
    %v2462 = vor.u32 1.1754944e-38, %v2461
    %v2463 = vsel %vm2460, %v2462, %v2458
    %v2464 = vmul.f32 %v2439, %v2463
    %v2465 = vmin.f32 %v2464, 1.0
    %v2466 = vmax.f32 %v2465, -1.0
    %v2467 = vmul.f32 %v1858, %v1858
    %v2468 = vmin.f32 16.0, %v2467
    %v2469 = vmul.f32 %v2468, 2.1237322e-06
    %v2470 = vadd.f32 %v2469, 0.00028619796
    %v2471 = vmul.f32 %v2468, %v2470
    %v2472 = vadd.f32 %v2471, 0.0036580483
    %v2473 = vmul.f32 %v2468, %v2472
    %v2474 = vadd.f32 %v2473, 0.05243302
    %v2475 = vmul.f32 %v2468, %v2474
    %v2476 = vadd.f32 %v2475, 0.18741608
    %v2477 = vmul.f32 %v2468, %v2476
    %v2478 = vadd.f32 %v2477, 1.1283791
    %v2479 = vmul.f32 %v1858, %v2478
    %v2480 = vmul.f32 %v2468, 3.8918573e-05
    %v2481 = vadd.f32 %v2480, 0.001143296
    %v2482 = vmul.f32 %v2468, %v2481
    %v2483 = vadd.f32 %v2482, 0.014752088
    %v2484 = vmul.f32 %v2468, %v2483
    %v2485 = vadd.f32 %v2484, 0.112945676
    %v2486 = vmul.f32 %v2468, %v2485
    %v2487 = vadd.f32 %v2486, 0.4994258
    %v2488 = vmul.f32 %v2468, %v2487
    %v2489 = vadd.f32 %v2488, 1.0
    %v2490 = vrcp.pop %v2489
    %v2491 = vmul.f32 %v2489, %v2490
    %v2492 = vsub.f32 1.0, %v2491
    %v2493 = vmul.f32 %v2490, %v2492
    %v2494 = vadd.f32 %v2490, %v2493
    %vm2495 = vweird.f32 %v2489
    %vm2496 = vweird.f32 %v2490
    %vm2497 = vmor %vm2495, %vm2496
    %v2498 = vsel %vm2497, %v2490, %v2494
    %v2499 = vand.u32 2147483647, %v2489
    %vm2500 = vcmp.eq.f32.partialorder %v2499, 8.507059e+37
    %v2501 = vand.u32 %v2489, 2147483648
    %v2502 = vor.u32 1.1754944e-38, %v2501
    %v2503 = vsel %vm2500, %v2502, %v2498
    %v2504 = vmul.f32 %v2479, %v2503
    %v2505 = vmin.f32 %v2504, 1.0
    %v2506 = vmax.f32 %v2505, -1.0
    %v2507 = vmul.f32 %v1859, %v1859
    %v2508 = vmin.f32 16.0, %v2507
    %v2509 = vmul.f32 %v2508, 2.1237322e-06
    %v2510 = vadd.f32 %v2509, 0.00028619796
    %v2511 = vmul.f32 %v2508, %v2510
    %v2512 = vadd.f32 %v2511, 0.0036580483
    %v2513 = vmul.f32 %v2508, %v2512
    %v2514 = vadd.f32 %v2513, 0.05243302
    %v2515 = vmul.f32 %v2508, %v2514
    %v2516 = vadd.f32 %v2515, 0.18741608
    %v2517 = vmul.f32 %v2508, %v2516
    %v2518 = vadd.f32 %v2517, 1.1283791
    %v2519 = vmul.f32 %v1859, %v2518
    %v2520 = vmul.f32 %v2508, 3.8918573e-05
    %v2521 = vadd.f32 %v2520, 0.001143296
    %v2522 = vmul.f32 %v2508, %v2521
    %v2523 = vadd.f32 %v2522, 0.014752088
    %v2524 = vmul.f32 %v2508, %v2523
    %v2525 = vadd.f32 %v2524, 0.112945676
    %v2526 = vmul.f32 %v2508, %v2525
    %v2527 = vadd.f32 %v2526, 0.4994258
    %v2528 = vmul.f32 %v2508, %v2527
    %v2529 = vadd.f32 %v2528, 1.0
    %v2530 = vrcp.pop %v2529
    %v2531 = vmul.f32 %v2529, %v2530
    %v2532 = vsub.f32 1.0, %v2531
    %v2533 = vmul.f32 %v2530, %v2532
    %v2534 = vadd.f32 %v2530, %v2533
    %vm2535 = vweird.f32 %v2529
    %vm2536 = vweird.f32 %v2530
    %vm2537 = vmor %vm2535, %vm2536
    %v2538 = vsel %vm2537, %v2530, %v2534
    %v2539 = vand.u32 2147483647, %v2529
    %vm2540 = vcmp.eq.f32.partialorder %v2539, 8.507059e+37
    %v2541 = vand.u32 %v2529, 2147483648
    %v2542 = vor.u32 1.1754944e-38, %v2541
    %v2543 = vsel %vm2540, %v2542, %v2538
    %v2544 = vmul.f32 %v2519, %v2543
    %v2545 = vmin.f32 %v2544, 1.0
    %v2546 = vmax.f32 %v2545, -1.0
    %v2547 = vmul.f32 %v1860, %v1860
    %v2548 = vmin.f32 16.0, %v2547
    %v2549 = vmul.f32 %v2548, 2.1237322e-06
    %v2550 = vadd.f32 %v2549, 0.00028619796
    %v2551 = vmul.f32 %v2548, %v2550
    %v2552 = vadd.f32 %v2551, 0.0036580483
    %v2553 = vmul.f32 %v2548, %v2552
    %v2554 = vadd.f32 %v2553, 0.05243302
    %v2555 = vmul.f32 %v2548, %v2554
    %v2556 = vadd.f32 %v2555, 0.18741608
    %v2557 = vmul.f32 %v2548, %v2556
    %v2558 = vadd.f32 %v2557, 1.1283791
    %v2559 = vmul.f32 %v1860, %v2558
    %v2560 = vmul.f32 %v2548, 3.8918573e-05
    %v2561 = vadd.f32 %v2560, 0.001143296
    %v2562 = vmul.f32 %v2548, %v2561
    %v2563 = vadd.f32 %v2562, 0.014752088
    %v2564 = vmul.f32 %v2548, %v2563
    %v2565 = vadd.f32 %v2564, 0.112945676
    %v2566 = vmul.f32 %v2548, %v2565
    %v2567 = vadd.f32 %v2566, 0.4994258
    %v2568 = vmul.f32 %v2548, %v2567
    %v2569 = vadd.f32 %v2568, 1.0
    %v2570 = vrcp.pop %v2569
    %v2571 = vmul.f32 %v2569, %v2570
    %v2572 = vsub.f32 1.0, %v2571
    %v2573 = vmul.f32 %v2570, %v2572
    %v2574 = vadd.f32 %v2570, %v2573
    %vm2575 = vweird.f32 %v2569
    %vm2576 = vweird.f32 %v2570
    %vm2577 = vmor %vm2575, %vm2576
    %v2578 = vsel %vm2577, %v2570, %v2574
    %v2579 = vand.u32 2147483647, %v2569
    %vm2580 = vcmp.eq.f32.partialorder %v2579, 8.507059e+37
    %v2581 = vand.u32 %v2569, 2147483648
    %v2582 = vor.u32 1.1754944e-38, %v2581
    %v2583 = vsel %vm2580, %v2582, %v2578
    %v2584 = vmul.f32 %v2559, %v2583
    %v2585 = vmin.f32 %v2584, 1.0
    %v2586 = vmax.f32 %v2585, -1.0
    %v2587 = vmul.f32 %v1861, %v1861
    %v2588 = vmin.f32 16.0, %v2587
    %v2589 = vmul.f32 %v2588, 2.1237322e-06
    %v2590 = vadd.f32 %v2589, 0.00028619796
    %v2591 = vmul.f32 %v2588, %v2590
    %v2592 = vadd.f32 %v2591, 0.0036580483
    %v2593 = vmul.f32 %v2588, %v2592
    %v2594 = vadd.f32 %v2593, 0.05243302
    %v2595 = vmul.f32 %v2588, %v2594
    %v2596 = vadd.f32 %v2595, 0.18741608
    %v2597 = vmul.f32 %v2588, %v2596
    %v2598 = vadd.f32 %v2597, 1.1283791
    %v2599 = vmul.f32 %v1861, %v2598
    %v2600 = vmul.f32 %v2588, 3.8918573e-05
    %v2601 = vadd.f32 %v2600, 0.001143296
    %v2602 = vmul.f32 %v2588, %v2601
    %v2603 = vadd.f32 %v2602, 0.014752088
    %v2604 = vmul.f32 %v2588, %v2603
    %v2605 = vadd.f32 %v2604, 0.112945676
    %v2606 = vmul.f32 %v2588, %v2605
    %v2607 = vadd.f32 %v2606, 0.4994258
    %v2608 = vmul.f32 %v2588, %v2607
    %v2609 = vadd.f32 %v2608, 1.0
    %v2610 = vrcp.pop %v2609
    %v2611 = vmul.f32 %v2609, %v2610
    %v2612 = vsub.f32 1.0, %v2611
    %v2613 = vmul.f32 %v2610, %v2612
    %v2614 = vadd.f32 %v2610, %v2613
    %vm2615 = vweird.f32 %v2609
    %vm2616 = vweird.f32 %v2610
    %vm2617 = vmor %vm2615, %vm2616
    %v2618 = vsel %vm2617, %v2610, %v2614
    %v2619 = vand.u32 2147483647, %v2609
    %vm2620 = vcmp.eq.f32.partialorder %v2619, 8.507059e+37
    %v2621 = vand.u32 %v2609, 2147483648
    %v2622 = vor.u32 1.1754944e-38, %v2621
    %v2623 = vsel %vm2620, %v2622, %v2618
    %v2624 = vmul.f32 %v2599, %v2623
    %v2625 = vmin.f32 %v2624, 1.0
    %v2626 = vmax.f32 %v2625, -1.0
    %v2627 = vmul.f32 %v1862, %v1862
    %v2628 = vmin.f32 16.0, %v2627
    %v2629 = vmul.f32 %v2628, 2.1237322e-06
    %v2630 = vadd.f32 %v2629, 0.00028619796
    %v2631 = vmul.f32 %v2628, %v2630
    %v2632 = vadd.f32 %v2631, 0.0036580483
    %v2633 = vmul.f32 %v2628, %v2632
    %v2634 = vadd.f32 %v2633, 0.05243302
    %v2635 = vmul.f32 %v2628, %v2634
    %v2636 = vadd.f32 %v2635, 0.18741608
    %v2637 = vmul.f32 %v2628, %v2636
    %v2638 = vadd.f32 %v2637, 1.1283791
    %v2639 = vmul.f32 %v1862, %v2638
    %v2640 = vmul.f32 %v2628, 3.8918573e-05
    %v2641 = vadd.f32 %v2640, 0.001143296
    %v2642 = vmul.f32 %v2628, %v2641
    %v2643 = vadd.f32 %v2642, 0.014752088
    %v2644 = vmul.f32 %v2628, %v2643
    %v2645 = vadd.f32 %v2644, 0.112945676
    %v2646 = vmul.f32 %v2628, %v2645
    %v2647 = vadd.f32 %v2646, 0.4994258
    %v2648 = vmul.f32 %v2628, %v2647
    %v2649 = vadd.f32 %v2648, 1.0
    %v2650 = vrcp.pop %v2649
    %v2651 = vmul.f32 %v2649, %v2650
    %v2652 = vsub.f32 1.0, %v2651
    %v2653 = vmul.f32 %v2650, %v2652
    %v2654 = vadd.f32 %v2650, %v2653
    %vm2655 = vweird.f32 %v2649
    %vm2656 = vweird.f32 %v2650
    %vm2657 = vmor %vm2655, %vm2656
    %v2658 = vsel %vm2657, %v2650, %v2654
    %v2659 = vand.u32 2147483647, %v2649
    %vm2660 = vcmp.eq.f32.partialorder %v2659, 8.507059e+37
    %v2661 = vand.u32 %v2649, 2147483648
    %v2662 = vor.u32 1.1754944e-38, %v2661
    %v2663 = vsel %vm2660, %v2662, %v2658
    %v2664 = vmul.f32 %v2639, %v2663
    %v2665 = vmin.f32 %v2664, 1.0
    %v2666 = vmax.f32 %v2665, -1.0
    %v2667 = vmul.f32 %v1863, %v1863
    %v2668 = vmin.f32 16.0, %v2667
    %v2669 = vmul.f32 %v2668, 2.1237322e-06
    %v2670 = vadd.f32 %v2669, 0.00028619796
    %v2671 = vmul.f32 %v2668, %v2670
    %v2672 = vadd.f32 %v2671, 0.0036580483
    %v2673 = vmul.f32 %v2668, %v2672
    %v2674 = vadd.f32 %v2673, 0.05243302
    %v2675 = vmul.f32 %v2668, %v2674
    %v2676 = vadd.f32 %v2675, 0.18741608
    %v2677 = vmul.f32 %v2668, %v2676
    %v2678 = vadd.f32 %v2677, 1.1283791
    %v2679 = vmul.f32 %v1863, %v2678
    %v2680 = vmul.f32 %v2668, 3.8918573e-05
    %v2681 = vadd.f32 %v2680, 0.001143296
    %v2682 = vmul.f32 %v2668, %v2681
    %v2683 = vadd.f32 %v2682, 0.014752088
    %v2684 = vmul.f32 %v2668, %v2683
    %v2685 = vadd.f32 %v2684, 0.112945676
    %v2686 = vmul.f32 %v2668, %v2685
    %v2687 = vadd.f32 %v2686, 0.4994258
    %v2688 = vmul.f32 %v2668, %v2687
    %v2689 = vadd.f32 %v2688, 1.0
    %v2690 = vrcp.pop %v2689
    %v2691 = vmul.f32 %v2689, %v2690
    %v2692 = vsub.f32 1.0, %v2691
    %v2693 = vmul.f32 %v2690, %v2692
    %v2694 = vadd.f32 %v2690, %v2693
    %vm2695 = vweird.f32 %v2689
    %vm2696 = vweird.f32 %v2690
    %vm2697 = vmor %vm2695, %vm2696
    %v2698 = vsel %vm2697, %v2690, %v2694
    %v2699 = vand.u32 2147483647, %v2689
    %vm2700 = vcmp.eq.f32.partialorder %v2699, 8.507059e+37
    %v2701 = vand.u32 %v2689, 2147483648
    %v2702 = vor.u32 1.1754944e-38, %v2701
    %v2703 = vsel %vm2700, %v2702, %v2698
    %v2704 = vmul.f32 %v2679, %v2703
    %v2705 = vmin.f32 %v2704, 1.0
    %v2706 = vmax.f32 %v2705, -1.0
    %v2707 = vmul.f32 %v1864, %v1864
    %v2708 = vmin.f32 16.0, %v2707
    %v2709 = vmul.f32 %v2708, 2.1237322e-06
    %v2710 = vadd.f32 %v2709, 0.00028619796
    %v2711 = vmul.f32 %v2708, %v2710
    %v2712 = vadd.f32 %v2711, 0.0036580483
    %v2713 = vmul.f32 %v2708, %v2712
    %v2714 = vadd.f32 %v2713, 0.05243302
    %v2715 = vmul.f32 %v2708, %v2714
    %v2716 = vadd.f32 %v2715, 0.18741608
    %v2717 = vmul.f32 %v2708, %v2716
    %v2718 = vadd.f32 %v2717, 1.1283791
    %v2719 = vmul.f32 %v1864, %v2718
    %v2720 = vmul.f32 %v2708, 3.8918573e-05
    %v2721 = vadd.f32 %v2720, 0.001143296
    %v2722 = vmul.f32 %v2708, %v2721
    %v2723 = vadd.f32 %v2722, 0.014752088
    %v2724 = vmul.f32 %v2708, %v2723
    %v2725 = vadd.f32 %v2724, 0.112945676
    %v2726 = vmul.f32 %v2708, %v2725
    %v2727 = vadd.f32 %v2726, 0.4994258
    %v2728 = vmul.f32 %v2708, %v2727
    %v2729 = vadd.f32 %v2728, 1.0
    %v2730 = vrcp.pop %v2729
    %v2731 = vmul.f32 %v2729, %v2730
    %v2732 = vsub.f32 1.0, %v2731
    %v2733 = vmul.f32 %v2730, %v2732
    %v2734 = vadd.f32 %v2730, %v2733
    %vm2735 = vweird.f32 %v2729
    %vm2736 = vweird.f32 %v2730
    %vm2737 = vmor %vm2735, %vm2736
    %v2738 = vsel %vm2737, %v2730, %v2734
    %v2739 = vand.u32 2147483647, %v2729
    %vm2740 = vcmp.eq.f32.partialorder %v2739, 8.507059e+37
    %v2741 = vand.u32 %v2729, 2147483648
    %v2742 = vor.u32 1.1754944e-38, %v2741
    %v2743 = vsel %vm2740, %v2742, %v2738
    %v2744 = vmul.f32 %v2719, %v2743
    %v2745 = vmin.f32 %v2744, 1.0
    %v2746 = vmax.f32 %v2745, -1.0
    %v2747 = vmul.f32 %v1865, %v1865
    %v2748 = vmin.f32 16.0, %v2747
    %v2749 = vmul.f32 %v2748, 2.1237322e-06
    %v2750 = vadd.f32 %v2749, 0.00028619796
    %v2751 = vmul.f32 %v2748, %v2750
    %v2752 = vadd.f32 %v2751, 0.0036580483
    %v2753 = vmul.f32 %v2748, %v2752
    %v2754 = vadd.f32 %v2753, 0.05243302
    %v2755 = vmul.f32 %v2748, %v2754
    %v2756 = vadd.f32 %v2755, 0.18741608
    %v2757 = vmul.f32 %v2748, %v2756
    %v2758 = vadd.f32 %v2757, 1.1283791
    %v2759 = vmul.f32 %v1865, %v2758
    %v2760 = vmul.f32 %v2748, 3.8918573e-05
    %v2761 = vadd.f32 %v2760, 0.001143296
    %v2762 = vmul.f32 %v2748, %v2761
    %v2763 = vadd.f32 %v2762, 0.014752088
    %v2764 = vmul.f32 %v2748, %v2763
    %v2765 = vadd.f32 %v2764, 0.112945676
    %v2766 = vmul.f32 %v2748, %v2765
    %v2767 = vadd.f32 %v2766, 0.4994258
    %v2768 = vmul.f32 %v2748, %v2767
    %v2769 = vadd.f32 %v2768, 1.0
    %v2770 = vrcp.pop %v2769
    %v2771 = vmul.f32 %v2769, %v2770
    %v2772 = vsub.f32 1.0, %v2771
    %v2773 = vmul.f32 %v2770, %v2772
    %v2774 = vadd.f32 %v2770, %v2773
    %vm2775 = vweird.f32 %v2769
    %vm2776 = vweird.f32 %v2770
    %vm2777 = vmor %vm2775, %vm2776
    %v2778 = vsel %vm2777, %v2770, %v2774
    %v2779 = vand.u32 2147483647, %v2769
    %vm2780 = vcmp.eq.f32.partialorder %v2779, 8.507059e+37
    %v2781 = vand.u32 %v2769, 2147483648
    %v2782 = vor.u32 1.1754944e-38, %v2781
    %v2783 = vsel %vm2780, %v2782, %v2778
    %v2784 = vmul.f32 %v2759, %v2783
    %v2785 = vmin.f32 %v2784, 1.0
    %v2786 = vmax.f32 %v2785, -1.0
    %v2787 = vmul.f32 %v1866, %v1866
    %v2788 = vmin.f32 16.0, %v2787
    %v2789 = vmul.f32 %v2788, 2.1237322e-06
    %v2790 = vadd.f32 %v2789, 0.00028619796
    %v2791 = vmul.f32 %v2788, %v2790
    %v2792 = vadd.f32 %v2791, 0.0036580483
    %v2793 = vmul.f32 %v2788, %v2792
    %v2794 = vadd.f32 %v2793, 0.05243302
    %v2795 = vmul.f32 %v2788, %v2794
    %v2796 = vadd.f32 %v2795, 0.18741608
    %v2797 = vmul.f32 %v2788, %v2796
    %v2798 = vadd.f32 %v2797, 1.1283791
    %v2799 = vmul.f32 %v1866, %v2798
    %v2800 = vmul.f32 %v2788, 3.8918573e-05
    %v2801 = vadd.f32 %v2800, 0.001143296
    %v2802 = vmul.f32 %v2788, %v2801
    %v2803 = vadd.f32 %v2802, 0.014752088
    %v2804 = vmul.f32 %v2788, %v2803
    %v2805 = vadd.f32 %v2804, 0.112945676
    %v2806 = vmul.f32 %v2788, %v2805
    %v2807 = vadd.f32 %v2806, 0.4994258
    %v2808 = vmul.f32 %v2788, %v2807
    %v2809 = vadd.f32 %v2808, 1.0
    %v2810 = vrcp.pop %v2809
    %v2811 = vmul.f32 %v2809, %v2810
    %v2812 = vsub.f32 1.0, %v2811
    %v2813 = vmul.f32 %v2810, %v2812
    %v2814 = vadd.f32 %v2810, %v2813
    %vm2815 = vweird.f32 %v2809
    %vm2816 = vweird.f32 %v2810
    %vm2817 = vmor %vm2815, %vm2816
    %v2818 = vsel %vm2817, %v2810, %v2814
    %v2819 = vand.u32 2147483647, %v2809
    %vm2820 = vcmp.eq.f32.partialorder %v2819, 8.507059e+37
    %v2821 = vand.u32 %v2809, 2147483648
    %v2822 = vor.u32 1.1754944e-38, %v2821
    %v2823 = vsel %vm2820, %v2822, %v2818
    %v2824 = vmul.f32 %v2799, %v2823
    %v2825 = vmin.f32 %v2824, 1.0
    %v2826 = vmax.f32 %v2825, -1.0
    %v2827 = vadd.f32 %v1906, 1.0
    %v2828 = vadd.f32 %v1946, 1.0
    %v2829 = vadd.f32 %v1986, 1.0
    %v2830 = vadd.f32 %v2026, 1.0
    %v2831 = vadd.f32 %v2066, 1.0
    %v2832 = vadd.f32 %v2106, 1.0
    %v2833 = vadd.f32 %v2146, 1.0
    %v2834 = vadd.f32 %v2186, 1.0
    %v2835 = vadd.f32 %v2226, 1.0
    %v2836 = vadd.f32 %v2266, 1.0
    %v2837 = vadd.f32 %v2306, 1.0
    %v2838 = vadd.f32 %v2346, 1.0
    %v2839 = vadd.f32 %v2386, 1.0
    %v2840 = vadd.f32 %v2426, 1.0
    %v2841 = vadd.f32 %v2466, 1.0
    %v2842 = vadd.f32 %v2506, 1.0
    %v2843 = vadd.f32 %v2546, 1.0
    %v2844 = vadd.f32 %v2586, 1.0
    %v2845 = vadd.f32 %v2626, 1.0
    %v2846 = vadd.f32 %v2666, 1.0
    %v2847 = vadd.f32 %v2706, 1.0
    %v2848 = vadd.f32 %v2746, 1.0
    %v2849 = vadd.f32 %v2786, 1.0
    %v2850 = vadd.f32 %v2826, 1.0
    %v2851 = vmul.f32 %v1819, %v2827
    %v2852 = vmul.f32 %v1820, %v2828
    %v2853 = vmul.f32 %v1821, %v2829
    %v2854 = vmul.f32 %v1822, %v2830
    %v2855 = vmul.f32 %v1823, %v2831
    %v2856 = vmul.f32 %v1824, %v2832
    %v2857 = vmul.f32 %v1825, %v2833
    %v2858 = vmul.f32 %v1826, %v2834
    %v2859 = vmul.f32 %v1827, %v2835
    %v2860 = vmul.f32 %v1828, %v2836
    %v2861 = vmul.f32 %v1829, %v2837
    %v2862 = vmul.f32 %v1830, %v2838
    %v2863 = vmul.f32 %v1831, %v2839
    %v2864 = vmul.f32 %v1832, %v2840
    %v2865 = vmul.f32 %v1833, %v2841
    %v2866 = vmul.f32 %v1834, %v2842
    %v2867 = vmul.f32 %v1835, %v2843
    %v2868 = vmul.f32 %v1836, %v2844
    %v2869 = vmul.f32 %v1837, %v2845
    %v2870 = vmul.f32 %v1838, %v2846
    %v2871 = vmul.f32 %v1839, %v2847
    %v2872 = vmul.f32 %v1840, %v2848
    %v2873 = vmul.f32 %v1841, %v2849
    %v2874 = vmul.f32 %v1842, %v2850
    %v2875 = vpack.c.bf16 %v2851, %v2851
    %v2876 = vpack.c.bf16 %v2852, %v2852
    %v2877 = vpack.c.bf16 %v2853, %v2853
    %v2878 = vpack.c.bf16 %v2854, %v2854
    %v2879 = vpack.c.bf16 %v2855, %v2855
    %v2880 = vpack.c.bf16 %v2856, %v2856
    %v2881 = vpack.c.bf16 %v2857, %v2857
    %v2882 = vpack.c.bf16 %v2858, %v2858
    %v2883 = vpack.c.bf16 %v2859, %v2859
    %v2884 = vpack.c.bf16 %v2860, %v2860
    %v2885 = vpack.c.bf16 %v2861, %v2861
    %v2886 = vpack.c.bf16 %v2862, %v2862
    %v2887 = vpack.c.bf16 %v2863, %v2863
    %v2888 = vpack.c.bf16 %v2864, %v2864
    %v2889 = vpack.c.bf16 %v2865, %v2865
    %v2890 = vpack.c.bf16 %v2866, %v2866
    %v2891 = vpack.c.bf16 %v2867, %v2867
    %v2892 = vpack.c.bf16 %v2868, %v2868
    %v2893 = vpack.c.bf16 %v2869, %v2869
    %v2894 = vpack.c.bf16 %v2870, %v2870
    %v2895 = vpack.c.bf16 %v2871, %v2871
    %v2896 = vpack.c.bf16 %v2872, %v2872
    %v2897 = vpack.c.bf16 %v2873, %v2873
    %v2898 = vpack.c.bf16 %v2874, %v2874
    %v2899 = vld [vmem:[#allocation13] sm:$0xf]
    %v2900 = vld [vmem:[#allocation13 + $0x4] sm:$0xf]
    %v2901 = vld [vmem:[#allocation13 + $0x8] sm:$0xf]
    %v2902 = vld [vmem:[#allocation13 + $0xc] sm:$0xf]
    %v2903 = vld [vmem:[#allocation13 + $0x10] sm:$0xf]
    %v2904 = vld [vmem:[#allocation13 + $0x14] sm:$0xf]
    %v2905 = vld [vmem:[#allocation13 + $0x18] sm:$0xf]
    %v2906 = vld [vmem:[#allocation13 + $0x1c] sm:$0xf]
    %v2907 = vld [vmem:[#allocation13 + $0x20] sm:$0xf]
    %v2908 = vld [vmem:[#allocation13 + $0x24] sm:$0xf]
    %v2909 = vld [vmem:[#allocation13 + $0x28] sm:$0xf]
    %v2910 = vld [vmem:[#allocation13 + $0x2c] sm:$0xf]
    %v2911 = vld [vmem:[#allocation13 + $0x30] sm:$0xf]
    %v2912 = vld [vmem:[#allocation13 + $0x34] sm:$0xf]
    %v2913 = vld [vmem:[#allocation13 + $0x38] sm:$0xf]
    %v2914 = vld [vmem:[#allocation13 + $0x3c] sm:$0xf]
    %v2915 = vld [vmem:[#allocation13 + $0x40] sm:$0xf]
    %v2916 = vld [vmem:[#allocation13 + $0x44] sm:$0xf]
    %v2917 = vld [vmem:[#allocation13 + $0x48] sm:$0xf]
    %v2918 = vld [vmem:[#allocation13 + $0x4c] sm:$0xf]
    %v2919 = vld [vmem:[#allocation13 + $0x50] sm:$0xf]
    %v2920 = vld [vmem:[#allocation13 + $0x54] sm:$0xf]
    %v2921 = vld [vmem:[#allocation13 + $0x58] sm:$0xf]
    %v2922 = vld [vmem:[#allocation13 + $0x5c] sm:$0xf]
    %v2923 = vld [vmem:[#allocation13 + $0x60] sm:$0xf]
    %v2924 = vld [vmem:[#allocation13 + $0x64] sm:$0xf]
    %v2925 = vld [vmem:[#allocation13 + $0x68] sm:$0xf]
    %v2926 = vld [vmem:[#allocation13 + $0x6c] sm:$0xf]
    %v2927 = vld [vmem:[#allocation13 + $0x70] sm:$0xf]
    %v2928 = vld [vmem:[#allocation13 + $0x74] sm:$0xf]
    %v2929 = vld [vmem:[#allocation13 + $0x78] sm:$0xf]
    %v2930 = vld [vmem:[#allocation13 + $0x7c] sm:$0xf]
    %v2931 = vld [vmem:[#allocation13 + $0x80] sm:$0xf]
    %v2932 = vld [vmem:[#allocation13 + $0x84] sm:$0xf]
    %v2933 = vld [vmem:[#allocation13 + $0x88] sm:$0xf]
    %v2934 = vld [vmem:[#allocation13 + $0x8c] sm:$0xf]
    %v2935 = vld [vmem:[#allocation13 + $0x90] sm:$0xf]
    %v2936 = vld [vmem:[#allocation13 + $0x94] sm:$0xf]
    %v2937 = vld [vmem:[#allocation13 + $0x98] sm:$0xf]
    %v2938 = vld [vmem:[#allocation13 + $0x9c] sm:$0xf]
    %v2939 = vld [vmem:[#allocation13 + $0xa0] sm:$0xf]
    %v2940 = vld [vmem:[#allocation13 + $0xa4] sm:$0xf]
    %v2941 = vld [vmem:[#allocation13 + $0xa8] sm:$0xf]
    %v2942 = vld [vmem:[#allocation13 + $0xac] sm:$0xf]
    %v2943 = vld [vmem:[#allocation13 + $0xb0] sm:$0xf]
    %v2944 = vld [vmem:[#allocation13 + $0xb4] sm:$0xf]
    %v2945 = vld [vmem:[#allocation13 + $0xb8] sm:$0xf]
    %v2946 = vld [vmem:[#allocation13 + $0xbc] sm:$0xf]
    %v2947 = vld [vmem:[#allocation13 + $0xc0] sm:$0xf]
    %v2948 = vld [vmem:[#allocation13 + $0xc4] sm:$0xf]
    %v2949 = vld [vmem:[#allocation13 + $0xc8] sm:$0xf]
    %v2950 = vld [vmem:[#allocation13 + $0xcc] sm:$0xf]
    %v2951 = vld [vmem:[#allocation13 + $0xd0] sm:$0xf]
    %v2952 = vld [vmem:[#allocation13 + $0xd4] sm:$0xf]
    %v2953 = vld [vmem:[#allocation13 + $0xd8] sm:$0xf]
    %v2954 = vld [vmem:[#allocation13 + $0xdc] sm:$0xf]
    %v2955 = vld [vmem:[#allocation13 + $0xe0] sm:$0xf]
    %v2956 = vld [vmem:[#allocation13 + $0xe4] sm:$0xf]
    %v2957 = vld [vmem:[#allocation13 + $0xe8] sm:$0xf]
    %v2958 = vld [vmem:[#allocation13 + $0xec] sm:$0xf]
    %v2959 = vld [vmem:[#allocation13 + $0xf0] sm:$0xf]
    %v2960 = vld [vmem:[#allocation13 + $0xf4] sm:$0xf]
    %v2961 = vld [vmem:[#allocation13 + $0xf8] sm:$0xf]
    %v2962 = vld [vmem:[#allocation13 + $0xfc] sm:$0xf]
    %v2963 = vld [vmem:[#allocation13 + $0x100] sm:$0xf]
    %v2964 = vld [vmem:[#allocation13 + $0x104] sm:$0xf]
    %v2965 = vld [vmem:[#allocation13 + $0x108] sm:$0xf]
    %v2966 = vld [vmem:[#allocation13 + $0x10c] sm:$0xf]
    %v2967 = vld [vmem:[#allocation13 + $0x110] sm:$0xf]
    %v2968 = vld [vmem:[#allocation13 + $0x114] sm:$0xf]
    %v2969 = vld [vmem:[#allocation13 + $0x118] sm:$0xf]
    %v2970 = vld [vmem:[#allocation13 + $0x11c] sm:$0xf]
    %v2971 = vld [vmem:[#allocation13 + $0x120] sm:$0xf]
    %v2972 = vld [vmem:[#allocation13 + $0x124] sm:$0xf]
    %v2973 = vld [vmem:[#allocation13 + $0x128] sm:$0xf]
    %v2974 = vld [vmem:[#allocation13 + $0x12c] sm:$0xf]
    %v2975 = vld [vmem:[#allocation13 + $0x130] sm:$0xf]
    %v2976 = vld [vmem:[#allocation13 + $0x134] sm:$0xf]
    %v2977 = vld [vmem:[#allocation13 + $0x138] sm:$0xf]
    %v2978 = vld [vmem:[#allocation13 + $0x13c] sm:$0xf]
    %v2979 = vld [vmem:[#allocation13 + $0x140] sm:$0xf]
    %v2980 = vld [vmem:[#allocation13 + $0x144] sm:$0xf]
    %v2981 = vld [vmem:[#allocation13 + $0x148] sm:$0xf]
    %v2982 = vld [vmem:[#allocation13 + $0x14c] sm:$0xf]
    %v2983 = vld [vmem:[#allocation13 + $0x150] sm:$0xf]
    %v2984 = vld [vmem:[#allocation13 + $0x154] sm:$0xf]
    %v2985 = vld [vmem:[#allocation13 + $0x158] sm:$0xf]
    %v2986 = vld [vmem:[#allocation13 + $0x15c] sm:$0xf]
    %v2987 = vld [vmem:[#allocation13 + $0x160] sm:$0xf]
    %v2988 = vld [vmem:[#allocation13 + $0x164] sm:$0xf]
    %v2989 = vld [vmem:[#allocation13 + $0x168] sm:$0xf]
    %v2990 = vld [vmem:[#allocation13 + $0x16c] sm:$0xf]
    %v2991 = vld [vmem:[#allocation13 + $0x170] sm:$0xf]
    %v2992 = vld [vmem:[#allocation13 + $0x174] sm:$0xf]
    %v2993 = vld [vmem:[#allocation13 + $0x178] sm:$0xf]
    %v2994 = vld [vmem:[#allocation13 + $0x17c] sm:$0xf]
    %v2995 = vld [vmem:[#allocation13 + $0x180] sm:$0xf]
    %v2996 = vld [vmem:[#allocation13 + $0x184] sm:$0xf]
    %v2997 = vld [vmem:[#allocation13 + $0x188] sm:$0xf]
    %v2998 = vld [vmem:[#allocation13 + $0x18c] sm:$0xf]
    %v2999 = vld [vmem:[#allocation13 + $0x190] sm:$0xf]
    %v3000 = vld [vmem:[#allocation13 + $0x194] sm:$0xf]
    %v3001 = vld [vmem:[#allocation13 + $0x198] sm:$0xf]
    %v3002 = vld [vmem:[#allocation13 + $0x19c] sm:$0xf]
    %v3003 = vld [vmem:[#allocation13 + $0x1a0] sm:$0xf]
    %v3004 = vld [vmem:[#allocation13 + $0x1a4] sm:$0xf]
    %v3005 = vld [vmem:[#allocation13 + $0x1a8] sm:$0xf]
    %v3006 = vld [vmem:[#allocation13 + $0x1ac] sm:$0xf]
    %v3007 = vld [vmem:[#allocation13 + $0x1b0] sm:$0xf]
    %v3008 = vld [vmem:[#allocation13 + $0x1b4] sm:$0xf]
    %v3009 = vld [vmem:[#allocation13 + $0x1b8] sm:$0xf]
    %v3010 = vld [vmem:[#allocation13 + $0x1bc] sm:$0xf]
    %v3011 = vld [vmem:[#allocation13 + $0x1c0] sm:$0xf]
    %v3012 = vld [vmem:[#allocation13 + $0x1c4] sm:$0xf]
    %v3013 = vld [vmem:[#allocation13 + $0x1c8] sm:$0xf]
    %v3014 = vld [vmem:[#allocation13 + $0x1cc] sm:$0xf]
    %v3015 = vld [vmem:[#allocation13 + $0x1d0] sm:$0xf]
    %v3016 = vld [vmem:[#allocation13 + $0x1d4] sm:$0xf]
    %v3017 = vld [vmem:[#allocation13 + $0x1d8] sm:$0xf]
    %v3018 = vld [vmem:[#allocation13 + $0x1dc] sm:$0xf]
    %v3019 = vld [vmem:[#allocation13 + $0x1e0] sm:$0xf]
    %v3020 = vld [vmem:[#allocation13 + $0x1e4] sm:$0xf]
    %v3021 = vld [vmem:[#allocation13 + $0x1e8] sm:$0xf]
    %v3022 = vld [vmem:[#allocation13 + $0x1ec] sm:$0xf]
    %v3023 = vld [vmem:[#allocation13 + $0x1f0] sm:$0xf]
    %v3024 = vld [vmem:[#allocation13 + $0x1f4] sm:$0xf]
    %v3025 = vld [vmem:[#allocation13 + $0x1f8] sm:$0xf]
    %v3026 = vld [vmem:[#allocation13 + $0x1fc] sm:$0xf]
    %v3027 = vld [vmem:[#allocation13 + $0x200] sm:$0xf]
    %v3028 = vld [vmem:[#allocation13 + $0x204] sm:$0xf]
    %v3029 = vld [vmem:[#allocation13 + $0x208] sm:$0xf]
    %v3030 = vld [vmem:[#allocation13 + $0x20c] sm:$0xf]
    %v3031 = vld [vmem:[#allocation13 + $0x210] sm:$0xf]
    %v3032 = vld [vmem:[#allocation13 + $0x214] sm:$0xf]
    %v3033 = vld [vmem:[#allocation13 + $0x218] sm:$0xf]
    %v3034 = vld [vmem:[#allocation13 + $0x21c] sm:$0xf]
    %v3035 = vld [vmem:[#allocation13 + $0x220] sm:$0xf]
    %v3036 = vld [vmem:[#allocation13 + $0x224] sm:$0xf]
    %v3037 = vld [vmem:[#allocation13 + $0x228] sm:$0xf]
    %v3038 = vld [vmem:[#allocation13 + $0x22c] sm:$0xf]
    %v3039 = vld [vmem:[#allocation13 + $0x230] sm:$0xf]
    %v3040 = vld [vmem:[#allocation13 + $0x234] sm:$0xf]
    %v3041 = vld [vmem:[#allocation13 + $0x238] sm:$0xf]
    %v3042 = vld [vmem:[#allocation13 + $0x23c] sm:$0xf]
    %v3043 = vld [vmem:[#allocation13 + $0x240] sm:$0xf]
    %v3044 = vld [vmem:[#allocation13 + $0x244] sm:$0xf]
    %v3045 = vld [vmem:[#allocation13 + $0x248] sm:$0xf]
    %v3046 = vld [vmem:[#allocation13 + $0x24c] sm:$0xf]
    %v3047 = vld [vmem:[#allocation13 + $0x250] sm:$0xf]
    %v3048 = vld [vmem:[#allocation13 + $0x254] sm:$0xf]
    %v3049 = vld [vmem:[#allocation13 + $0x258] sm:$0xf]
    %v3050 = vld [vmem:[#allocation13 + $0x25c] sm:$0xf]
    %v3051 = vld [vmem:[#allocation13 + $0x260] sm:$0xf]
    %v3052 = vld [vmem:[#allocation13 + $0x264] sm:$0xf]
    %v3053 = vld [vmem:[#allocation13 + $0x268] sm:$0xf]
    %v3054 = vld [vmem:[#allocation13 + $0x26c] sm:$0xf]
    %v3055 = vld [vmem:[#allocation13 + $0x270] sm:$0xf]
    %v3056 = vld [vmem:[#allocation13 + $0x274] sm:$0xf]
    %v3057 = vld [vmem:[#allocation13 + $0x278] sm:$0xf]
    %v3058 = vld [vmem:[#allocation13 + $0x27c] sm:$0xf]
    %v3059 = vld [vmem:[#allocation13 + $0x280] sm:$0xf]
    %v3060 = vld [vmem:[#allocation13 + $0x284] sm:$0xf]
    %v3061 = vld [vmem:[#allocation13 + $0x288] sm:$0xf]
    %v3062 = vld [vmem:[#allocation13 + $0x28c] sm:$0xf]
    %v3063 = vld [vmem:[#allocation13 + $0x290] sm:$0xf]
    %v3064 = vld [vmem:[#allocation13 + $0x294] sm:$0xf]
    %v3065 = vld [vmem:[#allocation13 + $0x298] sm:$0xf]
    %v3066 = vld [vmem:[#allocation13 + $0x29c] sm:$0xf]
    %v3067 = vld [vmem:[#allocation13 + $0x2a0] sm:$0xf]
    %v3068 = vld [vmem:[#allocation13 + $0x2a4] sm:$0xf]
    %v3069 = vld [vmem:[#allocation13 + $0x2a8] sm:$0xf]
    %v3070 = vld [vmem:[#allocation13 + $0x2ac] sm:$0xf]
    %v3071 = vld [vmem:[#allocation13 + $0x2b0] sm:$0xf]
    %v3072 = vld [vmem:[#allocation13 + $0x2b4] sm:$0xf]
    %v3073 = vld [vmem:[#allocation13 + $0x2b8] sm:$0xf]
    %v3074 = vld [vmem:[#allocation13 + $0x2bc] sm:$0xf]
    %v3075 = vld [vmem:[#allocation13 + $0x2c0] sm:$0xf]
    %v3076 = vld [vmem:[#allocation13 + $0x2c4] sm:$0xf]
    %v3077 = vld [vmem:[#allocation13 + $0x2c8] sm:$0xf]
    %v3078 = vld [vmem:[#allocation13 + $0x2cc] sm:$0xf]
    %v3079 = vld [vmem:[#allocation13 + $0x2d0] sm:$0xf]
    %v3080 = vld [vmem:[#allocation13 + $0x2d4] sm:$0xf]
    %v3081 = vld [vmem:[#allocation13 + $0x2d8] sm:$0xf]
    %v3082 = vld [vmem:[#allocation13 + $0x2dc] sm:$0xf]
    %v3083 = vld [vmem:[#allocation13 + $0x2e0] sm:$0xf]
    %v3084 = vld [vmem:[#allocation13 + $0x2e4] sm:$0xf]
    %v3085 = vld [vmem:[#allocation13 + $0x2e8] sm:$0xf]
    %v3086 = vld [vmem:[#allocation13 + $0x2ec] sm:$0xf]
    %v3087 = vld [vmem:[#allocation13 + $0x2f0] sm:$0xf]
    %v3088 = vld [vmem:[#allocation13 + $0x2f4] sm:$0xf]
    %v3089 = vld [vmem:[#allocation13 + $0x2f8] sm:$0xf]
    %v3090 = vld [vmem:[#allocation13 + $0x2fc] sm:$0xf]
    %v3091 = vld [vmem:[#allocation13 + $0x300] sm:$0xf]
    %v3092 = vld [vmem:[#allocation13 + $0x304] sm:$0xf]
    %v3093 = vld [vmem:[#allocation13 + $0x308] sm:$0xf]
    %v3094 = vld [vmem:[#allocation13 + $0x30c] sm:$0xf]
    %v3095 = vld [vmem:[#allocation13 + $0x310] sm:$0xf]
    %v3096 = vld [vmem:[#allocation13 + $0x314] sm:$0xf]
    %v3097 = vld [vmem:[#allocation13 + $0x318] sm:$0xf]
    %v3098 = vld [vmem:[#allocation13 + $0x31c] sm:$0xf]
    %v3099 = vld [vmem:[#allocation13 + $0x320] sm:$0xf]
    %v3100 = vld [vmem:[#allocation13 + $0x324] sm:$0xf]
    %v3101 = vld [vmem:[#allocation13 + $0x328] sm:$0xf]
    %v3102 = vld [vmem:[#allocation13 + $0x32c] sm:$0xf]
    %v3103 = vld [vmem:[#allocation13 + $0x330] sm:$0xf]
    %v3104 = vld [vmem:[#allocation13 + $0x334] sm:$0xf]
    %v3105 = vld [vmem:[#allocation13 + $0x338] sm:$0xf]
    %v3106 = vld [vmem:[#allocation13 + $0x33c] sm:$0xf]
    %v3107 = vld [vmem:[#allocation13 + $0x340] sm:$0xf]
    %v3108 = vld [vmem:[#allocation13 + $0x344] sm:$0xf]
    %v3109 = vld [vmem:[#allocation13 + $0x348] sm:$0xf]
    %v3110 = vld [vmem:[#allocation13 + $0x34c] sm:$0xf]
    %v3111 = vld [vmem:[#allocation13 + $0x350] sm:$0xf]
    %v3112 = vld [vmem:[#allocation13 + $0x354] sm:$0xf]
    %v3113 = vld [vmem:[#allocation13 + $0x358] sm:$0xf]
    %v3114 = vld [vmem:[#allocation13 + $0x35c] sm:$0xf]
    %v3115 = vld [vmem:[#allocation13 + $0x360] sm:$0xf]
    %v3116 = vld [vmem:[#allocation13 + $0x364] sm:$0xf]
    %v3117 = vld [vmem:[#allocation13 + $0x368] sm:$0xf]
    %v3118 = vld [vmem:[#allocation13 + $0x36c] sm:$0xf]
    %v3119 = vld [vmem:[#allocation13 + $0x370] sm:$0xf]
    %v3120 = vld [vmem:[#allocation13 + $0x374] sm:$0xf]
    %v3121 = vld [vmem:[#allocation13 + $0x378] sm:$0xf]
    %v3122 = vld [vmem:[#allocation13 + $0x37c] sm:$0xf]
    %v3123 = vld [vmem:[#allocation13 + $0x380] sm:$0xf]
    %v3124 = vld [vmem:[#allocation13 + $0x384] sm:$0xf]
    %v3125 = vld [vmem:[#allocation13 + $0x388] sm:$0xf]
    %v3126 = vld [vmem:[#allocation13 + $0x38c] sm:$0xf]
    %v3127 = vld [vmem:[#allocation13 + $0x390] sm:$0xf]
    %v3128 = vld [vmem:[#allocation13 + $0x394] sm:$0xf]
    %v3129 = vld [vmem:[#allocation13 + $0x398] sm:$0xf]
    %v3130 = vld [vmem:[#allocation13 + $0x39c] sm:$0xf]
    %v3131 = vld [vmem:[#allocation13 + $0x3a0] sm:$0xf]
    %v3132 = vld [vmem:[#allocation13 + $0x3a4] sm:$0xf]
    %v3133 = vld [vmem:[#allocation13 + $0x3a8] sm:$0xf]
    %v3134 = vld [vmem:[#allocation13 + $0x3ac] sm:$0xf]
    %v3135 = vld [vmem:[#allocation13 + $0x3b0] sm:$0xf]
    %v3136 = vld [vmem:[#allocation13 + $0x3b4] sm:$0xf]
    %v3137 = vld [vmem:[#allocation13 + $0x3b8] sm:$0xf]
    %v3138 = vld [vmem:[#allocation13 + $0x3bc] sm:$0xf]
    %v3139 = vld [vmem:[#allocation13 + $0x3c0] sm:$0xf]
    %v3140 = vld [vmem:[#allocation13 + $0x3c4] sm:$0xf]
    %v3141 = vld [vmem:[#allocation13 + $0x3c8] sm:$0xf]
    %v3142 = vld [vmem:[#allocation13 + $0x3cc] sm:$0xf]
    %v3143 = vld [vmem:[#allocation13 + $0x3d0] sm:$0xf]
    %v3144 = vld [vmem:[#allocation13 + $0x3d4] sm:$0xf]
    %v3145 = vld [vmem:[#allocation13 + $0x3d8] sm:$0xf]
    %v3146 = vld [vmem:[#allocation13 + $0x3dc] sm:$0xf]
    %v3147 = vld [vmem:[#allocation13 + $0x3e0] sm:$0xf]
    %v3148 = vld [vmem:[#allocation13 + $0x3e4] sm:$0xf]
    %v3149 = vld [vmem:[#allocation13 + $0x3e8] sm:$0xf]
    %v3150 = vld [vmem:[#allocation13 + $0x3ec] sm:$0xf]
    %v3151 = vld [vmem:[#allocation13 + $0x3f0] sm:$0xf]
    %v3152 = vld [vmem:[#allocation13 + $0x3f4] sm:$0xf]
    %v3153 = vld [vmem:[#allocation13 + $0x3f8] sm:$0xf]
    %v3154 = vld [vmem:[#allocation13 + $0x3fc] sm:$0xf]
    %v3155 = vld [vmem:[#allocation13 + $0x400] sm:$0xf]
    %v3156 = vld [vmem:[#allocation13 + $0x404] sm:$0xf]
    %v3157 = vld [vmem:[#allocation13 + $0x408] sm:$0xf]
    %v3158 = vld [vmem:[#allocation13 + $0x40c] sm:$0xf]
    %v3159 = vld [vmem:[#allocation13 + $0x410] sm:$0xf]
    %v3160 = vld [vmem:[#allocation13 + $0x414] sm:$0xf]
    %v3161 = vld [vmem:[#allocation13 + $0x418] sm:$0xf]
    %v3162 = vld [vmem:[#allocation13 + $0x41c] sm:$0xf]
    %v3163 = vld [vmem:[#allocation13 + $0x420] sm:$0xf]
    %v3164 = vld [vmem:[#allocation13 + $0x424] sm:$0xf]
    %v3165 = vld [vmem:[#allocation13 + $0x428] sm:$0xf]
    %v3166 = vld [vmem:[#allocation13 + $0x42c] sm:$0xf]
    %v3167 = vld [vmem:[#allocation13 + $0x430] sm:$0xf]
    %v3168 = vld [vmem:[#allocation13 + $0x434] sm:$0xf]
    %v3169 = vld [vmem:[#allocation13 + $0x438] sm:$0xf]
    %v3170 = vld [vmem:[#allocation13 + $0x43c] sm:$0xf]
    %v3171 = vld [vmem:[#allocation13 + $0x440] sm:$0xf]
    %v3172 = vld [vmem:[#allocation13 + $0x444] sm:$0xf]
    %v3173 = vld [vmem:[#allocation13 + $0x448] sm:$0xf]
    %v3174 = vld [vmem:[#allocation13 + $0x44c] sm:$0xf]
    %v3175 = vld [vmem:[#allocation13 + $0x450] sm:$0xf]
    %v3176 = vld [vmem:[#allocation13 + $0x454] sm:$0xf]
    %v3177 = vld [vmem:[#allocation13 + $0x458] sm:$0xf]
    %v3178 = vld [vmem:[#allocation13 + $0x45c] sm:$0xf]
    %v3179 = vld [vmem:[#allocation13 + $0x460] sm:$0xf]
    %v3180 = vld [vmem:[#allocation13 + $0x464] sm:$0xf]
    %v3181 = vld [vmem:[#allocation13 + $0x468] sm:$0xf]
    %v3182 = vld [vmem:[#allocation13 + $0x46c] sm:$0xf]
    %v3183 = vld [vmem:[#allocation13 + $0x470] sm:$0xf]
    %v3184 = vld [vmem:[#allocation13 + $0x474] sm:$0xf]
    %v3185 = vld [vmem:[#allocation13 + $0x478] sm:$0xf]
    %v3186 = vld [vmem:[#allocation13 + $0x47c] sm:$0xf]
    %v3187 = vld [vmem:[#allocation13 + $0x480] sm:$0xf]
    %v3188 = vld [vmem:[#allocation13 + $0x484] sm:$0xf]
    %v3189 = vld [vmem:[#allocation13 + $0x488] sm:$0xf]
    %v3190 = vld [vmem:[#allocation13 + $0x48c] sm:$0xf]
    %v3191 = vld [vmem:[#allocation13 + $0x490] sm:$0xf]
    %v3192 = vld [vmem:[#allocation13 + $0x494] sm:$0xf]
    %v3193 = vld [vmem:[#allocation13 + $0x498] sm:$0xf]
    %v3194 = vld [vmem:[#allocation13 + $0x49c] sm:$0xf]
    %v3195 = vld [vmem:[#allocation13 + $0x4a0] sm:$0xf]
    %v3196 = vld [vmem:[#allocation13 + $0x4a4] sm:$0xf]
    %v3197 = vld [vmem:[#allocation13 + $0x4a8] sm:$0xf]
    %v3198 = vld [vmem:[#allocation13 + $0x4ac] sm:$0xf]
    %v3199 = vld [vmem:[#allocation13 + $0x4b0] sm:$0xf]
    %v3200 = vld [vmem:[#allocation13 + $0x4b4] sm:$0xf]
    %v3201 = vld [vmem:[#allocation13 + $0x4b8] sm:$0xf]
    %v3202 = vld [vmem:[#allocation13 + $0x4bc] sm:$0xf]
    %v3203 = vld [vmem:[#allocation13 + $0x4c0] sm:$0xf]
    %v3204 = vld [vmem:[#allocation13 + $0x4c4] sm:$0xf]
    %v3205 = vld [vmem:[#allocation13 + $0x4c8] sm:$0xf]
    %v3206 = vld [vmem:[#allocation13 + $0x4cc] sm:$0xf]
    %v3207 = vld [vmem:[#allocation13 + $0x4d0] sm:$0xf]
    %v3208 = vld [vmem:[#allocation13 + $0x4d4] sm:$0xf]
    %v3209 = vld [vmem:[#allocation13 + $0x4d8] sm:$0xf]
    %v3210 = vld [vmem:[#allocation13 + $0x4dc] sm:$0xf]
    %v3211 = vld [vmem:[#allocation13 + $0x4e0] sm:$0xf]
    %v3212 = vld [vmem:[#allocation13 + $0x4e4] sm:$0xf]
    %v3213 = vld [vmem:[#allocation13 + $0x4e8] sm:$0xf]
    %v3214 = vld [vmem:[#allocation13 + $0x4ec] sm:$0xf]
    %v3215 = vld [vmem:[#allocation13 + $0x4f0] sm:$0xf]
    %v3216 = vld [vmem:[#allocation13 + $0x4f4] sm:$0xf]
    %v3217 = vld [vmem:[#allocation13 + $0x4f8] sm:$0xf]
    %v3218 = vld [vmem:[#allocation13 + $0x4fc] sm:$0xf]
    %v3219 = vld [vmem:[#allocation13 + $0x500] sm:$0xf]
    %v3220 = vld [vmem:[#allocation13 + $0x504] sm:$0xf]
    %v3221 = vld [vmem:[#allocation13 + $0x508] sm:$0xf]
    %v3222 = vld [vmem:[#allocation13 + $0x50c] sm:$0xf]
    %v3223 = vld [vmem:[#allocation13 + $0x510] sm:$0xf]
    %v3224 = vld [vmem:[#allocation13 + $0x514] sm:$0xf]
    %v3225 = vld [vmem:[#allocation13 + $0x518] sm:$0xf]
    %v3226 = vld [vmem:[#allocation13 + $0x51c] sm:$0xf]
    %v3227 = vld [vmem:[#allocation13 + $0x520] sm:$0xf]
    %v3228 = vld [vmem:[#allocation13 + $0x524] sm:$0xf]
    %v3229 = vld [vmem:[#allocation13 + $0x528] sm:$0xf]
    %v3230 = vld [vmem:[#allocation13 + $0x52c] sm:$0xf]
    %v3231 = vld [vmem:[#allocation13 + $0x530] sm:$0xf]
    %v3232 = vld [vmem:[#allocation13 + $0x534] sm:$0xf]
    %v3233 = vld [vmem:[#allocation13 + $0x538] sm:$0xf]
    %v3234 = vld [vmem:[#allocation13 + $0x53c] sm:$0xf]
    %v3235 = vld [vmem:[#allocation13 + $0x540] sm:$0xf]
    %v3236 = vld [vmem:[#allocation13 + $0x544] sm:$0xf]
    %v3237 = vld [vmem:[#allocation13 + $0x548] sm:$0xf]
    %v3238 = vld [vmem:[#allocation13 + $0x54c] sm:$0xf]
    %v3239 = vld [vmem:[#allocation13 + $0x550] sm:$0xf]
    %v3240 = vld [vmem:[#allocation13 + $0x554] sm:$0xf]
    %v3241 = vld [vmem:[#allocation13 + $0x558] sm:$0xf]
    %v3242 = vld [vmem:[#allocation13 + $0x55c] sm:$0xf]
    %v3243 = vld [vmem:[#allocation13 + $0x560] sm:$0xf]
    %v3244 = vld [vmem:[#allocation13 + $0x564] sm:$0xf]
    %v3245 = vld [vmem:[#allocation13 + $0x568] sm:$0xf]
    %v3246 = vld [vmem:[#allocation13 + $0x56c] sm:$0xf]
    %v3247 = vld [vmem:[#allocation13 + $0x570] sm:$0xf]
    %v3248 = vld [vmem:[#allocation13 + $0x574] sm:$0xf]
    %v3249 = vld [vmem:[#allocation13 + $0x578] sm:$0xf]
    %v3250 = vld [vmem:[#allocation13 + $0x57c] sm:$0xf]
    %v3251 = vld [vmem:[#allocation13 + $0x580] sm:$0xf]
    %v3252 = vld [vmem:[#allocation13 + $0x584] sm:$0xf]
    %v3253 = vld [vmem:[#allocation13 + $0x588] sm:$0xf]
    %v3254 = vld [vmem:[#allocation13 + $0x58c] sm:$0xf]
    %v3255 = vld [vmem:[#allocation13 + $0x590] sm:$0xf]
    %v3256 = vld [vmem:[#allocation13 + $0x594] sm:$0xf]
    %v3257 = vld [vmem:[#allocation13 + $0x598] sm:$0xf]
    %v3258 = vld [vmem:[#allocation13 + $0x59c] sm:$0xf]
    %v3259 = vld [vmem:[#allocation13 + $0x5a0] sm:$0xf]
    %v3260 = vld [vmem:[#allocation13 + $0x5a4] sm:$0xf]
    %v3261 = vld [vmem:[#allocation13 + $0x5a8] sm:$0xf]
    %v3262 = vld [vmem:[#allocation13 + $0x5ac] sm:$0xf]
    %v3263 = vld [vmem:[#allocation13 + $0x5b0] sm:$0xf]
    %v3264 = vld [vmem:[#allocation13 + $0x5b4] sm:$0xf]
    %v3265 = vld [vmem:[#allocation13 + $0x5b8] sm:$0xf]
    %v3266 = vld [vmem:[#allocation13 + $0x5bc] sm:$0xf]
    %v3267 = vld [vmem:[#allocation13 + $0x5c0] sm:$0xf]
    %v3268 = vld [vmem:[#allocation13 + $0x5c4] sm:$0xf]
    %v3269 = vld [vmem:[#allocation13 + $0x5c8] sm:$0xf]
    %v3270 = vld [vmem:[#allocation13 + $0x5cc] sm:$0xf]
    %v3271 = vld [vmem:[#allocation13 + $0x5d0] sm:$0xf]
    %v3272 = vld [vmem:[#allocation13 + $0x5d4] sm:$0xf]
    %v3273 = vld [vmem:[#allocation13 + $0x5d8] sm:$0xf]
    %v3274 = vld [vmem:[#allocation13 + $0x5dc] sm:$0xf]
    %v3275 = vld [vmem:[#allocation13 + $0x5e0] sm:$0xf]
    %v3276 = vld [vmem:[#allocation13 + $0x5e4] sm:$0xf]
    %v3277 = vld [vmem:[#allocation13 + $0x5e8] sm:$0xf]
    %v3278 = vld [vmem:[#allocation13 + $0x5ec] sm:$0xf]
    %v3279 = vld [vmem:[#allocation13 + $0x5f0] sm:$0xf]
    %v3280 = vld [vmem:[#allocation13 + $0x5f4] sm:$0xf]
    %v3281 = vld [vmem:[#allocation13 + $0x5f8] sm:$0xf]
    %v3282 = vld [vmem:[#allocation13 + $0x5fc] sm:$0xf]
    %v3283 = vld [vmem:[%s7] sm:$0x1]
    %v3285 = vperm.slane %v3283, 0
    %v3671 = vunpack.c.l.b16 %v2899
    %v3672 = vunpack.c.l.b16 %v2900
    %v3673 = vunpack.c.l.b16 %v2901
    %v3674 = vunpack.c.l.b16 %v2902
    %v3675 = vunpack.c.l.b16 %v2903
    %v3676 = vunpack.c.l.b16 %v2904
    %v3677 = vunpack.c.l.b16 %v2905
    %v3678 = vunpack.c.l.b16 %v2906
    %v3679 = vunpack.c.l.b16 %v2907
    %v3680 = vunpack.c.l.b16 %v2908
    %v3681 = vunpack.c.l.b16 %v2909
    %v3682 = vunpack.c.l.b16 %v2910
    %v3683 = vunpack.c.l.b16 %v2911
    %v3684 = vunpack.c.l.b16 %v2912
    %v3685 = vunpack.c.l.b16 %v2913
    %v3686 = vunpack.c.l.b16 %v2914
    %v3687 = vunpack.c.l.b16 %v2915
    %v3688 = vunpack.c.l.b16 %v2916
    %v3689 = vunpack.c.l.b16 %v2917
    %v3690 = vunpack.c.l.b16 %v2918
    %v3691 = vunpack.c.l.b16 %v2919
    %v3692 = vunpack.c.l.b16 %v2920
    %v3693 = vunpack.c.l.b16 %v2921
    %v3694 = vunpack.c.l.b16 %v2922
    %v3695 = vunpack.c.l.b16 %v2923
    %v3696 = vunpack.c.l.b16 %v2924
    %v3697 = vunpack.c.l.b16 %v2925
    %v3698 = vunpack.c.l.b16 %v2926
    %v3699 = vunpack.c.l.b16 %v2927
    %v3700 = vunpack.c.l.b16 %v2928
    %v3701 = vunpack.c.l.b16 %v2929
    %v3702 = vunpack.c.l.b16 %v2930
    %v3703 = vunpack.c.l.b16 %v2931
    %v3704 = vunpack.c.l.b16 %v2932
    %v3705 = vunpack.c.l.b16 %v2933
    %v3706 = vunpack.c.l.b16 %v2934
    %v3707 = vunpack.c.l.b16 %v2935
    %v3708 = vunpack.c.l.b16 %v2936
    %v3709 = vunpack.c.l.b16 %v2937
    %v3710 = vunpack.c.l.b16 %v2938
    %v3711 = vunpack.c.l.b16 %v2939
    %v3712 = vunpack.c.l.b16 %v2940
    %v3713 = vunpack.c.l.b16 %v2941
    %v3714 = vunpack.c.l.b16 %v2942
    %v3715 = vunpack.c.l.b16 %v2943
    %v3716 = vunpack.c.l.b16 %v2944
    %v3717 = vunpack.c.l.b16 %v2945
    %v3718 = vunpack.c.l.b16 %v2946
    %v3719 = vunpack.c.l.b16 %v2947
    %v3720 = vunpack.c.l.b16 %v2948
    %v3721 = vunpack.c.l.b16 %v2949
    %v3722 = vunpack.c.l.b16 %v2950
    %v3723 = vunpack.c.l.b16 %v2951
    %v3724 = vunpack.c.l.b16 %v2952
    %v3725 = vunpack.c.l.b16 %v2953
    %v3726 = vunpack.c.l.b16 %v2954
    %v3727 = vunpack.c.l.b16 %v2955
    %v3728 = vunpack.c.l.b16 %v2956
    %v3729 = vunpack.c.l.b16 %v2957
    %v3730 = vunpack.c.l.b16 %v2958
    %v3731 = vunpack.c.l.b16 %v2959
    %v3732 = vunpack.c.l.b16 %v2960
    %v3733 = vunpack.c.l.b16 %v2961
    %v3734 = vunpack.c.l.b16 %v2962
    %v3735 = vunpack.c.l.b16 %v2963
    %v3736 = vunpack.c.l.b16 %v2964
    %v3737 = vunpack.c.l.b16 %v2965
    %v3738 = vunpack.c.l.b16 %v2966
    %v3739 = vunpack.c.l.b16 %v2967
    %v3740 = vunpack.c.l.b16 %v2968
    %v3741 = vunpack.c.l.b16 %v2969
    %v3742 = vunpack.c.l.b16 %v2970
    %v3743 = vunpack.c.l.b16 %v2971
    %v3744 = vunpack.c.l.b16 %v2972
    %v3745 = vunpack.c.l.b16 %v2973
    %v3746 = vunpack.c.l.b16 %v2974
    %v3747 = vunpack.c.l.b16 %v2975
    %v3748 = vunpack.c.l.b16 %v2976
    %v3749 = vunpack.c.l.b16 %v2977
    %v3750 = vunpack.c.l.b16 %v2978
    %v3751 = vunpack.c.l.b16 %v2979
    %v3752 = vunpack.c.l.b16 %v2980
    %v3753 = vunpack.c.l.b16 %v2981
    %v3754 = vunpack.c.l.b16 %v2982
    %v3755 = vunpack.c.l.b16 %v2983
    %v3756 = vunpack.c.l.b16 %v2984
    %v3757 = vunpack.c.l.b16 %v2985
    %v3758 = vunpack.c.l.b16 %v2986
    %v3759 = vunpack.c.l.b16 %v2987
    %v3760 = vunpack.c.l.b16 %v2988
    %v3761 = vunpack.c.l.b16 %v2989
    %v3762 = vunpack.c.l.b16 %v2990
    %v3763 = vunpack.c.l.b16 %v2991
    %v3764 = vunpack.c.l.b16 %v2992
    %v3765 = vunpack.c.l.b16 %v2993
    %v3766 = vunpack.c.l.b16 %v2994
    %v3767 = vunpack.c.l.b16 %v2995
    %v3768 = vunpack.c.l.b16 %v2996
    %v3769 = vunpack.c.l.b16 %v2997
    %v3770 = vunpack.c.l.b16 %v2998
    %v3771 = vunpack.c.l.b16 %v2999
    %v3772 = vunpack.c.l.b16 %v3000
    %v3773 = vunpack.c.l.b16 %v3001
    %v3774 = vunpack.c.l.b16 %v3002
    %v3775 = vunpack.c.l.b16 %v3003
    %v3776 = vunpack.c.l.b16 %v3004
    %v3777 = vunpack.c.l.b16 %v3005
    %v3778 = vunpack.c.l.b16 %v3006
    %v3779 = vunpack.c.l.b16 %v3007
    %v3780 = vunpack.c.l.b16 %v3008
    %v3781 = vunpack.c.l.b16 %v3009
    %v3782 = vunpack.c.l.b16 %v3010
    %v3783 = vunpack.c.l.b16 %v3011
    %v3784 = vunpack.c.l.b16 %v3012
    %v3785 = vunpack.c.l.b16 %v3013
    %v3786 = vunpack.c.l.b16 %v3014
    %v3787 = vunpack.c.l.b16 %v3015
    %v3788 = vunpack.c.l.b16 %v3016
    %v3789 = vunpack.c.l.b16 %v3017
    %v3790 = vunpack.c.l.b16 %v3018
    %v3791 = vunpack.c.l.b16 %v3019
    %v3792 = vunpack.c.l.b16 %v3020
    %v3793 = vunpack.c.l.b16 %v3021
    %v3794 = vunpack.c.l.b16 %v3022
    %v3795 = vunpack.c.l.b16 %v3023
    %v3796 = vunpack.c.l.b16 %v3024
    %v3797 = vunpack.c.l.b16 %v3025
    %v3798 = vunpack.c.l.b16 %v3026
    %v3799 = vunpack.c.l.b16 %v3027
    %v3800 = vunpack.c.l.b16 %v3028
    %v3801 = vunpack.c.l.b16 %v3029
    %v3802 = vunpack.c.l.b16 %v3030
    %v3803 = vunpack.c.l.b16 %v3031
    %v3804 = vunpack.c.l.b16 %v3032
    %v3805 = vunpack.c.l.b16 %v3033
    %v3806 = vunpack.c.l.b16 %v3034
    %v3807 = vunpack.c.l.b16 %v3035
    %v3808 = vunpack.c.l.b16 %v3036
    %v3809 = vunpack.c.l.b16 %v3037
    %v3810 = vunpack.c.l.b16 %v3038
    %v3811 = vunpack.c.l.b16 %v3039
    %v3812 = vunpack.c.l.b16 %v3040
    %v3813 = vunpack.c.l.b16 %v3041
    %v3814 = vunpack.c.l.b16 %v3042
    %v3815 = vunpack.c.l.b16 %v3043
    %v3816 = vunpack.c.l.b16 %v3044
    %v3817 = vunpack.c.l.b16 %v3045
    %v3818 = vunpack.c.l.b16 %v3046
    %v3819 = vunpack.c.l.b16 %v3047
    %v3820 = vunpack.c.l.b16 %v3048
    %v3821 = vunpack.c.l.b16 %v3049
    %v3822 = vunpack.c.l.b16 %v3050
    %v3823 = vunpack.c.l.b16 %v3051
    %v3824 = vunpack.c.l.b16 %v3052
    %v3825 = vunpack.c.l.b16 %v3053
    %v3826 = vunpack.c.l.b16 %v3054
    %v3827 = vunpack.c.l.b16 %v3055
    %v3828 = vunpack.c.l.b16 %v3056
    %v3829 = vunpack.c.l.b16 %v3057
    %v3830 = vunpack.c.l.b16 %v3058
    %v3831 = vunpack.c.l.b16 %v3059
    %v3832 = vunpack.c.l.b16 %v3060
    %v3833 = vunpack.c.l.b16 %v3061
    %v3834 = vunpack.c.l.b16 %v3062
    %v3835 = vunpack.c.l.b16 %v3063
    %v3836 = vunpack.c.l.b16 %v3064
    %v3837 = vunpack.c.l.b16 %v3065
    %v3838 = vunpack.c.l.b16 %v3066
    %v3839 = vunpack.c.l.b16 %v3067
    %v3840 = vunpack.c.l.b16 %v3068
    %v3841 = vunpack.c.l.b16 %v3069
    %v3842 = vunpack.c.l.b16 %v3070
    %v3843 = vunpack.c.l.b16 %v3071
    %v3844 = vunpack.c.l.b16 %v3072
    %v3845 = vunpack.c.l.b16 %v3073
    %v3846 = vunpack.c.l.b16 %v3074
    %v3847 = vunpack.c.l.b16 %v3075
    %v3848 = vunpack.c.l.b16 %v3076
    %v3849 = vunpack.c.l.b16 %v3077
    %v3850 = vunpack.c.l.b16 %v3078
    %v3851 = vunpack.c.l.b16 %v3079
    %v3852 = vunpack.c.l.b16 %v3080
    %v3853 = vunpack.c.l.b16 %v3081
    %v3854 = vunpack.c.l.b16 %v3082
    %v3855 = vunpack.c.l.b16 %v3083
    %v3856 = vunpack.c.l.b16 %v3084
    %v3857 = vunpack.c.l.b16 %v3085
    %v3858 = vunpack.c.l.b16 %v3086
    %v3859 = vunpack.c.l.b16 %v3087
    %v3860 = vunpack.c.l.b16 %v3088
    %v3861 = vunpack.c.l.b16 %v3089
    %v3862 = vunpack.c.l.b16 %v3090
    %v3863 = vunpack.c.l.b16 %v3091
    %v3864 = vunpack.c.l.b16 %v3092
    %v3865 = vunpack.c.l.b16 %v3093
    %v3866 = vunpack.c.l.b16 %v3094
    %v3867 = vunpack.c.l.b16 %v3095
    %v3868 = vunpack.c.l.b16 %v3096
    %v3869 = vunpack.c.l.b16 %v3097
    %v3870 = vunpack.c.l.b16 %v3098
    %v3871 = vunpack.c.l.b16 %v3099
    %v3872 = vunpack.c.l.b16 %v3100
    %v3873 = vunpack.c.l.b16 %v3101
    %v3874 = vunpack.c.l.b16 %v3102
    %v3875 = vunpack.c.l.b16 %v3103
    %v3876 = vunpack.c.l.b16 %v3104
    %v3877 = vunpack.c.l.b16 %v3105
    %v3878 = vunpack.c.l.b16 %v3106
    %v3879 = vunpack.c.l.b16 %v3107
    %v3880 = vunpack.c.l.b16 %v3108
    %v3881 = vunpack.c.l.b16 %v3109
    %v3882 = vunpack.c.l.b16 %v3110
    %v3883 = vunpack.c.l.b16 %v3111
    %v3884 = vunpack.c.l.b16 %v3112
    %v3885 = vunpack.c.l.b16 %v3113
    %v3886 = vunpack.c.l.b16 %v3114
    %v3887 = vunpack.c.l.b16 %v3115
    %v3888 = vunpack.c.l.b16 %v3116
    %v3889 = vunpack.c.l.b16 %v3117
    %v3890 = vunpack.c.l.b16 %v3118
    %v3891 = vunpack.c.l.b16 %v3119
    %v3892 = vunpack.c.l.b16 %v3120
    %v3893 = vunpack.c.l.b16 %v3121
    %v3894 = vunpack.c.l.b16 %v3122
    %v3895 = vunpack.c.l.b16 %v3123
    %v3896 = vunpack.c.l.b16 %v3124
    %v3897 = vunpack.c.l.b16 %v3125
    %v3898 = vunpack.c.l.b16 %v3126
    %v3899 = vunpack.c.l.b16 %v3127
    %v3900 = vunpack.c.l.b16 %v3128
    %v3901 = vunpack.c.l.b16 %v3129
    %v3902 = vunpack.c.l.b16 %v3130
    %v3903 = vunpack.c.l.b16 %v3131
    %v3904 = vunpack.c.l.b16 %v3132
    %v3905 = vunpack.c.l.b16 %v3133
    %v3906 = vunpack.c.l.b16 %v3134
    %v3907 = vunpack.c.l.b16 %v3135
    %v3908 = vunpack.c.l.b16 %v3136
    %v3909 = vunpack.c.l.b16 %v3137
    %v3910 = vunpack.c.l.b16 %v3138
    %v3911 = vunpack.c.l.b16 %v3139
    %v3912 = vunpack.c.l.b16 %v3140
    %v3913 = vunpack.c.l.b16 %v3141
    %v3914 = vunpack.c.l.b16 %v3142
    %v3915 = vunpack.c.l.b16 %v3143
    %v3916 = vunpack.c.l.b16 %v3144
    %v3917 = vunpack.c.l.b16 %v3145
    %v3918 = vunpack.c.l.b16 %v3146
    %v3919 = vunpack.c.l.b16 %v3147
    %v3920 = vunpack.c.l.b16 %v3148
    %v3921 = vunpack.c.l.b16 %v3149
    %v3922 = vunpack.c.l.b16 %v3150
    %v3923 = vunpack.c.l.b16 %v3151
    %v3924 = vunpack.c.l.b16 %v3152
    %v3925 = vunpack.c.l.b16 %v3153
    %v3926 = vunpack.c.l.b16 %v3154
    %v3927 = vunpack.c.l.b16 %v3155
    %v3928 = vunpack.c.l.b16 %v3156
    %v3929 = vunpack.c.l.b16 %v3157
    %v3930 = vunpack.c.l.b16 %v3158
    %v3931 = vunpack.c.l.b16 %v3159
    %v3932 = vunpack.c.l.b16 %v3160
    %v3933 = vunpack.c.l.b16 %v3161
    %v3934 = vunpack.c.l.b16 %v3162
    %v3935 = vunpack.c.l.b16 %v3163
    %v3936 = vunpack.c.l.b16 %v3164
    %v3937 = vunpack.c.l.b16 %v3165
    %v3938 = vunpack.c.l.b16 %v3166
    %v3939 = vunpack.c.l.b16 %v3167
    %v3940 = vunpack.c.l.b16 %v3168
    %v3941 = vunpack.c.l.b16 %v3169
    %v3942 = vunpack.c.l.b16 %v3170
    %v3943 = vunpack.c.l.b16 %v3171
    %v3944 = vunpack.c.l.b16 %v3172
    %v3945 = vunpack.c.l.b16 %v3173
    %v3946 = vunpack.c.l.b16 %v3174
    %v3947 = vunpack.c.l.b16 %v3175
    %v3948 = vunpack.c.l.b16 %v3176
    %v3949 = vunpack.c.l.b16 %v3177
    %v3950 = vunpack.c.l.b16 %v3178
    %v3951 = vunpack.c.l.b16 %v3179
    %v3952 = vunpack.c.l.b16 %v3180
    %v3953 = vunpack.c.l.b16 %v3181
    %v3954 = vunpack.c.l.b16 %v3182
    %v3955 = vunpack.c.l.b16 %v3183
    %v3956 = vunpack.c.l.b16 %v3184
    %v3957 = vunpack.c.l.b16 %v3185
    %v3958 = vunpack.c.l.b16 %v3186
    %v3959 = vunpack.c.l.b16 %v3187
    %v3960 = vunpack.c.l.b16 %v3188
    %v3961 = vunpack.c.l.b16 %v3189
    %v3962 = vunpack.c.l.b16 %v3190
    %v3963 = vunpack.c.l.b16 %v3191
    %v3964 = vunpack.c.l.b16 %v3192
    %v3965 = vunpack.c.l.b16 %v3193
    %v3966 = vunpack.c.l.b16 %v3194
    %v3967 = vunpack.c.l.b16 %v3195
    %v3968 = vunpack.c.l.b16 %v3196
    %v3969 = vunpack.c.l.b16 %v3197
    %v3970 = vunpack.c.l.b16 %v3198
    %v3971 = vunpack.c.l.b16 %v3199
    %v3972 = vunpack.c.l.b16 %v3200
    %v3973 = vunpack.c.l.b16 %v3201
    %v3974 = vunpack.c.l.b16 %v3202
    %v3975 = vunpack.c.l.b16 %v3203
    %v3976 = vunpack.c.l.b16 %v3204
    %v3977 = vunpack.c.l.b16 %v3205
    %v3978 = vunpack.c.l.b16 %v3206
    %v3979 = vunpack.c.l.b16 %v3207
    %v3980 = vunpack.c.l.b16 %v3208
    %v3981 = vunpack.c.l.b16 %v3209
    %v3982 = vunpack.c.l.b16 %v3210
    %v3983 = vunpack.c.l.b16 %v3211
    %v3984 = vunpack.c.l.b16 %v3212
    %v3985 = vunpack.c.l.b16 %v3213
    %v3986 = vunpack.c.l.b16 %v3214
    %v3987 = vunpack.c.l.b16 %v3215
    %v3988 = vunpack.c.l.b16 %v3216
    %v3989 = vunpack.c.l.b16 %v3217
    %v3990 = vunpack.c.l.b16 %v3218
    %v3991 = vunpack.c.l.b16 %v3219
    %v3992 = vunpack.c.l.b16 %v3220
    %v3993 = vunpack.c.l.b16 %v3221
    %v3994 = vunpack.c.l.b16 %v3222
    %v3995 = vunpack.c.l.b16 %v3223
    %v3996 = vunpack.c.l.b16 %v3224
    %v3997 = vunpack.c.l.b16 %v3225
    %v3998 = vunpack.c.l.b16 %v3226
    %v3999 = vunpack.c.l.b16 %v3227
    %v4000 = vunpack.c.l.b16 %v3228
    %v4001 = vunpack.c.l.b16 %v3229
    %v4002 = vunpack.c.l.b16 %v3230
    %v4003 = vunpack.c.l.b16 %v3231
    %v4004 = vunpack.c.l.b16 %v3232
    %v4005 = vunpack.c.l.b16 %v3233
    %v4006 = vunpack.c.l.b16 %v3234
    %v4007 = vunpack.c.l.b16 %v3235
    %v4008 = vunpack.c.l.b16 %v3236
    %v4009 = vunpack.c.l.b16 %v3237
    %v4010 = vunpack.c.l.b16 %v3238
    %v4011 = vunpack.c.l.b16 %v3239
    %v4012 = vunpack.c.l.b16 %v3240
    %v4013 = vunpack.c.l.b16 %v3241
    %v4014 = vunpack.c.l.b16 %v3242
    %v4015 = vunpack.c.l.b16 %v3243
    %v4016 = vunpack.c.l.b16 %v3244
    %v4017 = vunpack.c.l.b16 %v3245
    %v4018 = vunpack.c.l.b16 %v3246
    %v4019 = vunpack.c.l.b16 %v3247
    %v4020 = vunpack.c.l.b16 %v3248
    %v4021 = vunpack.c.l.b16 %v3249
    %v4022 = vunpack.c.l.b16 %v3250
    %v4023 = vunpack.c.l.b16 %v3251
    %v4024 = vunpack.c.l.b16 %v3252
    %v4025 = vunpack.c.l.b16 %v3253
    %v4026 = vunpack.c.l.b16 %v3254
    %v4027 = vunpack.c.l.b16 %v3255
    %v4028 = vunpack.c.l.b16 %v3256
    %v4029 = vunpack.c.l.b16 %v3257
    %v4030 = vunpack.c.l.b16 %v3258
    %v4031 = vunpack.c.l.b16 %v3259
    %v4032 = vunpack.c.l.b16 %v3260
    %v4033 = vunpack.c.l.b16 %v3261
    %v4034 = vunpack.c.l.b16 %v3262
    %v4035 = vunpack.c.l.b16 %v3263
    %v4036 = vunpack.c.l.b16 %v3264
    %v4037 = vunpack.c.l.b16 %v3265
    %v4038 = vunpack.c.l.b16 %v3266
    %v4039 = vunpack.c.l.b16 %v3267
    %v4040 = vunpack.c.l.b16 %v3268
    %v4041 = vunpack.c.l.b16 %v3269
    %v4042 = vunpack.c.l.b16 %v3270
    %v4043 = vunpack.c.l.b16 %v3271
    %v4044 = vunpack.c.l.b16 %v3272
    %v4045 = vunpack.c.l.b16 %v3273
    %v4046 = vunpack.c.l.b16 %v3274
    %v4047 = vunpack.c.l.b16 %v3275
    %v4048 = vunpack.c.l.b16 %v3276
    %v4049 = vunpack.c.l.b16 %v3277
    %v4050 = vunpack.c.l.b16 %v3278
    %v4051 = vunpack.c.l.b16 %v3279
    %v4052 = vunpack.c.l.b16 %v3280
    %v4053 = vunpack.c.l.b16 %v3281
    %v4054 = vunpack.c.l.b16 %v3282
    %v4055 = vpack.c.b16 %v3672, %v3671
    %v4056 = vpack.c.b16 %v3674, %v3673
    %v4057 = vpack.c.b16 %v3676, %v3675
    %v4058 = vpack.c.b16 %v3678, %v3677
    %v4059 = vpack.c.b16 %v3680, %v3679
    %v4060 = vpack.c.b16 %v3682, %v3681
    %v4061 = vpack.c.b16 %v3684, %v3683
    %v4062 = vpack.c.b16 %v3686, %v3685
    %v4063 = vpack.c.b16 %v3688, %v3687
    %v4064 = vpack.c.b16 %v3690, %v3689
    %v4065 = vpack.c.b16 %v3692, %v3691
    %v4066 = vpack.c.b16 %v3694, %v3693
    %v4067 = vpack.c.b16 %v3696, %v3695
    %v4068 = vpack.c.b16 %v3698, %v3697
    %v4069 = vpack.c.b16 %v3700, %v3699
    %v4070 = vpack.c.b16 %v3702, %v3701
    %v4071 = vpack.c.b16 %v3704, %v3703
    %v4072 = vpack.c.b16 %v3706, %v3705
    %v4073 = vpack.c.b16 %v3708, %v3707
    %v4074 = vpack.c.b16 %v3710, %v3709
    %v4075 = vpack.c.b16 %v3712, %v3711
    %v4076 = vpack.c.b16 %v3714, %v3713
    %v4077 = vpack.c.b16 %v3716, %v3715
    %v4078 = vpack.c.b16 %v3718, %v3717
    %v4079 = vpack.c.b16 %v3720, %v3719
    %v4080 = vpack.c.b16 %v3722, %v3721
    %v4081 = vpack.c.b16 %v3724, %v3723
    %v4082 = vpack.c.b16 %v3726, %v3725
    %v4083 = vpack.c.b16 %v3728, %v3727
    %v4084 = vpack.c.b16 %v3730, %v3729
    %v4085 = vpack.c.b16 %v3732, %v3731
    %v4086 = vpack.c.b16 %v3734, %v3733
    %v4087 = vpack.c.b16 %v3736, %v3735
    %v4088 = vpack.c.b16 %v3738, %v3737
    %v4089 = vpack.c.b16 %v3740, %v3739
    %v4090 = vpack.c.b16 %v3742, %v3741
    %v4091 = vpack.c.b16 %v3744, %v3743
    %v4092 = vpack.c.b16 %v3746, %v3745
    %v4093 = vpack.c.b16 %v3748, %v3747
    %v4094 = vpack.c.b16 %v3750, %v3749
    %v4095 = vpack.c.b16 %v3752, %v3751
    %v4096 = vpack.c.b16 %v3754, %v3753
    %v4097 = vpack.c.b16 %v3756, %v3755
    %v4098 = vpack.c.b16 %v3758, %v3757
    %v4099 = vpack.c.b16 %v3760, %v3759
    %v4100 = vpack.c.b16 %v3762, %v3761
    %v4101 = vpack.c.b16 %v3764, %v3763
    %v4102 = vpack.c.b16 %v3766, %v3765
    %v4103 = vpack.c.b16 %v3768, %v3767
    %v4104 = vpack.c.b16 %v3770, %v3769
    %v4105 = vpack.c.b16 %v3772, %v3771
    %v4106 = vpack.c.b16 %v3774, %v3773
    %v4107 = vpack.c.b16 %v3776, %v3775
    %v4108 = vpack.c.b16 %v3778, %v3777
    %v4109 = vpack.c.b16 %v3780, %v3779
    %v4110 = vpack.c.b16 %v3782, %v3781
    %v4111 = vpack.c.b16 %v3784, %v3783
    %v4112 = vpack.c.b16 %v3786, %v3785
    %v4113 = vpack.c.b16 %v3788, %v3787
    %v4114 = vpack.c.b16 %v3790, %v3789
    %v4115 = vpack.c.b16 %v3792, %v3791
    %v4116 = vpack.c.b16 %v3794, %v3793
    %v4117 = vpack.c.b16 %v3796, %v3795
    %v4118 = vpack.c.b16 %v3798, %v3797
    %v4119 = vpack.c.b16 %v3800, %v3799
    %v4120 = vpack.c.b16 %v3802, %v3801
    %v4121 = vpack.c.b16 %v3804, %v3803
    %v4122 = vpack.c.b16 %v3806, %v3805
    %v4123 = vpack.c.b16 %v3808, %v3807
    %v4124 = vpack.c.b16 %v3810, %v3809
    %v4125 = vpack.c.b16 %v3812, %v3811
    %v4126 = vpack.c.b16 %v3814, %v3813
    %v4127 = vpack.c.b16 %v3816, %v3815
    %v4128 = vpack.c.b16 %v3818, %v3817
    %v4129 = vpack.c.b16 %v3820, %v3819
    %v4130 = vpack.c.b16 %v3822, %v3821
    %v4131 = vpack.c.b16 %v3824, %v3823
    %v4132 = vpack.c.b16 %v3826, %v3825
    %v4133 = vpack.c.b16 %v3828, %v3827
    %v4134 = vpack.c.b16 %v3830, %v3829
    %v4135 = vpack.c.b16 %v3832, %v3831
    %v4136 = vpack.c.b16 %v3834, %v3833
    %v4137 = vpack.c.b16 %v3836, %v3835
    %v4138 = vpack.c.b16 %v3838, %v3837
    %v4139 = vpack.c.b16 %v3840, %v3839
    %v4140 = vpack.c.b16 %v3842, %v3841
    %v4141 = vpack.c.b16 %v3844, %v3843
    %v4142 = vpack.c.b16 %v3846, %v3845
    %v4143 = vpack.c.b16 %v3848, %v3847
    %v4144 = vpack.c.b16 %v3850, %v3849
    %v4145 = vpack.c.b16 %v3852, %v3851
    %v4146 = vpack.c.b16 %v3854, %v3853
    %v4147 = vpack.c.b16 %v3856, %v3855
    %v4148 = vpack.c.b16 %v3858, %v3857
    %v4149 = vpack.c.b16 %v3860, %v3859
    %v4150 = vpack.c.b16 %v3862, %v3861
    %v4151 = vpack.c.b16 %v3864, %v3863
    %v4152 = vpack.c.b16 %v3866, %v3865
    %v4153 = vpack.c.b16 %v3868, %v3867
    %v4154 = vpack.c.b16 %v3870, %v3869
    %v4155 = vpack.c.b16 %v3872, %v3871
    %v4156 = vpack.c.b16 %v3874, %v3873
    %v4157 = vpack.c.b16 %v3876, %v3875
    %v4158 = vpack.c.b16 %v3878, %v3877
    %v4159 = vpack.c.b16 %v3880, %v3879
    %v4160 = vpack.c.b16 %v3882, %v3881
    %v4161 = vpack.c.b16 %v3884, %v3883
    %v4162 = vpack.c.b16 %v3886, %v3885
    %v4163 = vpack.c.b16 %v3888, %v3887
    %v4164 = vpack.c.b16 %v3890, %v3889
    %v4165 = vpack.c.b16 %v3892, %v3891
    %v4166 = vpack.c.b16 %v3894, %v3893
    %v4167 = vpack.c.b16 %v3896, %v3895
    %v4168 = vpack.c.b16 %v3898, %v3897
    %v4169 = vpack.c.b16 %v3900, %v3899
    %v4170 = vpack.c.b16 %v3902, %v3901
    %v4171 = vpack.c.b16 %v3904, %v3903
    %v4172 = vpack.c.b16 %v3906, %v3905
    %v4173 = vpack.c.b16 %v3908, %v3907
    %v4174 = vpack.c.b16 %v3910, %v3909
    %v4175 = vpack.c.b16 %v3912, %v3911
    %v4176 = vpack.c.b16 %v3914, %v3913
    %v4177 = vpack.c.b16 %v3916, %v3915
    %v4178 = vpack.c.b16 %v3918, %v3917
    %v4179 = vpack.c.b16 %v3920, %v3919
    %v4180 = vpack.c.b16 %v3922, %v3921
    %v4181 = vpack.c.b16 %v3924, %v3923
    %v4182 = vpack.c.b16 %v3926, %v3925
    %v4183 = vpack.c.b16 %v3928, %v3927
    %v4184 = vpack.c.b16 %v3930, %v3929
    %v4185 = vpack.c.b16 %v3932, %v3931
    %v4186 = vpack.c.b16 %v3934, %v3933
    %v4187 = vpack.c.b16 %v3936, %v3935
    %v4188 = vpack.c.b16 %v3938, %v3937
    %v4189 = vpack.c.b16 %v3940, %v3939
    %v4190 = vpack.c.b16 %v3942, %v3941
    %v4191 = vpack.c.b16 %v3944, %v3943
    %v4192 = vpack.c.b16 %v3946, %v3945
    %v4193 = vpack.c.b16 %v3948, %v3947
    %v4194 = vpack.c.b16 %v3950, %v3949
    %v4195 = vpack.c.b16 %v3952, %v3951
    %v4196 = vpack.c.b16 %v3954, %v3953
    %v4197 = vpack.c.b16 %v3956, %v3955
    %v4198 = vpack.c.b16 %v3958, %v3957
    %v4199 = vpack.c.b16 %v3960, %v3959
    %v4200 = vpack.c.b16 %v3962, %v3961
    %v4201 = vpack.c.b16 %v3964, %v3963
    %v4202 = vpack.c.b16 %v3966, %v3965
    %v4203 = vpack.c.b16 %v3968, %v3967
    %v4204 = vpack.c.b16 %v3970, %v3969
    %v4205 = vpack.c.b16 %v3972, %v3971
    %v4206 = vpack.c.b16 %v3974, %v3973
    %v4207 = vpack.c.b16 %v3976, %v3975
    %v4208 = vpack.c.b16 %v3978, %v3977
    %v4209 = vpack.c.b16 %v3980, %v3979
    %v4210 = vpack.c.b16 %v3982, %v3981
    %v4211 = vpack.c.b16 %v3984, %v3983
    %v4212 = vpack.c.b16 %v3986, %v3985
    %v4213 = vpack.c.b16 %v3988, %v3987
    %v4214 = vpack.c.b16 %v3990, %v3989
    %v4215 = vpack.c.b16 %v3992, %v3991
    %v4216 = vpack.c.b16 %v3994, %v3993
    %v4217 = vpack.c.b16 %v3996, %v3995
    %v4218 = vpack.c.b16 %v3998, %v3997
    %v4219 = vpack.c.b16 %v4000, %v3999
    %v4220 = vpack.c.b16 %v4002, %v4001
    %v4221 = vpack.c.b16 %v4004, %v4003
    %v4222 = vpack.c.b16 %v4006, %v4005
    %v4223 = vpack.c.b16 %v4008, %v4007
    %v4224 = vpack.c.b16 %v4010, %v4009
    %v4225 = vpack.c.b16 %v4012, %v4011
    %v4226 = vpack.c.b16 %v4014, %v4013
    %v4227 = vpack.c.b16 %v4016, %v4015
    %v4228 = vpack.c.b16 %v4018, %v4017
    %v4229 = vpack.c.b16 %v4020, %v4019
    %v4230 = vpack.c.b16 %v4022, %v4021
    %v4231 = vpack.c.b16 %v4024, %v4023
    %v4232 = vpack.c.b16 %v4026, %v4025
    %v4233 = vpack.c.b16 %v4028, %v4027
    %v4234 = vpack.c.b16 %v4030, %v4029
    %v4235 = vpack.c.b16 %v4032, %v4031
    %v4236 = vpack.c.b16 %v4034, %v4033
    %v4237 = vpack.c.b16 %v4036, %v4035
    %v4238 = vpack.c.b16 %v4038, %v4037
    %v4239 = vpack.c.b16 %v4040, %v4039
    %v4240 = vpack.c.b16 %v4042, %v4041
    %v4241 = vpack.c.b16 %v4044, %v4043
    %v4242 = vpack.c.b16 %v4046, %v4045
    %v4243 = vpack.c.b16 %v4048, %v4047
    %v4244 = vpack.c.b16 %v4050, %v4049
    %v4245 = vpack.c.b16 %v4052, %v4051
    %v4246 = vpack.c.b16 %v4054, %v4053
    %4439 = vmatpush.bf16.msra.mxu0 %v4062
    %4440 = vmatpush.bf16.msra.mxu0 %v4061
    %4441 = vmatpush.bf16.msra.mxu0 %v4060
    %4442 = vmatpush.bf16.msra.mxu0 %v4059
    %4443 = vmatpush.bf16.msra.mxu0 %v4058
    %4444 = vmatpush.bf16.msra.mxu0 %v4057
    %4445 = vmatpush.bf16.msra.mxu0 %v4056
    %4446 = vmatpush.bf16.msra.mxu0 %v4055
    %4447 = vmatmul.bf16.gmra.mxu0 %v2875
    %v4448 = vpop.f32.mrf.mxu0
    %v4449 = vadd.f32 %v3285, %v4448
    %v4450 = vpop.f32.mrf.mxu0
    %4451 = vdwg.mxu0
    %4452 = vmatpush.bf16.msra.mxu0 %v4070
    %4453 = vmatpush.bf16.msra.mxu0 %v4069
    %4454 = vmatpush.bf16.msra.mxu0 %v4068
    %4455 = vmatpush.bf16.msra.mxu0 %v4067
    %4456 = vmatpush.bf16.msra.mxu0 %v4066
    %4457 = vmatpush.bf16.msra.mxu0 %v4065
    %4458 = vmatpush.bf16.msra.mxu0 %v4064
    %4459 = vmatpush.bf16.msra.mxu0 %v4063
    %4460 = vmatmul.bf16.gmra.mxu0 %v2876
    %v4461 = vpop.f32.mrf.mxu0
    %v4462 = vadd.f32 %v4449, %v4461
    %v4463 = vpop.f32.mrf.mxu0
    %4464 = vdwg.mxu0
    %4465 = vmatpush.bf16.msra.mxu0 %v4078
    %4466 = vmatpush.bf16.msra.mxu0 %v4077
    %4467 = vmatpush.bf16.msra.mxu0 %v4076
    %4468 = vmatpush.bf16.msra.mxu0 %v4075
    %4469 = vmatpush.bf16.msra.mxu0 %v4074
    %4470 = vmatpush.bf16.msra.mxu0 %v4073
    %4471 = vmatpush.bf16.msra.mxu0 %v4072
    %4472 = vmatpush.bf16.msra.mxu0 %v4071
    %4473 = vmatmul.bf16.gmra.mxu0 %v2877
    %v4474 = vpop.f32.mrf.mxu0
    %v4475 = vadd.f32 %v4462, %v4474
    %v4476 = vpop.f32.mrf.mxu0
    %4477 = vdwg.mxu0
    %4478 = vmatpush.bf16.msra.mxu0 %v4086
    %4479 = vmatpush.bf16.msra.mxu0 %v4085
    %4480 = vmatpush.bf16.msra.mxu0 %v4084
    %4481 = vmatpush.bf16.msra.mxu0 %v4083
    %4482 = vmatpush.bf16.msra.mxu0 %v4082
    %4483 = vmatpush.bf16.msra.mxu0 %v4081
    %4484 = vmatpush.bf16.msra.mxu0 %v4080
    %4485 = vmatpush.bf16.msra.mxu0 %v4079
    %4486 = vmatmul.bf16.gmra.mxu0 %v2878
    %v4487 = vpop.f32.mrf.mxu0
    %v4488 = vadd.f32 %v4475, %v4487
    %v4489 = vpop.f32.mrf.mxu0
    %4490 = vdwg.mxu0
    %4491 = vmatpush.bf16.msra.mxu0 %v4094
    %4492 = vmatpush.bf16.msra.mxu0 %v4093
    %4493 = vmatpush.bf16.msra.mxu0 %v4092
    %4494 = vmatpush.bf16.msra.mxu0 %v4091
    %4495 = vmatpush.bf16.msra.mxu0 %v4090
    %4496 = vmatpush.bf16.msra.mxu0 %v4089
    %4497 = vmatpush.bf16.msra.mxu0 %v4088
    %4498 = vmatpush.bf16.msra.mxu0 %v4087
    %4499 = vmatmul.bf16.gmra.mxu0 %v2879
    %v4500 = vpop.f32.mrf.mxu0
    %v4501 = vadd.f32 %v4488, %v4500
    %v4502 = vpop.f32.mrf.mxu0
    %4503 = vdwg.mxu0
    %4504 = vmatpush.bf16.msra.mxu0 %v4102
    %4505 = vmatpush.bf16.msra.mxu0 %v4101
    %4506 = vmatpush.bf16.msra.mxu0 %v4100
    %4507 = vmatpush.bf16.msra.mxu0 %v4099
    %4508 = vmatpush.bf16.msra.mxu0 %v4098
    %4509 = vmatpush.bf16.msra.mxu0 %v4097
    %4510 = vmatpush.bf16.msra.mxu0 %v4096
    %4511 = vmatpush.bf16.msra.mxu0 %v4095
    %4512 = vmatmul.bf16.gmra.mxu0 %v2880
    %v4513 = vpop.f32.mrf.mxu0
    %v4514 = vadd.f32 %v4501, %v4513
    %v4515 = vpop.f32.mrf.mxu0
    %4516 = vdwg.mxu0
    %4517 = vmatpush.bf16.msra.mxu0 %v4110
    %4518 = vmatpush.bf16.msra.mxu0 %v4109
    %4519 = vmatpush.bf16.msra.mxu0 %v4108
    %4520 = vmatpush.bf16.msra.mxu0 %v4107
    %4521 = vmatpush.bf16.msra.mxu0 %v4106
    %4522 = vmatpush.bf16.msra.mxu0 %v4105
    %4523 = vmatpush.bf16.msra.mxu0 %v4104
    %4524 = vmatpush.bf16.msra.mxu0 %v4103
    %4525 = vmatmul.bf16.gmra.mxu0 %v2881
    %v4526 = vpop.f32.mrf.mxu0
    %v4527 = vadd.f32 %v4514, %v4526
    %v4528 = vpop.f32.mrf.mxu0
    %4529 = vdwg.mxu0
    %4530 = vmatpush.bf16.msra.mxu0 %v4118
    %4531 = vmatpush.bf16.msra.mxu0 %v4117
    %4532 = vmatpush.bf16.msra.mxu0 %v4116
    %4533 = vmatpush.bf16.msra.mxu0 %v4115
    %4534 = vmatpush.bf16.msra.mxu0 %v4114
    %4535 = vmatpush.bf16.msra.mxu0 %v4113
    %4536 = vmatpush.bf16.msra.mxu0 %v4112
    %4537 = vmatpush.bf16.msra.mxu0 %v4111
    %4538 = vmatmul.bf16.gmra.mxu0 %v2882
    %v4539 = vpop.f32.mrf.mxu0
    %v4540 = vadd.f32 %v4527, %v4539
    %v4541 = vpop.f32.mrf.mxu0
    %4542 = vdwg.mxu0
    %4543 = vmatpush.bf16.msra.mxu0 %v4126
    %4544 = vmatpush.bf16.msra.mxu0 %v4125
    %4545 = vmatpush.bf16.msra.mxu0 %v4124
    %4546 = vmatpush.bf16.msra.mxu0 %v4123
    %4547 = vmatpush.bf16.msra.mxu0 %v4122
    %4548 = vmatpush.bf16.msra.mxu0 %v4121
    %4549 = vmatpush.bf16.msra.mxu0 %v4120
    %4550 = vmatpush.bf16.msra.mxu0 %v4119
    %4551 = vmatmul.bf16.gmra.mxu0 %v2883
    %v4552 = vpop.f32.mrf.mxu0
    %v4553 = vadd.f32 %v4540, %v4552
    %v4554 = vpop.f32.mrf.mxu0
    %4555 = vdwg.mxu0
    %4556 = vmatpush.bf16.msra.mxu0 %v4134
    %4557 = vmatpush.bf16.msra.mxu0 %v4133
    %4558 = vmatpush.bf16.msra.mxu0 %v4132
    %4559 = vmatpush.bf16.msra.mxu0 %v4131
    %4560 = vmatpush.bf16.msra.mxu0 %v4130
    %4561 = vmatpush.bf16.msra.mxu0 %v4129
    %4562 = vmatpush.bf16.msra.mxu0 %v4128
    %4563 = vmatpush.bf16.msra.mxu0 %v4127
    %4564 = vmatmul.bf16.gmra.mxu0 %v2884
    %v4565 = vpop.f32.mrf.mxu0
    %v4566 = vadd.f32 %v4553, %v4565
    %v4567 = vpop.f32.mrf.mxu0
    %4568 = vdwg.mxu0
    %4569 = vmatpush.bf16.msra.mxu0 %v4142
    %4570 = vmatpush.bf16.msra.mxu0 %v4141
    %4571 = vmatpush.bf16.msra.mxu0 %v4140
    %4572 = vmatpush.bf16.msra.mxu0 %v4139
    %4573 = vmatpush.bf16.msra.mxu0 %v4138
    %4574 = vmatpush.bf16.msra.mxu0 %v4137
    %4575 = vmatpush.bf16.msra.mxu0 %v4136
    %4576 = vmatpush.bf16.msra.mxu0 %v4135
    %4577 = vmatmul.bf16.gmra.mxu0 %v2885
    %v4578 = vpop.f32.mrf.mxu0
    %v4579 = vadd.f32 %v4566, %v4578
    %v4580 = vpop.f32.mrf.mxu0
    %4581 = vdwg.mxu0
    %4582 = vmatpush.bf16.msra.mxu0 %v4150
    %4583 = vmatpush.bf16.msra.mxu0 %v4149
    %4584 = vmatpush.bf16.msra.mxu0 %v4148
    %4585 = vmatpush.bf16.msra.mxu0 %v4147
    %4586 = vmatpush.bf16.msra.mxu0 %v4146
    %4587 = vmatpush.bf16.msra.mxu0 %v4145
    %4588 = vmatpush.bf16.msra.mxu0 %v4144
    %4589 = vmatpush.bf16.msra.mxu0 %v4143
    %4590 = vmatmul.bf16.gmra.mxu0 %v2886
    %v4591 = vpop.f32.mrf.mxu0
    %v4592 = vadd.f32 %v4579, %v4591
    %v4593 = vpop.f32.mrf.mxu0
    %4594 = vdwg.mxu0
    %4595 = vmatpush.bf16.msra.mxu0 %v4158
    %4596 = vmatpush.bf16.msra.mxu0 %v4157
    %4597 = vmatpush.bf16.msra.mxu0 %v4156
    %4598 = vmatpush.bf16.msra.mxu0 %v4155
    %4599 = vmatpush.bf16.msra.mxu0 %v4154
    %4600 = vmatpush.bf16.msra.mxu0 %v4153
    %4601 = vmatpush.bf16.msra.mxu0 %v4152
    %4602 = vmatpush.bf16.msra.mxu0 %v4151
    %4603 = vmatmul.bf16.gmra.mxu0 %v2887
    %v4604 = vpop.f32.mrf.mxu0
    %v4605 = vadd.f32 %v4592, %v4604
    %v4606 = vpop.f32.mrf.mxu0
    %4607 = vdwg.mxu0
    %4608 = vmatpush.bf16.msra.mxu0 %v4166
    %4609 = vmatpush.bf16.msra.mxu0 %v4165
    %4610 = vmatpush.bf16.msra.mxu0 %v4164
    %4611 = vmatpush.bf16.msra.mxu0 %v4163
    %4612 = vmatpush.bf16.msra.mxu0 %v4162
    %4613 = vmatpush.bf16.msra.mxu0 %v4161
    %4614 = vmatpush.bf16.msra.mxu0 %v4160
    %4615 = vmatpush.bf16.msra.mxu0 %v4159
    %4616 = vmatmul.bf16.gmra.mxu0 %v2888
    %v4617 = vpop.f32.mrf.mxu0
    %v4618 = vadd.f32 %v4605, %v4617
    %v4619 = vpop.f32.mrf.mxu0
    %4620 = vdwg.mxu0
    %4621 = vmatpush.bf16.msra.mxu0 %v4174
    %4622 = vmatpush.bf16.msra.mxu0 %v4173
    %4623 = vmatpush.bf16.msra.mxu0 %v4172
    %4624 = vmatpush.bf16.msra.mxu0 %v4171
    %4625 = vmatpush.bf16.msra.mxu0 %v4170
    %4626 = vmatpush.bf16.msra.mxu0 %v4169
    %4627 = vmatpush.bf16.msra.mxu0 %v4168
    %4628 = vmatpush.bf16.msra.mxu0 %v4167
    %4629 = vmatmul.bf16.gmra.mxu0 %v2889
    %v4630 = vpop.f32.mrf.mxu0
    %v4631 = vadd.f32 %v4618, %v4630
    %v4632 = vpop.f32.mrf.mxu0
    %4633 = vdwg.mxu0
    %4634 = vmatpush.bf16.msra.mxu0 %v4182
    %4635 = vmatpush.bf16.msra.mxu0 %v4181
    %4636 = vmatpush.bf16.msra.mxu0 %v4180
    %4637 = vmatpush.bf16.msra.mxu0 %v4179
    %4638 = vmatpush.bf16.msra.mxu0 %v4178
    %4639 = vmatpush.bf16.msra.mxu0 %v4177
    %4640 = vmatpush.bf16.msra.mxu0 %v4176
    %4641 = vmatpush.bf16.msra.mxu0 %v4175
    %4642 = vmatmul.bf16.gmra.mxu0 %v2890
    %v4643 = vpop.f32.mrf.mxu0
    %v4644 = vadd.f32 %v4631, %v4643
    %v4645 = vpop.f32.mrf.mxu0
    %4646 = vdwg.mxu0
    %4647 = vmatpush.bf16.msra.mxu0 %v4190
    %4648 = vmatpush.bf16.msra.mxu0 %v4189
    %4649 = vmatpush.bf16.msra.mxu0 %v4188
    %4650 = vmatpush.bf16.msra.mxu0 %v4187
    %4651 = vmatpush.bf16.msra.mxu0 %v4186
    %4652 = vmatpush.bf16.msra.mxu0 %v4185
    %4653 = vmatpush.bf16.msra.mxu0 %v4184
    %4654 = vmatpush.bf16.msra.mxu0 %v4183
    %4655 = vmatmul.bf16.gmra.mxu0 %v2891
    %v4656 = vpop.f32.mrf.mxu0
    %v4657 = vadd.f32 %v4644, %v4656
    %v4658 = vpop.f32.mrf.mxu0
    %4659 = vdwg.mxu0
    %4660 = vmatpush.bf16.msra.mxu0 %v4198
    %4661 = vmatpush.bf16.msra.mxu0 %v4197
    %4662 = vmatpush.bf16.msra.mxu0 %v4196
    %4663 = vmatpush.bf16.msra.mxu0 %v4195
    %4664 = vmatpush.bf16.msra.mxu0 %v4194
    %4665 = vmatpush.bf16.msra.mxu0 %v4193
    %4666 = vmatpush.bf16.msra.mxu0 %v4192
    %4667 = vmatpush.bf16.msra.mxu0 %v4191
    %4668 = vmatmul.bf16.gmra.mxu0 %v2892
    %v4669 = vpop.f32.mrf.mxu0
    %v4670 = vadd.f32 %v4657, %v4669
    %v4671 = vpop.f32.mrf.mxu0
    %4672 = vdwg.mxu0
    %4673 = vmatpush.bf16.msra.mxu0 %v4206
    %4674 = vmatpush.bf16.msra.mxu0 %v4205
    %4675 = vmatpush.bf16.msra.mxu0 %v4204
    %4676 = vmatpush.bf16.msra.mxu0 %v4203
    %4677 = vmatpush.bf16.msra.mxu0 %v4202
    %4678 = vmatpush.bf16.msra.mxu0 %v4201
    %4679 = vmatpush.bf16.msra.mxu0 %v4200
    %4680 = vmatpush.bf16.msra.mxu0 %v4199
    %4681 = vmatmul.bf16.gmra.mxu0 %v2893
    %v4682 = vpop.f32.mrf.mxu0
    %v4683 = vadd.f32 %v4670, %v4682
    %v4684 = vpop.f32.mrf.mxu0
    %4685 = vdwg.mxu0
    %4686 = vmatpush.bf16.msra.mxu0 %v4214
    %4687 = vmatpush.bf16.msra.mxu0 %v4213
    %4688 = vmatpush.bf16.msra.mxu0 %v4212
    %4689 = vmatpush.bf16.msra.mxu0 %v4211
    %4690 = vmatpush.bf16.msra.mxu0 %v4210
    %4691 = vmatpush.bf16.msra.mxu0 %v4209
    %4692 = vmatpush.bf16.msra.mxu0 %v4208
    %4693 = vmatpush.bf16.msra.mxu0 %v4207
    %4694 = vmatmul.bf16.gmra.mxu0 %v2894
    %v4695 = vpop.f32.mrf.mxu0
    %v4696 = vadd.f32 %v4683, %v4695
    %v4697 = vpop.f32.mrf.mxu0
    %4698 = vdwg.mxu0
    %4699 = vmatpush.bf16.msra.mxu0 %v4222
    %4700 = vmatpush.bf16.msra.mxu0 %v4221
    %4701 = vmatpush.bf16.msra.mxu0 %v4220
    %4702 = vmatpush.bf16.msra.mxu0 %v4219
    %4703 = vmatpush.bf16.msra.mxu0 %v4218
    %4704 = vmatpush.bf16.msra.mxu0 %v4217
    %4705 = vmatpush.bf16.msra.mxu0 %v4216
    %4706 = vmatpush.bf16.msra.mxu0 %v4215
    %4707 = vmatmul.bf16.gmra.mxu0 %v2895
    %v4708 = vpop.f32.mrf.mxu0
    %v4709 = vadd.f32 %v4696, %v4708
    %v4710 = vpop.f32.mrf.mxu0
    %4711 = vdwg.mxu0
    %4712 = vmatpush.bf16.msra.mxu0 %v4230
    %4713 = vmatpush.bf16.msra.mxu0 %v4229
    %4714 = vmatpush.bf16.msra.mxu0 %v4228
    %4715 = vmatpush.bf16.msra.mxu0 %v4227
    %4716 = vmatpush.bf16.msra.mxu0 %v4226
    %4717 = vmatpush.bf16.msra.mxu0 %v4225
    %4718 = vmatpush.bf16.msra.mxu0 %v4224
    %4719 = vmatpush.bf16.msra.mxu0 %v4223
    %4720 = vmatmul.bf16.gmra.mxu0 %v2896
    %v4721 = vpop.f32.mrf.mxu0
    %v4722 = vadd.f32 %v4709, %v4721
    %v4723 = vpop.f32.mrf.mxu0
    %4724 = vdwg.mxu0
    %4725 = vmatpush.bf16.msra.mxu0 %v4238
    %4726 = vmatpush.bf16.msra.mxu0 %v4237
    %4727 = vmatpush.bf16.msra.mxu0 %v4236
    %4728 = vmatpush.bf16.msra.mxu0 %v4235
    %4729 = vmatpush.bf16.msra.mxu0 %v4234
    %4730 = vmatpush.bf16.msra.mxu0 %v4233
    %4731 = vmatpush.bf16.msra.mxu0 %v4232
    %4732 = vmatpush.bf16.msra.mxu0 %v4231
    %4733 = vmatmul.bf16.gmra.mxu0 %v2897
    %v4734 = vpop.f32.mrf.mxu0
    %v4735 = vadd.f32 %v4722, %v4734
    %v4736 = vpop.f32.mrf.mxu0
    %4737 = vdwg.mxu0
    %4738 = vmatpush.bf16.msra.mxu0 %v4246
    %4739 = vmatpush.bf16.msra.mxu0 %v4245
    %4740 = vmatpush.bf16.msra.mxu0 %v4244
    %4741 = vmatpush.bf16.msra.mxu0 %v4243
    %4742 = vmatpush.bf16.msra.mxu0 %v4242
    %4743 = vmatpush.bf16.msra.mxu0 %v4241
    %4744 = vmatpush.bf16.msra.mxu0 %v4240
    %4745 = vmatpush.bf16.msra.mxu0 %v4239
    %4746 = vmatmul.bf16.gmra.mxu0 %v2898
    %v4747 = vpop.f32.mrf.mxu0
    %v4748 = vadd.f32 %v4735, %v4747
    %v4749 = vpop.f32.mrf.mxu0
    %4750 = vdwg.mxu0
    %4751 = vst [vmem:[#allocation14] sm:$0xff] %v4748
    // Predicated region
    $region62: #{tpu_custom_call.1} parent=1 // pred_check
      _
    $region63: #{tpu_custom_call.1} parent=1 // pred_check_branch
      %4753 = sbr.rel (0) target = $region65
    $region64: #{tpu_custom_call.1} parent=1 // pred_region
      %4755 = vsyncadd [#allocation4], 0
      %s4757 = sshll.u32 [#allocation14], 4
      %s4758 = int_to_ptr.vmem [resolvable:$true] %s4757
      %s4759 = sshll.u32 %s8, 4
      %s4760 = int_to_ptr.hbm [resolvable:$true] %s4759
      %4762 = dma.vmem_to_hbm [thread:$0]  %s4758, 128, %s4760, [#allocation4]
    $region65: #{tpu_custom_call.1} parent=1 // pred_fallthru
      _
    // Predicated region
    $region66: #{tpu_custom_call.1} parent=1 // pred_check
      _
    $region67: #{tpu_custom_call.1} parent=1 // pred_check_branch
      %4764 = sbr.rel (0) target = $region69
    $region68: #{tpu_custom_call.1} parent=1 // pred_region
      %4766 = dma.done [#allocation4], 128
    $region69: #{tpu_custom_call.1} parent=1 // pred_fallthru
      _
    %4767 = vsyncpa [#allocation3], 1
    %4768 = vsyncpa [#allocation6], 1
    %4769 = vsyncpa [#allocation9], 1
    %4770 = vsyncpa [#allocation12], 1
    %4771 = vsyncpa [#allocation4], 1

// kernel: tpu_custom_call.1
$region0: #{tpu_custom_call.1}
  #allocation0 [shape = 'u32[]', space=smem, size = 0x4, offset = 0x4, fixed_abs, tag = 'smem constant byte address 0x4 - core index']
  #allocation1 [shape = 'u32[72,128]{1,0:T(1,128)}', space=vmem, size = 0x9000, scoped, tag = 'internal scratch']
  %s0 = inlined_call_operand.hbm [shape: f32[8,128], index: 0, kind: input, shape index: {}]
  %s1 = inlined_call_operand.hbm [shape: f32[8,128], index: 1, kind: input, shape index: {}]
  %s2 = inlined_call_operand.hbm [shape: bf16[128,128], index: 2, kind: input, shape index: {}]
  %s3 = inlined_call_operand.hbm [shape: bf16[128,128], index: 3, kind: input, shape index: {}]
  %s4 = inlined_call_operand.hbm [shape: bf16[128,3072], index: 4, kind: input, shape index: {}]
  %s5 = inlined_call_operand.hbm [shape: f32[1,3072], index: 5, kind: input, shape index: {}]
  %s6 = inlined_call_operand.hbm [shape: bf16[3072,128], index: 6, kind: input, shape index: {}]
  %s7 = inlined_call_operand.vmem [shape: f32[1,128], index: 7, kind: input, shape index: {}]
  %s8 = inlined_call_operand.hbm [shape: f32[8,128], index: 8, kind: output, shape index: {}]
  %s9 = sld [smem:[#allocation0]]
  $region70: #{tpu_custom_call.1} parent=0
    _
  %s11 = ssub.s32 1, %s9
  %s12 = scalar_select 0, %s11, %s9
  $region1: #{tpu_custom_call.1} parent=0
    #allocation2 [shape = 'u8[4096]{0}', space=vmem, size = 0x1000, scoped, tag = 'input window, operand 0, single buffered']
    #allocation3 [shape = 's32[1]{0}', space=sflag, size = 0x4, scoped, tag = 'scoped memory for tpu_custom_call.1']
    #allocation4 [shape = 's32[1]{0}', space=sflag, size = 0x4, scoped, tag = 'scoped memory for tpu_custom_call.1']
    #allocation5 [shape = 'u8[4096]{0}', space=vmem, size = 0x1000, scoped, tag = 'input window, operand 1, single buffered']
    #allocation6 [shape = 's32[1]{0}', space=sflag, size = 0x4, scoped, tag = 'scoped memory for tpu_custom_call.1']
    #allocation7 [shape = 'u8[32768]{0}', space=vmem, size = 0x8000, scoped, tag = 'input window, operand 2, single buffered']
    #allocation8 [shape = 'u8[32768]{0}', space=vmem, size = 0x8000, scoped, tag = 'input window, operand 3, single buffered']
    #allocation9 [shape = 's32[1]{0}', space=sflag, size = 0x4, scoped, tag = 'scoped memory for tpu_custom_call.1']
    #allocation10 [shape = 'u8[786432]{0}', space=vmem, size = 0xc0000, scoped, tag = 'input window, operand 4, single buffered']
    #allocation11 [shape = 'u8[12288]{0}', space=vmem, size = 0x3000, scoped, tag = 'input window, operand 5, single buffered']
    #allocation12 [shape = 's32[1]{0}', space=sflag, size = 0x4, scoped, tag = 'scoped memory for tpu_custom_call.1']
    #allocation13 [shape = 'u8[786432]{0}', space=vmem, size = 0xc0000, scoped, tag = 'input window, operand 6, single buffered']
    #allocation14 [shape = 'u8[4096]{0}', space=vmem, size = 0x1000, scoped, tag = 'output window, operand 0, single buffered']
    %13 = vsyncpa [#allocation3], 0
    %14 = vsyncpa [#allocation6], 0
    %15 = vsyncpa [#allocation9], 0
    %16 = vsyncpa [#allocation12], 0
    %17 = vsyncpa [#allocation4], 0
    // Predicated region
    $region2: #{tpu_custom_call.1} parent=1 // pred_check
      _
    $region3: #{tpu_custom_call.1} parent=1 // pred_check_branch
      %19 = sbr.rel (0) target = $region5
    $region4: #{tpu_custom_call.1} parent=1 // pred_region
      %21 = vsyncadd [#allocation3], 0
      %s23 = sshll.u32 %s0, 4
      %s24 = int_to_ptr.hbm [resolvable:$true] %s23
      %s25 = sshll.u32 [#allocation2], 4
      %s26 = int_to_ptr.vmem [resolvable:$true] %s25
      %28 = dma.hbm_to_vmem [thread:$0]  %s24, 128, %s26, [#allocation3]
    $region5: #{tpu_custom_call.1} parent=1 // pred_fallthru
      _
    // Predicated region
    $region6: #{tpu_custom_call.1} parent=1 // pred_check
      _
    $region7: #{tpu_custom_call.1} parent=1 // pred_check_branch
      %30 = sbr.rel (0) target = $region9
    $region8: #{tpu_custom_call.1} parent=1 // pred_region
      %32 = vsyncadd [#allocation6], 0
      %s34 = sshll.u32 %s1, 4
      %s35 = int_to_ptr.hbm [resolvable:$true] %s34
      %s36 = sshll.u32 [#allocation5], 4
      %s37 = int_to_ptr.vmem [resolvable:$true] %s36
      %39 = dma.hbm_to_vmem [thread:$0]  %s35, 128, %s37, [#allocation6]
    $region9: #{tpu_custom_call.1} parent=1 // pred_fallthru
      _
    // Predicated region
    $region10: #{tpu_custom_call.1} parent=1 // pred_check
      _
    $region11: #{tpu_custom_call.1} parent=1 // pred_check_branch
      %41 = sbr.rel (0) target = $region13
    $region12: #{tpu_custom_call.1} parent=1 // pred_region
      %43 = vsyncadd [#allocation6], 0
      %s44 = sshll.u32 %s2, 4
      %s45 = int_to_ptr.hbm [resolvable:$true] %s44
      %s46 = sshll.u32 [#allocation7], 4
      %s47 = int_to_ptr.vmem [resolvable:$true] %s46
      %52 = dma.hbm_to_vmem [thread:$0]  %s45, 1024, %s47, [#allocation6], 64, 64, 4
    $region13: #{tpu_custom_call.1} parent=1 // pred_fallthru
      _
    // Predicated region
    $region14: #{tpu_custom_call.1} parent=1 // pred_check
      _
    $region15: #{tpu_custom_call.1} parent=1 // pred_check_branch
      %54 = sbr.rel (0) target = $region17
    $region16: #{tpu_custom_call.1} parent=1 // pred_region
      %56 = vsyncadd [#allocation9], 0
      %s57 = sshll.u32 %s3, 4
      %s58 = int_to_ptr.hbm [resolvable:$true] %s57
      %s59 = sshll.u32 [#allocation8], 4
      %s60 = int_to_ptr.vmem [resolvable:$true] %s59
      %65 = dma.hbm_to_vmem [thread:$0]  %s58, 1024, %s60, [#allocation9], 64, 64, 4
    $region17: #{tpu_custom_call.1} parent=1 // pred_fallthru
      _
    // Predicated region
    $region18: #{tpu_custom_call.1} parent=1 // pred_check
      _
    $region19: #{tpu_custom_call.1} parent=1 // pred_check_branch
      %67 = sbr.rel (0) target = $region21
    $region20: #{tpu_custom_call.1} parent=1 // pred_region
      %69 = vsyncadd [#allocation9], 0
      %s70 = sshll.u32 %s4, 4
      %s71 = int_to_ptr.hbm [resolvable:$true] %s70
      %s72 = sshll.u32 [#allocation10], 4
      %s73 = int_to_ptr.vmem [resolvable:$true] %s72
      %78 = dma.hbm_to_vmem [thread:$0]  %s71, 24576, %s73, [#allocation9], 1536, 1536, 96
    $region21: #{tpu_custom_call.1} parent=1 // pred_fallthru
      _
    // Predicated region
    $region22: #{tpu_custom_call.1} parent=1 // pred_check
      _
    $region23: #{tpu_custom_call.1} parent=1 // pred_check_branch
      %80 = sbr.rel (0) target = $region25
    $region24: #{tpu_custom_call.1} parent=1 // pred_region
      %82 = vsyncadd [#allocation12], 0
      %s84 = sshll.u32 %s5, 4
      %s85 = int_to_ptr.hbm [resolvable:$true] %s84
      %s86 = sshll.u32 [#allocation11], 4
      %s87 = int_to_ptr.vmem [resolvable:$true] %s86
      %89 = dma.hbm_to_vmem [thread:$0]  %s85, 384, %s87, [#allocation12]
    $region25: #{tpu_custom_call.1} parent=1 // pred_fallthru
      _
    // Predicated region
    $region26: #{tpu_custom_call.1} parent=1 // pred_check
      _
    $region27: #{tpu_custom_call.1} parent=1 // pred_check_branch
      %91 = sbr.rel (0) target = $region29
    $region28: #{tpu_custom_call.1} parent=1 // pred_region
      %93 = vsyncadd [#allocation12], 0
      %s94 = sshll.u32 %s6, 4
      %s95 = int_to_ptr.hbm [resolvable:$true] %s94
      %s96 = sshll.u32 [#allocation13], 4
      %s97 = int_to_ptr.vmem [resolvable:$true] %s96
      %102 = dma.hbm_to_vmem [thread:$0]  %s95, 24576, %s97, [#allocation12], 64, 64, 4
    $region29: #{tpu_custom_call.1} parent=1 // pred_fallthru
      _
    // Predicated region
    $region30: #{tpu_custom_call.1} parent=1 // pred_check
      _
    $region31: #{tpu_custom_call.1} parent=1 // pred_check_branch
      %104 = sbr.rel (0) target = $region33
    $region32: #{tpu_custom_call.1} parent=1 // pred_region
      _
    $region33: #{tpu_custom_call.1} parent=1 // pred_fallthru
      _
    // Predicated region
    $region34: #{tpu_custom_call.1} parent=1 // pred_check
      _
    $region35: #{tpu_custom_call.1} parent=1 // pred_check_branch
      %106 = sbr.rel (0) target = $region37
    $region36: #{tpu_custom_call.1} parent=1 // pred_region
      %108 = dma.done [#allocation3], 128
    $region37: #{tpu_custom_call.1} parent=1 // pred_fallthru
      _
    // Predicated region
    $region38: #{tpu_custom_call.1} parent=1 // pred_check
      _
    $region39: #{tpu_custom_call.1} parent=1 // pred_check_branch
      %110 = sbr.rel (0) target = $region41
    $region40: #{tpu_custom_call.1} parent=1 // pred_region
      %112 = dma.done [#allocation6], 128
    $region41: #{tpu_custom_call.1} parent=1 // pred_fallthru
      _
    // Predicated region
    $region42: #{tpu_custom_call.1} parent=1 // pred_check
      _
    $region43: #{tpu_custom_call.1} parent=1 // pred_check_branch
      %114 = sbr.rel (0) target = $region45
    $region44: #{tpu_custom_call.1} parent=1 // pred_region
      %116 = dma.done [#allocation6], 1024
    $region45: #{tpu_custom_call.1} parent=1 // pred_fallthru
      _
    // Predicated region
    $region46: #{tpu_custom_call.1} parent=1 // pred_check
      _
    $region47: #{tpu_custom_call.1} parent=1 // pred_check_branch
      %118 = sbr.rel (0) target = $region49
    $region48: #{tpu_custom_call.1} parent=1 // pred_region
      %120 = dma.done [#allocation9], 1024
    $region49: #{tpu_custom_call.1} parent=1 // pred_fallthru
      _
    // Predicated region
    $region50: #{tpu_custom_call.1} parent=1 // pred_check
      _
    $region51: #{tpu_custom_call.1} parent=1 // pred_check_branch
      %122 = sbr.rel (0) target = $region53
    $region52: #{tpu_custom_call.1} parent=1 // pred_region
      %124 = dma.done [#allocation9], 24576
    $region53: #{tpu_custom_call.1} parent=1 // pred_fallthru
      _
    // Predicated region
    $region54: #{tpu_custom_call.1} parent=1 // pred_check
      _
    $region55: #{tpu_custom_call.1} parent=1 // pred_check_branch
      %126 = sbr.rel (0) target = $region57
    $region56: #{tpu_custom_call.1} parent=1 // pred_region
      %128 = dma.done [#allocation12], 384
    $region57: #{tpu_custom_call.1} parent=1 // pred_fallthru
      _
    // Predicated region
    $region58: #{tpu_custom_call.1} parent=1 // pred_check
      _
    $region59: #{tpu_custom_call.1} parent=1 // pred_check_branch
      %130 = sbr.rel (0) target = $region61
    $region60: #{tpu_custom_call.1} parent=1 // pred_region
      %132 = dma.done [#allocation12], 24576
    $region61: #{tpu_custom_call.1} parent=1 // pred_fallthru
      _
    %v133 = vld [vmem:[#allocation2] sm:$0xff]
    %v134 = vld [vmem:[#allocation5] sm:$0xff]
    %v135 = vpack.c.bf16 %v133, %v133
    %v136 = vld [vmem:[#allocation7] sm:$0xf]
    %v137 = vld [vmem:[#allocation7 + $0x4] sm:$0xf]
    %v138 = vld [vmem:[#allocation7 + $0x8] sm:$0xf]
    %v139 = vld [vmem:[#allocation7 + $0xc] sm:$0xf]
    %v140 = vld [vmem:[#allocation7 + $0x10] sm:$0xf]
    %v141 = vld [vmem:[#allocation7 + $0x14] sm:$0xf]
    %v142 = vld [vmem:[#allocation7 + $0x18] sm:$0xf]
    %v143 = vld [vmem:[#allocation7 + $0x1c] sm:$0xf]
    %v144 = vld [vmem:[#allocation7 + $0x20] sm:$0xf]
    %v145 = vld [vmem:[#allocation7 + $0x24] sm:$0xf]
    %v146 = vld [vmem:[#allocation7 + $0x28] sm:$0xf]
    %v147 = vld [vmem:[#allocation7 + $0x2c] sm:$0xf]
    %v148 = vld [vmem:[#allocation7 + $0x30] sm:$0xf]
    %v149 = vld [vmem:[#allocation7 + $0x34] sm:$0xf]
    %v150 = vld [vmem:[#allocation7 + $0x38] sm:$0xf]
    %v151 = vld [vmem:[#allocation7 + $0x3c] sm:$0xf]
    %v168 = vunpack.c.l.b16 %v136
    %v169 = vunpack.c.l.b16 %v137
    %v170 = vunpack.c.l.b16 %v138
    %v171 = vunpack.c.l.b16 %v139
    %v172 = vunpack.c.l.b16 %v140
    %v173 = vunpack.c.l.b16 %v141
    %v174 = vunpack.c.l.b16 %v142
    %v175 = vunpack.c.l.b16 %v143
    %v176 = vunpack.c.l.b16 %v144
    %v177 = vunpack.c.l.b16 %v145
    %v178 = vunpack.c.l.b16 %v146
    %v179 = vunpack.c.l.b16 %v147
    %v180 = vunpack.c.l.b16 %v148
    %v181 = vunpack.c.l.b16 %v149
    %v182 = vunpack.c.l.b16 %v150
    %v183 = vunpack.c.l.b16 %v151
    %v184 = vpack.c.b16 %v169, %v168
    %v185 = vpack.c.b16 %v171, %v170
    %v186 = vpack.c.b16 %v173, %v172
    %v187 = vpack.c.b16 %v175, %v174
    %v188 = vpack.c.b16 %v177, %v176
    %v189 = vpack.c.b16 %v179, %v178
    %v190 = vpack.c.b16 %v181, %v180
    %v191 = vpack.c.b16 %v183, %v182
    %200 = vmatpush.bf16.msra.mxu0 %v191
    %201 = vmatpush.bf16.msra.mxu0 %v190
    %202 = vmatpush.bf16.msra.mxu0 %v189
    %203 = vmatpush.bf16.msra.mxu0 %v188
    %204 = vmatpush.bf16.msra.mxu0 %v187
    %205 = vmatpush.bf16.msra.mxu0 %v186
    %206 = vmatpush.bf16.msra.mxu0 %v185
    %207 = vmatpush.bf16.msra.mxu0 %v184
    %208 = vmatmul.bf16.gmra.mxu0 %v135
    %v209 = vpop.f32.mrf.mxu0
    %v210 = vadd.f32 0.0, %v209
    %v211 = vpop.f32.mrf.mxu0
    %212 = vdwg.mxu0
    %v213 = vpack.c.bf16 %v134, %v134
    %v214 = vld [vmem:[#allocation8] sm:$0xf]
    %v215 = vld [vmem:[#allocation8 + $0x4] sm:$0xf]
    %v216 = vld [vmem:[#allocation8 + $0x8] sm:$0xf]
    %v217 = vld [vmem:[#allocation8 + $0xc] sm:$0xf]
    %v218 = vld [vmem:[#allocation8 + $0x10] sm:$0xf]
    %v219 = vld [vmem:[#allocation8 + $0x14] sm:$0xf]
    %v220 = vld [vmem:[#allocation8 + $0x18] sm:$0xf]
    %v221 = vld [vmem:[#allocation8 + $0x1c] sm:$0xf]
    %v222 = vld [vmem:[#allocation8 + $0x20] sm:$0xf]
    %v223 = vld [vmem:[#allocation8 + $0x24] sm:$0xf]
    %v224 = vld [vmem:[#allocation8 + $0x28] sm:$0xf]
    %v225 = vld [vmem:[#allocation8 + $0x2c] sm:$0xf]
    %v226 = vld [vmem:[#allocation8 + $0x30] sm:$0xf]
    %v227 = vld [vmem:[#allocation8 + $0x34] sm:$0xf]
    %v228 = vld [vmem:[#allocation8 + $0x38] sm:$0xf]
    %v229 = vld [vmem:[#allocation8 + $0x3c] sm:$0xf]
    %v246 = vunpack.c.l.b16 %v214
    %v247 = vunpack.c.l.b16 %v215
    %v248 = vunpack.c.l.b16 %v216
    %v249 = vunpack.c.l.b16 %v217
    %v250 = vunpack.c.l.b16 %v218
    %v251 = vunpack.c.l.b16 %v219
    %v252 = vunpack.c.l.b16 %v220
    %v253 = vunpack.c.l.b16 %v221
    %v254 = vunpack.c.l.b16 %v222
    %v255 = vunpack.c.l.b16 %v223
    %v256 = vunpack.c.l.b16 %v224
    %v257 = vunpack.c.l.b16 %v225
    %v258 = vunpack.c.l.b16 %v226
    %v259 = vunpack.c.l.b16 %v227
    %v260 = vunpack.c.l.b16 %v228
    %v261 = vunpack.c.l.b16 %v229
    %v262 = vpack.c.b16 %v247, %v246
    %v263 = vpack.c.b16 %v249, %v248
    %v264 = vpack.c.b16 %v251, %v250
    %v265 = vpack.c.b16 %v253, %v252
    %v266 = vpack.c.b16 %v255, %v254
    %v267 = vpack.c.b16 %v257, %v256
    %v268 = vpack.c.b16 %v259, %v258
    %v269 = vpack.c.b16 %v261, %v260
    %278 = vmatpush.bf16.msra.mxu0 %v269
    %279 = vmatpush.bf16.msra.mxu0 %v268
    %280 = vmatpush.bf16.msra.mxu0 %v267
    %281 = vmatpush.bf16.msra.mxu0 %v266
    %282 = vmatpush.bf16.msra.mxu0 %v265
    %283 = vmatpush.bf16.msra.mxu0 %v264
    %284 = vmatpush.bf16.msra.mxu0 %v263
    %285 = vmatpush.bf16.msra.mxu0 %v262
    %286 = vmatmul.bf16.gmra.mxu0 %v213
    %v287 = vpop.f32.mrf.mxu0
    %v288 = vadd.f32 0.0, %v287
    %v289 = vpop.f32.mrf.mxu0
    %290 = vdwg.mxu0
    %v291 = vsub.f32 %v288, %v210
    %v292 = vmul.f32 %v291, 1.442695
    %v293 = vpow.pop %v292
    %v294 = vadd.f32 %v293, 1.0
    %v295 = vrcp.pop %v294
    %v296 = vmul.f32 %v295, %v133
    %v297 = vsub.f32 1.0, %v295
    %v298 = vmul.f32 %v297, %v134
    %v299 = vadd.f32 %v296, %v298
    %v300 = vpack.c.bf16 %v299, %v299
    %v301 = vld [vmem:[#allocation10] sm:$0xff]
    %v302 = vld [vmem:[#allocation10 + $0x8] sm:$0xff]
    %v303 = vld [vmem:[#allocation10 + $0x10] sm:$0xff]
    %v304 = vld [vmem:[#allocation10 + $0x18] sm:$0xff]
    %v305 = vld [vmem:[#allocation10 + $0x20] sm:$0xff]
    %v306 = vld [vmem:[#allocation10 + $0x28] sm:$0xff]
    %v307 = vld [vmem:[#allocation10 + $0x30] sm:$0xff]
    %v308 = vld [vmem:[#allocation10 + $0x38] sm:$0xff]
    %v309 = vld [vmem:[#allocation10 + $0x40] sm:$0xff]
    %v310 = vld [vmem:[#allocation10 + $0x48] sm:$0xff]
    %v311 = vld [vmem:[#allocation10 + $0x50] sm:$0xff]
    %v312 = vld [vmem:[#allocation10 + $0x58] sm:$0xff]
    %v313 = vld [vmem:[#allocation10 + $0x60] sm:$0xff]
    %v314 = vld [vmem:[#allocation10 + $0x68] sm:$0xff]
    %v315 = vld [vmem:[#allocation10 + $0x70] sm:$0xff]
    %v316 = vld [vmem:[#allocation10 + $0x78] sm:$0xff]
    %v317 = vld [vmem:[#allocation10 + $0x80] sm:$0xff]
    %v318 = vld [vmem:[#allocation10 + $0x88] sm:$0xff]
    %v319 = vld [vmem:[#allocation10 + $0x90] sm:$0xff]
    %v320 = vld [vmem:[#allocation10 + $0x98] sm:$0xff]
    %v321 = vld [vmem:[#allocation10 + $0xa0] sm:$0xff]
    %v322 = vld [vmem:[#allocation10 + $0xa8] sm:$0xff]
    %v323 = vld [vmem:[#allocation10 + $0xb0] sm:$0xff]
    %v324 = vld [vmem:[#allocation10 + $0xb8] sm:$0xff]
    %v325 = vld [vmem:[#allocation10 + $0xc0] sm:$0xff]
    %v326 = vld [vmem:[#allocation10 + $0xc8] sm:$0xff]
    %v327 = vld [vmem:[#allocation10 + $0xd0] sm:$0xff]
    %v328 = vld [vmem:[#allocation10 + $0xd8] sm:$0xff]
    %v329 = vld [vmem:[#allocation10 + $0xe0] sm:$0xff]
    %v330 = vld [vmem:[#allocation10 + $0xe8] sm:$0xff]
    %v331 = vld [vmem:[#allocation10 + $0xf0] sm:$0xff]
    %v332 = vld [vmem:[#allocation10 + $0xf8] sm:$0xff]
    %v333 = vld [vmem:[#allocation10 + $0x100] sm:$0xff]
    %v334 = vld [vmem:[#allocation10 + $0x108] sm:$0xff]
    %v335 = vld [vmem:[#allocation10 + $0x110] sm:$0xff]
    %v336 = vld [vmem:[#allocation10 + $0x118] sm:$0xff]
    %v337 = vld [vmem:[#allocation10 + $0x120] sm:$0xff]
    %v338 = vld [vmem:[#allocation10 + $0x128] sm:$0xff]
    %v339 = vld [vmem:[#allocation10 + $0x130] sm:$0xff]
    %v340 = vld [vmem:[#allocation10 + $0x138] sm:$0xff]
    %v341 = vld [vmem:[#allocation10 + $0x140] sm:$0xff]
    %v342 = vld [vmem:[#allocation10 + $0x148] sm:$0xff]
    %v343 = vld [vmem:[#allocation10 + $0x150] sm:$0xff]
    %v344 = vld [vmem:[#allocation10 + $0x158] sm:$0xff]
    %v345 = vld [vmem:[#allocation10 + $0x160] sm:$0xff]
    %v346 = vld [vmem:[#allocation10 + $0x168] sm:$0xff]
    %v347 = vld [vmem:[#allocation10 + $0x170] sm:$0xff]
    %v348 = vld [vmem:[#allocation10 + $0x178] sm:$0xff]
    %v349 = vld [vmem:[#allocation10 + $0x180] sm:$0xff]
    %v350 = vld [vmem:[#allocation10 + $0x188] sm:$0xff]
    %v351 = vld [vmem:[#allocation10 + $0x190] sm:$0xff]
    %v352 = vld [vmem:[#allocation10 + $0x198] sm:$0xff]
    %v353 = vld [vmem:[#allocation10 + $0x1a0] sm:$0xff]
    %v354 = vld [vmem:[#allocation10 + $0x1a8] sm:$0xff]
    %v355 = vld [vmem:[#allocation10 + $0x1b0] sm:$0xff]
    %v356 = vld [vmem:[#allocation10 + $0x1b8] sm:$0xff]
    %v357 = vld [vmem:[#allocation10 + $0x1c0] sm:$0xff]
    %v358 = vld [vmem:[#allocation10 + $0x1c8] sm:$0xff]
    %v359 = vld [vmem:[#allocation10 + $0x1d0] sm:$0xff]
    %v360 = vld [vmem:[#allocation10 + $0x1d8] sm:$0xff]
    %v361 = vld [vmem:[#allocation10 + $0x1e0] sm:$0xff]
    %v362 = vld [vmem:[#allocation10 + $0x1e8] sm:$0xff]
    %v363 = vld [vmem:[#allocation10 + $0x1f0] sm:$0xff]
    %v364 = vld [vmem:[#allocation10 + $0x1f8] sm:$0xff]
    %v365 = vld [vmem:[#allocation10 + $0x200] sm:$0xff]
    %v366 = vld [vmem:[#allocation10 + $0x208] sm:$0xff]
    %v367 = vld [vmem:[#allocation10 + $0x210] sm:$0xff]
    %v368 = vld [vmem:[#allocation10 + $0x218] sm:$0xff]
    %v369 = vld [vmem:[#allocation10 + $0x220] sm:$0xff]
    %v370 = vld [vmem:[#allocation10 + $0x228] sm:$0xff]
    %v371 = vld [vmem:[#allocation10 + $0x230] sm:$0xff]
    %v372 = vld [vmem:[#allocation10 + $0x238] sm:$0xff]
    %v373 = vld [vmem:[#allocation10 + $0x240] sm:$0xff]
    %v374 = vld [vmem:[#allocation10 + $0x248] sm:$0xff]
    %v375 = vld [vmem:[#allocation10 + $0x250] sm:$0xff]
    %v376 = vld [vmem:[#allocation10 + $0x258] sm:$0xff]
    %v377 = vld [vmem:[#allocation10 + $0x260] sm:$0xff]
    %v378 = vld [vmem:[#allocation10 + $0x268] sm:$0xff]
    %v379 = vld [vmem:[#allocation10 + $0x270] sm:$0xff]
    %v380 = vld [vmem:[#allocation10 + $0x278] sm:$0xff]
    %v381 = vld [vmem:[#allocation10 + $0x280] sm:$0xff]
    %v382 = vld [vmem:[#allocation10 + $0x288] sm:$0xff]
    %v383 = vld [vmem:[#allocation10 + $0x290] sm:$0xff]
    %v384 = vld [vmem:[#allocation10 + $0x298] sm:$0xff]
    %v385 = vld [vmem:[#allocation10 + $0x2a0] sm:$0xff]
    %v386 = vld [vmem:[#allocation10 + $0x2a8] sm:$0xff]
    %v387 = vld [vmem:[#allocation10 + $0x2b0] sm:$0xff]
    %v388 = vld [vmem:[#allocation10 + $0x2b8] sm:$0xff]
    %v389 = vld [vmem:[#allocation10 + $0x2c0] sm:$0xff]
    %v390 = vld [vmem:[#allocation10 + $0x2c8] sm:$0xff]
    %v391 = vld [vmem:[#allocation10 + $0x2d0] sm:$0xff]
    %v392 = vld [vmem:[#allocation10 + $0x2d8] sm:$0xff]
    %v393 = vld [vmem:[#allocation10 + $0x2e0] sm:$0xff]
    %v394 = vld [vmem:[#allocation10 + $0x2e8] sm:$0xff]
    %v395 = vld [vmem:[#allocation10 + $0x2f0] sm:$0xff]
    %v396 = vld [vmem:[#allocation10 + $0x2f8] sm:$0xff]
    %v397 = vld [vmem:[#allocation10 + $0x300] sm:$0xff]
    %v398 = vld [vmem:[#allocation10 + $0x308] sm:$0xff]
    %v399 = vld [vmem:[#allocation10 + $0x310] sm:$0xff]
    %v400 = vld [vmem:[#allocation10 + $0x318] sm:$0xff]
    %v401 = vld [vmem:[#allocation10 + $0x320] sm:$0xff]
    %v402 = vld [vmem:[#allocation10 + $0x328] sm:$0xff]
    %v403 = vld [vmem:[#allocation10 + $0x330] sm:$0xff]
    %v404 = vld [vmem:[#allocation10 + $0x338] sm:$0xff]
    %v405 = vld [vmem:[#allocation10 + $0x340] sm:$0xff]
    %v406 = vld [vmem:[#allocation10 + $0x348] sm:$0xff]
    %v407 = vld [vmem:[#allocation10 + $0x350] sm:$0xff]
    %v408 = vld [vmem:[#allocation10 + $0x358] sm:$0xff]
    %v409 = vld [vmem:[#allocation10 + $0x360] sm:$0xff]
    %v410 = vld [vmem:[#allocation10 + $0x368] sm:$0xff]
    %v411 = vld [vmem:[#allocation10 + $0x370] sm:$0xff]
    %v412 = vld [vmem:[#allocation10 + $0x378] sm:$0xff]
    %v413 = vld [vmem:[#allocation10 + $0x380] sm:$0xff]
    %v414 = vld [vmem:[#allocation10 + $0x388] sm:$0xff]
    %v415 = vld [vmem:[#allocation10 + $0x390] sm:$0xff]
    %v416 = vld [vmem:[#allocation10 + $0x398] sm:$0xff]
    %v417 = vld [vmem:[#allocation10 + $0x3a0] sm:$0xff]
    %v418 = vld [vmem:[#allocation10 + $0x3a8] sm:$0xff]
    %v419 = vld [vmem:[#allocation10 + $0x3b0] sm:$0xff]
    %v420 = vld [vmem:[#allocation10 + $0x3b8] sm:$0xff]
    %v421 = vld [vmem:[#allocation10 + $0x3c0] sm:$0xff]
    %v422 = vld [vmem:[#allocation10 + $0x3c8] sm:$0xff]
    %v423 = vld [vmem:[#allocation10 + $0x3d0] sm:$0xff]
    %v424 = vld [vmem:[#allocation10 + $0x3d8] sm:$0xff]
    %v425 = vld [vmem:[#allocation10 + $0x3e0] sm:$0xff]
    %v426 = vld [vmem:[#allocation10 + $0x3e8] sm:$0xff]
    %v427 = vld [vmem:[#allocation10 + $0x3f0] sm:$0xff]
    %v428 = vld [vmem:[#allocation10 + $0x3f8] sm:$0xff]
    %v429 = vld [vmem:[#allocation10 + $0x400] sm:$0xff]
    %v430 = vld [vmem:[#allocation10 + $0x408] sm:$0xff]
    %v431 = vld [vmem:[#allocation10 + $0x410] sm:$0xff]
    %v432 = vld [vmem:[#allocation10 + $0x418] sm:$0xff]
    %v433 = vld [vmem:[#allocation10 + $0x420] sm:$0xff]
    %v434 = vld [vmem:[#allocation10 + $0x428] sm:$0xff]
    %v435 = vld [vmem:[#allocation10 + $0x430] sm:$0xff]
    %v436 = vld [vmem:[#allocation10 + $0x438] sm:$0xff]
    %v437 = vld [vmem:[#allocation10 + $0x440] sm:$0xff]
    %v438 = vld [vmem:[#allocation10 + $0x448] sm:$0xff]
    %v439 = vld [vmem:[#allocation10 + $0x450] sm:$0xff]
    %v440 = vld [vmem:[#allocation10 + $0x458] sm:$0xff]
    %v441 = vld [vmem:[#allocation10 + $0x460] sm:$0xff]
    %v442 = vld [vmem:[#allocation10 + $0x468] sm:$0xff]
    %v443 = vld [vmem:[#allocation10 + $0x470] sm:$0xff]
    %v444 = vld [vmem:[#allocation10 + $0x478] sm:$0xff]
    %v445 = vld [vmem:[#allocation10 + $0x480] sm:$0xff]
    %v446 = vld [vmem:[#allocation10 + $0x488] sm:$0xff]
    %v447 = vld [vmem:[#allocation10 + $0x490] sm:$0xff]
    %v448 = vld [vmem:[#allocation10 + $0x498] sm:$0xff]
    %v449 = vld [vmem:[#allocation10 + $0x4a0] sm:$0xff]
    %v450 = vld [vmem:[#allocation10 + $0x4a8] sm:$0xff]
    %v451 = vld [vmem:[#allocation10 + $0x4b0] sm:$0xff]
    %v452 = vld [vmem:[#allocation10 + $0x4b8] sm:$0xff]
    %v453 = vld [vmem:[#allocation10 + $0x4c0] sm:$0xff]
    %v454 = vld [vmem:[#allocation10 + $0x4c8] sm:$0xff]
    %v455 = vld [vmem:[#allocation10 + $0x4d0] sm:$0xff]
    %v456 = vld [vmem:[#allocation10 + $0x4d8] sm:$0xff]
    %v457 = vld [vmem:[#allocation10 + $0x4e0] sm:$0xff]
    %v458 = vld [vmem:[#allocation10 + $0x4e8] sm:$0xff]
    %v459 = vld [vmem:[#allocation10 + $0x4f0] sm:$0xff]
    %v460 = vld [vmem:[#allocation10 + $0x4f8] sm:$0xff]
    %v461 = vld [vmem:[#allocation10 + $0x500] sm:$0xff]
    %v462 = vld [vmem:[#allocation10 + $0x508] sm:$0xff]
    %v463 = vld [vmem:[#allocation10 + $0x510] sm:$0xff]
    %v464 = vld [vmem:[#allocation10 + $0x518] sm:$0xff]
    %v465 = vld [vmem:[#allocation10 + $0x520] sm:$0xff]
    %v466 = vld [vmem:[#allocation10 + $0x528] sm:$0xff]
    %v467 = vld [vmem:[#allocation10 + $0x530] sm:$0xff]
    %v468 = vld [vmem:[#allocation10 + $0x538] sm:$0xff]
    %v469 = vld [vmem:[#allocation10 + $0x540] sm:$0xff]
    %v470 = vld [vmem:[#allocation10 + $0x548] sm:$0xff]
    %v471 = vld [vmem:[#allocation10 + $0x550] sm:$0xff]
    %v472 = vld [vmem:[#allocation10 + $0x558] sm:$0xff]
    %v473 = vld [vmem:[#allocation10 + $0x560] sm:$0xff]
    %v474 = vld [vmem:[#allocation10 + $0x568] sm:$0xff]
    %v475 = vld [vmem:[#allocation10 + $0x570] sm:$0xff]
    %v476 = vld [vmem:[#allocation10 + $0x578] sm:$0xff]
    %v477 = vld [vmem:[#allocation10 + $0x580] sm:$0xff]
    %v478 = vld [vmem:[#allocation10 + $0x588] sm:$0xff]
    %v479 = vld [vmem:[#allocation10 + $0x590] sm:$0xff]
    %v480 = vld [vmem:[#allocation10 + $0x598] sm:$0xff]
    %v481 = vld [vmem:[#allocation10 + $0x5a0] sm:$0xff]
    %v482 = vld [vmem:[#allocation10 + $0x5a8] sm:$0xff]
    %v483 = vld [vmem:[#allocation10 + $0x5b0] sm:$0xff]
    %v484 = vld [vmem:[#allocation10 + $0x5b8] sm:$0xff]
    %v485 = vld [vmem:[#allocation10 + $0x5c0] sm:$0xff]
    %v486 = vld [vmem:[#allocation10 + $0x5c8] sm:$0xff]
    %v487 = vld [vmem:[#allocation10 + $0x5d0] sm:$0xff]
    %v488 = vld [vmem:[#allocation10 + $0x5d8] sm:$0xff]
    %v489 = vld [vmem:[#allocation10 + $0x5e0] sm:$0xff]
    %v490 = vld [vmem:[#allocation10 + $0x5e8] sm:$0xff]
    %v491 = vld [vmem:[#allocation10 + $0x5f0] sm:$0xff]
    %v492 = vld [vmem:[#allocation10 + $0x5f8] sm:$0xff]
    %v493 = vld [vmem:[#allocation11] sm:$0xff]
    %v494 = vld [vmem:[#allocation11 + $0x8] sm:$0xff]
    %v495 = vld [vmem:[#allocation11 + $0x10] sm:$0xff]
    %v499 = vperm.slane %v493, 0
    %v500 = vperm.slane %v493, 1
    %v501 = vperm.slane %v493, 2
    %v502 = vperm.slane %v493, 3
    %v503 = vperm.slane %v493, 4
    %v504 = vperm.slane %v493, 5
    %v505 = vperm.slane %v493, 6
    %v506 = vperm.slane %v493, 7
    %v507 = vperm.slane %v494, 0
    %v508 = vperm.slane %v494, 1
    %v509 = vperm.slane %v494, 2
    %v510 = vperm.slane %v494, 3
    %v511 = vperm.slane %v494, 4
    %v512 = vperm.slane %v494, 5
    %v513 = vperm.slane %v494, 6
    %v514 = vperm.slane %v494, 7
    %v515 = vperm.slane %v495, 0
    %v516 = vperm.slane %v495, 1
    %v517 = vperm.slane %v495, 2
    %v518 = vperm.slane %v495, 3
    %v519 = vperm.slane %v495, 4
    %v520 = vperm.slane %v495, 5
    %v521 = vperm.slane %v495, 6
    %v522 = vperm.slane %v495, 7
    %v739 = vunpack.c.l.b16 %v301
    %v740 = vunpack.c.h.b16 %v301
    %v741 = vunpack.c.l.b16 %v302
    %v742 = vunpack.c.h.b16 %v302
    %v743 = vunpack.c.l.b16 %v303
    %v744 = vunpack.c.h.b16 %v303
    %v745 = vunpack.c.l.b16 %v304
    %v746 = vunpack.c.h.b16 %v304
    %v747 = vunpack.c.l.b16 %v305
    %v748 = vunpack.c.h.b16 %v305
    %v749 = vunpack.c.l.b16 %v306
    %v750 = vunpack.c.h.b16 %v306
    %v751 = vunpack.c.l.b16 %v307
    %v752 = vunpack.c.h.b16 %v307
    %v753 = vunpack.c.l.b16 %v308
    %v754 = vunpack.c.h.b16 %v308
    %v755 = vunpack.c.l.b16 %v309
    %v756 = vunpack.c.h.b16 %v309
    %v757 = vunpack.c.l.b16 %v310
    %v758 = vunpack.c.h.b16 %v310
    %v759 = vunpack.c.l.b16 %v311
    %v760 = vunpack.c.h.b16 %v311
    %v761 = vunpack.c.l.b16 %v312
    %v762 = vunpack.c.h.b16 %v312
    %v763 = vunpack.c.l.b16 %v313
    %v764 = vunpack.c.h.b16 %v313
    %v765 = vunpack.c.l.b16 %v314
    %v766 = vunpack.c.h.b16 %v314
    %v767 = vunpack.c.l.b16 %v315
    %v768 = vunpack.c.h.b16 %v315
    %v769 = vunpack.c.l.b16 %v316
    %v770 = vunpack.c.h.b16 %v316
    %v771 = vunpack.c.l.b16 %v317
    %v772 = vunpack.c.h.b16 %v317
    %v773 = vunpack.c.l.b16 %v318
    %v774 = vunpack.c.h.b16 %v318
    %v775 = vunpack.c.l.b16 %v319
    %v776 = vunpack.c.h.b16 %v319
    %v777 = vunpack.c.l.b16 %v320
    %v778 = vunpack.c.h.b16 %v320
    %v779 = vunpack.c.l.b16 %v321
    %v780 = vunpack.c.h.b16 %v321
    %v781 = vunpack.c.l.b16 %v322
    %v782 = vunpack.c.h.b16 %v322
    %v783 = vunpack.c.l.b16 %v323
    %v784 = vunpack.c.h.b16 %v323
    %v785 = vunpack.c.l.b16 %v324
    %v786 = vunpack.c.h.b16 %v324
    %v787 = vunpack.c.l.b16 %v325
    %v788 = vunpack.c.h.b16 %v325
    %v789 = vunpack.c.l.b16 %v326
    %v790 = vunpack.c.h.b16 %v326
    %v791 = vunpack.c.l.b16 %v327
    %v792 = vunpack.c.h.b16 %v327
    %v793 = vunpack.c.l.b16 %v328
    %v794 = vunpack.c.h.b16 %v328
    %v795 = vunpack.c.l.b16 %v329
    %v796 = vunpack.c.h.b16 %v329
    %v797 = vunpack.c.l.b16 %v330
    %v798 = vunpack.c.h.b16 %v330
    %v799 = vunpack.c.l.b16 %v331
    %v800 = vunpack.c.h.b16 %v331
    %v801 = vunpack.c.l.b16 %v332
    %v802 = vunpack.c.h.b16 %v332
    %v803 = vunpack.c.l.b16 %v333
    %v804 = vunpack.c.h.b16 %v333
    %v805 = vunpack.c.l.b16 %v334
    %v806 = vunpack.c.h.b16 %v334
    %v807 = vunpack.c.l.b16 %v335
    %v808 = vunpack.c.h.b16 %v335
    %v809 = vunpack.c.l.b16 %v336
    %v810 = vunpack.c.h.b16 %v336
    %v811 = vunpack.c.l.b16 %v337
    %v812 = vunpack.c.h.b16 %v337
    %v813 = vunpack.c.l.b16 %v338
    %v814 = vunpack.c.h.b16 %v338
    %v815 = vunpack.c.l.b16 %v339
    %v816 = vunpack.c.h.b16 %v339
    %v817 = vunpack.c.l.b16 %v340
    %v818 = vunpack.c.h.b16 %v340
    %v819 = vunpack.c.l.b16 %v341
    %v820 = vunpack.c.h.b16 %v341
    %v821 = vunpack.c.l.b16 %v342
    %v822 = vunpack.c.h.b16 %v342
    %v823 = vunpack.c.l.b16 %v343
    %v824 = vunpack.c.h.b16 %v343
    %v825 = vunpack.c.l.b16 %v344
    %v826 = vunpack.c.h.b16 %v344
    %v827 = vunpack.c.l.b16 %v345
    %v828 = vunpack.c.h.b16 %v345
    %v829 = vunpack.c.l.b16 %v346
    %v830 = vunpack.c.h.b16 %v346
    %v831 = vunpack.c.l.b16 %v347
    %v832 = vunpack.c.h.b16 %v347
    %v833 = vunpack.c.l.b16 %v348
    %v834 = vunpack.c.h.b16 %v348
    %v835 = vunpack.c.l.b16 %v349
    %v836 = vunpack.c.h.b16 %v349
    %v837 = vunpack.c.l.b16 %v350
    %v838 = vunpack.c.h.b16 %v350
    %v839 = vunpack.c.l.b16 %v351
    %v840 = vunpack.c.h.b16 %v351
    %v841 = vunpack.c.l.b16 %v352
    %v842 = vunpack.c.h.b16 %v352
    %v843 = vunpack.c.l.b16 %v353
    %v844 = vunpack.c.h.b16 %v353
    %v845 = vunpack.c.l.b16 %v354
    %v846 = vunpack.c.h.b16 %v354
    %v847 = vunpack.c.l.b16 %v355
    %v848 = vunpack.c.h.b16 %v355
    %v849 = vunpack.c.l.b16 %v356
    %v850 = vunpack.c.h.b16 %v356
    %v851 = vunpack.c.l.b16 %v357
    %v852 = vunpack.c.h.b16 %v357
    %v853 = vunpack.c.l.b16 %v358
    %v854 = vunpack.c.h.b16 %v358
    %v855 = vunpack.c.l.b16 %v359
    %v856 = vunpack.c.h.b16 %v359
    %v857 = vunpack.c.l.b16 %v360
    %v858 = vunpack.c.h.b16 %v360
    %v859 = vunpack.c.l.b16 %v361
    %v860 = vunpack.c.h.b16 %v361
    %v861 = vunpack.c.l.b16 %v362
    %v862 = vunpack.c.h.b16 %v362
    %v863 = vunpack.c.l.b16 %v363
    %v864 = vunpack.c.h.b16 %v363
    %v865 = vunpack.c.l.b16 %v364
    %v866 = vunpack.c.h.b16 %v364
    %v867 = vunpack.c.l.b16 %v365
    %v868 = vunpack.c.h.b16 %v365
    %v869 = vunpack.c.l.b16 %v366
    %v870 = vunpack.c.h.b16 %v366
    %v871 = vunpack.c.l.b16 %v367
    %v872 = vunpack.c.h.b16 %v367
    %v873 = vunpack.c.l.b16 %v368
    %v874 = vunpack.c.h.b16 %v368
    %v875 = vunpack.c.l.b16 %v369
    %v876 = vunpack.c.h.b16 %v369
    %v877 = vunpack.c.l.b16 %v370
    %v878 = vunpack.c.h.b16 %v370
    %v879 = vunpack.c.l.b16 %v371
    %v880 = vunpack.c.h.b16 %v371
    %v881 = vunpack.c.l.b16 %v372
    %v882 = vunpack.c.h.b16 %v372
    %v883 = vunpack.c.l.b16 %v373
    %v884 = vunpack.c.h.b16 %v373
    %v885 = vunpack.c.l.b16 %v374
    %v886 = vunpack.c.h.b16 %v374
    %v887 = vunpack.c.l.b16 %v375
    %v888 = vunpack.c.h.b16 %v375
    %v889 = vunpack.c.l.b16 %v376
    %v890 = vunpack.c.h.b16 %v376
    %v891 = vunpack.c.l.b16 %v377
    %v892 = vunpack.c.h.b16 %v377
    %v893 = vunpack.c.l.b16 %v378
    %v894 = vunpack.c.h.b16 %v378
    %v895 = vunpack.c.l.b16 %v379
    %v896 = vunpack.c.h.b16 %v379
    %v897 = vunpack.c.l.b16 %v380
    %v898 = vunpack.c.h.b16 %v380
    %v899 = vunpack.c.l.b16 %v381
    %v900 = vunpack.c.h.b16 %v381
    %v901 = vunpack.c.l.b16 %v382
    %v902 = vunpack.c.h.b16 %v382
    %v903 = vunpack.c.l.b16 %v383
    %v904 = vunpack.c.h.b16 %v383
    %v905 = vunpack.c.l.b16 %v384
    %v906 = vunpack.c.h.b16 %v384
    %v907 = vunpack.c.l.b16 %v385
    %v908 = vunpack.c.h.b16 %v385
    %v909 = vunpack.c.l.b16 %v386
    %v910 = vunpack.c.h.b16 %v386
    %v911 = vunpack.c.l.b16 %v387
    %v912 = vunpack.c.h.b16 %v387
    %v913 = vunpack.c.l.b16 %v388
    %v914 = vunpack.c.h.b16 %v388
    %v915 = vunpack.c.l.b16 %v389
    %v916 = vunpack.c.h.b16 %v389
    %v917 = vunpack.c.l.b16 %v390
    %v918 = vunpack.c.h.b16 %v390
    %v919 = vunpack.c.l.b16 %v391
    %v920 = vunpack.c.h.b16 %v391
    %v921 = vunpack.c.l.b16 %v392
    %v922 = vunpack.c.h.b16 %v392
    %v923 = vunpack.c.l.b16 %v393
    %v924 = vunpack.c.h.b16 %v393
    %v925 = vunpack.c.l.b16 %v394
    %v926 = vunpack.c.h.b16 %v394
    %v927 = vunpack.c.l.b16 %v395
    %v928 = vunpack.c.h.b16 %v395
    %v929 = vunpack.c.l.b16 %v396
    %v930 = vunpack.c.h.b16 %v396
    %v931 = vunpack.c.l.b16 %v397
    %v932 = vunpack.c.h.b16 %v397
    %v933 = vunpack.c.l.b16 %v398
    %v934 = vunpack.c.h.b16 %v398
    %v935 = vunpack.c.l.b16 %v399
    %v936 = vunpack.c.h.b16 %v399
    %v937 = vunpack.c.l.b16 %v400
    %v938 = vunpack.c.h.b16 %v400
    %v939 = vunpack.c.l.b16 %v401
    %v940 = vunpack.c.h.b16 %v401
    %v941 = vunpack.c.l.b16 %v402
    %v942 = vunpack.c.h.b16 %v402
    %v943 = vunpack.c.l.b16 %v403
    %v944 = vunpack.c.h.b16 %v403
    %v945 = vunpack.c.l.b16 %v404
    %v946 = vunpack.c.h.b16 %v404
    %v947 = vunpack.c.l.b16 %v405
    %v948 = vunpack.c.h.b16 %v405
    %v949 = vunpack.c.l.b16 %v406
    %v950 = vunpack.c.h.b16 %v406
    %v951 = vunpack.c.l.b16 %v407
    %v952 = vunpack.c.h.b16 %v407
    %v953 = vunpack.c.l.b16 %v408
    %v954 = vunpack.c.h.b16 %v408
    %v955 = vunpack.c.l.b16 %v409
    %v956 = vunpack.c.h.b16 %v409
    %v957 = vunpack.c.l.b16 %v410
    %v958 = vunpack.c.h.b16 %v410
    %v959 = vunpack.c.l.b16 %v411
    %v960 = vunpack.c.h.b16 %v411
    %v961 = vunpack.c.l.b16 %v412
    %v962 = vunpack.c.h.b16 %v412
    %v963 = vunpack.c.l.b16 %v413
    %v964 = vunpack.c.h.b16 %v413
    %v965 = vunpack.c.l.b16 %v414
    %v966 = vunpack.c.h.b16 %v414
    %v967 = vunpack.c.l.b16 %v415
    %v968 = vunpack.c.h.b16 %v415
    %v969 = vunpack.c.l.b16 %v416
    %v970 = vunpack.c.h.b16 %v416
    %v971 = vunpack.c.l.b16 %v417
    %v972 = vunpack.c.h.b16 %v417
    %v973 = vunpack.c.l.b16 %v418
    %v974 = vunpack.c.h.b16 %v418
    %v975 = vunpack.c.l.b16 %v419
    %v976 = vunpack.c.h.b16 %v419
    %v977 = vunpack.c.l.b16 %v420
    %v978 = vunpack.c.h.b16 %v420
    %v979 = vunpack.c.l.b16 %v421
    %v980 = vunpack.c.h.b16 %v421
    %v981 = vunpack.c.l.b16 %v422
    %v982 = vunpack.c.h.b16 %v422
    %v983 = vunpack.c.l.b16 %v423
    %v984 = vunpack.c.h.b16 %v423
    %v985 = vunpack.c.l.b16 %v424
    %v986 = vunpack.c.h.b16 %v424
    %v987 = vunpack.c.l.b16 %v425
    %v988 = vunpack.c.h.b16 %v425
    %v989 = vunpack.c.l.b16 %v426
    %v990 = vunpack.c.h.b16 %v426
    %v991 = vunpack.c.l.b16 %v427
    %v992 = vunpack.c.h.b16 %v427
    %v993 = vunpack.c.l.b16 %v428
    %v994 = vunpack.c.h.b16 %v428
    %v995 = vunpack.c.l.b16 %v429
    %v996 = vunpack.c.h.b16 %v429
    %v997 = vunpack.c.l.b16 %v430
    %v998 = vunpack.c.h.b16 %v430
    %v999 = vunpack.c.l.b16 %v431
    %v1000 = vunpack.c.h.b16 %v431
    %v1001 = vunpack.c.l.b16 %v432
    %v1002 = vunpack.c.h.b16 %v432
    %v1003 = vunpack.c.l.b16 %v433
    %v1004 = vunpack.c.h.b16 %v433
    %v1005 = vunpack.c.l.b16 %v434
    %v1006 = vunpack.c.h.b16 %v434
    %v1007 = vunpack.c.l.b16 %v435
    %v1008 = vunpack.c.h.b16 %v435
    %v1009 = vunpack.c.l.b16 %v436
    %v1010 = vunpack.c.h.b16 %v436
    %v1011 = vunpack.c.l.b16 %v437
    %v1012 = vunpack.c.h.b16 %v437
    %v1013 = vunpack.c.l.b16 %v438
    %v1014 = vunpack.c.h.b16 %v438
    %v1015 = vunpack.c.l.b16 %v439
    %v1016 = vunpack.c.h.b16 %v439
    %v1017 = vunpack.c.l.b16 %v440
    %v1018 = vunpack.c.h.b16 %v440
    %v1019 = vunpack.c.l.b16 %v441
    %v1020 = vunpack.c.h.b16 %v441
    %v1021 = vunpack.c.l.b16 %v442
    %v1022 = vunpack.c.h.b16 %v442
    %v1023 = vunpack.c.l.b16 %v443
    %v1024 = vunpack.c.h.b16 %v443
    %v1025 = vunpack.c.l.b16 %v444
    %v1026 = vunpack.c.h.b16 %v444
    %v1027 = vunpack.c.l.b16 %v445
    %v1028 = vunpack.c.h.b16 %v445
    %v1029 = vunpack.c.l.b16 %v446
    %v1030 = vunpack.c.h.b16 %v446
    %v1031 = vunpack.c.l.b16 %v447
    %v1032 = vunpack.c.h.b16 %v447
    %v1033 = vunpack.c.l.b16 %v448
    %v1034 = vunpack.c.h.b16 %v448
    %v1035 = vunpack.c.l.b16 %v449
    %v1036 = vunpack.c.h.b16 %v449
    %v1037 = vunpack.c.l.b16 %v450
    %v1038 = vunpack.c.h.b16 %v450
    %v1039 = vunpack.c.l.b16 %v451
    %v1040 = vunpack.c.h.b16 %v451
    %v1041 = vunpack.c.l.b16 %v452
    %v1042 = vunpack.c.h.b16 %v452
    %v1043 = vunpack.c.l.b16 %v453
    %v1044 = vunpack.c.h.b16 %v453
    %v1045 = vunpack.c.l.b16 %v454
    %v1046 = vunpack.c.h.b16 %v454
    %v1047 = vunpack.c.l.b16 %v455
    %v1048 = vunpack.c.h.b16 %v455
    %v1049 = vunpack.c.l.b16 %v456
    %v1050 = vunpack.c.h.b16 %v456
    %v1051 = vunpack.c.l.b16 %v457
    %v1052 = vunpack.c.h.b16 %v457
    %v1053 = vunpack.c.l.b16 %v458
    %v1054 = vunpack.c.h.b16 %v458
    %v1055 = vunpack.c.l.b16 %v459
    %v1056 = vunpack.c.h.b16 %v459
    %v1057 = vunpack.c.l.b16 %v460
    %v1058 = vunpack.c.h.b16 %v460
    %v1059 = vunpack.c.l.b16 %v461
    %v1060 = vunpack.c.h.b16 %v461
    %v1061 = vunpack.c.l.b16 %v462
    %v1062 = vunpack.c.h.b16 %v462
    %v1063 = vunpack.c.l.b16 %v463
    %v1064 = vunpack.c.h.b16 %v463
    %v1065 = vunpack.c.l.b16 %v464
    %v1066 = vunpack.c.h.b16 %v464
    %v1067 = vunpack.c.l.b16 %v465
    %v1068 = vunpack.c.h.b16 %v465
    %v1069 = vunpack.c.l.b16 %v466
    %v1070 = vunpack.c.h.b16 %v466
    %v1071 = vunpack.c.l.b16 %v467
    %v1072 = vunpack.c.h.b16 %v467
    %v1073 = vunpack.c.l.b16 %v468
    %v1074 = vunpack.c.h.b16 %v468
    %v1075 = vunpack.c.l.b16 %v469
    %v1076 = vunpack.c.h.b16 %v469
    %v1077 = vunpack.c.l.b16 %v470
    %v1078 = vunpack.c.h.b16 %v470
    %v1079 = vunpack.c.l.b16 %v471
    %v1080 = vunpack.c.h.b16 %v471
    %v1081 = vunpack.c.l.b16 %v472
    %v1082 = vunpack.c.h.b16 %v472
    %v1083 = vunpack.c.l.b16 %v473
    %v1084 = vunpack.c.h.b16 %v473
    %v1085 = vunpack.c.l.b16 %v474
    %v1086 = vunpack.c.h.b16 %v474
    %v1087 = vunpack.c.l.b16 %v475
    %v1088 = vunpack.c.h.b16 %v475
    %v1089 = vunpack.c.l.b16 %v476
    %v1090 = vunpack.c.h.b16 %v476
    %v1091 = vunpack.c.l.b16 %v477
    %v1092 = vunpack.c.h.b16 %v477
    %v1093 = vunpack.c.l.b16 %v478
    %v1094 = vunpack.c.h.b16 %v478
    %v1095 = vunpack.c.l.b16 %v479
    %v1096 = vunpack.c.h.b16 %v479
    %v1097 = vunpack.c.l.b16 %v480
    %v1098 = vunpack.c.h.b16 %v480
    %v1099 = vunpack.c.l.b16 %v481
    %v1100 = vunpack.c.h.b16 %v481
    %v1101 = vunpack.c.l.b16 %v482
    %v1102 = vunpack.c.h.b16 %v482
    %v1103 = vunpack.c.l.b16 %v483
    %v1104 = vunpack.c.h.b16 %v483
    %v1105 = vunpack.c.l.b16 %v484
    %v1106 = vunpack.c.h.b16 %v484
    %v1107 = vunpack.c.l.b16 %v485
    %v1108 = vunpack.c.h.b16 %v485
    %v1109 = vunpack.c.l.b16 %v486
    %v1110 = vunpack.c.h.b16 %v486
    %v1111 = vunpack.c.l.b16 %v487
    %v1112 = vunpack.c.h.b16 %v487
    %v1113 = vunpack.c.l.b16 %v488
    %v1114 = vunpack.c.h.b16 %v488
    %v1115 = vunpack.c.l.b16 %v489
    %v1116 = vunpack.c.h.b16 %v489
    %v1117 = vunpack.c.l.b16 %v490
    %v1118 = vunpack.c.h.b16 %v490
    %v1119 = vunpack.c.l.b16 %v491
    %v1120 = vunpack.c.h.b16 %v491
    %v1121 = vunpack.c.l.b16 %v492
    %v1122 = vunpack.c.h.b16 %v492
    %v1123 = vpack.c.b16 %v763, %v739
    %v1124 = vpack.c.b16 %v764, %v740
    %v1125 = vpack.c.b16 %v765, %v741
    %v1126 = vpack.c.b16 %v766, %v742
    %v1127 = vpack.c.b16 %v767, %v743
    %v1128 = vpack.c.b16 %v768, %v744
    %v1129 = vpack.c.b16 %v769, %v745
    %v1130 = vpack.c.b16 %v770, %v746
    %v1131 = vpack.c.b16 %v771, %v747
    %v1132 = vpack.c.b16 %v772, %v748
    %v1133 = vpack.c.b16 %v773, %v749
    %v1134 = vpack.c.b16 %v774, %v750
    %v1135 = vpack.c.b16 %v775, %v751
    %v1136 = vpack.c.b16 %v776, %v752
    %v1137 = vpack.c.b16 %v777, %v753
    %v1138 = vpack.c.b16 %v778, %v754
    %v1139 = vpack.c.b16 %v779, %v755
    %v1140 = vpack.c.b16 %v780, %v756
    %v1141 = vpack.c.b16 %v781, %v757
    %v1142 = vpack.c.b16 %v782, %v758
    %v1143 = vpack.c.b16 %v783, %v759
    %v1144 = vpack.c.b16 %v784, %v760
    %v1145 = vpack.c.b16 %v785, %v761
    %v1146 = vpack.c.b16 %v786, %v762
    %v1147 = vpack.c.b16 %v811, %v787
    %v1148 = vpack.c.b16 %v812, %v788
    %v1149 = vpack.c.b16 %v813, %v789
    %v1150 = vpack.c.b16 %v814, %v790
    %v1151 = vpack.c.b16 %v815, %v791
    %v1152 = vpack.c.b16 %v816, %v792
    %v1153 = vpack.c.b16 %v817, %v793
    %v1154 = vpack.c.b16 %v818, %v794
    %v1155 = vpack.c.b16 %v819, %v795
    %v1156 = vpack.c.b16 %v820, %v796
    %v1157 = vpack.c.b16 %v821, %v797
    %v1158 = vpack.c.b16 %v822, %v798
    %v1159 = vpack.c.b16 %v823, %v799
    %v1160 = vpack.c.b16 %v824, %v800
    %v1161 = vpack.c.b16 %v825, %v801
    %v1162 = vpack.c.b16 %v826, %v802
    %v1163 = vpack.c.b16 %v827, %v803
    %v1164 = vpack.c.b16 %v828, %v804
    %v1165 = vpack.c.b16 %v829, %v805
    %v1166 = vpack.c.b16 %v830, %v806
    %v1167 = vpack.c.b16 %v831, %v807
    %v1168 = vpack.c.b16 %v832, %v808
    %v1169 = vpack.c.b16 %v833, %v809
    %v1170 = vpack.c.b16 %v834, %v810
    %v1171 = vpack.c.b16 %v859, %v835
    %v1172 = vpack.c.b16 %v860, %v836
    %v1173 = vpack.c.b16 %v861, %v837
    %v1174 = vpack.c.b16 %v862, %v838
    %v1175 = vpack.c.b16 %v863, %v839
    %v1176 = vpack.c.b16 %v864, %v840
    %v1177 = vpack.c.b16 %v865, %v841
    %v1178 = vpack.c.b16 %v866, %v842
    %v1179 = vpack.c.b16 %v867, %v843
    %v1180 = vpack.c.b16 %v868, %v844
    %v1181 = vpack.c.b16 %v869, %v845
    %v1182 = vpack.c.b16 %v870, %v846
    %v1183 = vpack.c.b16 %v871, %v847
    %v1184 = vpack.c.b16 %v872, %v848
    %v1185 = vpack.c.b16 %v873, %v849
    %v1186 = vpack.c.b16 %v874, %v850
    %v1187 = vpack.c.b16 %v875, %v851
    %v1188 = vpack.c.b16 %v876, %v852
    %v1189 = vpack.c.b16 %v877, %v853
    %v1190 = vpack.c.b16 %v878, %v854
    %v1191 = vpack.c.b16 %v879, %v855
    %v1192 = vpack.c.b16 %v880, %v856
    %v1193 = vpack.c.b16 %v881, %v857
    %v1194 = vpack.c.b16 %v882, %v858
    %v1195 = vpack.c.b16 %v907, %v883
    %v1196 = vpack.c.b16 %v908, %v884
    %v1197 = vpack.c.b16 %v909, %v885
    %v1198 = vpack.c.b16 %v910, %v886
    %v1199 = vpack.c.b16 %v911, %v887
    %v1200 = vpack.c.b16 %v912, %v888
    %v1201 = vpack.c.b16 %v913, %v889
    %v1202 = vpack.c.b16 %v914, %v890
    %v1203 = vpack.c.b16 %v915, %v891
    %v1204 = vpack.c.b16 %v916, %v892
    %v1205 = vpack.c.b16 %v917, %v893
    %v1206 = vpack.c.b16 %v918, %v894
    %v1207 = vpack.c.b16 %v919, %v895
    %v1208 = vpack.c.b16 %v920, %v896
    %v1209 = vpack.c.b16 %v921, %v897
    %v1210 = vpack.c.b16 %v922, %v898
    %v1211 = vpack.c.b16 %v923, %v899
    %v1212 = vpack.c.b16 %v924, %v900
    %v1213 = vpack.c.b16 %v925, %v901
    %v1214 = vpack.c.b16 %v926, %v902
    %v1215 = vpack.c.b16 %v927, %v903
    %v1216 = vpack.c.b16 %v928, %v904
    %v1217 = vpack.c.b16 %v929, %v905
    %v1218 = vpack.c.b16 %v930, %v906
    %v1219 = vpack.c.b16 %v955, %v931
    %v1220 = vpack.c.b16 %v956, %v932
    %v1221 = vpack.c.b16 %v957, %v933
    %v1222 = vpack.c.b16 %v958, %v934
    %v1223 = vpack.c.b16 %v959, %v935
    %v1224 = vpack.c.b16 %v960, %v936
    %v1225 = vpack.c.b16 %v961, %v937
    %v1226 = vpack.c.b16 %v962, %v938
    %v1227 = vpack.c.b16 %v963, %v939
    %v1228 = vpack.c.b16 %v964, %v940
    %v1229 = vpack.c.b16 %v965, %v941
    %v1230 = vpack.c.b16 %v966, %v942
    %v1231 = vpack.c.b16 %v967, %v943
    %v1232 = vpack.c.b16 %v968, %v944
    %v1233 = vpack.c.b16 %v969, %v945
    %v1234 = vpack.c.b16 %v970, %v946
    %v1235 = vpack.c.b16 %v971, %v947
    %v1236 = vpack.c.b16 %v972, %v948
    %v1237 = vpack.c.b16 %v973, %v949
    %v1238 = vpack.c.b16 %v974, %v950
    %v1239 = vpack.c.b16 %v975, %v951
    %v1240 = vpack.c.b16 %v976, %v952
    %v1241 = vpack.c.b16 %v977, %v953
    %v1242 = vpack.c.b16 %v978, %v954
    %v1243 = vpack.c.b16 %v1003, %v979
    %v1244 = vpack.c.b16 %v1004, %v980
    %v1245 = vpack.c.b16 %v1005, %v981
    %v1246 = vpack.c.b16 %v1006, %v982
    %v1247 = vpack.c.b16 %v1007, %v983
    %v1248 = vpack.c.b16 %v1008, %v984
    %v1249 = vpack.c.b16 %v1009, %v985
    %v1250 = vpack.c.b16 %v1010, %v986
    %v1251 = vpack.c.b16 %v1011, %v987
    %v1252 = vpack.c.b16 %v1012, %v988
    %v1253 = vpack.c.b16 %v1013, %v989
    %v1254 = vpack.c.b16 %v1014, %v990
    %v1255 = vpack.c.b16 %v1015, %v991
    %v1256 = vpack.c.b16 %v1016, %v992
    %v1257 = vpack.c.b16 %v1017, %v993
    %v1258 = vpack.c.b16 %v1018, %v994
    %v1259 = vpack.c.b16 %v1019, %v995
    %v1260 = vpack.c.b16 %v1020, %v996
    %v1261 = vpack.c.b16 %v1021, %v997
    %v1262 = vpack.c.b16 %v1022, %v998
    %v1263 = vpack.c.b16 %v1023, %v999
    %v1264 = vpack.c.b16 %v1024, %v1000
    %v1265 = vpack.c.b16 %v1025, %v1001
    %v1266 = vpack.c.b16 %v1026, %v1002
    %v1267 = vpack.c.b16 %v1051, %v1027
    %v1268 = vpack.c.b16 %v1052, %v1028
    %v1269 = vpack.c.b16 %v1053, %v1029
    %v1270 = vpack.c.b16 %v1054, %v1030
    %v1271 = vpack.c.b16 %v1055, %v1031
    %v1272 = vpack.c.b16 %v1056, %v1032
    %v1273 = vpack.c.b16 %v1057, %v1033
    %v1274 = vpack.c.b16 %v1058, %v1034
    %v1275 = vpack.c.b16 %v1059, %v1035
    %v1276 = vpack.c.b16 %v1060, %v1036
    %v1277 = vpack.c.b16 %v1061, %v1037
    %v1278 = vpack.c.b16 %v1062, %v1038
    %v1279 = vpack.c.b16 %v1063, %v1039
    %v1280 = vpack.c.b16 %v1064, %v1040
    %v1281 = vpack.c.b16 %v1065, %v1041
    %v1282 = vpack.c.b16 %v1066, %v1042
    %v1283 = vpack.c.b16 %v1067, %v1043
    %v1284 = vpack.c.b16 %v1068, %v1044
    %v1285 = vpack.c.b16 %v1069, %v1045
    %v1286 = vpack.c.b16 %v1070, %v1046
    %v1287 = vpack.c.b16 %v1071, %v1047
    %v1288 = vpack.c.b16 %v1072, %v1048
    %v1289 = vpack.c.b16 %v1073, %v1049
    %v1290 = vpack.c.b16 %v1074, %v1050
    %v1291 = vpack.c.b16 %v1099, %v1075
    %v1292 = vpack.c.b16 %v1100, %v1076
    %v1293 = vpack.c.b16 %v1101, %v1077
    %v1294 = vpack.c.b16 %v1102, %v1078
    %v1295 = vpack.c.b16 %v1103, %v1079
    %v1296 = vpack.c.b16 %v1104, %v1080
    %v1297 = vpack.c.b16 %v1105, %v1081
    %v1298 = vpack.c.b16 %v1106, %v1082
    %v1299 = vpack.c.b16 %v1107, %v1083
    %v1300 = vpack.c.b16 %v1108, %v1084
    %v1301 = vpack.c.b16 %v1109, %v1085
    %v1302 = vpack.c.b16 %v1110, %v1086
    %v1303 = vpack.c.b16 %v1111, %v1087
    %v1304 = vpack.c.b16 %v1112, %v1088
    %v1305 = vpack.c.b16 %v1113, %v1089
    %v1306 = vpack.c.b16 %v1114, %v1090
    %v1307 = vpack.c.b16 %v1115, %v1091
    %v1308 = vpack.c.b16 %v1116, %v1092
    %v1309 = vpack.c.b16 %v1117, %v1093
    %v1310 = vpack.c.b16 %v1118, %v1094
    %v1311 = vpack.c.b16 %v1119, %v1095
    %v1312 = vpack.c.b16 %v1120, %v1096
    %v1313 = vpack.c.b16 %v1121, %v1097
    %v1314 = vpack.c.b16 %v1122, %v1098
    %1507 = vmatpush.bf16.msra.mxu0 %v1291
    %1508 = vmatpush.bf16.msra.mxu0 %v1267
    %1509 = vmatpush.bf16.msra.mxu0 %v1243
    %1510 = vmatpush.bf16.msra.mxu0 %v1219
    %1511 = vmatpush.bf16.msra.mxu0 %v1195
    %1512 = vmatpush.bf16.msra.mxu0 %v1171
    %1513 = vmatpush.bf16.msra.mxu0 %v1147
    %1514 = vmatpush.bf16.msra.mxu0 %v1123
    %1515 = vmatmul.bf16.gmra.mxu0 %v300
    %v1516 = vpop.f32.mrf.mxu0
    %v1517 = vadd.f32 %v499, %v1516
    %v1518 = vpop.f32.mrf.mxu0
    %1519 = vdwg.mxu0
    %1520 = vmatpush.bf16.msra.mxu0 %v1292
    %1521 = vmatpush.bf16.msra.mxu0 %v1268
    %1522 = vmatpush.bf16.msra.mxu0 %v1244
    %1523 = vmatpush.bf16.msra.mxu0 %v1220
    %1524 = vmatpush.bf16.msra.mxu0 %v1196
    %1525 = vmatpush.bf16.msra.mxu0 %v1172
    %1526 = vmatpush.bf16.msra.mxu0 %v1148
    %1527 = vmatpush.bf16.msra.mxu0 %v1124
    %1528 = vmatmul.bf16.gmra.mxu0 %v300
    %v1529 = vpop.f32.mrf.mxu0
    %v1530 = vadd.f32 %v500, %v1529
    %v1531 = vpop.f32.mrf.mxu0
    %1532 = vdwg.mxu0
    %1533 = vmatpush.bf16.msra.mxu0 %v1293
    %1534 = vmatpush.bf16.msra.mxu0 %v1269
    %1535 = vmatpush.bf16.msra.mxu0 %v1245
    %1536 = vmatpush.bf16.msra.mxu0 %v1221
    %1537 = vmatpush.bf16.msra.mxu0 %v1197
    %1538 = vmatpush.bf16.msra.mxu0 %v1173
    %1539 = vmatpush.bf16.msra.mxu0 %v1149
    %1540 = vmatpush.bf16.msra.mxu0 %v1125
    %1541 = vmatmul.bf16.gmra.mxu0 %v300
    %v1542 = vpop.f32.mrf.mxu0
    %v1543 = vadd.f32 %v501, %v1542
    %v1544 = vpop.f32.mrf.mxu0
    %1545 = vdwg.mxu0
    %1546 = vmatpush.bf16.msra.mxu0 %v1294
    %1547 = vmatpush.bf16.msra.mxu0 %v1270
    %1548 = vmatpush.bf16.msra.mxu0 %v1246
    %1549 = vmatpush.bf16.msra.mxu0 %v1222
    %1550 = vmatpush.bf16.msra.mxu0 %v1198
    %1551 = vmatpush.bf16.msra.mxu0 %v1174
    %1552 = vmatpush.bf16.msra.mxu0 %v1150
    %1553 = vmatpush.bf16.msra.mxu0 %v1126
    %1554 = vmatmul.bf16.gmra.mxu0 %v300
    %v1555 = vpop.f32.mrf.mxu0
    %v1556 = vadd.f32 %v502, %v1555
    %v1557 = vpop.f32.mrf.mxu0
    %1558 = vdwg.mxu0
    %1559 = vmatpush.bf16.msra.mxu0 %v1295
    %1560 = vmatpush.bf16.msra.mxu0 %v1271
    %1561 = vmatpush.bf16.msra.mxu0 %v1247
    %1562 = vmatpush.bf16.msra.mxu0 %v1223
    %1563 = vmatpush.bf16.msra.mxu0 %v1199
    %1564 = vmatpush.bf16.msra.mxu0 %v1175
    %1565 = vmatpush.bf16.msra.mxu0 %v1151
    %1566 = vmatpush.bf16.msra.mxu0 %v1127
    %1567 = vmatmul.bf16.gmra.mxu0 %v300
    %v1568 = vpop.f32.mrf.mxu0
    %v1569 = vadd.f32 %v503, %v1568
    %v1570 = vpop.f32.mrf.mxu0
    %1571 = vdwg.mxu0
    %1572 = vmatpush.bf16.msra.mxu0 %v1296
    %1573 = vmatpush.bf16.msra.mxu0 %v1272
    %1574 = vmatpush.bf16.msra.mxu0 %v1248
    %1575 = vmatpush.bf16.msra.mxu0 %v1224
    %1576 = vmatpush.bf16.msra.mxu0 %v1200
    %1577 = vmatpush.bf16.msra.mxu0 %v1176
    %1578 = vmatpush.bf16.msra.mxu0 %v1152
    %1579 = vmatpush.bf16.msra.mxu0 %v1128
    %1580 = vmatmul.bf16.gmra.mxu0 %v300
    %v1581 = vpop.f32.mrf.mxu0
    %v1582 = vadd.f32 %v504, %v1581
    %v1583 = vpop.f32.mrf.mxu0
    %1584 = vdwg.mxu0
    %1585 = vmatpush.bf16.msra.mxu0 %v1297
    %1586 = vmatpush.bf16.msra.mxu0 %v1273
    %1587 = vmatpush.bf16.msra.mxu0 %v1249
    %1588 = vmatpush.bf16.msra.mxu0 %v1225
    %1589 = vmatpush.bf16.msra.mxu0 %v1201
    %1590 = vmatpush.bf16.msra.mxu0 %v1177
    %1591 = vmatpush.bf16.msra.mxu0 %v1153
    %1592 = vmatpush.bf16.msra.mxu0 %v1129
    %1593 = vmatmul.bf16.gmra.mxu0 %v300
    %v1594 = vpop.f32.mrf.mxu0
    %v1595 = vadd.f32 %v505, %v1594
    %v1596 = vpop.f32.mrf.mxu0
    %1597 = vdwg.mxu0
    %1598 = vmatpush.bf16.msra.mxu0 %v1298
    %1599 = vmatpush.bf16.msra.mxu0 %v1274
    %1600 = vmatpush.bf16.msra.mxu0 %v1250
    %1601 = vmatpush.bf16.msra.mxu0 %v1226
    %1602 = vmatpush.bf16.msra.mxu0 %v1202
    %1603 = vmatpush.bf16.msra.mxu0 %v1178
    %1604 = vmatpush.bf16.msra.mxu0 %v1154
    %1605 = vmatpush.bf16.msra.mxu0 %v1130
    %1606 = vmatmul.bf16.gmra.mxu0 %v300
    %v1607 = vpop.f32.mrf.mxu0
    %v1608 = vadd.f32 %v506, %v1607
    %v1609 = vpop.f32.mrf.mxu0
    %1610 = vdwg.mxu0
    %1611 = vmatpush.bf16.msra.mxu0 %v1299
    %1612 = vmatpush.bf16.msra.mxu0 %v1275
    %1613 = vmatpush.bf16.msra.mxu0 %v1251
    %1614 = vmatpush.bf16.msra.mxu0 %v1227
    %1615 = vmatpush.bf16.msra.mxu0 %v1203
    %1616 = vmatpush.bf16.msra.mxu0 %v1179
    %1617 = vmatpush.bf16.msra.mxu0 %v1155
    %1618 = vmatpush.bf16.msra.mxu0 %v1131
    %1619 = vmatmul.bf16.gmra.mxu0 %v300
    %v1620 = vpop.f32.mrf.mxu0
    %v1621 = vadd.f32 %v507, %v1620
    %v1622 = vpop.f32.mrf.mxu0
    %1623 = vdwg.mxu0
    %1624 = vmatpush.bf16.msra.mxu0 %v1300
    %1625 = vmatpush.bf16.msra.mxu0 %v1276
    %1626 = vmatpush.bf16.msra.mxu0 %v1252
    %1627 = vmatpush.bf16.msra.mxu0 %v1228
    %1628 = vmatpush.bf16.msra.mxu0 %v1204
    %1629 = vmatpush.bf16.msra.mxu0 %v1180
    %1630 = vmatpush.bf16.msra.mxu0 %v1156
    %1631 = vmatpush.bf16.msra.mxu0 %v1132
    %1632 = vmatmul.bf16.gmra.mxu0 %v300
    %v1633 = vpop.f32.mrf.mxu0
    %v1634 = vadd.f32 %v508, %v1633
    %v1635 = vpop.f32.mrf.mxu0
    %1636 = vdwg.mxu0
    %1637 = vmatpush.bf16.msra.mxu0 %v1301
    %1638 = vmatpush.bf16.msra.mxu0 %v1277
    %1639 = vmatpush.bf16.msra.mxu0 %v1253
    %1640 = vmatpush.bf16.msra.mxu0 %v1229
    %1641 = vmatpush.bf16.msra.mxu0 %v1205
    %1642 = vmatpush.bf16.msra.mxu0 %v1181
    %1643 = vmatpush.bf16.msra.mxu0 %v1157
    %1644 = vmatpush.bf16.msra.mxu0 %v1133
    %1645 = vmatmul.bf16.gmra.mxu0 %v300
    %v1646 = vpop.f32.mrf.mxu0
    %v1647 = vadd.f32 %v509, %v1646
    %v1648 = vpop.f32.mrf.mxu0
    %1649 = vdwg.mxu0
    %1650 = vmatpush.bf16.msra.mxu0 %v1302
    %1651 = vmatpush.bf16.msra.mxu0 %v1278
    %1652 = vmatpush.bf16.msra.mxu0 %v1254
    %1653 = vmatpush.bf16.msra.mxu0 %v1230
    %1654 = vmatpush.bf16.msra.mxu0 %v1206
    %1655 = vmatpush.bf16.msra.mxu0 %v1182
    %1656 = vmatpush.bf16.msra.mxu0 %v1158
    %1657 = vmatpush.bf16.msra.mxu0 %v1134
    %1658 = vmatmul.bf16.gmra.mxu0 %v300
    %v1659 = vpop.f32.mrf.mxu0
    %v1660 = vadd.f32 %v510, %v1659
    %v1661 = vpop.f32.mrf.mxu0
    %1662 = vdwg.mxu0
    %1663 = vmatpush.bf16.msra.mxu0 %v1303
    %1664 = vmatpush.bf16.msra.mxu0 %v1279
    %1665 = vmatpush.bf16.msra.mxu0 %v1255
    %1666 = vmatpush.bf16.msra.mxu0 %v1231
    %1667 = vmatpush.bf16.msra.mxu0 %v1207
    %1668 = vmatpush.bf16.msra.mxu0 %v1183
    %1669 = vmatpush.bf16.msra.mxu0 %v1159
    %1670 = vmatpush.bf16.msra.mxu0 %v1135
    %1671 = vmatmul.bf16.gmra.mxu0 %v300
    %v1672 = vpop.f32.mrf.mxu0
    %v1673 = vadd.f32 %v511, %v1672
    %v1674 = vpop.f32.mrf.mxu0
    %1675 = vdwg.mxu0
    %1676 = vmatpush.bf16.msra.mxu0 %v1304
    %1677 = vmatpush.bf16.msra.mxu0 %v1280
    %1678 = vmatpush.bf16.msra.mxu0 %v1256
    %1679 = vmatpush.bf16.msra.mxu0 %v1232
    %1680 = vmatpush.bf16.msra.mxu0 %v1208
    %1681 = vmatpush.bf16.msra.mxu0 %v1184
    %1682 = vmatpush.bf16.msra.mxu0 %v1160
    %1683 = vmatpush.bf16.msra.mxu0 %v1136
    %1684 = vmatmul.bf16.gmra.mxu0 %v300
    %v1685 = vpop.f32.mrf.mxu0
    %v1686 = vadd.f32 %v512, %v1685
    %v1687 = vpop.f32.mrf.mxu0
    %1688 = vdwg.mxu0
    %1689 = vmatpush.bf16.msra.mxu0 %v1305
    %1690 = vmatpush.bf16.msra.mxu0 %v1281
    %1691 = vmatpush.bf16.msra.mxu0 %v1257
    %1692 = vmatpush.bf16.msra.mxu0 %v1233
    %1693 = vmatpush.bf16.msra.mxu0 %v1209
    %1694 = vmatpush.bf16.msra.mxu0 %v1185
    %1695 = vmatpush.bf16.msra.mxu0 %v1161
    %1696 = vmatpush.bf16.msra.mxu0 %v1137
    %1697 = vmatmul.bf16.gmra.mxu0 %v300
    %v1698 = vpop.f32.mrf.mxu0
    %v1699 = vadd.f32 %v513, %v1698
    %v1700 = vpop.f32.mrf.mxu0
    %1701 = vdwg.mxu0
    %1702 = vmatpush.bf16.msra.mxu0 %v1306
    %1703 = vmatpush.bf16.msra.mxu0 %v1282
    %1704 = vmatpush.bf16.msra.mxu0 %v1258
    %1705 = vmatpush.bf16.msra.mxu0 %v1234
    %1706 = vmatpush.bf16.msra.mxu0 %v1210
    %1707 = vmatpush.bf16.msra.mxu0 %v1186
    %1708 = vmatpush.bf16.msra.mxu0 %v1162
    %1709 = vmatpush.bf16.msra.mxu0 %v1138
    %1710 = vmatmul.bf16.gmra.mxu0 %v300
    %v1711 = vpop.f32.mrf.mxu0
    %v1712 = vadd.f32 %v514, %v1711
    %v1713 = vpop.f32.mrf.mxu0
    %1714 = vdwg.mxu0
    %1715 = vmatpush.bf16.msra.mxu0 %v1307
    %1716 = vmatpush.bf16.msra.mxu0 %v1283
    %1717 = vmatpush.bf16.msra.mxu0 %v1259
    %1718 = vmatpush.bf16.msra.mxu0 %v1235
    %1719 = vmatpush.bf16.msra.mxu0 %v1211
    %1720 = vmatpush.bf16.msra.mxu0 %v1187
    %1721 = vmatpush.bf16.msra.mxu0 %v1163
    %1722 = vmatpush.bf16.msra.mxu0 %v1139
    %1723 = vmatmul.bf16.gmra.mxu0 %v300
    %v1724 = vpop.f32.mrf.mxu0
    %v1725 = vadd.f32 %v515, %v1724
    %v1726 = vpop.f32.mrf.mxu0
    %1727 = vdwg.mxu0
    %1728 = vmatpush.bf16.msra.mxu0 %v1308
    %1729 = vmatpush.bf16.msra.mxu0 %v1284
    %1730 = vmatpush.bf16.msra.mxu0 %v1260
    %1731 = vmatpush.bf16.msra.mxu0 %v1236
    %1732 = vmatpush.bf16.msra.mxu0 %v1212
    %1733 = vmatpush.bf16.msra.mxu0 %v1188
    %1734 = vmatpush.bf16.msra.mxu0 %v1164
    %1735 = vmatpush.bf16.msra.mxu0 %v1140
    %1736 = vmatmul.bf16.gmra.mxu0 %v300
    %v1737 = vpop.f32.mrf.mxu0
    %v1738 = vadd.f32 %v516, %v1737
    %v1739 = vpop.f32.mrf.mxu0
    %1740 = vdwg.mxu0
    %1741 = vmatpush.bf16.msra.mxu0 %v1309
    %1742 = vmatpush.bf16.msra.mxu0 %v1285
    %1743 = vmatpush.bf16.msra.mxu0 %v1261
    %1744 = vmatpush.bf16.msra.mxu0 %v1237
    %1745 = vmatpush.bf16.msra.mxu0 %v1213
    %1746 = vmatpush.bf16.msra.mxu0 %v1189
    %1747 = vmatpush.bf16.msra.mxu0 %v1165
    %1748 = vmatpush.bf16.msra.mxu0 %v1141
    %1749 = vmatmul.bf16.gmra.mxu0 %v300
    %v1750 = vpop.f32.mrf.mxu0
    %v1751 = vadd.f32 %v517, %v1750
    %v1752 = vpop.f32.mrf.mxu0
    %1753 = vdwg.mxu0
    %1754 = vmatpush.bf16.msra.mxu0 %v1310
    %1755 = vmatpush.bf16.msra.mxu0 %v1286
    %1756 = vmatpush.bf16.msra.mxu0 %v1262
    %1757 = vmatpush.bf16.msra.mxu0 %v1238
    %1758 = vmatpush.bf16.msra.mxu0 %v1214
    %1759 = vmatpush.bf16.msra.mxu0 %v1190
    %1760 = vmatpush.bf16.msra.mxu0 %v1166
    %1761 = vmatpush.bf16.msra.mxu0 %v1142
    %1762 = vmatmul.bf16.gmra.mxu0 %v300
    %v1763 = vpop.f32.mrf.mxu0
    %v1764 = vadd.f32 %v518, %v1763
    %v1765 = vpop.f32.mrf.mxu0
    %1766 = vdwg.mxu0
    %1767 = vmatpush.bf16.msra.mxu0 %v1311
    %1768 = vmatpush.bf16.msra.mxu0 %v1287
    %1769 = vmatpush.bf16.msra.mxu0 %v1263
    %1770 = vmatpush.bf16.msra.mxu0 %v1239
    %1771 = vmatpush.bf16.msra.mxu0 %v1215
    %1772 = vmatpush.bf16.msra.mxu0 %v1191
    %1773 = vmatpush.bf16.msra.mxu0 %v1167
    %1774 = vmatpush.bf16.msra.mxu0 %v1143
    %1775 = vmatmul.bf16.gmra.mxu0 %v300
    %v1776 = vpop.f32.mrf.mxu0
    %v1777 = vadd.f32 %v519, %v1776
    %v1778 = vpop.f32.mrf.mxu0
    %1779 = vdwg.mxu0
    %1780 = vmatpush.bf16.msra.mxu0 %v1312
    %1781 = vmatpush.bf16.msra.mxu0 %v1288
    %1782 = vmatpush.bf16.msra.mxu0 %v1264
    %1783 = vmatpush.bf16.msra.mxu0 %v1240
    %1784 = vmatpush.bf16.msra.mxu0 %v1216
    %1785 = vmatpush.bf16.msra.mxu0 %v1192
    %1786 = vmatpush.bf16.msra.mxu0 %v1168
    %1787 = vmatpush.bf16.msra.mxu0 %v1144
    %1788 = vmatmul.bf16.gmra.mxu0 %v300
    %v1789 = vpop.f32.mrf.mxu0
    %v1790 = vadd.f32 %v520, %v1789
    %v1791 = vpop.f32.mrf.mxu0
    %1792 = vdwg.mxu0
    %1793 = vmatpush.bf16.msra.mxu0 %v1313
    %1794 = vmatpush.bf16.msra.mxu0 %v1289
    %1795 = vmatpush.bf16.msra.mxu0 %v1265
    %1796 = vmatpush.bf16.msra.mxu0 %v1241
    %1797 = vmatpush.bf16.msra.mxu0 %v1217
    %1798 = vmatpush.bf16.msra.mxu0 %v1193
    %1799 = vmatpush.bf16.msra.mxu0 %v1169
    %1800 = vmatpush.bf16.msra.mxu0 %v1145
    %1801 = vmatmul.bf16.gmra.mxu0 %v300
    %v1802 = vpop.f32.mrf.mxu0
    %v1803 = vadd.f32 %v521, %v1802
    %v1804 = vpop.f32.mrf.mxu0
    %1805 = vdwg.mxu0
    %1806 = vmatpush.bf16.msra.mxu0 %v1314
    %1807 = vmatpush.bf16.msra.mxu0 %v1290
    %1808 = vmatpush.bf16.msra.mxu0 %v1266
    %1809 = vmatpush.bf16.msra.mxu0 %v1242
    %1810 = vmatpush.bf16.msra.mxu0 %v1218
    %1811 = vmatpush.bf16.msra.mxu0 %v1194
    %1812 = vmatpush.bf16.msra.mxu0 %v1170
    %1813 = vmatpush.bf16.msra.mxu0 %v1146
    %1814 = vmatmul.bf16.gmra.mxu0 %v300
    %v1815 = vpop.f32.mrf.mxu0
    %v1816 = vadd.f32 %v522, %v1815
    %v1817 = vpop.f32.mrf.mxu0
    %1818 = vdwg.mxu0
    %v1819 = vmul.f32 %v1517, 0.5
    %v1820 = vmul.f32 %v1530, 0.5
    %v1821 = vmul.f32 %v1543, 0.5
    %v1822 = vmul.f32 %v1556, 0.5
    %v1823 = vmul.f32 %v1569, 0.5
    %v1824 = vmul.f32 %v1582, 0.5
    %v1825 = vmul.f32 %v1595, 0.5
    %v1826 = vmul.f32 %v1608, 0.5
    %v1827 = vmul.f32 %v1621, 0.5
    %v1828 = vmul.f32 %v1634, 0.5
    %v1829 = vmul.f32 %v1647, 0.5
    %v1830 = vmul.f32 %v1660, 0.5
    %v1831 = vmul.f32 %v1673, 0.5
    %v1832 = vmul.f32 %v1686, 0.5
    %v1833 = vmul.f32 %v1699, 0.5
    %v1834 = vmul.f32 %v1712, 0.5
    %v1835 = vmul.f32 %v1725, 0.5
    %v1836 = vmul.f32 %v1738, 0.5
    %v1837 = vmul.f32 %v1751, 0.5
    %v1838 = vmul.f32 %v1764, 0.5
    %v1839 = vmul.f32 %v1777, 0.5
    %v1840 = vmul.f32 %v1790, 0.5
    %v1841 = vmul.f32 %v1803, 0.5
    %v1842 = vmul.f32 %v1816, 0.5
    %v1843 = vmul.f32 %v1517, 0.70710677
    %v1844 = vmul.f32 %v1530, 0.70710677
    %v1845 = vmul.f32 %v1543, 0.70710677
    %v1846 = vmul.f32 %v1556, 0.70710677
    %v1847 = vmul.f32 %v1569, 0.70710677
    %v1848 = vmul.f32 %v1582, 0.70710677
    %v1849 = vmul.f32 %v1595, 0.70710677
    %v1850 = vmul.f32 %v1608, 0.70710677
    %v1851 = vmul.f32 %v1621, 0.70710677
    %v1852 = vmul.f32 %v1634, 0.70710677
    %v1853 = vmul.f32 %v1647, 0.70710677
    %v1854 = vmul.f32 %v1660, 0.70710677
    %v1855 = vmul.f32 %v1673, 0.70710677
    %v1856 = vmul.f32 %v1686, 0.70710677
    %v1857 = vmul.f32 %v1699, 0.70710677
    %v1858 = vmul.f32 %v1712, 0.70710677
    %v1859 = vmul.f32 %v1725, 0.70710677
    %v1860 = vmul.f32 %v1738, 0.70710677
    %v1861 = vmul.f32 %v1751, 0.70710677
    %v1862 = vmul.f32 %v1764, 0.70710677
    %v1863 = vmul.f32 %v1777, 0.70710677
    %v1864 = vmul.f32 %v1790, 0.70710677
    %v1865 = vmul.f32 %v1803, 0.70710677
    %v1866 = vmul.f32 %v1816, 0.70710677
    %v1867 = vmul.f32 %v1843, %v1843
    %v1868 = vmin.f32 16.0, %v1867
    %v1869 = vmul.f32 %v1868, 2.1237322e-06
    %v1870 = vadd.f32 %v1869, 0.00028619796
    %v1871 = vmul.f32 %v1868, %v1870
    %v1872 = vadd.f32 %v1871, 0.0036580483
    %v1873 = vmul.f32 %v1868, %v1872
    %v1874 = vadd.f32 %v1873, 0.05243302
    %v1875 = vmul.f32 %v1868, %v1874
    %v1876 = vadd.f32 %v1875, 0.18741608
    %v1877 = vmul.f32 %v1868, %v1876
    %v1878 = vadd.f32 %v1877, 1.1283791
    %v1879 = vmul.f32 %v1843, %v1878
    %v1880 = vmul.f32 %v1868, 3.8918573e-05
    %v1881 = vadd.f32 %v1880, 0.001143296
    %v1882 = vmul.f32 %v1868, %v1881
    %v1883 = vadd.f32 %v1882, 0.014752088
    %v1884 = vmul.f32 %v1868, %v1883
    %v1885 = vadd.f32 %v1884, 0.112945676
    %v1886 = vmul.f32 %v1868, %v1885
    %v1887 = vadd.f32 %v1886, 0.4994258
    %v1888 = vmul.f32 %v1868, %v1887
    %v1889 = vadd.f32 %v1888, 1.0
    %v1890 = vrcp.pop %v1889
    %v1891 = vmul.f32 %v1889, %v1890
    %v1892 = vsub.f32 1.0, %v1891
    %v1893 = vmul.f32 %v1890, %v1892
    %v1894 = vadd.f32 %v1890, %v1893
    %vm1895 = vweird.f32 %v1889
    %vm1896 = vweird.f32 %v1890
    %vm1897 = vmor %vm1895, %vm1896
    %v1898 = vsel %vm1897, %v1890, %v1894
    %v1899 = vand.u32 2147483647, %v1889
    %vm1900 = vcmp.eq.f32.partialorder %v1899, 8.507059e+37
    %v1901 = vand.u32 %v1889, 2147483648
    %v1902 = vor.u32 1.1754944e-38, %v1901
    %v1903 = vsel %vm1900, %v1902, %v1898
    %v1904 = vmul.f32 %v1879, %v1903
    %v1905 = vmin.f32 %v1904, 1.0
    %v1906 = vmax.f32 %v1905, -1.0
    %v1907 = vmul.f32 %v1844, %v1844
    %v1908 = vmin.f32 16.0, %v1907
    %v1909 = vmul.f32 %v1908, 2.1237322e-06
    %v1910 = vadd.f32 %v1909, 0.00028619796
    %v1911 = vmul.f32 %v1908, %v1910
    %v1912 = vadd.f32 %v1911, 0.0036580483
    %v1913 = vmul.f32 %v1908, %v1912
    %v1914 = vadd.f32 %v1913, 0.05243302
    %v1915 = vmul.f32 %v1908, %v1914
    %v1916 = vadd.f32 %v1915, 0.18741608
    %v1917 = vmul.f32 %v1908, %v1916
    %v1918 = vadd.f32 %v1917, 1.1283791
    %v1919 = vmul.f32 %v1844, %v1918
    %v1920 = vmul.f32 %v1908, 3.8918573e-05
    %v1921 = vadd.f32 %v1920, 0.001143296
    %v1922 = vmul.f32 %v1908, %v1921
    %v1923 = vadd.f32 %v1922, 0.014752088
    %v1924 = vmul.f32 %v1908, %v1923
    %v1925 = vadd.f32 %v1924, 0.112945676
    %v1926 = vmul.f32 %v1908, %v1925
    %v1927 = vadd.f32 %v1926, 0.4994258
    %v1928 = vmul.f32 %v1908, %v1927
    %v1929 = vadd.f32 %v1928, 1.0
    %v1930 = vrcp.pop %v1929
    %v1931 = vmul.f32 %v1929, %v1930
    %v1932 = vsub.f32 1.0, %v1931
    %v1933 = vmul.f32 %v1930, %v1932
    %v1934 = vadd.f32 %v1930, %v1933
    %vm1935 = vweird.f32 %v1929
    %vm1936 = vweird.f32 %v1930
    %vm1937 = vmor %vm1935, %vm1936
    %v1938 = vsel %vm1937, %v1930, %v1934
    %v1939 = vand.u32 2147483647, %v1929
    %vm1940 = vcmp.eq.f32.partialorder %v1939, 8.507059e+37
    %v1941 = vand.u32 %v1929, 2147483648
    %v1942 = vor.u32 1.1754944e-38, %v1941
    %v1943 = vsel %vm1940, %v1942, %v1938
    %v1944 = vmul.f32 %v1919, %v1943
    %v1945 = vmin.f32 %v1944, 1.0
    %v1946 = vmax.f32 %v1945, -1.0
    %v1947 = vmul.f32 %v1845, %v1845
    %v1948 = vmin.f32 16.0, %v1947
    %v1949 = vmul.f32 %v1948, 2.1237322e-06
    %v1950 = vadd.f32 %v1949, 0.00028619796
    %v1951 = vmul.f32 %v1948, %v1950
    %v1952 = vadd.f32 %v1951, 0.0036580483
    %v1953 = vmul.f32 %v1948, %v1952
    %v1954 = vadd.f32 %v1953, 0.05243302
    %v1955 = vmul.f32 %v1948, %v1954
    %v1956 = vadd.f32 %v1955, 0.18741608
    %v1957 = vmul.f32 %v1948, %v1956
    %v1958 = vadd.f32 %v1957, 1.1283791
    %v1959 = vmul.f32 %v1845, %v1958
    %v1960 = vmul.f32 %v1948, 3.8918573e-05
    %v1961 = vadd.f32 %v1960, 0.001143296
    %v1962 = vmul.f32 %v1948, %v1961
    %v1963 = vadd.f32 %v1962, 0.014752088
    %v1964 = vmul.f32 %v1948, %v1963
    %v1965 = vadd.f32 %v1964, 0.112945676
    %v1966 = vmul.f32 %v1948, %v1965
    %v1967 = vadd.f32 %v1966, 0.4994258
    %v1968 = vmul.f32 %v1948, %v1967
    %v1969 = vadd.f32 %v1968, 1.0
    %v1970 = vrcp.pop %v1969
    %v1971 = vmul.f32 %v1969, %v1970
    %v1972 = vsub.f32 1.0, %v1971
    %v1973 = vmul.f32 %v1970, %v1972
    %v1974 = vadd.f32 %v1970, %v1973
    %vm1975 = vweird.f32 %v1969
    %vm1976 = vweird.f32 %v1970
    %vm1977 = vmor %vm1975, %vm1976
    %v1978 = vsel %vm1977, %v1970, %v1974
    %v1979 = vand.u32 2147483647, %v1969
    %vm1980 = vcmp.eq.f32.partialorder %v1979, 8.507059e+37
    %v1981 = vand.u32 %v1969, 2147483648
    %v1982 = vor.u32 1.1754944e-38, %v1981
    %v1983 = vsel %vm1980, %v1982, %v1978
    %v1984 = vmul.f32 %v1959, %v1983
    %v1985 = vmin.f32 %v1984, 1.0
    %v1986 = vmax.f32 %v1985, -1.0
    %v1987 = vmul.f32 %v1846, %v1846
    %v1988 = vmin.f32 16.0, %v1987
    %v1989 = vmul.f32 %v1988, 2.1237322e-06
    %v1990 = vadd.f32 %v1989, 0.00028619796
    %v1991 = vmul.f32 %v1988, %v1990
    %v1992 = vadd.f32 %v1991, 0.0036580483
    %v1993 = vmul.f32 %v1988, %v1992
    %v1994 = vadd.f32 %v1993, 0.05243302
    %v1995 = vmul.f32 %v1988, %v1994
    %v1996 = vadd.f32 %v1995, 0.18741608
    %v1997 = vmul.f32 %v1988, %v1996
    %v1998 = vadd.f32 %v1997, 1.1283791
    %v1999 = vmul.f32 %v1846, %v1998
    %v2000 = vmul.f32 %v1988, 3.8918573e-05
    %v2001 = vadd.f32 %v2000, 0.001143296
    %v2002 = vmul.f32 %v1988, %v2001
    %v2003 = vadd.f32 %v2002, 0.014752088
    %v2004 = vmul.f32 %v1988, %v2003
    %v2005 = vadd.f32 %v2004, 0.112945676
    %v2006 = vmul.f32 %v1988, %v2005
    %v2007 = vadd.f32 %v2006, 0.4994258
    %v2008 = vmul.f32 %v1988, %v2007
    %v2009 = vadd.f32 %v2008, 1.0
    %v2010 = vrcp.pop %v2009
    %v2011 = vmul.f32 %v2009, %v2010
    %v2012 = vsub.f32 1.0, %v2011
    %v2013 = vmul.f32 %v2010, %v2012
    %v2014 = vadd.f32 %v2010, %v2013
    %vm2015 = vweird.f32 %v2009
    %vm2016 = vweird.f32 %v2010
    %vm2017 = vmor %vm2015, %vm2016
    %v2018 = vsel %vm2017, %v2010, %v2014
    %v2019 = vand.u32 2147483647, %v2009
    %vm2020 = vcmp.eq.f32.partialorder %v2019, 8.507059e+37
    %v2021 = vand.u32 %v2009, 2147483648
    %v2022 = vor.u32 1.1754944e-38, %v2021
    %v2023 = vsel %vm2020, %v2022, %v2018
    %v2024 = vmul.f32 %v1999, %v2023
    %v2025 = vmin.f32 %v2024, 1.0
    %v2026 = vmax.f32 %v2025, -1.0
    %v2027 = vmul.f32 %v1847, %v1847
    %v2028 = vmin.f32 16.0, %v2027
    %v2029 = vmul.f32 %v2028, 2.1237322e-06
    %v2030 = vadd.f32 %v2029, 0.00028619796
    %v2031 = vmul.f32 %v2028, %v2030
    %v2032 = vadd.f32 %v2031, 0.0036580483
    %v2033 = vmul.f32 %v2028, %v2032
    %v2034 = vadd.f32 %v2033, 0.05243302
    %v2035 = vmul.f32 %v2028, %v2034
    %v2036 = vadd.f32 %v2035, 0.18741608
    %v2037 = vmul.f32 %v2028, %v2036
    %v2038 = vadd.f32 %v2037, 1.1283791
    %v2039 = vmul.f32 %v1847, %v2038
    %v2040 = vmul.f32 %v2028, 3.8918573e-05
    %v2041 = vadd.f32 %v2040, 0.001143296
    %v2042 = vmul.f32 %v2028, %v2041
    %v2043 = vadd.f32 %v2042, 0.014752088
    %v2044 = vmul.f32 %v2028, %v2043
    %v2045 = vadd.f32 %v2044, 0.112945676
    %v2046 = vmul.f32 %v2028, %v2045
    %v2047 = vadd.f32 %v2046, 0.4994258
    %v2048 = vmul.f32 %v2028, %v2047
    %v2049 = vadd.f32 %v2048, 1.0
    %v2050 = vrcp.pop %v2049
    %v2051 = vmul.f32 %v2049, %v2050
    %v2052 = vsub.f32 1.0, %v2051
    %v2053 = vmul.f32 %v2050, %v2052
    %v2054 = vadd.f32 %v2050, %v2053
    %vm2055 = vweird.f32 %v2049
    %vm2056 = vweird.f32 %v2050
    %vm2057 = vmor %vm2055, %vm2056
    %v2058 = vsel %vm2057, %v2050, %v2054
    %v2059 = vand.u32 2147483647, %v2049
    %vm2060 = vcmp.eq.f32.partialorder %v2059, 8.507059e+37
    %v2061 = vand.u32 %v2049, 2147483648
    %v2062 = vor.u32 1.1754944e-38, %v2061
    %v2063 = vsel %vm2060, %v2062, %v2058
    %v2064 = vmul.f32 %v2039, %v2063
    %v2065 = vmin.f32 %v2064, 1.0
    %v2066 = vmax.f32 %v2065, -1.0
    %v2067 = vmul.f32 %v1848, %v1848
    %v2068 = vmin.f32 16.0, %v2067
    %v2069 = vmul.f32 %v2068, 2.1237322e-06
    %v2070 = vadd.f32 %v2069, 0.00028619796
    %v2071 = vmul.f32 %v2068, %v2070
    %v2072 = vadd.f32 %v2071, 0.0036580483
    %v2073 = vmul.f32 %v2068, %v2072
    %v2074 = vadd.f32 %v2073, 0.05243302
    %v2075 = vmul.f32 %v2068, %v2074
    %v2076 = vadd.f32 %v2075, 0.18741608
    %v2077 = vmul.f32 %v2068, %v2076
    %v2078 = vadd.f32 %v2077, 1.1283791
    %v2079 = vmul.f32 %v1848, %v2078
    %v2080 = vmul.f32 %v2068, 3.8918573e-05
    %v2081 = vadd.f32 %v2080, 0.001143296
    %v2082 = vmul.f32 %v2068, %v2081
    %v2083 = vadd.f32 %v2082, 0.014752088
    %v2084 = vmul.f32 %v2068, %v2083
    %v2085 = vadd.f32 %v2084, 0.112945676
    %v2086 = vmul.f32 %v2068, %v2085
    %v2087 = vadd.f32 %v2086, 0.4994258
    %v2088 = vmul.f32 %v2068, %v2087
    %v2089 = vadd.f32 %v2088, 1.0
    %v2090 = vrcp.pop %v2089
    %v2091 = vmul.f32 %v2089, %v2090
    %v2092 = vsub.f32 1.0, %v2091
    %v2093 = vmul.f32 %v2090, %v2092
    %v2094 = vadd.f32 %v2090, %v2093
    %vm2095 = vweird.f32 %v2089
    %vm2096 = vweird.f32 %v2090
    %vm2097 = vmor %vm2095, %vm2096
    %v2098 = vsel %vm2097, %v2090, %v2094
    %v2099 = vand.u32 2147483647, %v2089
    %vm2100 = vcmp.eq.f32.partialorder %v2099, 8.507059e+37
    %v2101 = vand.u32 %v2089, 2147483648
    %v2102 = vor.u32 1.1754944e-38, %v2101
    %v2103 = vsel %vm2100, %v2102, %v2098
    %v2104 = vmul.f32 %v2079, %v2103
    %v2105 = vmin.f32 %v2104, 1.0
    %v2106 = vmax.f32 %v2105, -1.0
    %v2107 = vmul.f32 %v1849, %v1849
    %v2108 = vmin.f32 16.0, %v2107
    %v2109 = vmul.f32 %v2108, 2.1237322e-06
    %v2110 = vadd.f32 %v2109, 0.00028619796
    %v2111 = vmul.f32 %v2108, %v2110
    %v2112 = vadd.f32 %v2111, 0.0036580483
    %v2113 = vmul.f32 %v2108, %v2112
    %v2114 = vadd.f32 %v2113, 0.05243302
    %v2115 = vmul.f32 %v2108, %v2114
    %v2116 = vadd.f32 %v2115, 0.18741608
    %v2117 = vmul.f32 %v2108, %v2116
    %v2118 = vadd.f32 %v2117, 1.1283791
    %v2119 = vmul.f32 %v1849, %v2118
    %v2120 = vmul.f32 %v2108, 3.8918573e-05
    %v2121 = vadd.f32 %v2120, 0.001143296
    %v2122 = vmul.f32 %v2108, %v2121
    %v2123 = vadd.f32 %v2122, 0.014752088
    %v2124 = vmul.f32 %v2108, %v2123
    %v2125 = vadd.f32 %v2124, 0.112945676
    %v2126 = vmul.f32 %v2108, %v2125
    %v2127 = vadd.f32 %v2126, 0.4994258
    %v2128 = vmul.f32 %v2108, %v2127
    %v2129 = vadd.f32 %v2128, 1.0
    %v2130 = vrcp.pop %v2129
    %v2131 = vmul.f32 %v2129, %v2130
    %v2132 = vsub.f32 1.0, %v2131
    %v2133 = vmul.f32 %v2130, %v2132
    %v2134 = vadd.f32 %v2130, %v2133
    %vm2135 = vweird.f32 %v2129
    %vm2136 = vweird.f32 %v2130
    %vm2137 = vmor %vm2135, %vm2136
    %v2138 = vsel %vm2137, %v2130, %v2134
    %v2139 = vand.u32 2147483647, %v2129
    %vm2140 = vcmp.eq.f32.partialorder %v2139, 8.507059e+37
    %v2141 = vand.u32 %v2129, 2147483648
    %v2142 = vor.u32 1.1754944e-38, %v2141
    %v2143 = vsel %vm2140, %v2142, %v2138
    %v2144 = vmul.f32 %v2119, %v2143
    %v2145 = vmin.f32 %v2144, 1.0
    %v2146 = vmax.f32 %v2145, -1.0
    %v2147 = vmul.f32 %v1850, %v1850
    %v2148 = vmin.f32 16.0, %v2147
    %v2149 = vmul.f32 %v2148, 2.1237322e-06
    %v2150 = vadd.f32 %v2149, 0.00028619796
    %v2151 = vmul.f32 %v2148, %v2150
    %v2152 = vadd.f32 %v2151, 0.0036580483
    %v2153 = vmul.f32 %v2148, %v2152
    %v2154 = vadd.f32 %v2153, 0.05243302
    %v2155 = vmul.f32 %v2148, %v2154
    %v2156 = vadd.f32 %v2155, 0.18741608
    %v2157 = vmul.f32 %v2148, %v2156
    %v2158 = vadd.f32 %v2157, 1.1283791
    %v2159 = vmul.f32 %v1850, %v2158
    %v2160 = vmul.f32 %v2148, 3.8918573e-05
    %v2161 = vadd.f32 %v2160, 0.001143296
    %v2162 = vmul.f32 %v2148, %v2161
    %v2163 = vadd.f32 %v2162, 0.014752088
    %v2164 = vmul.f32 %v2148, %v2163
    %v2165 = vadd.f32 %v2164, 0.112945676
    %v2166 = vmul.f32 %v2148, %v2165
    %v2167 = vadd.f32 %v2166, 0.4994258
    %v2168 = vmul.f32 %v2148, %v2167
    %v2169 = vadd.f32 %v2168, 1.0
    %v2170 = vrcp.pop %v2169
    %v2171 = vmul.f32 %v2169, %v2170
    %v2172 = vsub.f32 1.0, %v2171
    %v2173 = vmul.f32 %v2170, %v2172
    %v2174 = vadd.f32 %v2170, %v2173
    %vm2175 = vweird.f32 %v2169
    %vm2176 = vweird.f32 %v2170
    %vm2177 = vmor %vm2175, %vm2176
    %v2178 = vsel %vm2177, %v2170, %v2174
    %v2179 = vand.u32 2147483647, %v2169
    %vm2180 = vcmp.eq.f32.partialorder %v2179, 8.507059e+37
    %v2181 = vand.u32 %v2169, 2147483648
    %v2182 = vor.u32 1.1754944e-38, %v2181
    %v2183 = vsel %vm2180, %v2182, %v2178
    %v2184 = vmul.f32 %v2159, %v2183
    %v2185 = vmin.f32 %v2184, 1.0
    %v2186 = vmax.f32 %v2185, -1.0
    %v2187 = vmul.f32 %v1851, %v1851
    %v2188 = vmin.f32 16.0, %v2187
    %v2189 = vmul.f32 %v2188, 2.1237322e-06
    %v2190 = vadd.f32 %v2189, 0.00028619796
    %v2191 = vmul.f32 %v2188, %v2190
    %v2192 = vadd.f32 %v2191, 0.0036580483
    %v2193 = vmul.f32 %v2188, %v2192
    %v2194 = vadd.f32 %v2193, 0.05243302
    %v2195 = vmul.f32 %v2188, %v2194
    %v2196 = vadd.f32 %v2195, 0.18741608
    %v2197 = vmul.f32 %v2188, %v2196
    %v2198 = vadd.f32 %v2197, 1.1283791
    %v2199 = vmul.f32 %v1851, %v2198
    %v2200 = vmul.f32 %v2188, 3.8918573e-05
    %v2201 = vadd.f32 %v2200, 0.001143296
    %v2202 = vmul.f32 %v2188, %v2201
    %v2203 = vadd.f32 %v2202, 0.014752088
    %v2204 = vmul.f32 %v2188, %v2203
    %v2205 = vadd.f32 %v2204, 0.112945676
    %v2206 = vmul.f32 %v2188, %v2205
    %v2207 = vadd.f32 %v2206, 0.4994258
    %v2208 = vmul.f32 %v2188, %v2207
    %v2209 = vadd.f32 %v2208, 1.0
    %v2210 = vrcp.pop %v2209
    %v2211 = vmul.f32 %v2209, %v2210
    %v2212 = vsub.f32 1.0, %v2211
    %v2213 = vmul.f32 %v2210, %v2212
    %v2214 = vadd.f32 %v2210, %v2213
    %vm2215 = vweird.f32 %v2209
    %vm2216 = vweird.f32 %v2210
    %vm2217 = vmor %vm2215, %vm2216
    %v2218 = vsel %vm2217, %v2210, %v2214
    %v2219 = vand.u32 2147483647, %v2209
    %vm2220 = vcmp.eq.f32.partialorder %v2219, 8.507059e+37
    %v2221 = vand.u32 %v2209, 2147483648
    %v2222 = vor.u32 1.1754944e-38, %v2221
    %v2223 = vsel %vm2220, %v2222, %v2218
    %v2224 = vmul.f32 %v2199, %v2223
    %v2225 = vmin.f32 %v2224, 1.0
    %v2226 = vmax.f32 %v2225, -1.0
    %v2227 = vmul.f32 %v1852, %v1852
    %v2228 = vmin.f32 16.0, %v2227
    %v2229 = vmul.f32 %v2228, 2.1237322e-06
    %v2230 = vadd.f32 %v2229, 0.00028619796
    %v2231 = vmul.f32 %v2228, %v2230
    %v2232 = vadd.f32 %v2231, 0.0036580483
    %v2233 = vmul.f32 %v2228, %v2232
    %v2234 = vadd.f32 %v2233, 0.05243302
    %v2235 = vmul.f32 %v2228, %v2234
    %v2236 = vadd.f32 %v2235, 0.18741608
    %v2237 = vmul.f32 %v2228, %v2236
    %v2238 = vadd.f32 %v2237, 1.1283791
    %v2239 = vmul.f32 %v1852, %v2238
    %v2240 = vmul.f32 %v2228, 3.8918573e-05
    %v2241 = vadd.f32 %v2240, 0.001143296
    %v2242 = vmul.f32 %v2228, %v2241
    %v2243 = vadd.f32 %v2242, 0.014752088
    %v2244 = vmul.f32 %v2228, %v2243
    %v2245 = vadd.f32 %v2244, 0.112945676
    %v2246 = vmul.f32 %v2228, %v2245
    %v2247 = vadd.f32 %v2246, 0.4994258
    %v2248 = vmul.f32 %v2228, %v2247
    %v2249 = vadd.f32 %v2248, 1.0
    %v2250 = vrcp.pop %v2249
    %v2251 = vmul.f32 %v2249, %v2250
    %v2252 = vsub.f32 1.0, %v2251
    %v2253 = vmul.f32 %v2250, %v2252
    %v2254 = vadd.f32 %v2250, %v2253
    %vm2255 = vweird.f32 %v2249
    %vm2256 = vweird.f32 %v2250
    %vm2257 = vmor %vm2255, %vm2256
    %v2258 = vsel %vm2257, %v2250, %v2254
    %v2259 = vand.u32 2147483647, %v2249
    %vm2260 = vcmp.eq.f32.partialorder %v2259, 8.507059e+37
    %v2261 = vand.u32 %v2249, 2147483648
    %v2262 = vor.u32 1.1754944e-38, %v2261
    %v2263 = vsel %vm2260, %v2262, %v2258
    %v2264 = vmul.f32 %v2239, %v2263
    %v2265 = vmin.f32 %v2264, 1.0
    %v2266 = vmax.f32 %v2265, -1.0
    %v2267 = vmul.f32 %v1853, %v1853
    %v2268 = vmin.f32 16.0, %v2267
    %v2269 = vmul.f32 %v2268, 2.1237322e-06
    %v2270 = vadd.f32 %v2269, 0.00028619796
    %v2271 = vmul.f32 %v2268, %v2270
    %v2272 = vadd.f32 %v2271, 0.0036580483
    %v2273 = vmul.f32 %v2268, %v2272
    %v2274 = vadd.f32 %v2273, 0.05243302
    %v2275 = vmul.f32 %v2268, %v2274
    %v2276 = vadd.f32 %v2275, 0.18741608
    %v2277 = vmul.f32 %v2268, %v2276
    %v2278 = vadd.f32 %v2277, 1.1283791
    %v2279 = vmul.f32 %v1853, %v2278
    %v2280 = vmul.f32 %v2268, 3.8918573e-05
    %v2281 = vadd.f32 %v2280, 0.001143296
    %v2282 = vmul.f32 %v2268, %v2281
    %v2283 = vadd.f32 %v2282, 0.014752088
    %v2284 = vmul.f32 %v2268, %v2283
    %v2285 = vadd.f32 %v2284, 0.112945676
    %v2286 = vmul.f32 %v2268, %v2285
    %v2287 = vadd.f32 %v2286, 0.4994258
    %v2288 = vmul.f32 %v2268, %v2287
    %v2289 = vadd.f32 %v2288, 1.0
    %v2290 = vrcp.pop %v2289
    %v2291 = vmul.f32 %v2289, %v2290
    %v2292 = vsub.f32 1.0, %v2291
    %v2293 = vmul.f32 %v2290, %v2292
    %v2294 = vadd.f32 %v2290, %v2293
    %vm2295 = vweird.f32 %v2289
    %vm2296 = vweird.f32 %v2290
    %vm2297 = vmor %vm2295, %vm2296
    %v2298 = vsel %vm2297, %v2290, %v2294
    %v2299 = vand.u32 2147483647, %v2289
    %vm2300 = vcmp.eq.f32.partialorder %v2299, 8.507059e+37
    %v2301 = vand.u32 %v2289, 2147483648
    %v2302 = vor.u32 1.1754944e-38, %v2301
    %v2303 = vsel %vm2300, %v2302, %v2298
    %v2304 = vmul.f32 %v2279, %v2303
    %v2305 = vmin.f32 %v2304, 1.0
    %v2306 = vmax.f32 %v2305, -1.0
    %v2307 = vmul.f32 %v1854, %v1854
    %v2308 = vmin.f32 16.0, %v2307
    %v2309 = vmul.f32 %v2308, 2.1237322e-06
    %v2310 = vadd.f32 %v2309, 0.00028619796
    %v2311 = vmul.f32 %v2308, %v2310
    %v2312 = vadd.f32 %v2311, 0.0036580483
    %v2313 = vmul.f32 %v2308, %v2312
    %v2314 = vadd.f32 %v2313, 0.05243302
    %v2315 = vmul.f32 %v2308, %v2314
    %v2316 = vadd.f32 %v2315, 0.18741608
    %v2317 = vmul.f32 %v2308, %v2316
    %v2318 = vadd.f32 %v2317, 1.1283791
    %v2319 = vmul.f32 %v1854, %v2318
    %v2320 = vmul.f32 %v2308, 3.8918573e-05
    %v2321 = vadd.f32 %v2320, 0.001143296
    %v2322 = vmul.f32 %v2308, %v2321
    %v2323 = vadd.f32 %v2322, 0.014752088
    %v2324 = vmul.f32 %v2308, %v2323
    %v2325 = vadd.f32 %v2324, 0.112945676
    %v2326 = vmul.f32 %v2308, %v2325
    %v2327 = vadd.f32 %v2326, 0.4994258
    %v2328 = vmul.f32 %v2308, %v2327
    %v2329 = vadd.f32 %v2328, 1.0
    %v2330 = vrcp.pop %v2329
    %v2331 = vmul.f32 %v2329, %v2330
    %v2332 = vsub.f32 1.0, %v2331
    %v2333 = vmul.f32 %v2330, %v2332
    %v2334 = vadd.f32 %v2330, %v2333
    %vm2335 = vweird.f32 %v2329
    %vm2336 = vweird.f32 %v2330
    %vm2337 = vmor %vm2335, %vm2336
    %v2338 = vsel %vm2337, %v2330, %v2334
    %v2339 = vand.u32 2147483647, %v2329
    %vm2340 = vcmp.eq.f32.partialorder %v2339, 8.507059e+37
    %v2341 = vand.u32 %v2329, 2147483648
    %v2342 = vor.u32 1.1754944e-38, %v2341
    %v2343 = vsel %vm2340, %v2342, %v2338
    %v2344 = vmul.f32 %v2319, %v2343
    %v2345 = vmin.f32 %v2344, 1.0
    %v2346 = vmax.f32 %v2345, -1.0
    %v2347 = vmul.f32 %v1855, %v1855
    %v2348 = vmin.f32 16.0, %v2347
    %v2349 = vmul.f32 %v2348, 2.1237322e-06
    %v2350 = vadd.f32 %v2349, 0.00028619796
    %v2351 = vmul.f32 %v2348, %v2350
    %v2352 = vadd.f32 %v2351, 0.0036580483
    %v2353 = vmul.f32 %v2348, %v2352
    %v2354 = vadd.f32 %v2353, 0.05243302
    %v2355 = vmul.f32 %v2348, %v2354
    %v2356 = vadd.f32 %v2355, 0.18741608
    %v2357 = vmul.f32 %v2348, %v2356
    %v2358 = vadd.f32 %v2357, 1.1283791
    %v2359 = vmul.f32 %v1855, %v2358
    %v2360 = vmul.f32 %v2348, 3.8918573e-05
    %v2361 = vadd.f32 %v2360, 0.001143296
    %v2362 = vmul.f32 %v2348, %v2361
    %v2363 = vadd.f32 %v2362, 0.014752088
    %v2364 = vmul.f32 %v2348, %v2363
    %v2365 = vadd.f32 %v2364, 0.112945676
    %v2366 = vmul.f32 %v2348, %v2365
    %v2367 = vadd.f32 %v2366, 0.4994258
    %v2368 = vmul.f32 %v2348, %v2367
    %v2369 = vadd.f32 %v2368, 1.0
    %v2370 = vrcp.pop %v2369
    %v2371 = vmul.f32 %v2369, %v2370
    %v2372 = vsub.f32 1.0, %v2371
    %v2373 = vmul.f32 %v2370, %v2372
    %v2374 = vadd.f32 %v2370, %v2373
    %vm2375 = vweird.f32 %v2369
    %vm2376 = vweird.f32 %v2370
    %vm2377 = vmor %vm2375, %vm2376
    %v2378 = vsel %vm2377, %v2370, %v2374
    %v2379 = vand.u32 2147483647, %v2369
    %vm2380 = vcmp.eq.f32.partialorder %v2379, 8.507059e+37
    %v2381 = vand.u32 %v2369, 2147483648
    %v2382 = vor.u32 1.1754944e-38, %v2381
    %v2383 = vsel %vm2380, %v2382, %v2378
    %v2384 = vmul.f32 %v2359, %v2383
    %v2385 = vmin.f32 %v2384, 1.0
    %v2386 = vmax.f32 %v2385, -1.0
    %v2387 = vmul.f32 %v1856, %v1856
    %v2388 = vmin.f32 16.0, %v2387
    %v2389 = vmul.f32 %v2388, 2.1237322e-06
    %v2390 = vadd.f32 %v2389, 0.00028619796
    %v2391 = vmul.f32 %v2388, %v2390
    %v2392 = vadd.f32 %v2391, 0.0036580483
    %v2393 = vmul.f32 %v2388, %v2392
    %v2394 = vadd.f32 %v2393, 0.05243302
    %v2395 = vmul.f32 %v2388, %v2394
    %v2396 = vadd.f32 %v2395, 0.18741608
    %v2397 = vmul.f32 %v2388, %v2396
    %v2398 = vadd.f32 %v2397, 1.1283791
    %v2399 = vmul.f32 %v1856, %v2398
    %v2400 = vmul.f32 %v2388, 3.8918573e-05
    %v2401 = vadd.f32 %v2400, 0.001143296
    %v2402 = vmul.f32 %v2388, %v2401
    %v2403 = vadd.f32 %v2402, 0.014752088
    %v2404 = vmul.f32 %v2388, %v2403
    %v2405 = vadd.f32 %v2404, 0.112945676
    %v2406 = vmul.f32 %v2388, %v2405
    %v2407 = vadd.f32 %v2406, 0.4994258
    %v2408 = vmul.f32 %v2388, %v2407
    %v2409 = vadd.f32 %v2408, 1.0
    %v2410 = vrcp.pop %v2409
    %v2411 = vmul.f32 %v2409, %v2410
    %v2412 = vsub.f32 1.0, %v2411
    %v2413 = vmul.f32 %v2410, %v2412
    %v2414 = vadd.f32 %v2410, %v2413
    %vm2415 = vweird.f32 %v2409
    %vm2416 = vweird.f32 %v2410
    %vm2417 = vmor %vm2415, %vm2416
    %v2418 = vsel %vm2417, %v2410, %v2414
    %v2419 = vand.u32 2147483647, %v2409
    %vm2420 = vcmp.eq.f32.partialorder %v2419, 8.507059e+37
    %v2421 = vand.u32 %v2409, 2147483648
    %v2422 = vor.u32 1.1754944e-38, %v2421
    %v2423 = vsel %vm2420, %v2422, %v2418
    %v2424 = vmul.f32 %v2399, %v2423
    %v2425 = vmin.f32 %v2424, 1.0
    %v2426 = vmax.f32 %v2425, -1.0
    %v2427 = vmul.f32 %v1857, %v1857
    %v2428 = vmin.f32 16.0, %v2427
    %v2429 = vmul.f32 %v2428, 2.1237322e-06
    %v2430 = vadd.f32 %v2429, 0.00028619796
    %v2431 = vmul.f32 %v2428, %v2430
    %v2432 = vadd.f32 %v2431, 0.0036580483
    %v2433 = vmul.f32 %v2428, %v2432
    %v2434 = vadd.f32 %v2433, 0.05243302
    %v2435 = vmul.f32 %v2428, %v2434
    %v2436 = vadd.f32 %v2435, 0.18741608
    %v2437 = vmul.f32 %v2428, %v2436
    %v2438 = vadd.f32 %v2437, 1.1283791
    %v2439 = vmul.f32 %v1857, %v2438
    %v2440 = vmul.f32 %v2428, 3.8918573e-05
    %v2441 = vadd.f32 %v2440, 0.001143296
    %v2442 = vmul.f32 %v2428, %v2441
    %v2443 = vadd.f32 %v2442, 0.014752088
    %v2444 = vmul.f32 %v2428, %v2443
    %v2445 = vadd.f32 %v2444, 0.112945676
    %v2446 = vmul.f32 %v2428, %v2445
    %v2447 = vadd.f32 %v2446, 0.4994258
    %v2448 = vmul.f32 %v2428, %v2447
    %v2449 = vadd.f32 %v2448, 1.0
    %v2450 = vrcp.pop %v2449
    %v2451 = vmul.f32 %v2449, %v2450
    %v2452 = vsub.f32 1.0, %v2451
    %v2453 = vmul.f32 %v2450, %v2452
    %v2454 = vadd.f32 %v2450, %v2453
    %vm2455 = vweird.f32 %v2449
    %vm2456 = vweird.f32 %v2450
    %vm2457 = vmor %vm2455, %vm2456
    %v2458 = vsel %vm2457, %v2450, %v2454
    %v2459 = vand.u32 2147483647, %v2449
    %vm2460 = vcmp.eq.f32.partialorder %v2459, 8.507059e+37
    %v2461 = vand.u32 %v2449, 2147483648
    %v2462 = vor.u32 1.1754944e-38, %v2461
    %v2463 = vsel %vm2460, %v2462, %v2458
    %v2464 = vmul.f32 %v2439, %v2463
    %v2465 = vmin.f32 %v2464, 1.0
    %v2466 = vmax.f32 %v2465, -1.0
    %v2467 = vmul.f32 %v1858, %v1858
    %v2468 = vmin.f32 16.0, %v2467
    %v2469 = vmul.f32 %v2468, 2.1237322e-06
    %v2470 = vadd.f32 %v2469, 0.00028619796
    %v2471 = vmul.f32 %v2468, %v2470
    %v2472 = vadd.f32 %v2471, 0.0036580483
    %v2473 = vmul.f32 %v2468, %v2472
    %v2474 = vadd.f32 %v2473, 0.05243302
    %v2475 = vmul.f32 %v2468, %v2474
    %v2476 = vadd.f32 %v2475, 0.18741608
    %v2477 = vmul.f32 %v2468, %v2476
    %v2478 = vadd.f32 %v2477, 1.1283791
    %v2479 = vmul.f32 %v1858, %v2478
    %v2480 = vmul.f32 %v2468, 3.8918573e-05
    %v2481 = vadd.f32 %v2480, 0.001143296
    %v2482 = vmul.f32 %v2468, %v2481
    %v2483 = vadd.f32 %v2482, 0.014752088
    %v2484 = vmul.f32 %v2468, %v2483
    %v2485 = vadd.f32 %v2484, 0.112945676
    %v2486 = vmul.f32 %v2468, %v2485
    %v2487 = vadd.f32 %v2486, 0.4994258
    %v2488 = vmul.f32 %v2468, %v2487
    %v2489 = vadd.f32 %v2488, 1.0
    %v2490 = vrcp.pop %v2489
    %v2491 = vmul.f32 %v2489, %v2490
    %v2492 = vsub.f32 1.0, %v2491
    %v2493 = vmul.f32 %v2490, %v2492
    %v2494 = vadd.f32 %v2490, %v2493
    %vm2495 = vweird.f32 %v2489
    %vm2496 = vweird.f32 %v2490
    %vm2497 = vmor %vm2495, %vm2496
    %v2498 = vsel %vm2497, %v2490, %v2494
    %v2499 = vand.u32 2147483647, %v2489
    %vm2500 = vcmp.eq.f32.partialorder %v2499, 8.507059e+37
    %v2501 = vand.u32 %v2489, 2147483648
    %v2502 = vor.u32 1.1754944e-38, %v2501
    %v2503 = vsel %vm2500, %v2502, %v2498
    %v2504 = vmul.f32 %v2479, %v2503
    %v2505 = vmin.f32 %v2504, 1.0
    %v2506 = vmax.f32 %v2505, -1.0
    %v2507 = vmul.f32 %v1859, %v1859
    %v2508 = vmin.f32 16.0, %v2507
    %v2509 = vmul.f32 %v2508, 2.1237322e-06
    %v2510 = vadd.f32 %v2509, 0.00028619796
    %v2511 = vmul.f32 %v2508, %v2510
    %v2512 = vadd.f32 %v2511, 0.0036580483
    %v2513 = vmul.f32 %v2508, %v2512
    %v2514 = vadd.f32 %v2513, 0.05243302
    %v2515 = vmul.f32 %v2508, %v2514
    %v2516 = vadd.f32 %v2515, 0.18741608
    %v2517 = vmul.f32 %v2508, %v2516
    %v2518 = vadd.f32 %v2517, 1.1283791
    %v2519 = vmul.f32 %v1859, %v2518
    %v2520 = vmul.f32 %v2508, 3.8918573e-05
    %v2521 = vadd.f32 %v2520, 0.001143296
    %v2522 = vmul.f32 %v2508, %v2521
    %v2523 = vadd.f32 %v2522, 0.014752088
    %v2524 = vmul.f32 %v2508, %v2523
    %v2525 = vadd.f32 %v2524, 0.112945676
    %v2526 = vmul.f32 %v2508, %v2525
    %v2527 = vadd.f32 %v2526, 0.4994258
    %v2528 = vmul.f32 %v2508, %v2527
    %v2529 = vadd.f32 %v2528, 1.0
    %v2530 = vrcp.pop %v2529
    %v2531 = vmul.f32 %v2529, %v2530
    %v2532 = vsub.f32 1.0, %v2531
    %v2533 = vmul.f32 %v2530, %v2532
    %v2534 = vadd.f32 %v2530, %v2533
    %vm2535 = vweird.f32 %v2529
    %vm2536 = vweird.f32 %v2530
    %vm2537 = vmor %vm2535, %vm2536
    %v2538 = vsel %vm2537, %v2530, %v2534
    %v2539 = vand.u32 2147483647, %v2529
    %vm2540 = vcmp.eq.f32.partialorder %v2539, 8.507059e+37
    %v2541 = vand.u32 %v2529, 2147483648
    %v2542 = vor.u32 1.1754944e-38, %v2541
    %v2543 = vsel %vm2540, %v2542, %v2538
    %v2544 = vmul.f32 %v2519, %v2543
    %v2545 = vmin.f32 %v2544, 1.0
    %v2546 = vmax.f32 %v2545, -1.0
    %v2547 = vmul.f32 %v1860, %v1860
    %v2548 = vmin.f32 16.0, %v2547
    %v2549 = vmul.f32 %v2548, 2.1237322e-06
    %v2550 = vadd.f32 %v2549, 0.00028619796
    %v2551 = vmul.f32 %v2548, %v2550
    %v2552 = vadd.f32 %v2551, 0.0036580483
    %v2553 = vmul.f32 %v2548, %v2552
    %v2554 = vadd.f32 %v2553, 0.05243302
    %v2555 = vmul.f32 %v2548, %v2554
    %v2556 = vadd.f32 %v2555, 0.18741608
    %v2557 = vmul.f32 %v2548, %v2556
    %v2558 = vadd.f32 %v2557, 1.1283791
    %v2559 = vmul.f32 %v1860, %v2558
    %v2560 = vmul.f32 %v2548, 3.8918573e-05
    %v2561 = vadd.f32 %v2560, 0.001143296
    %v2562 = vmul.f32 %v2548, %v2561
    %v2563 = vadd.f32 %v2562, 0.014752088
    %v2564 = vmul.f32 %v2548, %v2563
    %v2565 = vadd.f32 %v2564, 0.112945676
    %v2566 = vmul.f32 %v2548, %v2565
    %v2567 = vadd.f32 %v2566, 0.4994258
    %v2568 = vmul.f32 %v2548, %v2567
    %v2569 = vadd.f32 %v2568, 1.0
    %v2570 = vrcp.pop %v2569
    %v2571 = vmul.f32 %v2569, %v2570
    %v2572 = vsub.f32 1.0, %v2571
    %v2573 = vmul.f32 %v2570, %v2572
    %v2574 = vadd.f32 %v2570, %v2573
    %vm2575 = vweird.f32 %v2569
    %vm2576 = vweird.f32 %v2570
    %vm2577 = vmor %vm2575, %vm2576
    %v2578 = vsel %vm2577, %v2570, %v2574
    %v2579 = vand.u32 2147483647, %v2569
    %vm2580 = vcmp.eq.f32.partialorder %v2579, 8.507059e+37
    %v2581 = vand.u32 %v2569, 2147483648
    %v2582 = vor.u32 1.1754944e-38, %v2581
    %v2583 = vsel %vm2580, %v2582, %v2578
    %v2584 = vmul.f32 %v2559, %v2583
    %v2585 = vmin.f32 %v2584, 1.0
    %v2586 = vmax.f32 %v2585, -1.0
    %v2587 = vmul.f32 %v1861, %v1861
    %v2588 = vmin.f32 16.0, %v2587
    %v2589 = vmul.f32 %v2588, 2.1237322e-06
    %v2590 = vadd.f32 %v2589, 0.00028619796
    %v2591 = vmul.f32 %v2588, %v2590
    %v2592 = vadd.f32 %v2591, 0.0036580483
    %v2593 = vmul.f32 %v2588, %v2592
    %v2594 = vadd.f32 %v2593, 0.05243302
    %v2595 = vmul.f32 %v2588, %v2594
    %v2596 = vadd.f32 %v2595, 0.18741608
    %v2597 = vmul.f32 %v2588, %v2596
    %v2598 = vadd.f32 %v2597, 1.1283791
    %v2599 = vmul.f32 %v1861, %v2598
    %v2600 = vmul.f32 %v2588, 3.8918573e-05
    %v2601 = vadd.f32 %v2600, 0.001143296
    %v2602 = vmul.f32 %v2588, %v2601
    %v2603 = vadd.f32 %v2602, 0.014752088
    %v2604 = vmul.f32 %v2588, %v2603
    %v2605 = vadd.f32 %v2604, 0.112945676
    %v2606 = vmul.f32 %v2588, %v2605
    %v2607 = vadd.f32 %v2606, 0.4994258
    %v2608 = vmul.f32 %v2588, %v2607
    %v2609 = vadd.f32 %v2608, 1.0
    %v2610 = vrcp.pop %v2609
    %v2611 = vmul.f32 %v2609, %v2610
    %v2612 = vsub.f32 1.0, %v2611
    %v2613 = vmul.f32 %v2610, %v2612
    %v2614 = vadd.f32 %v2610, %v2613
    %vm2615 = vweird.f32 %v2609
    %vm2616 = vweird.f32 %v2610
    %vm2617 = vmor %vm2615, %vm2616
    %v2618 = vsel %vm2617, %v2610, %v2614
    %v2619 = vand.u32 2147483647, %v2609
    %vm2620 = vcmp.eq.f32.partialorder %v2619, 8.507059e+37
    %v2621 = vand.u32 %v2609, 2147483648
    %v2622 = vor.u32 1.1754944e-38, %v2621
    %v2623 = vsel %vm2620, %v2622, %v2618
    %v2624 = vmul.f32 %v2599, %v2623
    %v2625 = vmin.f32 %v2624, 1.0
    %v2626 = vmax.f32 %v2625, -1.0
    %v2627 = vmul.f32 %v1862, %v1862
    %v2628 = vmin.f32 16.0, %v2627
    %v2629 = vmul.f32 %v2628, 2.1237322e-06
    %v2630 = vadd.f32 %v2629, 0.00028619796
    %v2631 = vmul.f32 %v2628, %v2630
    %v2632 = vadd.f32 %v2631, 0.0036580483
    %v2633 = vmul.f32 %v2628, %v2632
    %v2634 = vadd.f32 %v2633, 0.05243302
    %v2635 = vmul.f32 %v2628, %v2634
    %v2636 = vadd.f32 %v2635, 0.18741608
    %v2637 = vmul.f32 %v2628, %v2636
    %v2638 = vadd.f32 %v2637, 1.1283791
    %v2639 = vmul.f32 %v1862, %v2638
    %v2640 = vmul.f32 %v2628, 3.8918573e-05
    %v2641 = vadd.f32 %v2640, 0.001143296
    %v2642 = vmul.f32 %v2628, %v2641
    %v2643 = vadd.f32 %v2642, 0.014752088
    %v2644 = vmul.f32 %v2628, %v2643
    %v2645 = vadd.f32 %v2644, 0.112945676
    %v2646 = vmul.f32 %v2628, %v2645
    %v2647 = vadd.f32 %v2646, 0.4994258
    %v2648 = vmul.f32 %v2628, %v2647
    %v2649 = vadd.f32 %v2648, 1.0
    %v2650 = vrcp.pop %v2649
    %v2651 = vmul.f32 %v2649, %v2650
    %v2652 = vsub.f32 1.0, %v2651
    %v2653 = vmul.f32 %v2650, %v2652
    %v2654 = vadd.f32 %v2650, %v2653
    %vm2655 = vweird.f32 %v2649
    %vm2656 = vweird.f32 %v2650
    %vm2657 = vmor %vm2655, %vm2656
    %v2658 = vsel %vm2657, %v2650, %v2654
    %v2659 = vand.u32 2147483647, %v2649
    %vm2660 = vcmp.eq.f32.partialorder %v2659, 8.507059e+37
    %v2661 = vand.u32 %v2649, 2147483648
    %v2662 = vor.u32 1.1754944e-38, %v2661
    %v2663 = vsel %vm2660, %v2662, %v2658
    %v2664 = vmul.f32 %v2639, %v2663
    %v2665 = vmin.f32 %v2664, 1.0
    %v2666 = vmax.f32 %v2665, -1.0
    %v2667 = vmul.f32 %v1863, %v1863
    %v2668 = vmin.f32 16.0, %v2667
    %v2669 = vmul.f32 %v2668, 2.1237322e-06
    %v2670 = vadd.f32 %v2669, 0.00028619796
    %v2671 = vmul.f32 %v2668, %v2670
    %v2672 = vadd.f32 %v2671, 0.0036580483
    %v2673 = vmul.f32 %v2668, %v2672
    %v2674 = vadd.f32 %v2673, 0.05243302
    %v2675 = vmul.f32 %v2668, %v2674
    %v2676 = vadd.f32 %v2675, 0.18741608
    %v2677 = vmul.f32 %v2668, %v2676
    %v2678 = vadd.f32 %v2677, 1.1283791
    %v2679 = vmul.f32 %v1863, %v2678
    %v2680 = vmul.f32 %v2668, 3.8918573e-05
    %v2681 = vadd.f32 %v2680, 0.001143296
    %v2682 = vmul.f32 %v2668, %v2681
    %v2683 = vadd.f32 %v2682, 0.014752088
    %v2684 = vmul.f32 %v2668, %v2683
    %v2685 = vadd.f32 %v2684, 0.112945676
    %v2686 = vmul.f32 %v2668, %v2685
    %v2687 = vadd.f32 %v2686, 0.4994258
    %v2688 = vmul.f32 %v2668, %v2687
    %v2689 = vadd.f32 %v2688, 1.0
    %v2690 = vrcp.pop %v2689
    %v2691 = vmul.f32 %v2689, %v2690
    %v2692 = vsub.f32 1.0, %v2691
    %v2693 = vmul.f32 %v2690, %v2692
    %v2694 = vadd.f32 %v2690, %v2693
    %vm2695 = vweird.f32 %v2689
    %vm2696 = vweird.f32 %v2690
    %vm2697 = vmor %vm2695, %vm2696
    %v2698 = vsel %vm2697, %v2690, %v2694
    %v2699 = vand.u32 2147483647, %v2689
    %vm2700 = vcmp.eq.f32.partialorder %v2699, 8.507059e+37
    %v2701 = vand.u32 %v2689, 2147483648
    %v2702 = vor.u32 1.1754944e-38, %v2701
    %v2703 = vsel %vm2700, %v2702, %v2698
    %v2704 = vmul.f32 %v2679, %v2703
    %v2705 = vmin.f32 %v2704, 1.0
    %v2706 = vmax.f32 %v2705, -1.0
    %v2707 = vmul.f32 %v1864, %v1864
    %v2708 = vmin.f32 16.0, %v2707
    %v2709 = vmul.f32 %v2708, 2.1237322e-06
    %v2710 = vadd.f32 %v2709, 0.00028619796
    %v2711 = vmul.f32 %v2708, %v2710
    %v2712 = vadd.f32 %v2711, 0.0036580483
    %v2713 = vmul.f32 %v2708, %v2712
    %v2714 = vadd.f32 %v2713, 0.05243302
    %v2715 = vmul.f32 %v2708, %v2714
    %v2716 = vadd.f32 %v2715, 0.18741608
    %v2717 = vmul.f32 %v2708, %v2716
    %v2718 = vadd.f32 %v2717, 1.1283791
    %v2719 = vmul.f32 %v1864, %v2718
    %v2720 = vmul.f32 %v2708, 3.8918573e-05
    %v2721 = vadd.f32 %v2720, 0.001143296
    %v2722 = vmul.f32 %v2708, %v2721
    %v2723 = vadd.f32 %v2722, 0.014752088
    %v2724 = vmul.f32 %v2708, %v2723
    %v2725 = vadd.f32 %v2724, 0.112945676
    %v2726 = vmul.f32 %v2708, %v2725
    %v2727 = vadd.f32 %v2726, 0.4994258
    %v2728 = vmul.f32 %v2708, %v2727
    %v2729 = vadd.f32 %v2728, 1.0
    %v2730 = vrcp.pop %v2729
    %v2731 = vmul.f32 %v2729, %v2730
    %v2732 = vsub.f32 1.0, %v2731
    %v2733 = vmul.f32 %v2730, %v2732
    %v2734 = vadd.f32 %v2730, %v2733
    %vm2735 = vweird.f32 %v2729
    %vm2736 = vweird.f32 %v2730
    %vm2737 = vmor %vm2735, %vm2736
    %v2738 = vsel %vm2737, %v2730, %v2734
    %v2739 = vand.u32 2147483647, %v2729
    %vm2740 = vcmp.eq.f32.partialorder %v2739, 8.507059e+37
    %v2741 = vand.u32 %v2729, 2147483648
    %v2742 = vor.u32 1.1754944e-38, %v2741
    %v2743 = vsel %vm2740, %v2742, %v2738
    %v2744 = vmul.f32 %v2719, %v2743
    %v2745 = vmin.f32 %v2744, 1.0
    %v2746 = vmax.f32 %v2745, -1.0
    %v2747 = vmul.f32 %v1865, %v1865
    %v2748 = vmin.f32 16.0, %v2747
    %v2749 = vmul.f32 %v2748, 2.1237322e-06
    %v2750 = vadd.f32 %v2749, 0.00028619796
    %v2751 = vmul.f32 %v2748, %v2750
    %v2752 = vadd.f32 %v2751, 0.0036580483
    %v2753 = vmul.f32 %v2748, %v2752
    %v2754 = vadd.f32 %v2753, 0.05243302
    %v2755 = vmul.f32 %v2748, %v2754
    %v2756 = vadd.f32 %v2755, 0.18741608
    %v2757 = vmul.f32 %v2748, %v2756
    %v2758 = vadd.f32 %v2757, 1.1283791
    %v2759 = vmul.f32 %v1865, %v2758
    %v2760 = vmul.f32 %v2748, 3.8918573e-05
    %v2761 = vadd.f32 %v2760, 0.001143296
    %v2762 = vmul.f32 %v2748, %v2761
    %v2763 = vadd.f32 %v2762, 0.014752088
    %v2764 = vmul.f32 %v2748, %v2763
    %v2765 = vadd.f32 %v2764, 0.112945676
    %v2766 = vmul.f32 %v2748, %v2765
    %v2767 = vadd.f32 %v2766, 0.4994258
    %v2768 = vmul.f32 %v2748, %v2767
    %v2769 = vadd.f32 %v2768, 1.0
    %v2770 = vrcp.pop %v2769
    %v2771 = vmul.f32 %v2769, %v2770
    %v2772 = vsub.f32 1.0, %v2771
    %v2773 = vmul.f32 %v2770, %v2772
    %v2774 = vadd.f32 %v2770, %v2773
    %vm2775 = vweird.f32 %v2769
    %vm2776 = vweird.f32 %v2770
    %vm2777 = vmor %vm2775, %vm2776
    %v2778 = vsel %vm2777, %v2770, %v2774
    %v2779 = vand.u32 2147483647, %v2769
    %vm2780 = vcmp.eq.f32.partialorder %v2779, 8.507059e+37
    %v2781 = vand.u32 %v2769, 2147483648
    %v2782 = vor.u32 1.1754944e-38, %v2781
    %v2783 = vsel %vm2780, %v2782, %v2778
    %v2784 = vmul.f32 %v2759, %v2783
    %v2785 = vmin.f32 %v2784, 1.0
    %v2786 = vmax.f32 %v2785, -1.0
    %v2787 = vmul.f32 %v1866, %v1866
    %v2788 = vmin.f32 16.0, %v2787
    %v2789 = vmul.f32 %v2788, 2.1237322e-06
    %v2790 = vadd.f32 %v2789, 0.00028619796
    %v2791 = vmul.f32 %v2788, %v2790
    %v2792 = vadd.f32 %v2791, 0.0036580483
    %v2793 = vmul.f32 %v2788, %v2792
    %v2794 = vadd.f32 %v2793, 0.05243302
    %v2795 = vmul.f32 %v2788, %v2794
    %v2796 = vadd.f32 %v2795, 0.18741608
    %v2797 = vmul.f32 %v2788, %v2796
    %v2798 = vadd.f32 %v2797, 1.1283791
    %v2799 = vmul.f32 %v1866, %v2798
    %v2800 = vmul.f32 %v2788, 3.8918573e-05
    %v2801 = vadd.f32 %v2800, 0.001143296
    %v2802 = vmul.f32 %v2788, %v2801
    %v2803 = vadd.f32 %v2802, 0.014752088
    %v2804 = vmul.f32 %v2788, %v2803
    %v2805 = vadd.f32 %v2804, 0.112945676
    %v2806 = vmul.f32 %v2788, %v2805
    %v2807 = vadd.f32 %v2806, 0.4994258
    %v2808 = vmul.f32 %v2788, %v2807
    %v2809 = vadd.f32 %v2808, 1.0
    %v2810 = vrcp.pop %v2809
    %v2811 = vmul.f32 %v2809, %v2810
    %v2812 = vsub.f32 1.0, %v2811
    %v2813 = vmul.f32 %v2810, %v2812
    %v2814 = vadd.f32 %v2810, %v2813
    %vm2815 = vweird.f32 %v2809
    %vm2816 = vweird.f32 %v2810
    %vm2817 = vmor %vm2815, %vm2816
    %v2818 = vsel %vm2817, %v2810, %v2814
    %v2819 = vand.u32 2147483647, %v2809
    %vm2820 = vcmp.eq.f32.partialorder %v2819, 8.507059e+37
    %v2821 = vand.u32 %v2809, 2147483648
    %v2822 = vor.u32 1.1754944e-38, %v2821
    %v2823 = vsel %vm2820, %v2822, %v2818
    %v2824 = vmul.f32 %v2799, %v2823
    %v2825 = vmin.f32 %v2824, 1.0
    %v2826 = vmax.f32 %v2825, -1.0
    %v2827 = vadd.f32 %v1906, 1.0
    %v2828 = vadd.f32 %v1946, 1.0
    %v2829 = vadd.f32 %v1986, 1.0
    %v2830 = vadd.f32 %v2026, 1.0
    %v2831 = vadd.f32 %v2066, 1.0
    %v2832 = vadd.f32 %v2106, 1.0
    %v2833 = vadd.f32 %v2146, 1.0
    %v2834 = vadd.f32 %v2186, 1.0
    %v2835 = vadd.f32 %v2226, 1.0
    %v2836 = vadd.f32 %v2266, 1.0
    %v2837 = vadd.f32 %v2306, 1.0
    %v2838 = vadd.f32 %v2346, 1.0
    %v2839 = vadd.f32 %v2386, 1.0
    %v2840 = vadd.f32 %v2426, 1.0
    %v2841 = vadd.f32 %v2466, 1.0
    %v2842 = vadd.f32 %v2506, 1.0
    %v2843 = vadd.f32 %v2546, 1.0
    %v2844 = vadd.f32 %v2586, 1.0
    %v2845 = vadd.f32 %v2626, 1.0
    %v2846 = vadd.f32 %v2666, 1.0
    %v2847 = vadd.f32 %v2706, 1.0
    %v2848 = vadd.f32 %v2746, 1.0
    %v2849 = vadd.f32 %v2786, 1.0
    %v2850 = vadd.f32 %v2826, 1.0
    %v2851 = vmul.f32 %v1819, %v2827
    %v2852 = vmul.f32 %v1820, %v2828
    %v2853 = vmul.f32 %v1821, %v2829
    %v2854 = vmul.f32 %v1822, %v2830
    %v2855 = vmul.f32 %v1823, %v2831
    %v2856 = vmul.f32 %v1824, %v2832
    %v2857 = vmul.f32 %v1825, %v2833
    %v2858 = vmul.f32 %v1826, %v2834
    %v2859 = vmul.f32 %v1827, %v2835
    %v2860 = vmul.f32 %v1828, %v2836
    %v2861 = vmul.f32 %v1829, %v2837
    %v2862 = vmul.f32 %v1830, %v2838
    %v2863 = vmul.f32 %v1831, %v2839
    %v2864 = vmul.f32 %v1832, %v2840
    %v2865 = vmul.f32 %v1833, %v2841
    %v2866 = vmul.f32 %v1834, %v2842
    %v2867 = vmul.f32 %v1835, %v2843
    %v2868 = vmul.f32 %v1836, %v2844
    %v2869 = vmul.f32 %v1837, %v2845
    %v2870 = vmul.f32 %v1838, %v2846
    %v2871 = vmul.f32 %v1839, %v2847
    %v2872 = vmul.f32 %v1840, %v2848
    %v2873 = vmul.f32 %v1841, %v2849
    %v2874 = vmul.f32 %v1842, %v2850
    %v2875 = vpack.c.bf16 %v2851, %v2851
    %v2876 = vpack.c.bf16 %v2852, %v2852
    %v2877 = vpack.c.bf16 %v2853, %v2853
    %v2878 = vpack.c.bf16 %v2854, %v2854
    %v2879 = vpack.c.bf16 %v2855, %v2855
    %v2880 = vpack.c.bf16 %v2856, %v2856
    %v2881 = vpack.c.bf16 %v2857, %v2857
    %v2882 = vpack.c.bf16 %v2858, %v2858
    %v2883 = vpack.c.bf16 %v2859, %v2859
    %v2884 = vpack.c.bf16 %v2860, %v2860
    %v2885 = vpack.c.bf16 %v2861, %v2861
    %v2886 = vpack.c.bf16 %v2862, %v2862
    %v2887 = vpack.c.bf16 %v2863, %v2863
    %v2888 = vpack.c.bf16 %v2864, %v2864
    %v2889 = vpack.c.bf16 %v2865, %v2865
    %v2890 = vpack.c.bf16 %v2866, %v2866
    %v2891 = vpack.c.bf16 %v2867, %v2867
    %v2892 = vpack.c.bf16 %v2868, %v2868
    %v2893 = vpack.c.bf16 %v2869, %v2869
    %v2894 = vpack.c.bf16 %v2870, %v2870
    %v2895 = vpack.c.bf16 %v2871, %v2871
    %v2896 = vpack.c.bf16 %v2872, %v2872
    %v2897 = vpack.c.bf16 %v2873, %v2873
    %v2898 = vpack.c.bf16 %v2874, %v2874
    %v2899 = vld [vmem:[#allocation13] sm:$0xf]
    %v2900 = vld [vmem:[#allocation13 + $0x4] sm:$0xf]
    %v2901 = vld [vmem:[#allocation13 + $0x8] sm:$0xf]
    %v2902 = vld [vmem:[#allocation13 + $0xc] sm:$0xf]
    %v2903 = vld [vmem:[#allocation13 + $0x10] sm:$0xf]
    %v2904 = vld [vmem:[#allocation13 + $0x14] sm:$0xf]
    %v2905 = vld [vmem:[#allocation13 + $0x18] sm:$0xf]
    %v2906 = vld [vmem:[#allocation13 + $0x1c] sm:$0xf]
    %v2907 = vld [vmem:[#allocation13 + $0x20] sm:$0xf]
    %v2908 = vld [vmem:[#allocation13 + $0x24] sm:$0xf]
    %v2909 = vld [vmem:[#allocation13 + $0x28] sm:$0xf]
    %v2910 = vld [vmem:[#allocation13 + $0x2c] sm:$0xf]
    %v2911 = vld [vmem:[#allocation13 + $0x30] sm:$0xf]
    %v2912 = vld [vmem:[#allocation13 + $0x34] sm:$0xf]
    %v2913 = vld [vmem:[#allocation13 + $0x38] sm:$0xf]
    %v2914 = vld [vmem:[#allocation13 + $0x3c] sm:$0xf]
    %v2915 = vld [vmem:[#allocation13 + $0x40] sm:$0xf]
    %v2916 = vld [vmem:[#allocation13 + $0x44] sm:$0xf]
    %v2917 = vld [vmem:[#allocation13 + $0x48] sm:$0xf]
    %v2918 = vld [vmem:[#allocation13 + $0x4c] sm:$0xf]
    %v2919 = vld [vmem:[#allocation13 + $0x50] sm:$0xf]
    %v2920 = vld [vmem:[#allocation13 + $0x54] sm:$0xf]
    %v2921 = vld [vmem:[#allocation13 + $0x58] sm:$0xf]
    %v2922 = vld [vmem:[#allocation13 + $0x5c] sm:$0xf]
    %v2923 = vld [vmem:[#allocation13 + $0x60] sm:$0xf]
    %v2924 = vld [vmem:[#allocation13 + $0x64] sm:$0xf]
    %v2925 = vld [vmem:[#allocation13 + $0x68] sm:$0xf]
    %v2926 = vld [vmem:[#allocation13 + $0x6c] sm:$0xf]
    %v2927 = vld [vmem:[#allocation13 + $0x70] sm:$0xf]
    %v2928 = vld [vmem:[#allocation13 + $0x74] sm:$0xf]
    %v2929 = vld [vmem:[#allocation13 + $0x78] sm:$0xf]
    %v2930 = vld [vmem:[#allocation13 + $0x7c] sm:$0xf]
    %v2931 = vld [vmem:[#allocation13 + $0x80] sm:$0xf]
    %v2932 = vld [vmem:[#allocation13 + $0x84] sm:$0xf]
    %v2933 = vld [vmem:[#allocation13 + $0x88] sm:$0xf]
    %v2934 = vld [vmem:[#allocation13 + $0x8c] sm:$0xf]
    %v2935 = vld [vmem:[#allocation13 + $0x90] sm:$0xf]
    %v2936 = vld [vmem:[#allocation13 + $0x94] sm:$0xf]
    %v2937 = vld [vmem:[#allocation13 + $0x98] sm:$0xf]
    %v2938 = vld [vmem:[#allocation13 + $0x9c] sm:$0xf]
    %v2939 = vld [vmem:[#allocation13 + $0xa0] sm:$0xf]
    %v2940 = vld [vmem:[#allocation13 + $0xa4] sm:$0xf]
    %v2941 = vld [vmem:[#allocation13 + $0xa8] sm:$0xf]
    %v2942 = vld [vmem:[#allocation13 + $0xac] sm:$0xf]
    %v2943 = vld [vmem:[#allocation13 + $0xb0] sm:$0xf]
    %v2944 = vld [vmem:[#allocation13 + $0xb4] sm:$0xf]
    %v2945 = vld [vmem:[#allocation13 + $0xb8] sm:$0xf]
    %v2946 = vld [vmem:[#allocation13 + $0xbc] sm:$0xf]
    %v2947 = vld [vmem:[#allocation13 + $0xc0] sm:$0xf]
    %v2948 = vld [vmem:[#allocation13 + $0xc4] sm:$0xf]
    %v2949 = vld [vmem:[#allocation13 + $0xc8] sm:$0xf]
    %v2950 = vld [vmem:[#allocation13 + $0xcc] sm:$0xf]
    %v2951 = vld [vmem:[#allocation13 + $0xd0] sm:$0xf]
    %v2952 = vld [vmem:[#allocation13 + $0xd4] sm:$0xf]
    %v2953 = vld [vmem:[#allocation13 + $0xd8] sm:$0xf]
    %v2954 = vld [vmem:[#allocation13 + $0xdc] sm:$0xf]
    %v2955 = vld [vmem:[#allocation13 + $0xe0] sm:$0xf]
    %v2956 = vld [vmem:[#allocation13 + $0xe4] sm:$0xf]
    %v2957 = vld [vmem:[#allocation13 + $0xe8] sm:$0xf]
    %v2958 = vld [vmem:[#allocation13 + $0xec] sm:$0xf]
    %v2959 = vld [vmem:[#allocation13 + $0xf0] sm:$0xf]
    %v2960 = vld [vmem:[#allocation13 + $0xf4] sm:$0xf]
    %v2961 = vld [vmem:[#allocation13 + $0xf8] sm:$0xf]
    %v2962 = vld [vmem:[#allocation13 + $0xfc] sm:$0xf]
    %v2963 = vld [vmem:[#allocation13 + $0x100] sm:$0xf]
    %v2964 = vld [vmem:[#allocation13 + $0x104] sm:$0xf]
    %v2965 = vld [vmem:[#allocation13 + $0x108] sm:$0xf]
    %v2966 = vld [vmem:[#allocation13 + $0x10c] sm:$0xf]
    %v2967 = vld [vmem:[#allocation13 + $0x110] sm:$0xf]
    %v2968 = vld [vmem:[#allocation13 + $0x114] sm:$0xf]
    %v2969 = vld [vmem:[#allocation13 + $0x118] sm:$0xf]
    %v2970 = vld [vmem:[#allocation13 + $0x11c] sm:$0xf]
    %v2971 = vld [vmem:[#allocation13 + $0x120] sm:$0xf]
    %v2972 = vld [vmem:[#allocation13 + $0x124] sm:$0xf]
    %v2973 = vld [vmem:[#allocation13 + $0x128] sm:$0xf]
    %v2974 = vld [vmem:[#allocation13 + $0x12c] sm:$0xf]
    %v2975 = vld [vmem:[#allocation13 + $0x130] sm:$0xf]
    %v2976 = vld [vmem:[#allocation13 + $0x134] sm:$0xf]
    %v2977 = vld [vmem:[#allocation13 + $0x138] sm:$0xf]
    %v2978 = vld [vmem:[#allocation13 + $0x13c] sm:$0xf]
    %v2979 = vld [vmem:[#allocation13 + $0x140] sm:$0xf]
    %v2980 = vld [vmem:[#allocation13 + $0x144] sm:$0xf]
    %v2981 = vld [vmem:[#allocation13 + $0x148] sm:$0xf]
    %v2982 = vld [vmem:[#allocation13 + $0x14c] sm:$0xf]
    %v2983 = vld [vmem:[#allocation13 + $0x150] sm:$0xf]
    %v2984 = vld [vmem:[#allocation13 + $0x154] sm:$0xf]
    %v2985 = vld [vmem:[#allocation13 + $0x158] sm:$0xf]
    %v2986 = vld [vmem:[#allocation13 + $0x15c] sm:$0xf]
    %v2987 = vld [vmem:[#allocation13 + $0x160] sm:$0xf]
    %v2988 = vld [vmem:[#allocation13 + $0x164] sm:$0xf]
    %v2989 = vld [vmem:[#allocation13 + $0x168] sm:$0xf]
    %v2990 = vld [vmem:[#allocation13 + $0x16c] sm:$0xf]
    %v2991 = vld [vmem:[#allocation13 + $0x170] sm:$0xf]
    %v2992 = vld [vmem:[#allocation13 + $0x174] sm:$0xf]
    %v2993 = vld [vmem:[#allocation13 + $0x178] sm:$0xf]
    %v2994 = vld [vmem:[#allocation13 + $0x17c] sm:$0xf]
    %v2995 = vld [vmem:[#allocation13 + $0x180] sm:$0xf]
    %v2996 = vld [vmem:[#allocation13 + $0x184] sm:$0xf]
    %v2997 = vld [vmem:[#allocation13 + $0x188] sm:$0xf]
    %v2998 = vld [vmem:[#allocation13 + $0x18c] sm:$0xf]
    %v2999 = vld [vmem:[#allocation13 + $0x190] sm:$0xf]
    %v3000 = vld [vmem:[#allocation13 + $0x194] sm:$0xf]
    %v3001 = vld [vmem:[#allocation13 + $0x198] sm:$0xf]
    %v3002 = vld [vmem:[#allocation13 + $0x19c] sm:$0xf]
    %v3003 = vld [vmem:[#allocation13 + $0x1a0] sm:$0xf]
    %v3004 = vld [vmem:[#allocation13 + $0x1a4] sm:$0xf]
    %v3005 = vld [vmem:[#allocation13 + $0x1a8] sm:$0xf]
    %v3006 = vld [vmem:[#allocation13 + $0x1ac] sm:$0xf]
    %v3007 = vld [vmem:[#allocation13 + $0x1b0] sm:$0xf]
    %v3008 = vld [vmem:[#allocation13 + $0x1b4] sm:$0xf]
    %v3009 = vld [vmem:[#allocation13 + $0x1b8] sm:$0xf]
    %v3010 = vld [vmem:[#allocation13 + $0x1bc] sm:$0xf]
    %v3011 = vld [vmem:[#allocation13 + $0x1c0] sm:$0xf]
    %v3012 = vld [vmem:[#allocation13 + $0x1c4] sm:$0xf]
    %v3013 = vld [vmem:[#allocation13 + $0x1c8] sm:$0xf]
    %v3014 = vld [vmem:[#allocation13 + $0x1cc] sm:$0xf]
    %v3015 = vld [vmem:[#allocation13 + $0x1d0] sm:$0xf]
    %v3016 = vld [vmem:[#allocation13 + $0x1d4] sm:$0xf]
    %v3017 = vld [vmem:[#allocation13 + $0x1d8] sm:$0xf]
    %v3018 = vld [vmem:[#allocation13 + $0x1dc] sm:$0xf]
    %v3019 = vld [vmem:[#allocation13 + $0x1e0] sm:$0xf]
    %v3020 = vld [vmem:[#allocation13 + $0x1e4] sm:$0xf]
    %v3021 = vld [vmem:[#allocation13 + $0x1e8] sm:$0xf]
    %v3022 = vld [vmem:[#allocation13 + $0x1ec] sm:$0xf]
    %v3023 = vld [vmem:[#allocation13 + $0x1f0] sm:$0xf]
    %v3024 = vld [vmem:[#allocation13 + $0x1f4] sm:$0xf]
    %v3025 = vld [vmem:[#allocation13 + $0x1f8] sm:$0xf]
    %v3026 = vld [vmem:[#allocation13 + $0x1fc] sm:$0xf]
    %v3027 = vld [vmem:[#allocation13 + $0x200] sm:$0xf]
    %v3028 = vld [vmem:[#allocation13 + $0x204] sm:$0xf]
    %v3029 = vld [vmem:[#allocation13 + $0x208] sm:$0xf]
    %v3030 = vld [vmem:[#allocation13 + $0x20c] sm:$0xf]
    %v3031 = vld [vmem:[#allocation13 + $0x210] sm:$0xf]
    %v3032 = vld [vmem:[#allocation13 + $0x214] sm:$0xf]
    %v3033 = vld [vmem:[#allocation13 + $0x218] sm:$0xf]
    %v3034 = vld [vmem:[#allocation13 + $0x21c] sm:$0xf]
    %v3035 = vld [vmem:[#allocation13 + $0x220] sm:$0xf]
    %v3036 = vld [vmem:[#allocation13 + $0x224] sm:$0xf]
    %v3037 = vld [vmem:[#allocation13 + $0x228] sm:$0xf]
    %v3038 = vld [vmem:[#allocation13 + $0x22c] sm:$0xf]
    %v3039 = vld [vmem:[#allocation13 + $0x230] sm:$0xf]
    %v3040 = vld [vmem:[#allocation13 + $0x234] sm:$0xf]
    %v3041 = vld [vmem:[#allocation13 + $0x238] sm:$0xf]
    %v3042 = vld [vmem:[#allocation13 + $0x23c] sm:$0xf]
    %v3043 = vld [vmem:[#allocation13 + $0x240] sm:$0xf]
    %v3044 = vld [vmem:[#allocation13 + $0x244] sm:$0xf]
    %v3045 = vld [vmem:[#allocation13 + $0x248] sm:$0xf]
    %v3046 = vld [vmem:[#allocation13 + $0x24c] sm:$0xf]
    %v3047 = vld [vmem:[#allocation13 + $0x250] sm:$0xf]
    %v3048 = vld [vmem:[#allocation13 + $0x254] sm:$0xf]
    %v3049 = vld [vmem:[#allocation13 + $0x258] sm:$0xf]
    %v3050 = vld [vmem:[#allocation13 + $0x25c] sm:$0xf]
    %v3051 = vld [vmem:[#allocation13 + $0x260] sm:$0xf]
    %v3052 = vld [vmem:[#allocation13 + $0x264] sm:$0xf]
    %v3053 = vld [vmem:[#allocation13 + $0x268] sm:$0xf]
    %v3054 = vld [vmem:[#allocation13 + $0x26c] sm:$0xf]
    %v3055 = vld [vmem:[#allocation13 + $0x270] sm:$0xf]
    %v3056 = vld [vmem:[#allocation13 + $0x274] sm:$0xf]
    %v3057 = vld [vmem:[#allocation13 + $0x278] sm:$0xf]
    %v3058 = vld [vmem:[#allocation13 + $0x27c] sm:$0xf]
    %v3059 = vld [vmem:[#allocation13 + $0x280] sm:$0xf]
    %v3060 = vld [vmem:[#allocation13 + $0x284] sm:$0xf]
    %v3061 = vld [vmem:[#allocation13 + $0x288] sm:$0xf]
    %v3062 = vld [vmem:[#allocation13 + $0x28c] sm:$0xf]
    %v3063 = vld [vmem:[#allocation13 + $0x290] sm:$0xf]
    %v3064 = vld [vmem:[#allocation13 + $0x294] sm:$0xf]
    %v3065 = vld [vmem:[#allocation13 + $0x298] sm:$0xf]
    %v3066 = vld [vmem:[#allocation13 + $0x29c] sm:$0xf]
    %v3067 = vld [vmem:[#allocation13 + $0x2a0] sm:$0xf]
    %v3068 = vld [vmem:[#allocation13 + $0x2a4] sm:$0xf]
    %v3069 = vld [vmem:[#allocation13 + $0x2a8] sm:$0xf]
    %v3070 = vld [vmem:[#allocation13 + $0x2ac] sm:$0xf]
    %v3071 = vld [vmem:[#allocation13 + $0x2b0] sm:$0xf]
    %v3072 = vld [vmem:[#allocation13 + $0x2b4] sm:$0xf]
    %v3073 = vld [vmem:[#allocation13 + $0x2b8] sm:$0xf]
    %v3074 = vld [vmem:[#allocation13 + $0x2bc] sm:$0xf]
    %v3075 = vld [vmem:[#allocation13 + $0x2c0] sm:$0xf]
    %v3076 = vld [vmem:[#allocation13 + $0x2c4] sm:$0xf]
    %v3077 = vld [vmem:[#allocation13 + $0x2c8] sm:$0xf]
    %v3078 = vld [vmem:[#allocation13 + $0x2cc] sm:$0xf]
    %v3079 = vld [vmem:[#allocation13 + $0x2d0] sm:$0xf]
    %v3080 = vld [vmem:[#allocation13 + $0x2d4] sm:$0xf]
    %v3081 = vld [vmem:[#allocation13 + $0x2d8] sm:$0xf]
    %v3082 = vld [vmem:[#allocation13 + $0x2dc] sm:$0xf]
    %v3083 = vld [vmem:[#allocation13 + $0x2e0] sm:$0xf]
    %v3084 = vld [vmem:[#allocation13 + $0x2e4] sm:$0xf]
    %v3085 = vld [vmem:[#allocation13 + $0x2e8] sm:$0xf]
    %v3086 = vld [vmem:[#allocation13 + $0x2ec] sm:$0xf]
    %v3087 = vld [vmem:[#allocation13 + $0x2f0] sm:$0xf]
    %v3088 = vld [vmem:[#allocation13 + $0x2f4] sm:$0xf]
    %v3089 = vld [vmem:[#allocation13 + $0x2f8] sm:$0xf]
    %v3090 = vld [vmem:[#allocation13 + $0x2fc] sm:$0xf]
    %v3091 = vld [vmem:[#allocation13 + $0x300] sm:$0xf]
    %v3092 = vld [vmem:[#allocation13 + $0x304] sm:$0xf]
    %v3093 = vld [vmem:[#allocation13 + $0x308] sm:$0xf]
    %v3094 = vld [vmem:[#allocation13 + $0x30c] sm:$0xf]
    %v3095 = vld [vmem:[#allocation13 + $0x310] sm:$0xf]
    %v3096 = vld [vmem:[#allocation13 + $0x314] sm:$0xf]
    %v3097 = vld [vmem:[#allocation13 + $0x318] sm:$0xf]
    %v3098 = vld [vmem:[#allocation13 + $0x31c] sm:$0xf]
    %v3099 = vld [vmem:[#allocation13 + $0x320] sm:$0xf]
    %v3100 = vld [vmem:[#allocation13 + $0x324] sm:$0xf]
    %v3101 = vld [vmem:[#allocation13 + $0x328] sm:$0xf]
    %v3102 = vld [vmem:[#allocation13 + $0x32c] sm:$0xf]
    %v3103 = vld [vmem:[#allocation13 + $0x330] sm:$0xf]
    %v3104 = vld [vmem:[#allocation13 + $0x334] sm:$0xf]
    %v3105 = vld [vmem:[#allocation13 + $0x338] sm:$0xf]
    %v3106 = vld [vmem:[#allocation13 + $0x33c] sm:$0xf]
    %v3107 = vld [vmem:[#allocation13 + $0x340] sm:$0xf]
    %v3108 = vld [vmem:[#allocation13 + $0x344] sm:$0xf]
    %v3109 = vld [vmem:[#allocation13 + $0x348] sm:$0xf]
    %v3110 = vld [vmem:[#allocation13 + $0x34c] sm:$0xf]
    %v3111 = vld [vmem:[#allocation13 + $0x350] sm:$0xf]
    %v3112 = vld [vmem:[#allocation13 + $0x354] sm:$0xf]
    %v3113 = vld [vmem:[#allocation13 + $0x358] sm:$0xf]
    %v3114 = vld [vmem:[#allocation13 + $0x35c] sm:$0xf]
    %v3115 = vld [vmem:[#allocation13 + $0x360] sm:$0xf]
    %v3116 = vld [vmem:[#allocation13 + $0x364] sm:$0xf]
    %v3117 = vld [vmem:[#allocation13 + $0x368] sm:$0xf]
    %v3118 = vld [vmem:[#allocation13 + $0x36c] sm:$0xf]
    %v3119 = vld [vmem:[#allocation13 + $0x370] sm:$0xf]
    %v3120 = vld [vmem:[#allocation13 + $0x374] sm:$0xf]
    %v3121 = vld [vmem:[#allocation13 + $0x378] sm:$0xf]
    %v3122 = vld [vmem:[#allocation13 + $0x37c] sm:$0xf]
    %v3123 = vld [vmem:[#allocation13 + $0x380] sm:$0xf]
    %v3124 = vld [vmem:[#allocation13 + $0x384] sm:$0xf]
    %v3125 = vld [vmem:[#allocation13 + $0x388] sm:$0xf]
    %v3126 = vld [vmem:[#allocation13 + $0x38c] sm:$0xf]
    %v3127 = vld [vmem:[#allocation13 + $0x390] sm:$0xf]
    %v3128 = vld [vmem:[#allocation13 + $0x394] sm:$0xf]
    %v3129 = vld [vmem:[#allocation13 + $0x398] sm:$0xf]
    %v3130 = vld [vmem:[#allocation13 + $0x39c] sm:$0xf]
    %v3131 = vld [vmem:[#allocation13 + $0x3a0] sm:$0xf]
    %v3132 = vld [vmem:[#allocation13 + $0x3a4] sm:$0xf]
    %v3133 = vld [vmem:[#allocation13 + $0x3a8] sm:$0xf]
    %v3134 = vld [vmem:[#allocation13 + $0x3ac] sm:$0xf]
    %v3135 = vld [vmem:[#allocation13 + $0x3b0] sm:$0xf]
    %v3136 = vld [vmem:[#allocation13 + $0x3b4] sm:$0xf]
    %v3137 = vld [vmem:[#allocation13 + $0x3b8] sm:$0xf]
    %v3138 = vld [vmem:[#allocation13 + $0x3bc] sm:$0xf]
    %v3139 = vld [vmem:[#allocation13 + $0x3c0] sm:$0xf]
    %v3140 = vld [vmem:[#allocation13 + $0x3c4] sm:$0xf]
    %v3141 = vld [vmem:[#allocation13 + $0x3c8] sm:$0xf]
    %v3142 = vld [vmem:[#allocation13 + $0x3cc] sm:$0xf]
    %v3143 = vld [vmem:[#allocation13 + $0x3d0] sm:$0xf]
    %v3144 = vld [vmem:[#allocation13 + $0x3d4] sm:$0xf]
    %v3145 = vld [vmem:[#allocation13 + $0x3d8] sm:$0xf]
    %v3146 = vld [vmem:[#allocation13 + $0x3dc] sm:$0xf]
    %v3147 = vld [vmem:[#allocation13 + $0x3e0] sm:$0xf]
    %v3148 = vld [vmem:[#allocation13 + $0x3e4] sm:$0xf]
    %v3149 = vld [vmem:[#allocation13 + $0x3e8] sm:$0xf]
    %v3150 = vld [vmem:[#allocation13 + $0x3ec] sm:$0xf]
    %v3151 = vld [vmem:[#allocation13 + $0x3f0] sm:$0xf]
    %v3152 = vld [vmem:[#allocation13 + $0x3f4] sm:$0xf]
    %v3153 = vld [vmem:[#allocation13 + $0x3f8] sm:$0xf]
    %v3154 = vld [vmem:[#allocation13 + $0x3fc] sm:$0xf]
    %v3155 = vld [vmem:[#allocation13 + $0x400] sm:$0xf]
    %v3156 = vld [vmem:[#allocation13 + $0x404] sm:$0xf]
    %v3157 = vld [vmem:[#allocation13 + $0x408] sm:$0xf]
    %v3158 = vld [vmem:[#allocation13 + $0x40c] sm:$0xf]
    %v3159 = vld [vmem:[#allocation13 + $0x410] sm:$0xf]
    %v3160 = vld [vmem:[#allocation13 + $0x414] sm:$0xf]
    %v3161 = vld [vmem:[#allocation13 + $0x418] sm:$0xf]
    %v3162 = vld [vmem:[#allocation13 + $0x41c] sm:$0xf]
    %v3163 = vld [vmem:[#allocation13 + $0x420] sm:$0xf]
    %v3164 = vld [vmem:[#allocation13 + $0x424] sm:$0xf]
    %v3165 = vld [vmem:[#allocation13 + $0x428] sm:$0xf]
    %v3166 = vld [vmem:[#allocation13 + $0x42c] sm:$0xf]
    %v3167 = vld [vmem:[#allocation13 + $0x430] sm:$0xf]
    %v3168 = vld [vmem:[#allocation13 + $0x434] sm:$0xf]
    %v3169 = vld [vmem:[#allocation13 + $0x438] sm:$0xf]
    %v3170 = vld [vmem:[#allocation13 + $0x43c] sm:$0xf]
    %v3171 = vld [vmem:[#allocation13 + $0x440] sm:$0xf]
    %v3172 = vld [vmem:[#allocation13 + $0x444] sm:$0xf]
    %v3173 = vld [vmem:[#allocation13 + $0x448] sm:$0xf]
    %v3174 = vld [vmem:[#allocation13 + $0x44c] sm:$0xf]
    %v3175 = vld [vmem:[#allocation13 + $0x450] sm:$0xf]
    %v3176 = vld [vmem:[#allocation13 + $0x454] sm:$0xf]
    %v3177 = vld [vmem:[#allocation13 + $0x458] sm:$0xf]
    %v3178 = vld [vmem:[#allocation13 + $0x45c] sm:$0xf]
    %v3179 = vld [vmem:[#allocation13 + $0x460] sm:$0xf]
    %v3180 = vld [vmem:[#allocation13 + $0x464] sm:$0xf]
    %v3181 = vld [vmem:[#allocation13 + $0x468] sm:$0xf]
    %v3182 = vld [vmem:[#allocation13 + $0x46c] sm:$0xf]
    %v3183 = vld [vmem:[#allocation13 + $0x470] sm:$0xf]
    %v3184 = vld [vmem:[#allocation13 + $0x474] sm:$0xf]
    %v3185 = vld [vmem:[#allocation13 + $0x478] sm:$0xf]
    %v3186 = vld [vmem:[#allocation13 + $0x47c] sm:$0xf]
    %v3187 = vld [vmem:[#allocation13 + $0x480] sm:$0xf]
    %v3188 = vld [vmem:[#allocation13 + $0x484] sm:$0xf]
    %v3189 = vld [vmem:[#allocation13 + $0x488] sm:$0xf]
    %v3190 = vld [vmem:[#allocation13 + $0x48c] sm:$0xf]
    %v3191 = vld [vmem:[#allocation13 + $0x490] sm:$0xf]
    %v3192 = vld [vmem:[#allocation13 + $0x494] sm:$0xf]
    %v3193 = vld [vmem:[#allocation13 + $0x498] sm:$0xf]
    %v3194 = vld [vmem:[#allocation13 + $0x49c] sm:$0xf]
    %v3195 = vld [vmem:[#allocation13 + $0x4a0] sm:$0xf]
    %v3196 = vld [vmem:[#allocation13 + $0x4a4] sm:$0xf]
    %v3197 = vld [vmem:[#allocation13 + $0x4a8] sm:$0xf]
    %v3198 = vld [vmem:[#allocation13 + $0x4ac] sm:$0xf]
    %v3199 = vld [vmem:[#allocation13 + $0x4b0] sm:$0xf]
    %v3200 = vld [vmem:[#allocation13 + $0x4b4] sm:$0xf]
    %v3201 = vld [vmem:[#allocation13 + $0x4b8] sm:$0xf]
    %v3202 = vld [vmem:[#allocation13 + $0x4bc] sm:$0xf]
    %v3203 = vld [vmem:[#allocation13 + $0x4c0] sm:$0xf]
    %v3204 = vld [vmem:[#allocation13 + $0x4c4] sm:$0xf]
    %v3205 = vld [vmem:[#allocation13 + $0x4c8] sm:$0xf]
    %v3206 = vld [vmem:[#allocation13 + $0x4cc] sm:$0xf]
    %v3207 = vld [vmem:[#allocation13 + $0x4d0] sm:$0xf]
    %v3208 = vld [vmem:[#allocation13 + $0x4d4] sm:$0xf]
    %v3209 = vld [vmem:[#allocation13 + $0x4d8] sm:$0xf]
    %v3210 = vld [vmem:[#allocation13 + $0x4dc] sm:$0xf]
    %v3211 = vld [vmem:[#allocation13 + $0x4e0] sm:$0xf]
    %v3212 = vld [vmem:[#allocation13 + $0x4e4] sm:$0xf]
    %v3213 = vld [vmem:[#allocation13 + $0x4e8] sm:$0xf]
    %v3214 = vld [vmem:[#allocation13 + $0x4ec] sm:$0xf]
    %v3215 = vld [vmem:[#allocation13 + $0x4f0] sm:$0xf]
    %v3216 = vld [vmem:[#allocation13 + $0x4f4] sm:$0xf]
    %v3217 = vld [vmem:[#allocation13 + $0x4f8] sm:$0xf]
    %v3218 = vld [vmem:[#allocation13 + $0x4fc] sm:$0xf]
    %v3219 = vld [vmem:[#allocation13 + $0x500] sm:$0xf]
    %v3220 = vld [vmem:[#allocation13 + $0x504] sm:$0xf]
    %v3221 = vld [vmem:[#allocation13 + $0x508] sm:$0xf]
    %v3222 = vld [vmem:[#allocation13 + $0x50c] sm:$0xf]
    %v3223 = vld [vmem:[#allocation13 + $0x510] sm:$0xf]
    %v3224 = vld [vmem:[#allocation13 + $0x514] sm:$0xf]
    %v3225 = vld [vmem:[#allocation13 + $0x518] sm:$0xf]
    %v3226 = vld [vmem:[#allocation13 + $0x51c] sm:$0xf]
    %v3227 = vld [vmem:[#allocation13 + $0x520] sm:$0xf]
    %v3228 = vld [vmem:[#allocation13 + $0x524] sm:$0xf]
    %v3229 = vld [vmem:[#allocation13 + $0x528] sm:$0xf]
    %v3230 = vld [vmem:[#allocation13 + $0x52c] sm:$0xf]
    %v3231 = vld [vmem:[#allocation13 + $0x530] sm:$0xf]
    %v3232 = vld [vmem:[#allocation13 + $0x534] sm:$0xf]
    %v3233 = vld [vmem:[#allocation13 + $0x538] sm:$0xf]
    %v3234 = vld [vmem:[#allocation13 + $0x53c] sm:$0xf]
    %v3235 = vld [vmem:[#allocation13 + $0x540] sm:$0xf]
    %v3236 = vld [vmem:[#allocation13 + $0x544] sm:$0xf]
    %v3237 = vld [vmem:[#allocation13 + $0x548] sm:$0xf]
    %v3238 = vld [vmem:[#allocation13 + $0x54c] sm:$0xf]
    %v3239 = vld [vmem:[#allocation13 + $0x550] sm:$0xf]
    %v3240 = vld [vmem:[#allocation13 + $0x554] sm:$0xf]
    %v3241 = vld [vmem:[#allocation13 + $0x558] sm:$0xf]
    %v3242 = vld [vmem:[#allocation13 + $0x55c] sm:$0xf]
    %v3243 = vld [vmem:[#allocation13 + $0x560] sm:$0xf]
    %v3244 = vld [vmem:[#allocation13 + $0x564] sm:$0xf]
    %v3245 = vld [vmem:[#allocation13 + $0x568] sm:$0xf]
    %v3246 = vld [vmem:[#allocation13 + $0x56c] sm:$0xf]
    %v3247 = vld [vmem:[#allocation13 + $0x570] sm:$0xf]
    %v3248 = vld [vmem:[#allocation13 + $0x574] sm:$0xf]
    %v3249 = vld [vmem:[#allocation13 + $0x578] sm:$0xf]
    %v3250 = vld [vmem:[#allocation13 + $0x57c] sm:$0xf]
    %v3251 = vld [vmem:[#allocation13 + $0x580] sm:$0xf]
    %v3252 = vld [vmem:[#allocation13 + $0x584] sm:$0xf]
    %v3253 = vld [vmem:[#allocation13 + $0x588] sm:$0xf]
    %v3254 = vld [vmem:[#allocation13 + $0x58c] sm:$0xf]
    %v3255 = vld [vmem:[#allocation13 + $0x590] sm:$0xf]
    %v3256 = vld [vmem:[#allocation13 + $0x594] sm:$0xf]
    %v3257 = vld [vmem:[#allocation13 + $0x598] sm:$0xf]
    %v3258 = vld [vmem:[#allocation13 + $0x59c] sm:$0xf]
    %v3259 = vld [vmem:[#allocation13 + $0x5a0] sm:$0xf]
    %v3260 = vld [vmem:[#allocation13 + $0x5a4] sm:$0xf]
    %v3261 = vld [vmem:[#allocation13 + $0x5a8] sm:$0xf]
    %v3262 = vld [vmem:[#allocation13 + $0x5ac] sm:$0xf]
    %v3263 = vld [vmem:[#allocation13 + $0x5b0] sm:$0xf]
    %v3264 = vld [vmem:[#allocation13 + $0x5b4] sm:$0xf]
    %v3265 = vld [vmem:[#allocation13 + $0x5b8] sm:$0xf]
    %v3266 = vld [vmem:[#allocation13 + $0x5bc] sm:$0xf]
    %v3267 = vld [vmem:[#allocation13 + $0x5c0] sm:$0xf]
    %v3268 = vld [vmem:[#allocation13 + $0x5c4] sm:$0xf]
    %v3269 = vld [vmem:[#allocation13 + $0x5c8] sm:$0xf]
    %v3270 = vld [vmem:[#allocation13 + $0x5cc] sm:$0xf]
    %v3271 = vld [vmem:[#allocation13 + $0x5d0] sm:$0xf]
    %v3272 = vld [vmem:[#allocation13 + $0x5d4] sm:$0xf]
    %v3273 = vld [vmem:[#allocation13 + $0x5d8] sm:$0xf]
    %v3274 = vld [vmem:[#allocation13 + $0x5dc] sm:$0xf]
    %v3275 = vld [vmem:[#allocation13 + $0x5e0] sm:$0xf]
    %v3276 = vld [vmem:[#allocation13 + $0x5e4] sm:$0xf]
    %v3277 = vld [vmem:[#allocation13 + $0x5e8] sm:$0xf]
    %v3278 = vld [vmem:[#allocation13 + $0x5ec] sm:$0xf]
    %v3279 = vld [vmem:[#allocation13 + $0x5f0] sm:$0xf]
    %v3280 = vld [vmem:[#allocation13 + $0x5f4] sm:$0xf]
    %v3281 = vld [vmem:[#allocation13 + $0x5f8] sm:$0xf]
    %v3282 = vld [vmem:[#allocation13 + $0x5fc] sm:$0xf]
    %v3283 = vld [vmem:[%s7] sm:$0x1]
    %v3285 = vperm.slane %v3283, 0
    %v3671 = vunpack.c.l.b16 %v2899
    %v3672 = vunpack.c.l.b16 %v2900
    %v3673 = vunpack.c.l.b16 %v2901
    %v3674 = vunpack.c.l.b16 %v2902
    %v3675 = vunpack.c.l.b16 %v2903
    %v3676 = vunpack.c.l.b16 %v2904
    %v3677 = vunpack.c.l.b16 %v2905
    %v3678 = vunpack.c.l.b16 %v2906
    %v3679 = vunpack.c.l.b16 %v2907
    %v3680 = vunpack.c.l.b16 %v2908
    %v3681 = vunpack.c.l.b16 %v2909
    %v3682 = vunpack.c.l.b16 %v2910
    %v3683 = vunpack.c.l.b16 %v2911
    %v3684 = vunpack.c.l.b16 %v2912
    %v3685 = vunpack.c.l.b16 %v2913
    %v3686 = vunpack.c.l.b16 %v2914
    %v3687 = vunpack.c.l.b16 %v2915
    %v3688 = vunpack.c.l.b16 %v2916
    %v3689 = vunpack.c.l.b16 %v2917
    %v3690 = vunpack.c.l.b16 %v2918
    %v3691 = vunpack.c.l.b16 %v2919
    %v3692 = vunpack.c.l.b16 %v2920
    %v3693 = vunpack.c.l.b16 %v2921
    %v3694 = vunpack.c.l.b16 %v2922
    %v3695 = vunpack.c.l.b16 %v2923
    %v3696 = vunpack.c.l.b16 %v2924
    %v3697 = vunpack.c.l.b16 %v2925
    %v3698 = vunpack.c.l.b16 %v2926
    %v3699 = vunpack.c.l.b16 %v2927
    %v3700 = vunpack.c.l.b16 %v2928
    %v3701 = vunpack.c.l.b16 %v2929
    %v3702 = vunpack.c.l.b16 %v2930
    %v3703 = vunpack.c.l.b16 %v2931
    %v3704 = vunpack.c.l.b16 %v2932
    %v3705 = vunpack.c.l.b16 %v2933
    %v3706 = vunpack.c.l.b16 %v2934
    %v3707 = vunpack.c.l.b16 %v2935
    %v3708 = vunpack.c.l.b16 %v2936
    %v3709 = vunpack.c.l.b16 %v2937
    %v3710 = vunpack.c.l.b16 %v2938
    %v3711 = vunpack.c.l.b16 %v2939
    %v3712 = vunpack.c.l.b16 %v2940
    %v3713 = vunpack.c.l.b16 %v2941
    %v3714 = vunpack.c.l.b16 %v2942
    %v3715 = vunpack.c.l.b16 %v2943
    %v3716 = vunpack.c.l.b16 %v2944
    %v3717 = vunpack.c.l.b16 %v2945
    %v3718 = vunpack.c.l.b16 %v2946
    %v3719 = vunpack.c.l.b16 %v2947
    %v3720 = vunpack.c.l.b16 %v2948
    %v3721 = vunpack.c.l.b16 %v2949
    %v3722 = vunpack.c.l.b16 %v2950
    %v3723 = vunpack.c.l.b16 %v2951
    %v3724 = vunpack.c.l.b16 %v2952
    %v3725 = vunpack.c.l.b16 %v2953
    %v3726 = vunpack.c.l.b16 %v2954
    %v3727 = vunpack.c.l.b16 %v2955
    %v3728 = vunpack.c.l.b16 %v2956
    %v3729 = vunpack.c.l.b16 %v2957
    %v3730 = vunpack.c.l.b16 %v2958
    %v3731 = vunpack.c.l.b16 %v2959
    %v3732 = vunpack.c.l.b16 %v2960
    %v3733 = vunpack.c.l.b16 %v2961
    %v3734 = vunpack.c.l.b16 %v2962
    %v3735 = vunpack.c.l.b16 %v2963
    %v3736 = vunpack.c.l.b16 %v2964
    %v3737 = vunpack.c.l.b16 %v2965
    %v3738 = vunpack.c.l.b16 %v2966
    %v3739 = vunpack.c.l.b16 %v2967
    %v3740 = vunpack.c.l.b16 %v2968
    %v3741 = vunpack.c.l.b16 %v2969
    %v3742 = vunpack.c.l.b16 %v2970
    %v3743 = vunpack.c.l.b16 %v2971
    %v3744 = vunpack.c.l.b16 %v2972
    %v3745 = vunpack.c.l.b16 %v2973
    %v3746 = vunpack.c.l.b16 %v2974
    %v3747 = vunpack.c.l.b16 %v2975
    %v3748 = vunpack.c.l.b16 %v2976
    %v3749 = vunpack.c.l.b16 %v2977
    %v3750 = vunpack.c.l.b16 %v2978
    %v3751 = vunpack.c.l.b16 %v2979
    %v3752 = vunpack.c.l.b16 %v2980
    %v3753 = vunpack.c.l.b16 %v2981
    %v3754 = vunpack.c.l.b16 %v2982
    %v3755 = vunpack.c.l.b16 %v2983
    %v3756 = vunpack.c.l.b16 %v2984
    %v3757 = vunpack.c.l.b16 %v2985
    %v3758 = vunpack.c.l.b16 %v2986
    %v3759 = vunpack.c.l.b16 %v2987
    %v3760 = vunpack.c.l.b16 %v2988
    %v3761 = vunpack.c.l.b16 %v2989
    %v3762 = vunpack.c.l.b16 %v2990
    %v3763 = vunpack.c.l.b16 %v2991
    %v3764 = vunpack.c.l.b16 %v2992
    %v3765 = vunpack.c.l.b16 %v2993
    %v3766 = vunpack.c.l.b16 %v2994
    %v3767 = vunpack.c.l.b16 %v2995
    %v3768 = vunpack.c.l.b16 %v2996
    %v3769 = vunpack.c.l.b16 %v2997
    %v3770 = vunpack.c.l.b16 %v2998
    %v3771 = vunpack.c.l.b16 %v2999
    %v3772 = vunpack.c.l.b16 %v3000
    %v3773 = vunpack.c.l.b16 %v3001
    %v3774 = vunpack.c.l.b16 %v3002
    %v3775 = vunpack.c.l.b16 %v3003
    %v3776 = vunpack.c.l.b16 %v3004
    %v3777 = vunpack.c.l.b16 %v3005
    %v3778 = vunpack.c.l.b16 %v3006
    %v3779 = vunpack.c.l.b16 %v3007
    %v3780 = vunpack.c.l.b16 %v3008
    %v3781 = vunpack.c.l.b16 %v3009
    %v3782 = vunpack.c.l.b16 %v3010
    %v3783 = vunpack.c.l.b16 %v3011
    %v3784 = vunpack.c.l.b16 %v3012
    %v3785 = vunpack.c.l.b16 %v3013
    %v3786 = vunpack.c.l.b16 %v3014
    %v3787 = vunpack.c.l.b16 %v3015
    %v3788 = vunpack.c.l.b16 %v3016
    %v3789 = vunpack.c.l.b16 %v3017
    %v3790 = vunpack.c.l.b16 %v3018
    %v3791 = vunpack.c.l.b16 %v3019
    %v3792 = vunpack.c.l.b16 %v3020
    %v3793 = vunpack.c.l.b16 %v3021
    %v3794 = vunpack.c.l.b16 %v3022
    %v3795 = vunpack.c.l.b16 %v3023
    %v3796 = vunpack.c.l.b16 %v3024
    %v3797 = vunpack.c.l.b16 %v3025
    %v3798 = vunpack.c.l.b16 %v3026
    %v3799 = vunpack.c.l.b16 %v3027
    %v3800 = vunpack.c.l.b16 %v3028
    %v3801 = vunpack.c.l.b16 %v3029
    %v3802 = vunpack.c.l.b16 %v3030
    %v3803 = vunpack.c.l.b16 %v3031
    %v3804 = vunpack.c.l.b16 %v3032
    %v3805 = vunpack.c.l.b16 %v3033
    %v3806 = vunpack.c.l.b16 %v3034
    %v3807 = vunpack.c.l.b16 %v3035
    %v3808 = vunpack.c.l.b16 %v3036
    %v3809 = vunpack.c.l.b16 %v3037
    %v3810 = vunpack.c.l.b16 %v3038
    %v3811 = vunpack.c.l.b16 %v3039
    %v3812 = vunpack.c.l.b16 %v3040
    %v3813 = vunpack.c.l.b16 %v3041
    %v3814 = vunpack.c.l.b16 %v3042
    %v3815 = vunpack.c.l.b16 %v3043
    %v3816 = vunpack.c.l.b16 %v3044
    %v3817 = vunpack.c.l.b16 %v3045
    %v3818 = vunpack.c.l.b16 %v3046
    %v3819 = vunpack.c.l.b16 %v3047
    %v3820 = vunpack.c.l.b16 %v3048
    %v3821 = vunpack.c.l.b16 %v3049
    %v3822 = vunpack.c.l.b16 %v3050
    %v3823 = vunpack.c.l.b16 %v3051
    %v3824 = vunpack.c.l.b16 %v3052
    %v3825 = vunpack.c.l.b16 %v3053
    %v3826 = vunpack.c.l.b16 %v3054
    %v3827 = vunpack.c.l.b16 %v3055
    %v3828 = vunpack.c.l.b16 %v3056
    %v3829 = vunpack.c.l.b16 %v3057
    %v3830 = vunpack.c.l.b16 %v3058
    %v3831 = vunpack.c.l.b16 %v3059
    %v3832 = vunpack.c.l.b16 %v3060
    %v3833 = vunpack.c.l.b16 %v3061
    %v3834 = vunpack.c.l.b16 %v3062
    %v3835 = vunpack.c.l.b16 %v3063
    %v3836 = vunpack.c.l.b16 %v3064
    %v3837 = vunpack.c.l.b16 %v3065
    %v3838 = vunpack.c.l.b16 %v3066
    %v3839 = vunpack.c.l.b16 %v3067
    %v3840 = vunpack.c.l.b16 %v3068
    %v3841 = vunpack.c.l.b16 %v3069
    %v3842 = vunpack.c.l.b16 %v3070
    %v3843 = vunpack.c.l.b16 %v3071
    %v3844 = vunpack.c.l.b16 %v3072
    %v3845 = vunpack.c.l.b16 %v3073
    %v3846 = vunpack.c.l.b16 %v3074
    %v3847 = vunpack.c.l.b16 %v3075
    %v3848 = vunpack.c.l.b16 %v3076
    %v3849 = vunpack.c.l.b16 %v3077
    %v3850 = vunpack.c.l.b16 %v3078
    %v3851 = vunpack.c.l.b16 %v3079
    %v3852 = vunpack.c.l.b16 %v3080
    %v3853 = vunpack.c.l.b16 %v3081
    %v3854 = vunpack.c.l.b16 %v3082
    %v3855 = vunpack.c.l.b16 %v3083
    %v3856 = vunpack.c.l.b16 %v3084
    %v3857 = vunpack.c.l.b16 %v3085
    %v3858 = vunpack.c.l.b16 %v3086
    %v3859 = vunpack.c.l.b16 %v3087
    %v3860 = vunpack.c.l.b16 %v3088
    %v3861 = vunpack.c.l.b16 %v3089
    %v3862 = vunpack.c.l.b16 %v3090
    %v3863 = vunpack.c.l.b16 %v3091
    %v3864 = vunpack.c.l.b16 %v3092
    %v3865 = vunpack.c.l.b16 %v3093
    %v3866 = vunpack.c.l.b16 %v3094
    %v3867 = vunpack.c.l.b16 %v3095
    %v3868 = vunpack.c.l.b16 %v3096
    %v3869 = vunpack.c.l.b16 %v3097
    %v3870 = vunpack.c.l.b16 %v3098
    %v3871 = vunpack.c.l.b16 %v3099
    %v3872 = vunpack.c.l.b16 %v3100
    %v3873 = vunpack.c.l.b16 %v3101
    %v3874 = vunpack.c.l.b16 %v3102
    %v3875 = vunpack.c.l.b16 %v3103
    %v3876 = vunpack.c.l.b16 %v3104
    %v3877 = vunpack.c.l.b16 %v3105
    %v3878 = vunpack.c.l.b16 %v3106
    %v3879 = vunpack.c.l.b16 %v3107
    %v3880 = vunpack.c.l.b16 %v3108
    %v3881 = vunpack.c.l.b16 %v3109
    %v3882 = vunpack.c.l.b16 %v3110
    %v3883 = vunpack.c.l.b16 %v3111
    %v3884 = vunpack.c.l.b16 %v3112
    %v3885 = vunpack.c.l.b16 %v3113
    %v3886 = vunpack.c.l.b16 %v3114
    %v3887 = vunpack.c.l.b16 %v3115
    %v3888 = vunpack.c.l.b16 %v3116
    %v3889 = vunpack.c.l.b16 %v3117
    %v3890 = vunpack.c.l.b16 %v3118
    %v3891 = vunpack.c.l.b16 %v3119
    %v3892 = vunpack.c.l.b16 %v3120
    %v3893 = vunpack.c.l.b16 %v3121
    %v3894 = vunpack.c.l.b16 %v3122
    %v3895 = vunpack.c.l.b16 %v3123
    %v3896 = vunpack.c.l.b16 %v3124
    %v3897 = vunpack.c.l.b16 %v3125
    %v3898 = vunpack.c.l.b16 %v3126
    %v3899 = vunpack.c.l.b16 %v3127
    %v3900 = vunpack.c.l.b16 %v3128
    %v3901 = vunpack.c.l.b16 %v3129
    %v3902 = vunpack.c.l.b16 %v3130
    %v3903 = vunpack.c.l.b16 %v3131
    %v3904 = vunpack.c.l.b16 %v3132
    %v3905 = vunpack.c.l.b16 %v3133
    %v3906 = vunpack.c.l.b16 %v3134
    %v3907 = vunpack.c.l.b16 %v3135
    %v3908 = vunpack.c.l.b16 %v3136
    %v3909 = vunpack.c.l.b16 %v3137
    %v3910 = vunpack.c.l.b16 %v3138
    %v3911 = vunpack.c.l.b16 %v3139
    %v3912 = vunpack.c.l.b16 %v3140
    %v3913 = vunpack.c.l.b16 %v3141
    %v3914 = vunpack.c.l.b16 %v3142
    %v3915 = vunpack.c.l.b16 %v3143
    %v3916 = vunpack.c.l.b16 %v3144
    %v3917 = vunpack.c.l.b16 %v3145
    %v3918 = vunpack.c.l.b16 %v3146
    %v3919 = vunpack.c.l.b16 %v3147
    %v3920 = vunpack.c.l.b16 %v3148
    %v3921 = vunpack.c.l.b16 %v3149
    %v3922 = vunpack.c.l.b16 %v3150
    %v3923 = vunpack.c.l.b16 %v3151
    %v3924 = vunpack.c.l.b16 %v3152
    %v3925 = vunpack.c.l.b16 %v3153
    %v3926 = vunpack.c.l.b16 %v3154
    %v3927 = vunpack.c.l.b16 %v3155
    %v3928 = vunpack.c.l.b16 %v3156
    %v3929 = vunpack.c.l.b16 %v3157
    %v3930 = vunpack.c.l.b16 %v3158
    %v3931 = vunpack.c.l.b16 %v3159
    %v3932 = vunpack.c.l.b16 %v3160
    %v3933 = vunpack.c.l.b16 %v3161
    %v3934 = vunpack.c.l.b16 %v3162
    %v3935 = vunpack.c.l.b16 %v3163
    %v3936 = vunpack.c.l.b16 %v3164
    %v3937 = vunpack.c.l.b16 %v3165
    %v3938 = vunpack.c.l.b16 %v3166
    %v3939 = vunpack.c.l.b16 %v3167
    %v3940 = vunpack.c.l.b16 %v3168
    %v3941 = vunpack.c.l.b16 %v3169
    %v3942 = vunpack.c.l.b16 %v3170
    %v3943 = vunpack.c.l.b16 %v3171
    %v3944 = vunpack.c.l.b16 %v3172
    %v3945 = vunpack.c.l.b16 %v3173
    %v3946 = vunpack.c.l.b16 %v3174
    %v3947 = vunpack.c.l.b16 %v3175
    %v3948 = vunpack.c.l.b16 %v3176
    %v3949 = vunpack.c.l.b16 %v3177
    %v3950 = vunpack.c.l.b16 %v3178
    %v3951 = vunpack.c.l.b16 %v3179
    %v3952 = vunpack.c.l.b16 %v3180
    %v3953 = vunpack.c.l.b16 %v3181
    %v3954 = vunpack.c.l.b16 %v3182
    %v3955 = vunpack.c.l.b16 %v3183
    %v3956 = vunpack.c.l.b16 %v3184
    %v3957 = vunpack.c.l.b16 %v3185
    %v3958 = vunpack.c.l.b16 %v3186
    %v3959 = vunpack.c.l.b16 %v3187
    %v3960 = vunpack.c.l.b16 %v3188
    %v3961 = vunpack.c.l.b16 %v3189
    %v3962 = vunpack.c.l.b16 %v3190
    %v3963 = vunpack.c.l.b16 %v3191
    %v3964 = vunpack.c.l.b16 %v3192
    %v3965 = vunpack.c.l.b16 %v3193
    %v3966 = vunpack.c.l.b16 %v3194
    %v3967 = vunpack.c.l.b16 %v3195
    %v3968 = vunpack.c.l.b16 %v3196
    %v3969 = vunpack.c.l.b16 %v3197
    %v3970 = vunpack.c.l.b16 %v3198
    %v3971 = vunpack.c.l.b16 %v3199
    %v3972 = vunpack.c.l.b16 %v3200
    %v3973 = vunpack.c.l.b16 %v3201
    %v3974 = vunpack.c.l.b16 %v3202
    %v3975 = vunpack.c.l.b16 %v3203
    %v3976 = vunpack.c.l.b16 %v3204
    %v3977 = vunpack.c.l.b16 %v3205
    %v3978 = vunpack.c.l.b16 %v3206
    %v3979 = vunpack.c.l.b16 %v3207
    %v3980 = vunpack.c.l.b16 %v3208
    %v3981 = vunpack.c.l.b16 %v3209
    %v3982 = vunpack.c.l.b16 %v3210
    %v3983 = vunpack.c.l.b16 %v3211
    %v3984 = vunpack.c.l.b16 %v3212
    %v3985 = vunpack.c.l.b16 %v3213
    %v3986 = vunpack.c.l.b16 %v3214
    %v3987 = vunpack.c.l.b16 %v3215
    %v3988 = vunpack.c.l.b16 %v3216
    %v3989 = vunpack.c.l.b16 %v3217
    %v3990 = vunpack.c.l.b16 %v3218
    %v3991 = vunpack.c.l.b16 %v3219
    %v3992 = vunpack.c.l.b16 %v3220
    %v3993 = vunpack.c.l.b16 %v3221
    %v3994 = vunpack.c.l.b16 %v3222
    %v3995 = vunpack.c.l.b16 %v3223
    %v3996 = vunpack.c.l.b16 %v3224
    %v3997 = vunpack.c.l.b16 %v3225
    %v3998 = vunpack.c.l.b16 %v3226
    %v3999 = vunpack.c.l.b16 %v3227
    %v4000 = vunpack.c.l.b16 %v3228
    %v4001 = vunpack.c.l.b16 %v3229
    %v4002 = vunpack.c.l.b16 %v3230
    %v4003 = vunpack.c.l.b16 %v3231
    %v4004 = vunpack.c.l.b16 %v3232
    %v4005 = vunpack.c.l.b16 %v3233
    %v4006 = vunpack.c.l.b16 %v3234
    %v4007 = vunpack.c.l.b16 %v3235
    %v4008 = vunpack.c.l.b16 %v3236
    %v4009 = vunpack.c.l.b16 %v3237
    %v4010 = vunpack.c.l.b16 %v3238
    %v4011 = vunpack.c.l.b16 %v3239
    %v4012 = vunpack.c.l.b16 %v3240
    %v4013 = vunpack.c.l.b16 %v3241
    %v4014 = vunpack.c.l.b16 %v3242
    %v4015 = vunpack.c.l.b16 %v3243
    %v4016 = vunpack.c.l.b16 %v3244
    %v4017 = vunpack.c.l.b16 %v3245
    %v4018 = vunpack.c.l.b16 %v3246
    %v4019 = vunpack.c.l.b16 %v3247
    %v4020 = vunpack.c.l.b16 %v3248
    %v4021 = vunpack.c.l.b16 %v3249
    %v4022 = vunpack.c.l.b16 %v3250
    %v4023 = vunpack.c.l.b16 %v3251
    %v4024 = vunpack.c.l.b16 %v3252
    %v4025 = vunpack.c.l.b16 %v3253
    %v4026 = vunpack.c.l.b16 %v3254
    %v4027 = vunpack.c.l.b16 %v3255
    %v4028 = vunpack.c.l.b16 %v3256
    %v4029 = vunpack.c.l.b16 %v3257
    %v4030 = vunpack.c.l.b16 %v3258
    %v4031 = vunpack.c.l.b16 %v3259
    %v4032 = vunpack.c.l.b16 %v3260
    %v4033 = vunpack.c.l.b16 %v3261
    %v4034 = vunpack.c.l.b16 %v3262
    %v4035 = vunpack.c.l.b16 %v3263
    %v4036 = vunpack.c.l.b16 %v3264
    %v4037 = vunpack.c.l.b16 %v3265
    %v4038 = vunpack.c.l.b16 %v3266
    %v4039 = vunpack.c.l.b16 %v3267
    %v4040 = vunpack.c.l.b16 %v3268
    %v4041 = vunpack.c.l.b16 %v3269
    %v4042 = vunpack.c.l.b16 %v3270
    %v4043 = vunpack.c.l.b16 %v3271
    %v4044 = vunpack.c.l.b16 %v3272
    %v4045 = vunpack.c.l.b16 %v3273
    %v4046 = vunpack.c.l.b16 %v3274
    %v4047 = vunpack.c.l.b16 %v3275
    %v4048 = vunpack.c.l.b16 %v3276
    %v4049 = vunpack.c.l.b16 %v3277
    %v4050 = vunpack.c.l.b16 %v3278
    %v4051 = vunpack.c.l.b16 %v3279
    %v4052 = vunpack.c.l.b16 %v3280
    %v4053 = vunpack.c.l.b16 %v3281
    %v4054 = vunpack.c.l.b16 %v3282
    %v4055 = vpack.c.b16 %v3672, %v3671
    %v4056 = vpack.c.b16 %v3674, %v3673
    %v4057 = vpack.c.b16 %v3676, %v3675
    %v4058 = vpack.c.b16 %v3678, %v3677
    %v4059 = vpack.c.b16 %v3680, %v3679
    %v4060 = vpack.c.b16 %v3682, %v3681
    %v4061 = vpack.c.b16 %v3684, %v3683
    %v4062 = vpack.c.b16 %v3686, %v3685
    %v4063 = vpack.c.b16 %v3688, %v3687
    %v4064 = vpack.c.b16 %v3690, %v3689
    %v4065 = vpack.c.b16 %v3692, %v3691
    %v4066 = vpack.c.b16 %v3694, %v3693
    %v4067 = vpack.c.b16 %v3696, %v3695
    %v4068 = vpack.c.b16 %v3698, %v3697
    %v4069 = vpack.c.b16 %v3700, %v3699
    %v4070 = vpack.c.b16 %v3702, %v3701
    %v4071 = vpack.c.b16 %v3704, %v3703
    %v4072 = vpack.c.b16 %v3706, %v3705
    %v4073 = vpack.c.b16 %v3708, %v3707
    %v4074 = vpack.c.b16 %v3710, %v3709
    %v4075 = vpack.c.b16 %v3712, %v3711
    %v4076 = vpack.c.b16 %v3714, %v3713
    %v4077 = vpack.c.b16 %v3716, %v3715
    %v4078 = vpack.c.b16 %v3718, %v3717
    %v4079 = vpack.c.b16 %v3720, %v3719
    %v4080 = vpack.c.b16 %v3722, %v3721
    %v4081 = vpack.c.b16 %v3724, %v3723
    %v4082 = vpack.c.b16 %v3726, %v3725
    %v4083 = vpack.c.b16 %v3728, %v3727
    %v4084 = vpack.c.b16 %v3730, %v3729
    %v4085 = vpack.c.b16 %v3732, %v3731
    %v4086 = vpack.c.b16 %v3734, %v3733
    %v4087 = vpack.c.b16 %v3736, %v3735
    %v4088 = vpack.c.b16 %v3738, %v3737
    %v4089 = vpack.c.b16 %v3740, %v3739
    %v4090 = vpack.c.b16 %v3742, %v3741
    %v4091 = vpack.c.b16 %v3744, %v3743
    %v4092 = vpack.c.b16 %v3746, %v3745
    %v4093 = vpack.c.b16 %v3748, %v3747
    %v4094 = vpack.c.b16 %v3750, %v3749
    %v4095 = vpack.c.b16 %v3752, %v3751
    %v4096 = vpack.c.b16 %v3754, %v3753
    %v4097 = vpack.c.b16 %v3756, %v3755
    %v4098 = vpack.c.b16 %v3758, %v3757
    %v4099 = vpack.c.b16 %v3760, %v3759
    %v4100 = vpack.c.b16 %v3762, %v3761
    %v4101 = vpack.c.b16 %v3764, %v3763
    %v4102 = vpack.c.b16 %v3766, %v3765
    %v4103 = vpack.c.b16 %v3768, %v3767
    %v4104 = vpack.c.b16 %v3770, %v3769
    %v4105 = vpack.c.b16 %v3772, %v3771
    %v4106 = vpack.c.b16 %v3774, %v3773
    %v4107 = vpack.c.b16 %v3776, %v3775
    %v4108 = vpack.c.b16 %v3778, %v3777
    %v4109 = vpack.c.b16 %v3780, %v3779
    %v4110 = vpack.c.b16 %v3782, %v3781
    %v4111 = vpack.c.b16 %v3784, %v3783
    %v4112 = vpack.c.b16 %v3786, %v3785
    %v4113 = vpack.c.b16 %v3788, %v3787
    %v4114 = vpack.c.b16 %v3790, %v3789
    %v4115 = vpack.c.b16 %v3792, %v3791
    %v4116 = vpack.c.b16 %v3794, %v3793
    %v4117 = vpack.c.b16 %v3796, %v3795
    %v4118 = vpack.c.b16 %v3798, %v3797
    %v4119 = vpack.c.b16 %v3800, %v3799
    %v4120 = vpack.c.b16 %v3802, %v3801
    %v4121 = vpack.c.b16 %v3804, %v3803
    %v4122 = vpack.c.b16 %v3806, %v3805
    %v4123 = vpack.c.b16 %v3808, %v3807
    %v4124 = vpack.c.b16 %v3810, %v3809
    %v4125 = vpack.c.b16 %v3812, %v3811
    %v4126 = vpack.c.b16 %v3814, %v3813
    %v4127 = vpack.c.b16 %v3816, %v3815
    %v4128 = vpack.c.b16 %v3818, %v3817
    %v4129 = vpack.c.b16 %v3820, %v3819
    %v4130 = vpack.c.b16 %v3822, %v3821
    %v4131 = vpack.c.b16 %v3824, %v3823
    %v4132 = vpack.c.b16 %v3826, %v3825
    %v4133 = vpack.c.b16 %v3828, %v3827
    %v4134 = vpack.c.b16 %v3830, %v3829
    %v4135 = vpack.c.b16 %v3832, %v3831
    %v4136 = vpack.c.b16 %v3834, %v3833
    %v4137 = vpack.c.b16 %v3836, %v3835
    %v4138 = vpack.c.b16 %v3838, %v3837
    %v4139 = vpack.c.b16 %v3840, %v3839
    %v4140 = vpack.c.b16 %v3842, %v3841
    %v4141 = vpack.c.b16 %v3844, %v3843
    %v4142 = vpack.c.b16 %v3846, %v3845
    %v4143 = vpack.c.b16 %v3848, %v3847
    %v4144 = vpack.c.b16 %v3850, %v3849
    %v4145 = vpack.c.b16 %v3852, %v3851
    %v4146 = vpack.c.b16 %v3854, %v3853
    %v4147 = vpack.c.b16 %v3856, %v3855
    %v4148 = vpack.c.b16 %v3858, %v3857
    %v4149 = vpack.c.b16 %v3860, %v3859
    %v4150 = vpack.c.b16 %v3862, %v3861
    %v4151 = vpack.c.b16 %v3864, %v3863
    %v4152 = vpack.c.b16 %v3866, %v3865
    %v4153 = vpack.c.b16 %v3868, %v3867
    %v4154 = vpack.c.b16 %v3870, %v3869
    %v4155 = vpack.c.b16 %v3872, %v3871
    %v4156 = vpack.c.b16 %v3874, %v3873
    %v4157 = vpack.c.b16 %v3876, %v3875
    %v4158 = vpack.c.b16 %v3878, %v3877
    %v4159 = vpack.c.b16 %v3880, %v3879
    %v4160 = vpack.c.b16 %v3882, %v3881
    %v4161 = vpack.c.b16 %v3884, %v3883
    %v4162 = vpack.c.b16 %v3886, %v3885
    %v4163 = vpack.c.b16 %v3888, %v3887
    %v4164 = vpack.c.b16 %v3890, %v3889
    %v4165 = vpack.c.b16 %v3892, %v3891
    %v4166 = vpack.c.b16 %v3894, %v3893
    %v4167 = vpack.c.b16 %v3896, %v3895
    %v4168 = vpack.c.b16 %v3898, %v3897
    %v4169 = vpack.c.b16 %v3900, %v3899
    %v4170 = vpack.c.b16 %v3902, %v3901
    %v4171 = vpack.c.b16 %v3904, %v3903
    %v4172 = vpack.c.b16 %v3906, %v3905
    %v4173 = vpack.c.b16 %v3908, %v3907
    %v4174 = vpack.c.b16 %v3910, %v3909
    %v4175 = vpack.c.b16 %v3912, %v3911
    %v4176 = vpack.c.b16 %v3914, %v3913
    %v4177 = vpack.c.b16 %v3916, %v3915
    %v4178 = vpack.c.b16 %v3918, %v3917
    %v4179 = vpack.c.b16 %v3920, %v3919
    %v4180 = vpack.c.b16 %v3922, %v3921
    %v4181 = vpack.c.b16 %v3924, %v3923
    %v4182 = vpack.c.b16 %v3926, %v3925
    %v4183 = vpack.c.b16 %v3928, %v3927
    %v4184 = vpack.c.b16 %v3930, %v3929
    %v4185 = vpack.c.b16 %v3932, %v3931
    %v4186 = vpack.c.b16 %v3934, %v3933
    %v4187 = vpack.c.b16 %v3936, %v3935
    %v4188 = vpack.c.b16 %v3938, %v3937
    %v4189 = vpack.c.b16 %v3940, %v3939
    %v4190 = vpack.c.b16 %v3942, %v3941
    %v4191 = vpack.c.b16 %v3944, %v3943
    %v4192 = vpack.c.b16 %v3946, %v3945
    %v4193 = vpack.c.b16 %v3948, %v3947
    %v4194 = vpack.c.b16 %v3950, %v3949
    %v4195 = vpack.c.b16 %v3952, %v3951
    %v4196 = vpack.c.b16 %v3954, %v3953
    %v4197 = vpack.c.b16 %v3956, %v3955
    %v4198 = vpack.c.b16 %v3958, %v3957
    %v4199 = vpack.c.b16 %v3960, %v3959
    %v4200 = vpack.c.b16 %v3962, %v3961
    %v4201 = vpack.c.b16 %v3964, %v3963
    %v4202 = vpack.c.b16 %v3966, %v3965
    %v4203 = vpack.c.b16 %v3968, %v3967
    %v4204 = vpack.c.b16 %v3970, %v3969
    %v4205 = vpack.c.b16 %v3972, %v3971
    %v4206 = vpack.c.b16 %v3974, %v3973
    %v4207 = vpack.c.b16 %v3976, %v3975
    %v4208 = vpack.c.b16 %v3978, %v3977
    %v4209 = vpack.c.b16 %v3980, %v3979
    %v4210 = vpack.c.b16 %v3982, %v3981
    %v4211 = vpack.c.b16 %v3984, %v3983
    %v4212 = vpack.c.b16 %v3986, %v3985
    %v4213 = vpack.c.b16 %v3988, %v3987
    %v4214 = vpack.c.b16 %v3990, %v3989
    %v4215 = vpack.c.b16 %v3992, %v3991
    %v4216 = vpack.c.b16 %v3994, %v3993
    %v4217 = vpack.c.b16 %v3996, %v3995
    %v4218 = vpack.c.b16 %v3998, %v3997
    %v4219 = vpack.c.b16 %v4000, %v3999
    %v4220 = vpack.c.b16 %v4002, %v4001
    %v4221 = vpack.c.b16 %v4004, %v4003
    %v4222 = vpack.c.b16 %v4006, %v4005
    %v4223 = vpack.c.b16 %v4008, %v4007
    %v4224 = vpack.c.b16 %v4010, %v4009
    %v4225 = vpack.c.b16 %v4012, %v4011
    %v4226 = vpack.c.b16 %v4014, %v4013
    %v4227 = vpack.c.b16 %v4016, %v4015
    %v4228 = vpack.c.b16 %v4018, %v4017
    %v4229 = vpack.c.b16 %v4020, %v4019
    %v4230 = vpack.c.b16 %v4022, %v4021
    %v4231 = vpack.c.b16 %v4024, %v4023
    %v4232 = vpack.c.b16 %v4026, %v4025
    %v4233 = vpack.c.b16 %v4028, %v4027
    %v4234 = vpack.c.b16 %v4030, %v4029
    %v4235 = vpack.c.b16 %v4032, %v4031
    %v4236 = vpack.c.b16 %v4034, %v4033
    %v4237 = vpack.c.b16 %v4036, %v4035
    %v4238 = vpack.c.b16 %v4038, %v4037
    %v4239 = vpack.c.b16 %v4040, %v4039
    %v4240 = vpack.c.b16 %v4042, %v4041
    %v4241 = vpack.c.b16 %v4044, %v4043
    %v4242 = vpack.c.b16 %v4046, %v4045
    %v4243 = vpack.c.b16 %v4048, %v4047
    %v4244 = vpack.c.b16 %v4050, %v4049
    %v4245 = vpack.c.b16 %v4052, %v4051
    %v4246 = vpack.c.b16 %v4054, %v4053
    %4439 = vmatpush.bf16.msra.mxu0 %v4062
    %4440 = vmatpush.bf16.msra.mxu0 %v4061
    %4441 = vmatpush.bf16.msra.mxu0 %v4060
    %4442 = vmatpush.bf16.msra.mxu0 %v4059
    %4443 = vmatpush.bf16.msra.mxu0 %v4058
    %4444 = vmatpush.bf16.msra.mxu0 %v4057
    %4445 = vmatpush.bf16.msra.mxu0 %v4056
    %4446 = vmatpush.bf16.msra.mxu0 %v4055
    %4447 = vmatmul.bf16.gmra.mxu0 %v2875
    %v4448 = vpop.f32.mrf.mxu0
    %v4449 = vadd.f32 %v3285, %v4448
    %v4450 = vpop.f32.mrf.mxu0
    %4451 = vdwg.mxu0
    %4452 = vmatpush.bf16.msra.mxu0 %v4070
    %4453 = vmatpush.bf16.msra.mxu0 %v4069
    %4454 = vmatpush.bf16.msra.mxu0 %v4068
    %4455 = vmatpush.bf16.msra.mxu0 %v4067
    %4456 = vmatpush.bf16.msra.mxu0 %v4066
    %4457 = vmatpush.bf16.msra.mxu0 %v4065
    %4458 = vmatpush.bf16.msra.mxu0 %v4064
    %4459 = vmatpush.bf16.msra.mxu0 %v4063
    %4460 = vmatmul.bf16.gmra.mxu0 %v2876
    %v4461 = vpop.f32.mrf.mxu0
    %v4462 = vadd.f32 %v4449, %v4461
    %v4463 = vpop.f32.mrf.mxu0
    %4464 = vdwg.mxu0
    %4465 = vmatpush.bf16.msra.mxu0 %v4078
    %4466 = vmatpush.bf16.msra.mxu0 %v4077
    %4467 = vmatpush.bf16.msra.mxu0 %v4076
    %4468 = vmatpush.bf16.msra.mxu0 %v4075
    %4469 = vmatpush.bf16.msra.mxu0 %v4074
    %4470 = vmatpush.bf16.msra.mxu0 %v4073
    %4471 = vmatpush.bf16.msra.mxu0 %v4072
    %4472 = vmatpush.bf16.msra.mxu0 %v4071
    %4473 = vmatmul.bf16.gmra.mxu0 %v2877
    %v4474 = vpop.f32.mrf.mxu0
    %v4475 = vadd.f32 %v4462, %v4474
    %v4476 = vpop.f32.mrf.mxu0
    %4477 = vdwg.mxu0
    %4478 = vmatpush.bf16.msra.mxu0 %v4086
    %4479 = vmatpush.bf16.msra.mxu0 %v4085
    %4480 = vmatpush.bf16.msra.mxu0 %v4084
    %4481 = vmatpush.bf16.msra.mxu0 %v4083
    %4482 = vmatpush.bf16.msra.mxu0 %v4082
    %4483 = vmatpush.bf16.msra.mxu0 %v4081
    %4484 = vmatpush.bf16.msra.mxu0 %v4080
    %4485 = vmatpush.bf16.msra.mxu0 %v4079
    %4486 = vmatmul.bf16.gmra.mxu0 %v2878
    %v4487 = vpop.f32.mrf.mxu0
    %v4488 = vadd.f32 %v4475, %v4487
    %v4489 = vpop.f32.mrf.mxu0
    %4490 = vdwg.mxu0
    %4491 = vmatpush.bf16.msra.mxu0 %v4094
    %4492 = vmatpush.bf16.msra.mxu0 %v4093
    %4493 = vmatpush.bf16.msra.mxu0 %v4092
    %4494 = vmatpush.bf16.msra.mxu0 %v4091
    %4495 = vmatpush.bf16.msra.mxu0 %v4090
    %4496 = vmatpush.bf16.msra.mxu0 %v4089
    %4497 = vmatpush.bf16.msra.mxu0 %v4088
    %4498 = vmatpush.bf16.msra.mxu0 %v4087
    %4499 = vmatmul.bf16.gmra.mxu0 %v2879
    %v4500 = vpop.f32.mrf.mxu0
    %v4501 = vadd.f32 %v4488, %v4500
    %v4502 = vpop.f32.mrf.mxu0
    %4503 = vdwg.mxu0
    %4504 = vmatpush.bf16.msra.mxu0 %v4102
    %4505 = vmatpush.bf16.msra.mxu0 %v4101
    %4506 = vmatpush.bf16.msra.mxu0 %v4100
    %4507 = vmatpush.bf16.msra.mxu0 %v4099
    %4508 = vmatpush.bf16.msra.mxu0 %v4098
    %4509 = vmatpush.bf16.msra.mxu0 %v4097
    %4510 = vmatpush.bf16.msra.mxu0 %v4096
    %4511 = vmatpush.bf16.msra.mxu0 %v4095
    %4512 = vmatmul.bf16.gmra.mxu0 %v2880
    %v4513 = vpop.f32.mrf.mxu0
    %v4514 = vadd.f32 %v4501, %v4513
    %v4515 = vpop.f32.mrf.mxu0
    %4516 = vdwg.mxu0
    %4517 = vmatpush.bf16.msra.mxu0 %v4110
    %4518 = vmatpush.bf16.msra.mxu0 %v4109
    %4519 = vmatpush.bf16.msra.mxu0 %v4108
    %4520 = vmatpush.bf16.msra.mxu0 %v4107
    %4521 = vmatpush.bf16.msra.mxu0 %v4106
    %4522 = vmatpush.bf16.msra.mxu0 %v4105
    %4523 = vmatpush.bf16.msra.mxu0 %v4104
    %4524 = vmatpush.bf16.msra.mxu0 %v4103
    %4525 = vmatmul.bf16.gmra.mxu0 %v2881
    %v4526 = vpop.f32.mrf.mxu0
    %v4527 = vadd.f32 %v4514, %v4526
    %v4528 = vpop.f32.mrf.mxu0
    %4529 = vdwg.mxu0
    %4530 = vmatpush.bf16.msra.mxu0 %v4118
    %4531 = vmatpush.bf16.msra.mxu0 %v4117
    %4532 = vmatpush.bf16.msra.mxu0 %v4116
    %4533 = vmatpush.bf16.msra.mxu0 %v4115
    %4534 = vmatpush.bf16.msra.mxu0 %v4114
    %4535 = vmatpush.bf16.msra.mxu0 %v4113
    %4536 = vmatpush.bf16.msra.mxu0 %v4112
    %4537 = vmatpush.bf16.msra.mxu0 %v4111
    %4538 = vmatmul.bf16.gmra.mxu0 %v2882
    %v4539 = vpop.f32.mrf.mxu0
    %v4540 = vadd.f32 %v4527, %v4539
    %v4541 = vpop.f32.mrf.mxu0
    %4542 = vdwg.mxu0
    %4543 = vmatpush.bf16.msra.mxu0 %v4126
    %4544 = vmatpush.bf16.msra.mxu0 %v4125
    %4545 = vmatpush.bf16.msra.mxu0 %v4124
    %4546 = vmatpush.bf16.msra.mxu0 %v4123
    %4547 = vmatpush.bf16.msra.mxu0 %v4122
    %4548 = vmatpush.bf16.msra.mxu0 %v4121
    %4549 = vmatpush.bf16.msra.mxu0 %v4120
    %4550 = vmatpush.bf16.msra.mxu0 %v4119
    %4551 = vmatmul.bf16.gmra.mxu0 %v2883
    %v4552 = vpop.f32.mrf.mxu0
    %v4553 = vadd.f32 %v4540, %v4552
    %v4554 = vpop.f32.mrf.mxu0
    %4555 = vdwg.mxu0
    %4556 = vmatpush.bf16.msra.mxu0 %v4134
    %4557 = vmatpush.bf16.msra.mxu0 %v4133
    %4558 = vmatpush.bf16.msra.mxu0 %v4132
    %4559 = vmatpush.bf16.msra.mxu0 %v4131
    %4560 = vmatpush.bf16.msra.mxu0 %v4130
    %4561 = vmatpush.bf16.msra.mxu0 %v4129
    %4562 = vmatpush.bf16.msra.mxu0 %v4128
    %4563 = vmatpush.bf16.msra.mxu0 %v4127
    %4564 = vmatmul.bf16.gmra.mxu0 %v2884
    %v4565 = vpop.f32.mrf.mxu0
    %v4566 = vadd.f32 %v4553, %v4565
    %v4567 = vpop.f32.mrf.mxu0
    %4568 = vdwg.mxu0
    %4569 = vmatpush.bf16.msra.mxu0 %v4142
    %4570 = vmatpush.bf16.msra.mxu0 %v4141
    %4571 = vmatpush.bf16.msra.mxu0 %v4140
    %4572 = vmatpush.bf16.msra.mxu0 %v4139
    %4573 = vmatpush.bf16.msra.mxu0 %v4138
    %4574 = vmatpush.bf16.msra.mxu0 %v4137
    %4575 = vmatpush.bf16.msra.mxu0 %v4136
    %4576 = vmatpush.bf16.msra.mxu0 %v4135
    %4577 = vmatmul.bf16.gmra.mxu0 %v2885
    %v4578 = vpop.f32.mrf.mxu0
    %v4579 = vadd.f32 %v4566, %v4578
    %v4580 = vpop.f32.mrf.mxu0
    %4581 = vdwg.mxu0
    %4582 = vmatpush.bf16.msra.mxu0 %v4150
    %4583 = vmatpush.bf16.msra.mxu0 %v4149
    %4584 = vmatpush.bf16.msra.mxu0 %v4148
    %4585 = vmatpush.bf16.msra.mxu0 %v4147
    %4586 = vmatpush.bf16.msra.mxu0 %v4146
    %4587 = vmatpush.bf16.msra.mxu0 %v4145
    %4588 = vmatpush.bf16.msra.mxu0 %v4144
    %4589 = vmatpush.bf16.msra.mxu0 %v4143
    %4590 = vmatmul.bf16.gmra.mxu0 %v2886
    %v4591 = vpop.f32.mrf.mxu0
    %v4592 = vadd.f32 %v4579, %v4591
    %v4593 = vpop.f32.mrf.mxu0
    %4594 = vdwg.mxu0
    %4595 = vmatpush.bf16.msra.mxu0 %v4158
    %4596 = vmatpush.bf16.msra.mxu0 %v4157
    %4597 = vmatpush.bf16.msra.mxu0 %v4156
    %4598 = vmatpush.bf16.msra.mxu0 %v4155
    %4599 = vmatpush.bf16.msra.mxu0 %v4154
    %4600 = vmatpush.bf16.msra.mxu0 %v4153
    %4601 = vmatpush.bf16.msra.mxu0 %v4152
    %4602 = vmatpush.bf16.msra.mxu0 %v4151
    %4603 = vmatmul.bf16.gmra.mxu0 %v2887
    %v4604 = vpop.f32.mrf.mxu0
    %v4605 = vadd.f32 %v4592, %v4604
    %v4606 = vpop.f32.mrf.mxu0
    %4607 = vdwg.mxu0
    %4608 = vmatpush.bf16.msra.mxu0 %v4166
    %4609 = vmatpush.bf16.msra.mxu0 %v4165
    %4610 = vmatpush.bf16.msra.mxu0 %v4164
    %4611 = vmatpush.bf16.msra.mxu0 %v4163
    %4612 = vmatpush.bf16.msra.mxu0 %v4162
    %4613 = vmatpush.bf16.msra.mxu0 %v4161
    %4614 = vmatpush.bf16.msra.mxu0 %v4160
    %4615 = vmatpush.bf16.msra.mxu0 %v4159
    %4616 = vmatmul.bf16.gmra.mxu0 %v2888
    %v4617 = vpop.f32.mrf.mxu0
    %v4618 = vadd.f32 %v4605, %v4617
    %v4619 = vpop.f32.mrf.mxu0
    %4620 = vdwg.mxu0
    %4621 = vmatpush.bf16.msra.mxu0 %v4174
    %4622 = vmatpush.bf16.msra.mxu0 %v4173
    %4623 = vmatpush.bf16.msra.mxu0 %v4172
    %4624 = vmatpush.bf16.msra.mxu0 %v4171
    %4625 = vmatpush.bf16.msra.mxu0 %v4170
    %4626 = vmatpush.bf16.msra.mxu0 %v4169
    %4627 = vmatpush.bf16.msra.mxu0 %v4168
    %4628 = vmatpush.bf16.msra.mxu0 %v4167
    %4629 = vmatmul.bf16.gmra.mxu0 %v2889
    %v4630 = vpop.f32.mrf.mxu0
    %v4631 = vadd.f32 %v4618, %v4630
    %v4632 = vpop.f32.mrf.mxu0
    %4633 = vdwg.mxu0
    %4634 = vmatpush.bf16.msra.mxu0 %v4182
    %4635 = vmatpush.bf16.msra.mxu0 %v4181
    %4636 = vmatpush.bf16.msra.mxu0 %v4180
    %4637 = vmatpush.bf16.msra.mxu0 %v4179
    %4638 = vmatpush.bf16.msra.mxu0 %v4178
    %4639 = vmatpush.bf16.msra.mxu0 %v4177
    %4640 = vmatpush.bf16.msra.mxu0 %v4176
    %4641 = vmatpush.bf16.msra.mxu0 %v4175
    %4642 = vmatmul.bf16.gmra.mxu0 %v2890
    %v4643 = vpop.f32.mrf.mxu0
    %v4644 = vadd.f32 %v4631, %v4643
    %v4645 = vpop.f32.mrf.mxu0
    %4646 = vdwg.mxu0
    %4647 = vmatpush.bf16.msra.mxu0 %v4190
    %4648 = vmatpush.bf16.msra.mxu0 %v4189
    %4649 = vmatpush.bf16.msra.mxu0 %v4188
    %4650 = vmatpush.bf16.msra.mxu0 %v4187
    %4651 = vmatpush.bf16.msra.mxu0 %v4186
    %4652 = vmatpush.bf16.msra.mxu0 %v4185
    %4653 = vmatpush.bf16.msra.mxu0 %v4184
    %4654 = vmatpush.bf16.msra.mxu0 %v4183
    %4655 = vmatmul.bf16.gmra.mxu0 %v2891
    %v4656 = vpop.f32.mrf.mxu0
    %v4657 = vadd.f32 %v4644, %v4656
    %v4658 = vpop.f32.mrf.mxu0
    %4659 = vdwg.mxu0
    %4660 = vmatpush.bf16.msra.mxu0 %v4198
    %4661 = vmatpush.bf16.msra.mxu0 %v4197
    %4662 = vmatpush.bf16.msra.mxu0 %v4196
    %4663 = vmatpush.bf16.msra.mxu0 %v4195
    %4664 = vmatpush.bf16.msra.mxu0 %v4194
    %4665 = vmatpush.bf16.msra.mxu0 %v4193
    %4666 = vmatpush.bf16.msra.mxu0 %v4192
    %4667 = vmatpush.bf16.msra.mxu0 %v4191
    %4668 = vmatmul.bf16.gmra.mxu0 %v2892
    %v4669 = vpop.f32.mrf.mxu0
    %v4670 = vadd.f32 %v4657, %v4669
    %v4671 = vpop.f32.mrf.mxu0
    %4672 = vdwg.mxu0
    %4673 = vmatpush.bf16.msra.mxu0 %v4206
    %4674 = vmatpush.bf16.msra.mxu0 %v4205
    %4675 = vmatpush.bf16.msra.mxu0 %v4204
    %4676 = vmatpush.bf16.msra.mxu0 %v4203
    %4677 = vmatpush.bf16.msra.mxu0 %v4202
    %4678 = vmatpush.bf16.msra.mxu0 %v4201
    %4679 = vmatpush.bf16.msra.mxu0 %v4200
    %4680 = vmatpush.bf16.msra.mxu0 %v4199
    %4681 = vmatmul.bf16.gmra.mxu0 %v2893
    %v4682 = vpop.f32.mrf.mxu0
    %v4683 = vadd.f32 %v4670, %v4682
    %v4684 = vpop.f32.mrf.mxu0
    %4685 = vdwg.mxu0
    %4686 = vmatpush.bf16.msra.mxu0 %v4214
    %4687 = vmatpush.bf16.msra.mxu0 %v4213
    %4688 = vmatpush.bf16.msra.mxu0 %v4212
    %4689 = vmatpush.bf16.msra.mxu0 %v4211
    %4690 = vmatpush.bf16.msra.mxu0 %v4210
    %4691 = vmatpush.bf16.msra.mxu0 %v4209
    %4692 = vmatpush.bf16.msra.mxu0 %v4208
    %4693 = vmatpush.bf16.msra.mxu0 %v4207
    %4694 = vmatmul.bf16.gmra.mxu0 %v2894
    %v4695 = vpop.f32.mrf.mxu0
    %v4696 = vadd.f32 %v4683, %v4695
    %v4697 = vpop.f32.mrf.mxu0
    %4698 = vdwg.mxu0
    %4699 = vmatpush.bf16.msra.mxu0 %v4222
    %4700 = vmatpush.bf16.msra.mxu0 %v4221
    %4701 = vmatpush.bf16.msra.mxu0 %v4220
    %4702 = vmatpush.bf16.msra.mxu0 %v4219
    %4703 = vmatpush.bf16.msra.mxu0 %v4218
    %4704 = vmatpush.bf16.msra.mxu0 %v4217
    %4705 = vmatpush.bf16.msra.mxu0 %v4216
    %4706 = vmatpush.bf16.msra.mxu0 %v4215
    %4707 = vmatmul.bf16.gmra.mxu0 %v2895
    %v4708 = vpop.f32.mrf.mxu0
    %v4709 = vadd.f32 %v4696, %v4708
    %v4710 = vpop.f32.mrf.mxu0
    %4711 = vdwg.mxu0
    %4712 = vmatpush.bf16.msra.mxu0 %v4230
    %4713 = vmatpush.bf16.msra.mxu0 %v4229
    %4714 = vmatpush.bf16.msra.mxu0 %v4228
    %4715 = vmatpush.bf16.msra.mxu0 %v4227
    %4716 = vmatpush.bf16.msra.mxu0 %v4226
    %4717 = vmatpush.bf16.msra.mxu0 %v4225
    %4718 = vmatpush.bf16.msra.mxu0 %v4224
    %4719 = vmatpush.bf16.msra.mxu0 %v4223
    %4720 = vmatmul.bf16.gmra.mxu0 %v2896
    %v4721 = vpop.f32.mrf.mxu0
    %v4722 = vadd.f32 %v4709, %v4721
    %v4723 = vpop.f32.mrf.mxu0
    %4724 = vdwg.mxu0
    %4725 = vmatpush.bf16.msra.mxu0 %v4238
    %4726 = vmatpush.bf16.msra.mxu0 %v4237
    %4727 = vmatpush.bf16.msra.mxu0 %v4236
    %4728 = vmatpush.bf16.msra.mxu0 %v4235
    %4729 = vmatpush.bf16.msra.mxu0 %v4234
    %4730 = vmatpush.bf16.msra.mxu0 %v4233
    %4731 = vmatpush.bf16.msra.mxu0 %v4232
    %4732 = vmatpush.bf16.msra.mxu0 %v4231
    %4733 = vmatmul.bf16.gmra.mxu0 %v2897
    %v4734 = vpop.f32.mrf.mxu0
    %v4735 = vadd.f32 %v4722, %v4734
    %v4736 = vpop.f32.mrf.mxu0
    %4737 = vdwg.mxu0
    %4738 = vmatpush.bf16.msra.mxu0 %v4246
    %4739 = vmatpush.bf16.msra.mxu0 %v4245
    %4740 = vmatpush.bf16.msra.mxu0 %v4244
    %4741 = vmatpush.bf16.msra.mxu0 %v4243
    %4742 = vmatpush.bf16.msra.mxu0 %v4242
    %4743 = vmatpush.bf16.msra.mxu0 %v4241
    %4744 = vmatpush.bf16.msra.mxu0 %v4240
    %4745 = vmatpush.bf16.msra.mxu0 %v4239
    %4746 = vmatmul.bf16.gmra.mxu0 %v2898
    %v4747 = vpop.f32.mrf.mxu0
    %v4748 = vadd.f32 %v4735, %v4747
    %v4749 = vpop.f32.mrf.mxu0
    %4750 = vdwg.mxu0
    %4751 = vst [vmem:[#allocation14] sm:$0xff] %v4748
    // Predicated region
    $region62: #{tpu_custom_call.1} parent=1 // pred_check
      _
    $region63: #{tpu_custom_call.1} parent=1 // pred_check_branch
      %4753 = sbr.rel (0) target = $region65
    $region64: #{tpu_custom_call.1} parent=1 // pred_region
      %4755 = vsyncadd [#allocation4], 0
      %s4757 = sshll.u32 [#allocation14], 4
      %s4758 = int_to_ptr.vmem [resolvable:$true] %s4757
      %s4759 = sshll.u32 %s8, 4
      %s4760 = int_to_ptr.hbm [resolvable:$true] %s4759
      %4762 = dma.vmem_to_hbm [thread:$0]  %s4758, 128, %s4760, [#allocation4]
    $region65: #{tpu_custom_call.1} parent=1 // pred_fallthru
      _
    // Predicated region
    $region66: #{tpu_custom_call.1} parent=1 // pred_check
      _
    $region67: #{tpu_custom_call.1} parent=1 // pred_check_branch
      %4764 = sbr.rel (0) target = $region69
    $region68: #{tpu_custom_call.1} parent=1 // pred_region
      %4766 = dma.done [#allocation4], 128
    $region69: #{tpu_custom_call.1} parent=1 // pred_fallthru
      _
    %4767 = vsyncpa [#allocation3], 1
    %4768 = vsyncpa [#allocation6], 1
    %4769 = vsyncpa [#allocation9], 1
    %4770 = vsyncpa [#allocation12], 1
    %4771 = vsyncpa [#allocation4], 1

</llo_original>
